<compile_context>
chip_gen: v6e
topology: v6e:2x2x1
jax: 0.10.0
libtpu: 0.0.40
codegen_flags: <defaults>
</compile_context>

<pallas_src>
import functools

import jax
import jax.numpy as jnp
import numpy as np
from jax import lax
from jax.experimental import pallas as pl
from jax.experimental.pallas import tpu as pltpu


def _round_up(a, b):
    return ((a + b - 1) // b) * b


@functools.lru_cache(maxsize=None)
def _vmem_limit_bytes():
    """~3/4 of physical VMEM: ~48 MiB on v7x, ~96 MiB on v5e/v6e."""
    cap = 128 * 1024 * 1024
    try:
        cap = int(pltpu.get_tpu_info().vmem_capacity_bytes)
    except Exception:
        pass
    return max(32 * 1024 * 1024, int(cap * 3 // 4))


# ----------------------------------------------------------------------------
# Tiled dense kernels (PyTorch nn.Linear semantics: y = x @ W.T + b)
# ----------------------------------------------------------------------------
def _linear_bias_kernel(x_ref, w_ref, b_ref, o_ref):
    x = x_ref[...].astype(jnp.bfloat16)          # cast in-kernel (rides the DMA)
    o_ref[...] = (jnp.dot(x, w_ref[...], preferred_element_type=jnp.float32)
                  + b_ref[...])


def _linear_nobias_kernel(x_ref, w_ref, o_ref):
    x = x_ref[...].astype(jnp.bfloat16)
    o_ref[...] = jnp.dot(x, w_ref[...], preferred_element_type=jnp.float32)


def pallas_linear(x, w_t, bias=None, *, tile_m=512):
    """x: (..., K) float; w_t: (K, N) bf16 (pre-transposed); bias: (N,) or None."""
    *lead, K = x.shape
    N = w_t.shape[1]
    M = int(np.prod(lead)) if lead else 1
    x2d = x.reshape(M, K)

    budget = _vmem_limit_bytes()
    tm = min(tile_m, _round_up(M, 8))

    def _block_bytes(t):
        return 2 * t * (K * x2d.dtype.itemsize + N * 4) + K * N * 2 + N * 4

    while tm > 8 and _block_bytes(tm) > budget:
        tm //= 2
    tm = max(8, _round_up(tm, 8))
    m_pad = _round_up(M, tm)
    if m_pad != M:
        x2d = jnp.pad(x2d, ((0, m_pad - M), (0, 0)))

    grid = (m_pad // tm,)
    x_spec = pl.BlockSpec((tm, K), lambda i: (i, 0))
    w_spec = pl.BlockSpec((K, N), lambda i: (0, 0))
    o_spec = pl.BlockSpec((tm, N), lambda i: (i, 0))
    cparams = pltpu.CompilerParams(dimension_semantics=("parallel",),
                                   vmem_limit_bytes=budget)
    out_shape = jax.ShapeDtypeStruct((m_pad, N), jnp.float32)

    if bias is None:
        out = pl.pallas_call(
            _linear_nobias_kernel, grid=grid,
            in_specs=[x_spec, w_spec], out_specs=o_spec,
            out_shape=out_shape, compiler_params=cparams,
        )(x2d, w_t)
    else:
        b_row = bias.astype(jnp.float32).reshape(1, N)
        out = pl.pallas_call(
            _linear_bias_kernel, grid=grid,
            in_specs=[x_spec, w_spec, pl.BlockSpec((1, N), lambda i: (0, 0))],
            out_specs=o_spec,
            out_shape=out_shape, compiler_params=cparams,
        )(x2d, w_t, b_row)

    if m_pad != M:
        out = out[:M]
    return out.reshape(*lead, N)


# ----------------------------------------------------------------------------
# Fused geometric graph attention core
#   grid = (batch, n // tile_i); per step: one query-row tile, all keys.
# ----------------------------------------------------------------------------
def _geo_attn_kernel(qs_ref, ks_ref, qp_ref, kp_ref, vc_ref, pair_ref,
                     wb_ref, w1_ref, b1_ref,
                     o_sv_ref, o_pr_ref, o_p1_ref,
                     edge_ref, attn_i_ref,
                     *, heads, tile_i, n, pd, dvc, ch_pad,
                     scalar_scale, point_scale):
    f32 = jnp.float32
    bf16 = jnp.bfloat16
    nt = (((1,), (1,)), ((), ()))          # contract last dims: q @ k^T

    # ---- fused pair-bias projection (pair_scale folded into wb) ----
    pair_f32 = pair_ref[0]                                      # (ti, n, pd)
    pair_bf = pair_f32.astype(bf16)
    pair2 = pair_bf.reshape(tile_i * n, pd)
    bias_all = lax.dot_general(wb_ref[...], pair2, nt,
                               preferred_element_type=f32)      # (heads, ti*n)
    bias_all = bias_all.reshape(heads, tile_i, n)

    def softmax_last(x):
        m = jnp.max(x, axis=-1, keepdims=True)
        e = jnp.exp(x - m)
        return e / jnp.sum(e, axis=-1, keepdims=True)

    # zero the channel padding of the edge scratch (pad rows of w1 are zero too)
    if ch_pad > 3 * heads:
        edge_ref[3 * heads:] = jnp.zeros((ch_pad - 3 * heads, tile_i, n), f32)

    # heads is small (4-8): static unrolled loop; per-head AV results collected
    # for a single merged lane-dense store.
    sv_chunks = []
    for hi in range(heads):
        qs_h = qs_ref[0, hi].astype(bf16)                       # (ti, dks)
        ks_h = ks_ref[0, hi].astype(bf16)                       # (n, dks)
        scalar_logits = lax.dot_general(qs_h, ks_h, nt, preferred_element_type=f32)

        qp_h = qp_ref[0, hi].astype(bf16)     # softplus(point_weights) folded in
        kp_h = kp_ref[0, hi].astype(bf16)
        point_logits = lax.dot_general(qp_h, kp_h, nt, preferred_element_type=f32)

        logits = (scalar_scale * scalar_logits
                  + point_scale * point_logits
                  + bias_all[hi])
        attn = softmax_last(logits)

        # edge channel order matches torch.cat((attn, point_wts, scalar_wts), dim=1)
        edge_ref[hi] = attn
        edge_ref[heads + hi] = softmax_last(point_logits)
        edge_ref[2 * heads + hi] = softmax_last(scalar_logits)

        attn_bf = attn.astype(bf16)
        attn_i_ref[:, hi, :] = attn_bf
        vc_h = vc_ref[0, hi].astype(bf16)                       # (n, dvs + 3*dvp)
        sv_chunks.append(jnp.dot(attn_bf, vc_h, preferred_element_type=f32))

    # merged scalar + point value output: one lane-dense store
    o_sv_ref[0] = jnp.concatenate(sv_chunks, axis=-1)           # (ti, heads*dvc)

    # ---- attention-weighted pair aggregation: single batched MXU matmul ----
    #   o_pr[i, h, :] = attn[i, h, :] @ pair[i, :, :]
    o_pr = lax.dot_general(attn_i_ref[...], pair_bf,
                           (((2,), (1,)), ((0,), (0,))),
                           preferred_element_type=f32)          # (ti, heads, pd)
    o_pr_ref[0] = o_pr.reshape(tile_i, heads * pd)

    # ---- fused first pair-update MLP layer on the VMEM-resident edge block ----
    edge2 = edge_ref[...].reshape(ch_pad, tile_i * n)
    edge_t = jnp.transpose(edge2).astype(bf16)                  # (ti*n, ch_pad)
    p1 = jnp.dot(edge_t, w1_ref[...], preferred_element_type=f32)  # (ti*n, pd)
    o_p1_ref[0] = p1.reshape(tile_i, n, pd) + b1_ref[...]


def _pick_tile_i(n, heads, pd, dks, dkp3, dvc, budget):
    """Largest multiple-of-8 divisor of n whose per-step VMEM footprint fits."""
    per_row = 4 * n * pd * 4                       # pair in + p1 out (double buffered)
    per_row += 4 * heads * (dks + dkp3) * 4        # q blocks
    per_row += 4 * heads * (pd + dvc) * 4          # o_pr / o_sv blocks
    per_row += 4 * heads * n * 4 + heads * n * 2   # edge + attn scratch rows
    fixed = 4 * heads * n * (2 * dks + 2 * dkp3 + dvc) * 4      # k/v blocks
    t_max = max(8, (budget - fixed) // max(per_row, 1))
    cands = [d for d in range(8, n + 1, 8) if n % d == 0]
    if not cands:
        return n
    best = cands[0]
    for d in cands:
        if d <= t_max:
            best = d
    return best


def geo_attention_core(q_s, k_s, q_p, k_p, v_c, pair, wb, w1, b1, *,
                       tile_i, scalar_scale, point_scale):
    b, heads, n, dks = q_s.shape
    dkp3 = q_p.shape[-1]
    dvc = v_c.shape[-1]
    pd = pair.shape[-1]
    ch_pad = w1.shape[0]
    assert n % tile_i == 0

    kernel = functools.partial(
        _geo_attn_kernel, heads=heads, tile_i=tile_i, n=n, pd=pd, dvc=dvc,
        ch_pad=ch_pad, scalar_scale=float(scalar_scale),
        point_scale=float(point_scale))

    grid = (b, n // tile_i)
    in_specs = [
        pl.BlockSpec((1, heads, tile_i, dks), lambda bi, ii: (bi, 0, ii, 0)),
        pl.BlockSpec((1, heads, n, dks), lambda bi, ii: (bi, 0, 0, 0)),
        pl.BlockSpec((1, heads, tile_i, dkp3), lambda bi, ii: (bi, 0, ii, 0)),
        pl.BlockSpec((1, heads, n, dkp3), lambda bi, ii: (bi, 0, 0, 0)),
        pl.BlockSpec((1, heads, n, dvc), lambda bi, ii: (bi, 0, 0, 0)),
        pl.BlockSpec((1, tile_i, n, pd), lambda bi, ii: (bi, ii, 0, 0)),
        pl.BlockSpec((heads, pd), lambda bi, ii: (0, 0)),
        pl.BlockSpec((ch_pad, pd), lambda bi, ii: (0, 0)),
        pl.BlockSpec((1, pd), lambda bi, ii: (0, 0)),
    ]
    out_specs = (
        pl.BlockSpec((1, tile_i, heads * dvc), lambda bi, ii: (bi, ii, 0)),
        pl.BlockSpec((1, tile_i, heads * pd), lambda bi, ii: (bi, ii, 0)),
        pl.BlockSpec((1, tile_i, n, pd), lambda bi, ii: (bi, ii, 0, 0)),
    )
    out_shape = (
        jax.ShapeDtypeStruct((b, n, heads * dvc), jnp.float32),
        jax.ShapeDtypeStruct((b, n, heads * pd), jnp.float32),
        jax.ShapeDtypeStruct((b, n, n, pd), jnp.float32),
    )
    scratch = [
        pltpu.VMEM((ch_pad, tile_i, n), jnp.float32),    # edge channels
        pltpu.VMEM((tile_i, heads, n), jnp.bfloat16),    # attn, batched layout
    ]
    return pl.pallas_call(
        kernel, grid=grid, in_specs=in_specs, out_specs=out_specs,
        out_shape=out_shape, scratch_shapes=scratch,
        compiler_params=pltpu.CompilerParams(
            dimension_semantics=("parallel", "parallel"),
            vmem_limit_bytes=_vmem_limit_bytes()),
    )(q_s, k_s, q_p, k_p, v_c, pair, wb, w1, b1)


# ----------------------------------------------------------------------------
# Plain-JAX glue
# ----------------------------------------------------------------------------
def layer_norm(x, gamma, beta, eps=1e-5):
    mu = jnp.mean(x, axis=-1, keepdims=True)
    var = jnp.mean((x - mu) ** 2, axis=-1, keepdims=True)
    return (x - mu) * lax.rsqrt(var + eps) * gamma + beta


def geometric_graph_attention(scalar_feats, pair_feats, rot, trans, params, cfg):
    """GeometricGraphAttention.forward (sim_ty=DOT_PROD, use_pair_bias=True,
    return_pair_update=True, mask=None)."""
    b, n, _ = scalar_feats.shape
    h = cfg["heads"]
    dks, dvs = cfg["scalar_kv"]
    dkp, dvp = cfg["point_kv"]
    pd = pair_feats.shape[-1]
    dkp3, dvp3 = dkp * 3, dvp * 3
    dvc = dvs + dvp3

    # --- qkv projection (SplitLinear, no bias) ---
    qkv = pallas_linear(scalar_feats, params["to_qkv_wt"])
    sizes = [dks * h, dks * h, dvs * h, dkp3 * h, dkp3 * h, dvp3 * h]
    splits = np.cumsum(sizes)[:-1].tolist()
    q_s, k_s, v_s, q_p, k_p, v_p = jnp.split(qkv, splits, axis=-1)

    def heads_first(x, d):                     # (b, n, h*d) -> (b, h, n, d)
        return x.reshape(b, n, h, d).transpose(0, 2, 1, 3)

    def apply_frames(x, npts):                 # rigids.apply on (b, n, npts, 3)
        pts = x.reshape(b, n, npts, 3)
        return jnp.einsum("bnij,bnkj->bnki", rot, pts) + trans[:, :, None, :]

    q_pt = apply_frames(q_p, h * dkp)
    k_pt = apply_frames(k_p, h * dkp)
    v_pt = apply_frames(v_p, h * dvp)

    # fold softplus(point_weights) into q_point: reference multiplies point
    # logits by softplus(pw) before both the attention mix and the standalone
    # point-softmax edge channel, so the fold is semantics-preserving.
    point_w = jax.nn.softplus(params["point_weights"].reshape(h))
    q_pt = q_pt.reshape(b, n, h, dkp3) * point_w[None, None, :, None]
    k_pt = k_pt.reshape(b, n, h, dkp3)

    q_s4 = heads_first(q_s, dks)
    k_s4 = heads_first(k_s, dks)
    q_p4 = q_pt.transpose(0, 2, 1, 3)
    k_p4 = k_pt.transpose(0, 2, 1, 3)
    # merged scalar/point V -> one attn @ V matmul per head inside the kernel
    v_c = jnp.concatenate(
        [v_s.reshape(b, n, h, dvs), v_pt.reshape(b, n, h, dvp3)], axis=-1)
    v_c4 = v_c.transpose(0, 2, 1, 3)

    n_logits = 3.0
    scalar_scale = (n_logits * dks) ** -0.5
    point_scale = (n_logits * dkp * (9.0 / 2.0)) ** -0.5

    tile_i = _pick_tile_i(n, h, pd, dks, dkp3, dvc, _vmem_limit_bytes())
    o_sv, o_pr, p1 = geo_attention_core(
        q_s4, k_s4, q_p4, k_p4, v_c4, pair_feats,
        params["pair_bias_w_scaled"], params["pair_out_w1t_pad"],
        params["pair_out_b1_row"],
        tile_i=tile_i, scalar_scale=scalar_scale, point_scale=point_scale)

    # split merged output, map result points back to local frames, take norms
    o_sv = o_sv.reshape(b, n, h, dvc)
    o_s = o_sv[..., :dvs].reshape(b, n, h * dvs)
    pts = o_sv[..., dvs:].reshape(b, n, h * dvp, 3)
    pts_local = jnp.einsum("bnij,bnki->bnkj", rot, pts - trans[:, :, None, :])
    norms = jnp.sqrt(jnp.sum(pts_local ** 2, axis=-1) + 1e-8)   # safe_norm
    results = jnp.concatenate(
        [o_s, o_pr, pts_local.reshape(b, n, h * dvp3), norms], axis=-1)
    scalar_out = pallas_linear(results, params["to_scalar_out_wt"],
                               params["to_scalar_out_b"])

    # pair update MLP: first layer (+bias) already fused into the attention
    # kernel; exact GELU + second layer here.
    p1 = jax.nn.gelu(p1, approximate=False)
    pair_update = pallas_linear(p1, params["pair_out_w2t"], params["pair_out_b2"])
    return scalar_out, pair_update


def block_forward(scalar_feats, pair_feats, rot, trans, params, cfg):
    """GeometricGraphAttentionBlock.forward"""
    normed = layer_norm(scalar_feats, params["attn_norm_g"], params["attn_norm_b"])
    attn_feats, pair_update = geometric_graph_attention(
        normed, pair_feats, rot, trans, params, cfg)
    x = attn_feats + scalar_feats                                  # attn residual
    hdn = layer_norm(x, params["ff_norm_g"], params["ff_norm_b"])  # PreNorm
    hdn = pallas_linear(hdn, params["ff_w1t"], params["ff_b1"])
    hdn = jax.nn.gelu(hdn, approximate=False)
    hdn = pallas_linear(hdn, params["ff_w2t"], params["ff_b2"])
    return x + hdn, pair_update                                    # ff residual


# ----------------------------------------------------------------------------
# Deterministic parameter init (torch layouts) + one-time preprocessing
# ----------------------------------------------------------------------------
def init_params(key, scalar_dim, pair_dim, heads, scalar_kv, point_kv, ff_mult):
    dks, dvs = scalar_kv
    dkp, dvp = point_kv
    total_qkv = 2 * dks * heads + dvs * heads + 2 * dkp * heads * 3 + dvp * heads * 3
    dim_out = heads * (pair_dim + dvs + 4 * dvp)
    hidden = int(scalar_dim * ff_mult)

    ks = jax.random.split(key, 12)
    w = lambda k, shape: 0.1 * jax.random.normal(k, shape, jnp.float32)
    return {
        "attn_norm_g": jnp.ones((scalar_dim,), jnp.float32),
        "attn_norm_b": jnp.zeros((scalar_dim,), jnp.float32),
        "to_qkv_w": w(ks[0], (total_qkv, scalar_dim)),
        "to_pair_bias_w": w(ks[1], (heads, pair_dim)),
        "point_weights": jnp.log(jnp.exp(jnp.ones((1, heads, 1, 1), jnp.float32)) - 1.0),
        "to_scalar_out_w": w(ks[2], (scalar_dim, dim_out)),
        "to_scalar_out_b": w(ks[3], (scalar_dim,)),
        "pair_out_w1": w(ks[4], (pair_dim, 3 * heads)),
        "pair_out_b1": w(ks[5], (pair_dim,)),
        "pair_out_w2": w(ks[6], (pair_dim, pair_dim)),
        "pair_out_b2": w(ks[7], (pair_dim,)),
        "ff_norm_g": jnp.ones((scalar_dim,), jnp.float32),
        "ff_norm_b": jnp.zeros((scalar_dim,), jnp.float32),
        "ff_w1": w(ks[8], (hidden, scalar_dim)),
        "ff_b1": w(ks[9], (hidden,)),
        "ff_w2": w(ks[10], (scalar_dim, hidden)),
        "ff_b2": w(ks[11], (scalar_dim,)),
    }


def prepare_params(params, *, n_attn_logits=3.0):
    """Weights pre-transposed / pre-scaled once so the forward pass never pays
    an HBM transpose or scale pass."""
    p = dict(params)
    for name in ("to_qkv_w", "to_scalar_out_w", "pair_out_w2", "ff_w1", "ff_w2"):
        p[name + "t"] = jnp.transpose(params[name]).astype(jnp.bfloat16)

    # pair-bias weight kept in torch (heads, pair_dim) layout; fold pair scale
    pair_scale = float(n_attn_logits) ** -0.5
    p["pair_bias_w_scaled"] = (params["to_pair_bias_w"] * pair_scale).astype(jnp.bfloat16)

    # first pair-update MLP layer: (3h, pd) bf16, channel axis zero-padded to x8
    w1t = jnp.transpose(params["pair_out_w1"]).astype(jnp.bfloat16)
    ch = w1t.shape[0]
    ch_pad = _round_up(max(ch, 8), 8)
    if ch_pad != ch:
        w1t = jnp.pad(w1t, ((0, ch_pad - ch), (0, 0)))
    p["pair_out_w1t_pad"] = w1t
    p["pair_out_b1_row"] = params["pair_out_b1"].astype(jnp.float32).reshape(1, -1)
    return p


if __name__ == "__main__":
    B, N = 2, 16
    scalar_dim, pair_dim = 32, 16
    heads = 4
    scalar_kv = (8, 8)
    point_kv = (4, 4)
    ff_mult = 2
    cfg = dict(heads=heads, scalar_kv=scalar_kv, point_kv=point_kv)

    root = jax.random.PRNGKey(0)
    k_param, k_s, k_p, k_r, k_t = jax.random.split(root, 5)
    params = prepare_params(
        init_params(k_param, scalar_dim, pair_dim, heads, scalar_kv, point_kv, ff_mult))

    scalar_feats = jax.random.normal(k_s, (B, N, scalar_dim), jnp.float32)
    pair_feats = jax.random.normal(k_p, (B, N, N, pair_dim), jnp.float32)
    # synthetic rigid frames: orthogonal rotations via QR + random translations
    rot_raw = jax.random.normal(k_r, (B, N, 3, 3), jnp.float32)
    rot, _ = jnp.linalg.qr(rot_raw)
    trans = jax.random.normal(k_t, (B, N, 3), jnp.float32)

    fwd = jax.jit(functools.partial(block_forward, cfg=cfg))
    scalar_out, pair_update = fwd(scalar_feats, pair_feats, rot, trans, params)
    jax.block_until_ready((scalar_out, pair_update))

    assert scalar_out.shape == (B, N, scalar_dim)
    assert pair_update.shape == (B, N, N, pair_dim)
    assert bool(jnp.all(jnp.isfinite(scalar_out)))
    assert bool(jnp.all(jnp.isfinite(pair_update)))
    print("KERNEL_OK")
</pallas_src>

<mosaic_0001>
module attributes {stable_mosaic.version = 11 : i64} {
  func.func @_linear_nobias_kernel(%arg0: i32, %arg1: memref<32x32xf32, #tpu.memory_space<vmem>>, %arg2: memref<32x240xbf16, #tpu.memory_space<vmem>>, %arg3: memref<32x240xf32, #tpu.memory_space<vmem>>) attributes {dimension_semantics = [#tpu.dimension_semantics<parallel>], iteration_bounds = array<i64: 1>, scalar_prefetch = 0 : i64, scratch_operands = 0 : i64, tpu.core_type = #tpu.core_type<tc>, window_params = [{transform_indices = @transform_0, window_bounds = array<i64: 32, 32>}, {pipeline_mode = #tpu.pipeline_mode<synchronous>, transform_indices = @transform_1, window_bounds = array<i64: 32, 240>}, {transform_indices = @transform_2, window_bounds = array<i64: 32, 240>}]} {
    %c0 = arith.constant 0 : index
    %c0_0 = arith.constant 0 : index
    %0 = vector.load %arg1[%c0, %c0_0] : memref<32x32xf32, #tpu.memory_space<vmem>>, vector<32x32xf32>
    %1 = arith.truncf %0 : vector<32x32xf32> to vector<32x32xbf16>
    %c0_1 = arith.constant 0 : index
    %c0_2 = arith.constant 0 : index
    %2 = vector.load %arg2[%c0_1, %c0_2] : memref<32x240xbf16, #tpu.memory_space<vmem>>, vector<32x240xbf16>
    %cst = arith.constant dense<0.000000e+00> : vector<32x240xf32>
    %3 = tpu.matmul %1, %2, %cst {dimension_numbers = #tpu.dot_dimension_numbers<[1], [0], [0], [1], [0, 0, 1, 1], [], []>} : vector<32x32xbf16>, vector<32x240xbf16>, vector<32x240xf32> -> vector<32x240xf32>
    %c0_3 = arith.constant 0 : index
    %c0_4 = arith.constant 0 : index
    %4 = vector.load %arg3[%c0_3, %c0_4] : memref<32x240xf32, #tpu.memory_space<vmem>>, vector<32x240xf32>
    tpu.vector_store %arg3[%c0_3, %c0_4], %3 {strides = array<i32>} : memref<32x240xf32, #tpu.memory_space<vmem>>, vector<32x240xf32>,
    return
  }
  func.func @transform_0(%arg0: i32) -> (i32, i32) {
    %c0_i32 = arith.constant 0 : i32
    %c0_i32_0 = arith.constant 0 : i32
    return %arg0, %c0_i32 : i32, i32
  }
  func.func @transform_1(%arg0: i32) -> (i32, i32) {
    %c0_i32 = arith.constant 0 : i32
    %c0_i32_0 = arith.constant 0 : i32
    %c0_i32_1 = arith.constant 0 : i32
    return %c0_i32, %c0_i32_0 : i32, i32
  }
  func.func @transform_2(%arg0: i32) -> (i32, i32) {
    %c0_i32 = arith.constant 0 : i32
    %c0_i32_0 = arith.constant 0 : i32
    return %arg0, %c0_i32 : i32, i32
  }
}

module attributes {stable_mosaic.version = 11 : i64} {
  func.func @_geo_attn_kernel(%arg0: i32, %arg1: i32, %arg2: memref<1x4x16x8xf32, #tpu.memory_space<vmem>>, %arg3: memref<1x4x16x8xf32, #tpu.memory_space<vmem>>, %arg4: memref<1x4x16x12xf32, #tpu.memory_space<vmem>>, %arg5: memref<1x4x16x12xf32, #tpu.memory_space<vmem>>, %arg6: memref<1x4x16x20xf32, #tpu.memory_space<vmem>>, %arg7: memref<1x16x16x16xf32, #tpu.memory_space<vmem>>, %arg8: memref<4x16xbf16, #tpu.memory_space<vmem>>, %arg9: memref<16x16xbf16, #tpu.memory_space<vmem>>, %arg10: memref<1x16xf32, #tpu.memory_space<vmem>>, %arg11: memref<1x16x80xf32, #tpu.memory_space<vmem>>, %arg12: memref<1x16x64xf32, #tpu.memory_space<vmem>>, %arg13: memref<1x16x16x16xf32, #tpu.memory_space<vmem>>, %arg14: memref<16x16x16xf32, #tpu.memory_space<vmem>>, %arg15: memref<16x4x16xbf16, #tpu.memory_space<vmem>>) attributes {dimension_semantics = [#tpu.dimension_semantics<parallel>, #tpu.dimension_semantics<parallel>], iteration_bounds = array<i64: 2, 1>, scalar_prefetch = 0 : i64, scratch_operands = 2 : i64, tpu.core_type = #tpu.core_type<tc>, window_params = [{transform_indices = @transform_0, window_bounds = array<i64: 1, 4, 16, 8>}, {transform_indices = @transform_1, window_bounds = array<i64: 1, 4, 16, 8>}, {transform_indices = @transform_2, window_bounds = array<i64: 1, 4, 16, 12>}, {transform_indices = @transform_3, window_bounds = array<i64: 1, 4, 16, 12>}, {transform_indices = @transform_4, window_bounds = array<i64: 1, 4, 16, 20>}, {transform_indices = @transform_5, window_bounds = array<i64: 1, 16, 16, 16>}, {pipeline_mode = #tpu.pipeline_mode<synchronous>, transform_indices = @transform_6, window_bounds = array<i64: 4, 16>}, {pipeline_mode = #tpu.pipeline_mode<synchronous>, transform_indices = @transform_7, window_bounds = array<i64: 16, 16>}, {pipeline_mode = #tpu.pipeline_mode<synchronous>, transform_indices = @transform_8, window_bounds = array<i64: 1, 16>}, {transform_indices = @transform_9, window_bounds = array<i64: 1, 16, 80>}, {transform_indices = @transform_10, window_bounds = array<i64: 1, 16, 64>}, {transform_indices = @transform_11, window_bounds = array<i64: 1, 16, 16, 16>}]} {
    %c0 = arith.constant 0 : index
    %c0_0 = arith.constant 0 : index
    %c0_1 = arith.constant 0 : index
    %c0_2 = arith.constant 0 : index
    %0 = vector.load %arg7[%c0, %c0_0, %c0_1, %c0_2] : memref<1x16x16x16xf32, #tpu.memory_space<vmem>>, vector<1x16x16x16xf32>
    %1 = vector.shape_cast %0 : vector<1x16x16x16xf32> to vector<16x16x16xf32>
    %2 = arith.truncf %1 : vector<16x16x16xf32> to vector<16x16x16xbf16>
    %3 = vector.shape_cast %2 : vector<16x16x16xbf16> to vector<256x16xbf16>
    %c0_3 = arith.constant 0 : index
    %c0_4 = arith.constant 0 : index
    %4 = vector.load %arg8[%c0_3, %c0_4] : memref<4x16xbf16, #tpu.memory_space<vmem>>, vector<4x16xbf16>
    %cst = arith.constant dense<0.000000e+00> : vector<4x256xf32>
    %5 = tpu.matmul %4, %3, %cst {dimension_numbers = #tpu.dot_dimension_numbers<[1], [1], [0], [0], [0, 0, 1, 0], [], []>} : vector<4x16xbf16>, vector<256x16xbf16>, vector<4x256xf32> -> vector<4x256xf32>
    %6 = vector.shape_cast %5 : vector<4x256xf32> to vector<4x16x16xf32>
    %cst_5 = arith.constant 0.000000e+00 : f32
    %7 = vector.broadcast %cst_5 : f32 to vector<4x16x16xf32>
    %c12 = arith.constant 12 : index
    %c0_6 = arith.constant 0 : index
    %c0_7 = arith.constant 0 : index
    %8 = vector.load %arg14[%c12, %c0_6, %c0_7] : memref<16x16x16xf32, #tpu.memory_space<vmem>>, vector<4x16x16xf32>
    tpu.vector_store %arg14[%c12, %c0_6, %c0_7], %7 {strides = array<i32>} : memref<16x16x16xf32, #tpu.memory_space<vmem>>, vector<4x16x16xf32>,
    %c0_8 = arith.constant 0 : index
    %c0_9 = arith.constant 0 : index
    %c0_10 = arith.constant 0 : index
    %c0_11 = arith.constant 0 : index
    %9 = vector.load %arg2[%c0_8, %c0_9, %c0_10, %c0_11] : memref<1x4x16x8xf32, #tpu.memory_space<vmem>>, vector<1x1x16x8xf32>
    %10 = vector.shape_cast %9 : vector<1x1x16x8xf32> to vector<16x8xf32>
    %11 = arith.truncf %10 : vector<16x8xf32> to vector<16x8xbf16>
    %c0_12 = arith.constant 0 : index
    %c0_13 = arith.constant 0 : index
    %c0_14 = arith.constant 0 : index
    %c0_15 = arith.constant 0 : index
    %12 = vector.load %arg3[%c0_12, %c0_13, %c0_14, %c0_15] : memref<1x4x16x8xf32, #tpu.memory_space<vmem>>, vector<1x1x16x8xf32>
    %13 = vector.shape_cast %12 : vector<1x1x16x8xf32> to vector<16x8xf32>
    %14 = arith.truncf %13 : vector<16x8xf32> to vector<16x8xbf16>
    %cst_16 = arith.constant dense<0.000000e+00> : vector<16x16xf32>
    %15 = tpu.matmul %11, %14, %cst_16 {dimension_numbers = #tpu.dot_dimension_numbers<[1], [1], [0], [0], [0, 0, 1, 0], [], []>} : vector<16x8xbf16>, vector<16x8xbf16>, vector<16x16xf32> -> vector<16x16xf32>
    %c0_17 = arith.constant 0 : index
    %c0_18 = arith.constant 0 : index
    %c0_19 = arith.constant 0 : index
    %c0_20 = arith.constant 0 : index
    %16 = vector.load %arg4[%c0_17, %c0_18, %c0_19, %c0_20] : memref<1x4x16x12xf32, #tpu.memory_space<vmem>>, vector<1x1x16x12xf32>
    %17 = vector.shape_cast %16 : vector<1x1x16x12xf32> to vector<16x12xf32>
    %18 = arith.truncf %17 : vector<16x12xf32> to vector<16x12xbf16>
    %c0_21 = arith.constant 0 : index
    %c0_22 = arith.constant 0 : index
    %c0_23 = arith.constant 0 : index
    %c0_24 = arith.constant 0 : index
    %19 = vector.load %arg5[%c0_21, %c0_22, %c0_23, %c0_24] : memref<1x4x16x12xf32, #tpu.memory_space<vmem>>, vector<1x1x16x12xf32>
    %20 = vector.shape_cast %19 : vector<1x1x16x12xf32> to vector<16x12xf32>
    %21 = arith.truncf %20 : vector<16x12xf32> to vector<16x12xbf16>
    %cst_25 = arith.constant dense<0.000000e+00> : vector<16x16xf32>
    %22 = tpu.matmul %18, %21, %cst_25 {dimension_numbers = #tpu.dot_dimension_numbers<[1], [1], [0], [0], [0, 0, 1, 0], [], []>} : vector<16x12xbf16>, vector<16x12xbf16>, vector<16x16xf32> -> vector<16x16xf32>
    %cst_26 = arith.constant 0.204124153 : f32
    %23 = vector.broadcast %cst_26 : f32 to vector<16x16xf32>
    %24 = arith.mulf %23, %15 : vector<16x16xf32>
    %cst_27 = arith.constant 0.136082768 : f32
    %25 = vector.broadcast %cst_27 : f32 to vector<16x16xf32>
    %26 = arith.mulf %25, %22 : vector<16x16xf32>
    %27 = arith.addf %24, %26 : vector<16x16xf32>
    %28 = vector.extract_strided_slice %6 {offsets = [0, 0, 0], sizes = [1, 16, 16], strides = [1, 1, 1]} : vector<4x16x16xf32> to vector<1x16x16xf32>
    %29 = vector.shape_cast %28 : vector<1x16x16xf32> to vector<16x16xf32>
    %30 = arith.addf %27, %29 : vector<16x16xf32>
    %cst_28 = arith.constant dense<0xFF800000> : vector<16xf32>
    %31 = vector.multi_reduction <maximumf>, %30, %cst_28 [1] : vector<16x16xf32> to vector<16xf32>
    %32 = vector.shape_cast %31 : vector<16xf32> to vector<16x1xf32>
    %33 = vector.broadcast %32 : vector<16x1xf32> to vector<16x16xf32>
    %34 = arith.subf %30, %33 : vector<16x16xf32>
    %35 = math.exp %34 : vector<16x16xf32>
    %cst_29 = arith.constant dense<0.000000e+00> : vector<16xf32>
    %36 = vector.multi_reduction <add>, %35, %cst_29 [1] : vector<16x16xf32> to vector<16xf32>
    %37 = vector.shape_cast %36 : vector<16xf32> to vector<16x1xf32>
    %38 = vector.broadcast %37 : vector<16x1xf32> to vector<16x16xf32>
    %39 = arith.divf %35, %38 : vector<16x16xf32>
    %c0_30 = arith.constant 0 : index
    %c0_31 = arith.constant 0 : index
    %c0_32 = arith.constant 0 : index
    %40 = vector.load %arg14[%c0_30, %c0_31, %c0_32] : memref<16x16x16xf32, #tpu.memory_space<vmem>>, vector<1x16x16xf32>
    %41 = vector.shape_cast %40 : vector<1x16x16xf32> to vector<16x16xf32>
    %42 = vector.shape_cast %39 : vector<16x16xf32> to vector<1x16x16xf32>
    tpu.vector_store %arg14[%c0_30, %c0_31, %c0_32], %42 {strides = array<i32>} : memref<16x16x16xf32, #tpu.memory_space<vmem>>, vector<1x16x16xf32>,
    %cst_33 = arith.constant dense<0xFF800000> : vector<16xf32>
    %43 = vector.multi_reduction <maximumf>, %22, %cst_33 [1] : vector<16x16xf32> to vector<16xf32>
    %44 = vector.shape_cast %43 : vector<16xf32> to vector<16x1xf32>
    %45 = vector.broadcast %44 : vector<16x1xf32> to vector<16x16xf32>
    %46 = arith.subf %22, %45 : vector<16x16xf32>
    %47 = math.exp %46 : vector<16x16xf32>
    %cst_34 = arith.constant dense<0.000000e+00> : vector<16xf32>
    %48 = vector.multi_reduction <add>, %47, %cst_34 [1] : vector<16x16xf32> to vector<16xf32>
    %49 = vector.shape_cast %48 : vector<16xf32> to vector<16x1xf32>
    %50 = vector.broadcast %49 : vector<16x1xf32> to vector<16x16xf32>
    %51 = arith.divf %47, %50 : vector<16x16xf32>
    %c4 = arith.constant 4 : index
    %c0_35 = arith.constant 0 : index
    %c0_36 = arith.constant 0 : index
    %52 = vector.load %arg14[%c4, %c0_35, %c0_36] : memref<16x16x16xf32, #tpu.memory_space<vmem>>, vector<1x16x16xf32>
    %53 = vector.shape_cast %52 : vector<1x16x16xf32> to vector<16x16xf32>
    %54 = vector.shape_cast %51 : vector<16x16xf32> to vector<1x16x16xf32>
    tpu.vector_store %arg14[%c4, %c0_35, %c0_36], %54 {strides = array<i32>} : memref<16x16x16xf32, #tpu.memory_space<vmem>>, vector<1x16x16xf32>,
    %cst_37 = arith.constant dense<0xFF800000> : vector<16xf32>
    %55 = vector.multi_reduction <maximumf>, %15, %cst_37 [1] : vector<16x16xf32> to vector<16xf32>
    %56 = vector.shape_cast %55 : vector<16xf32> to vector<16x1xf32>
    %57 = vector.broadcast %56 : vector<16x1xf32> to vector<16x16xf32>
    %58 = arith.subf %15, %57 : vector<16x16xf32>
    %59 = math.exp %58 : vector<16x16xf32>
    %cst_38 = arith.constant dense<0.000000e+00> : vector<16xf32>
    %60 = vector.multi_reduction <add>, %59, %cst_38 [1] : vector<16x16xf32> to vector<16xf32>
    %61 = vector.shape_cast %60 : vector<16xf32> to vector<16x1xf32>
    %62 = vector.broadcast %61 : vector<16x1xf32> to vector<16x16xf32>
    %63 = arith.divf %59, %62 : vector<16x16xf32>
    %c8 = arith.constant 8 : index
    %c0_39 = arith.constant 0 : index
    %c0_40 = arith.constant 0 : index
    %64 = vector.load %arg14[%c8, %c0_39, %c0_40] : memref<16x16x16xf32, #tpu.memory_space<vmem>>, vector<1x16x16xf32>
    %65 = vector.shape_cast %64 : vector<1x16x16xf32> to vector<16x16xf32>
    %66 = vector.shape_cast %63 : vector<16x16xf32> to vector<1x16x16xf32>
    tpu.vector_store %arg14[%c8, %c0_39, %c0_40], %66 {strides = array<i32>} : memref<16x16x16xf32, #tpu.memory_space<vmem>>, vector<1x16x16xf32>,
    %67 = arith.truncf %39 : vector<16x16xf32> to vector<16x16xbf16>
    %c0_41 = arith.constant 0 : index
    %c0_42 = arith.constant 0 : index
    %c0_43 = arith.constant 0 : index
    %68 = vector.load %arg15[%c0_41, %c0_42, %c0_43] : memref<16x4x16xbf16, #tpu.memory_space<vmem>>, vector<16x1x16xbf16>
    %69 = vector.shape_cast %68 : vector<16x1x16xbf16> to vector<16x16xbf16>
    %70 = vector.shape_cast %67 : vector<16x16xbf16> to vector<16x1x16xbf16>
    tpu.vector_store %arg15[%c0_41, %c0_42, %c0_43], %70 {strides = array<i32>} : memref<16x4x16xbf16, #tpu.memory_space<vmem>>, vector<16x1x16xbf16>,
    %c0_44 = arith.constant 0 : index
    %c0_45 = arith.constant 0 : index
    %c0_46 = arith.constant 0 : index
    %c0_47 = arith.constant 0 : index
    %71 = vector.load %arg6[%c0_44, %c0_45, %c0_46, %c0_47] : memref<1x4x16x20xf32, #tpu.memory_space<vmem>>, vector<1x1x16x20xf32>
    %72 = vector.shape_cast %71 : vector<1x1x16x20xf32> to vector<16x20xf32>
    %73 = arith.truncf %72 : vector<16x20xf32> to vector<16x20xbf16>
    %cst_48 = arith.constant dense<0.000000e+00> : vector<16x20xf32>
    %74 = tpu.matmul %67, %73, %cst_48 {dimension_numbers = #tpu.dot_dimension_numbers<[1], [0], [0], [1], [0, 0, 1, 1], [], []>} : vector<16x16xbf16>, vector<16x20xbf16>, vector<16x20xf32> -> vector<16x20xf32>
    %c0_49 = arith.constant 0 : index
    %c1 = arith.constant 1 : index
    %c0_50 = arith.constant 0 : index
    %c0_51 = arith.constant 0 : index
    %75 = vector.load %arg2[%c0_49, %c1, %c0_50, %c0_51] : memref<1x4x16x8xf32, #tpu.memory_space<vmem>>, vector<1x1x16x8xf32>
    %76 = vector.shape_cast %75 : vector<1x1x16x8xf32> to vector<16x8xf32>
    %77 = arith.truncf %76 : vector<16x8xf32> to vector<16x8xbf16>
    %c0_52 = arith.constant 0 : index
    %c1_53 = arith.constant 1 : index
    %c0_54 = arith.constant 0 : index
    %c0_55 = arith.constant 0 : index
    %78 = vector.load %arg3[%c0_52, %c1_53, %c0_54, %c0_55] : memref<1x4x16x8xf32, #tpu.memory_space<vmem>>, vector<1x1x16x8xf32>
    %79 = vector.shape_cast %78 : vector<1x1x16x8xf32> to vector<16x8xf32>
    %80 = arith.truncf %79 : vector<16x8xf32> to vector<16x8xbf16>
    %cst_56 = arith.constant dense<0.000000e+00> : vector<16x16xf32>
    %81 = tpu.matmul %77, %80, %cst_56 {dimension_numbers = #tpu.dot_dimension_numbers<[1], [1], [0], [0], [0, 0, 1, 0], [], []>} : vector<16x8xbf16>, vector<16x8xbf16>, vector<16x16xf32> -> vector<16x16xf32>
    %c0_57 = arith.constant 0 : index
    %c1_58 = arith.constant 1 : index
    %c0_59 = arith.constant 0 : index
    %c0_60 = arith.constant 0 : index
    %82 = vector.load %arg4[%c0_57, %c1_58, %c0_59, %c0_60] : memref<1x4x16x12xf32, #tpu.memory_space<vmem>>, vector<1x1x16x12xf32>
    %83 = vector.shape_cast %82 : vector<1x1x16x12xf32> to vector<16x12xf32>
    %84 = arith.truncf %83 : vector<16x12xf32> to vector<16x12xbf16>
    %c0_61 = arith.constant 0 : index
    %c1_62 = arith.constant 1 : index
    %c0_63 = arith.constant 0 : index
    %c0_64 = arith.constant 0 : index
    %85 = vector.load %arg5[%c0_61, %c1_62, %c0_63, %c0_64] : memref<1x4x16x12xf32, #tpu.memory_space<vmem>>, vector<1x1x16x12xf32>
    %86 = vector.shape_cast %85 : vector<1x1x16x12xf32> to vector<16x12xf32>
    %87 = arith.truncf %86 : vector<16x12xf32> to vector<16x12xbf16>
    %cst_65 = arith.constant dense<0.000000e+00> : vector<16x16xf32>
    %88 = tpu.matmul %84, %87, %cst_65 {dimension_numbers = #tpu.dot_dimension_numbers<[1], [1], [0], [0], [0, 0, 1, 0], [], []>} : vector<16x12xbf16>, vector<16x12xbf16>, vector<16x16xf32> -> vector<16x16xf32>
    %cst_66 = arith.constant 0.204124153 : f32
    %89 = vector.broadcast %cst_66 : f32 to vector<16x16xf32>
    %90 = arith.mulf %89, %81 : vector<16x16xf32>
    %cst_67 = arith.constant 0.136082768 : f32
    %91 = vector.broadcast %cst_67 : f32 to vector<16x16xf32>
    %92 = arith.mulf %91, %88 : vector<16x16xf32>
    %93 = arith.addf %90, %92 : vector<16x16xf32>
    %94 = vector.extract_strided_slice %6 {offsets = [1, 0, 0], sizes = [1, 16, 16], strides = [1, 1, 1]} : vector<4x16x16xf32> to vector<1x16x16xf32>
    %95 = vector.shape_cast %94 : vector<1x16x16xf32> to vector<16x16xf32>
    %96 = arith.addf %93, %95 : vector<16x16xf32>
    %cst_68 = arith.constant dense<0xFF800000> : vector<16xf32>
    %97 = vector.multi_reduction <maximumf>, %96, %cst_68 [1] : vector<16x16xf32> to vector<16xf32>
    %98 = vector.shape_cast %97 : vector<16xf32> to vector<16x1xf32>
    %99 = vector.broadcast %98 : vector<16x1xf32> to vector<16x16xf32>
    %100 = arith.subf %96, %99 : vector<16x16xf32>
    %101 = math.exp %100 : vector<16x16xf32>
    %cst_69 = arith.constant dense<0.000000e+00> : vector<16xf32>
    %102 = vector.multi_reduction <add>, %101, %cst_69 [1] : vector<16x16xf32> to vector<16xf32>
    %103 = vector.shape_cast %102 : vector<16xf32> to vector<16x1xf32>
    %104 = vector.broadcast %103 : vector<16x1xf32> to vector<16x16xf32>
    %105 = arith.divf %101, %104 : vector<16x16xf32>
    %c1_70 = arith.constant 1 : index
    %c0_71 = arith.constant 0 : index
    %c0_72 = arith.constant 0 : index
    %106 = vector.load %arg14[%c1_70, %c0_71, %c0_72] : memref<16x16x16xf32, #tpu.memory_space<vmem>>, vector<1x16x16xf32>
    %107 = vector.shape_cast %106 : vector<1x16x16xf32> to vector<16x16xf32>
    %108 = vector.shape_cast %105 : vector<16x16xf32> to vector<1x16x16xf32>
    tpu.vector_store %arg14[%c1_70, %c0_71, %c0_72], %108 {strides = array<i32>} : memref<16x16x16xf32, #tpu.memory_space<vmem>>, vector<1x16x16xf32>,
    %cst_73 = arith.constant dense<0xFF800000> : vector<16xf32>
    %109 = vector.multi_reduction <maximumf>, %88, %cst_73 [1] : vector<16x16xf32> to vector<16xf32>
    %110 = vector.shape_cast %109 : vector<16xf32> to vector<16x1xf32>
    %111 = vector.broadcast %110 : vector<16x1xf32> to vector<16x16xf32>
    %112 = arith.subf %88, %111 : vector<16x16xf32>
    %113 = math.exp %112 : vector<16x16xf32>
    %cst_74 = arith.constant dense<0.000000e+00> : vector<16xf32>
    %114 = vector.multi_reduction <add>, %113, %cst_74 [1] : vector<16x16xf32> to vector<16xf32>
    %115 = vector.shape_cast %114 : vector<16xf32> to vector<16x1xf32>
    %116 = vector.broadcast %115 : vector<16x1xf32> to vector<16x16xf32>
    %117 = arith.divf %113, %116 : vector<16x16xf32>
    %c5 = arith.constant 5 : index
    %c0_75 = arith.constant 0 : index
    %c0_76 = arith.constant 0 : index
    %118 = vector.load %arg14[%c5, %c0_75, %c0_76] : memref<16x16x16xf32, #tpu.memory_space<vmem>>, vector<1x16x16xf32>
    %119 = vector.shape_cast %118 : vector<1x16x16xf32> to vector<16x16xf32>
    %120 = vector.shape_cast %117 : vector<16x16xf32> to vector<1x16x16xf32>
    tpu.vector_store %arg14[%c5, %c0_75, %c0_76], %120 {strides = array<i32>} : memref<16x16x16xf32, #tpu.memory_space<vmem>>, vector<1x16x16xf32>,
    %cst_77 = arith.constant dense<0xFF800000> : vector<16xf32>
    %121 = vector.multi_reduction <maximumf>, %81, %cst_77 [1] : vector<16x16xf32> to vector<16xf32>
    %122 = vector.shape_cast %121 : vector<16xf32> to vector<16x1xf32>
    %123 = vector.broadcast %122 : vector<16x1xf32> to vector<16x16xf32>
    %124 = arith.subf %81, %123 : vector<16x16xf32>
    %125 = math.exp %124 : vector<16x16xf32>
    %cst_78 = arith.constant dense<0.000000e+00> : vector<16xf32>
    %126 = vector.multi_reduction <add>, %125, %cst_78 [1] : vector<16x16xf32> to vector<16xf32>
    %127 = vector.shape_cast %126 : vector<16xf32> to vector<16x1xf32>
    %128 = vector.broadcast %127 : vector<16x1xf32> to vector<16x16xf32>
    %129 = arith.divf %125, %128 : vector<16x16xf32>
    %c9 = arith.constant 9 : index
    %c0_79 = arith.constant 0 : index
    %c0_80 = arith.constant 0 : index
    %130 = vector.load %arg14[%c9, %c0_79, %c0_80] : memref<16x16x16xf32, #tpu.memory_space<vmem>>, vector<1x16x16xf32>
    %131 = vector.shape_cast %130 : vector<1x16x16xf32> to vector<16x16xf32>
    %132 = vector.shape_cast %129 : vector<16x16xf32> to vector<1x16x16xf32>
    tpu.vector_store %arg14[%c9, %c0_79, %c0_80], %132 {strides = array<i32>} : memref<16x16x16xf32, #tpu.memory_space<vmem>>, vector<1x16x16xf32>,
    %133 = arith.truncf %105 : vector<16x16xf32> to vector<16x16xbf16>
    %c0_81 = arith.constant 0 : index
    %c1_82 = arith.constant 1 : index
    %c0_83 = arith.constant 0 : index
    %134 = vector.load %arg15[%c0_81, %c1_82, %c0_83] : memref<16x4x16xbf16, #tpu.memory_space<vmem>>, vector<16x1x16xbf16>
    %135 = vector.shape_cast %134 : vector<16x1x16xbf16> to vector<16x16xbf16>
    %136 = vector.shape_cast %133 : vector<16x16xbf16> to vector<16x1x16xbf16>
    tpu.vector_store %arg15[%c0_81, %c1_82, %c0_83], %136 {strides = array<i32>} : memref<16x4x16xbf16, #tpu.memory_space<vmem>>, vector<16x1x16xbf16>,
    %c0_84 = arith.constant 0 : index
    %c1_85 = arith.constant 1 : index
    %c0_86 = arith.constant 0 : index
    %c0_87 = arith.constant 0 : index
    %137 = vector.load %arg6[%c0_84, %c1_85, %c0_86, %c0_87] : memref<1x4x16x20xf32, #tpu.memory_space<vmem>>, vector<1x1x16x20xf32>
    %138 = vector.shape_cast %137 : vector<1x1x16x20xf32> to vector<16x20xf32>
    %139 = arith.truncf %138 : vector<16x20xf32> to vector<16x20xbf16>
    %cst_88 = arith.constant dense<0.000000e+00> : vector<16x20xf32>
    %140 = tpu.matmul %133, %139, %cst_88 {dimension_numbers = #tpu.dot_dimension_numbers<[1], [0], [0], [1], [0, 0, 1, 1], [], []>} : vector<16x16xbf16>, vector<16x20xbf16>, vector<16x20xf32> -> vector<16x20xf32>
    %c0_89 = arith.constant 0 : index
    %c2 = arith.constant 2 : index
    %c0_90 = arith.constant 0 : index
    %c0_91 = arith.constant 0 : index
    %141 = vector.load %arg2[%c0_89, %c2, %c0_90, %c0_91] : memref<1x4x16x8xf32, #tpu.memory_space<vmem>>, vector<1x1x16x8xf32>
    %142 = vector.shape_cast %141 : vector<1x1x16x8xf32> to vector<16x8xf32>
    %143 = arith.truncf %142 : vector<16x8xf32> to vector<16x8xbf16>
    %c0_92 = arith.constant 0 : index
    %c2_93 = arith.constant 2 : index
    %c0_94 = arith.constant 0 : index
    %c0_95 = arith.constant 0 : index
    %144 = vector.load %arg3[%c0_92, %c2_93, %c0_94, %c0_95] : memref<1x4x16x8xf32, #tpu.memory_space<vmem>>, vector<1x1x16x8xf32>
    %145 = vector.shape_cast %144 : vector<1x1x16x8xf32> to vector<16x8xf32>
    %146 = arith.truncf %145 : vector<16x8xf32> to vector<16x8xbf16>
    %cst_96 = arith.constant dense<0.000000e+00> : vector<16x16xf32>
    %147 = tpu.matmul %143, %146, %cst_96 {dimension_numbers = #tpu.dot_dimension_numbers<[1], [1], [0], [0], [0, 0, 1, 0], [], []>} : vector<16x8xbf16>, vector<16x8xbf16>, vector<16x16xf32> -> vector<16x16xf32>
    %c0_97 = arith.constant 0 : index
    %c2_98 = arith.constant 2 : index
    %c0_99 = arith.constant 0 : index
    %c0_100 = arith.constant 0 : index
    %148 = vector.load %arg4[%c0_97, %c2_98, %c0_99, %c0_100] : memref<1x4x16x12xf32, #tpu.memory_space<vmem>>, vector<1x1x16x12xf32>
    %149 = vector.shape_cast %148 : vector<1x1x16x12xf32> to vector<16x12xf32>
    %150 = arith.truncf %149 : vector<16x12xf32> to vector<16x12xbf16>
    %c0_101 = arith.constant 0 : index
    %c2_102 = arith.constant 2 : index
    %c0_103 = arith.constant 0 : index
    %c0_104 = arith.constant 0 : index
    %151 = vector.load %arg5[%c0_101, %c2_102, %c0_103, %c0_104] : memref<1x4x16x12xf32, #tpu.memory_space<vmem>>, vector<1x1x16x12xf32>
    %152 = vector.shape_cast %151 : vector<1x1x16x12xf32> to vector<16x12xf32>
    %153 = arith.truncf %152 : vector<16x12xf32> to vector<16x12xbf16>
    %cst_105 = arith.constant dense<0.000000e+00> : vector<16x16xf32>
    %154 = tpu.matmul %150, %153, %cst_105 {dimension_numbers = #tpu.dot_dimension_numbers<[1], [1], [0], [0], [0, 0, 1, 0], [], []>} : vector<16x12xbf16>, vector<16x12xbf16>, vector<16x16xf32> -> vector<16x16xf32>
    %cst_106 = arith.constant 0.204124153 : f32
    %155 = vector.broadcast %cst_106 : f32 to vector<16x16xf32>
    %156 = arith.mulf %155, %147 : vector<16x16xf32>
    %cst_107 = arith.constant 0.136082768 : f32
    %157 = vector.broadcast %cst_107 : f32 to vector<16x16xf32>
    %158 = arith.mulf %157, %154 : vector<16x16xf32>
    %159 = arith.addf %156, %158 : vector<16x16xf32>
    %160 = vector.extract_strided_slice %6 {offsets = [2, 0, 0], sizes = [1, 16, 16], strides = [1, 1, 1]} : vector<4x16x16xf32> to vector<1x16x16xf32>
    %161 = vector.shape_cast %160 : vector<1x16x16xf32> to vector<16x16xf32>
    %162 = arith.addf %159, %161 : vector<16x16xf32>
    %cst_108 = arith.constant dense<0xFF800000> : vector<16xf32>
    %163 = vector.multi_reduction <maximumf>, %162, %cst_108 [1] : vector<16x16xf32> to vector<16xf32>
    %164 = vector.shape_cast %163 : vector<16xf32> to vector<16x1xf32>
    %165 = vector.broadcast %164 : vector<16x1xf32> to vector<16x16xf32>
    %166 = arith.subf %162, %165 : vector<16x16xf32>
    %167 = math.exp %166 : vector<16x16xf32>
    %cst_109 = arith.constant dense<0.000000e+00> : vector<16xf32>
    %168 = vector.multi_reduction <add>, %167, %cst_109 [1] : vector<16x16xf32> to vector<16xf32>
    %169 = vector.shape_cast %168 : vector<16xf32> to vector<16x1xf32>
    %170 = vector.broadcast %169 : vector<16x1xf32> to vector<16x16xf32>
    %171 = arith.divf %167, %170 : vector<16x16xf32>
    %c2_110 = arith.constant 2 : index
    %c0_111 = arith.constant 0 : index
    %c0_112 = arith.constant 0 : index
    %172 = vector.load %arg14[%c2_110, %c0_111, %c0_112] : memref<16x16x16xf32, #tpu.memory_space<vmem>>, vector<1x16x16xf32>
    %173 = vector.shape_cast %172 : vector<1x16x16xf32> to vector<16x16xf32>
    %174 = vector.shape_cast %171 : vector<16x16xf32> to vector<1x16x16xf32>
    tpu.vector_store %arg14[%c2_110, %c0_111, %c0_112], %174 {strides = array<i32>} : memref<16x16x16xf32, #tpu.memory_space<vmem>>, vector<1x16x16xf32>,
    %cst_113 = arith.constant dense<0xFF800000> : vector<16xf32>
    %175 = vector.multi_reduction <maximumf>, %154, %cst_113 [1] : vector<16x16xf32> to vector<16xf32>
    %176 = vector.shape_cast %175 : vector<16xf32> to vector<16x1xf32>
    %177 = vector.broadcast %176 : vector<16x1xf32> to vector<16x16xf32>
    %178 = arith.subf %154, %177 : vector<16x16xf32>
    %179 = math.exp %178 : vector<16x16xf32>
    %cst_114 = arith.constant dense<0.000000e+00> : vector<16xf32>
    %180 = vector.multi_reduction <add>, %179, %cst_114 [1] : vector<16x16xf32> to vector<16xf32>
    %181 = vector.shape_cast %180 : vector<16xf32> to vector<16x1xf32>
    %182 = vector.broadcast %181 : vector<16x1xf32> to vector<16x16xf32>
    %183 = arith.divf %179, %182 : vector<16x16xf32>
    %c6 = arith.constant 6 : index
    %c0_115 = arith.constant 0 : index
    %c0_116 = arith.constant 0 : index
    %184 = vector.load %arg14[%c6, %c0_115, %c0_116] : memref<16x16x16xf32, #tpu.memory_space<vmem>>, vector<1x16x16xf32>
    %185 = vector.shape_cast %184 : vector<1x16x16xf32> to vector<16x16xf32>
    %186 = vector.shape_cast %183 : vector<16x16xf32> to vector<1x16x16xf32>
    tpu.vector_store %arg14[%c6, %c0_115, %c0_116], %186 {strides = array<i32>} : memref<16x16x16xf32, #tpu.memory_space<vmem>>, vector<1x16x16xf32>,
    %cst_117 = arith.constant dense<0xFF800000> : vector<16xf32>
    %187 = vector.multi_reduction <maximumf>, %147, %cst_117 [1] : vector<16x16xf32> to vector<16xf32>
    %188 = vector.shape_cast %187 : vector<16xf32> to vector<16x1xf32>
    %189 = vector.broadcast %188 : vector<16x1xf32> to vector<16x16xf32>
    %190 = arith.subf %147, %189 : vector<16x16xf32>
    %191 = math.exp %190 : vector<16x16xf32>
    %cst_118 = arith.constant dense<0.000000e+00> : vector<16xf32>
    %192 = vector.multi_reduction <add>, %191, %cst_118 [1] : vector<16x16xf32> to vector<16xf32>
    %193 = vector.shape_cast %192 : vector<16xf32> to vector<16x1xf32>
    %194 = vector.broadcast %193 : vector<16x1xf32> to vector<16x16xf32>
    %195 = arith.divf %191, %194 : vector<16x16xf32>
    %c10 = arith.constant 10 : index
    %c0_119 = arith.constant 0 : index
    %c0_120 = arith.constant 0 : index
    %196 = vector.load %arg14[%c10, %c0_119, %c0_120] : memref<16x16x16xf32, #tpu.memory_space<vmem>>, vector<1x16x16xf32>
    %197 = vector.shape_cast %196 : vector<1x16x16xf32> to vector<16x16xf32>
    %198 = vector.shape_cast %195 : vector<16x16xf32> to vector<1x16x16xf32>
    tpu.vector_store %arg14[%c10, %c0_119, %c0_120], %198 {strides = array<i32>} : memref<16x16x16xf32, #tpu.memory_space<vmem>>, vector<1x16x16xf32>,
    %199 = arith.truncf %171 : vector<16x16xf32> to vector<16x16xbf16>
    %c0_121 = arith.constant 0 : index
    %c2_122 = arith.constant 2 : index
    %c0_123 = arith.constant 0 : index
    %200 = vector.load %arg15[%c0_121, %c2_122, %c0_123] : memref<16x4x16xbf16, #tpu.memory_space<vmem>>, vector<16x1x16xbf16>
    %201 = vector.shape_cast %200 : vector<16x1x16xbf16> to vector<16x16xbf16>
    %202 = vector.shape_cast %199 : vector<16x16xbf16> to vector<16x1x16xbf16>
    tpu.vector_store %arg15[%c0_121, %c2_122, %c0_123], %202 {strides = array<i32>} : memref<16x4x16xbf16, #tpu.memory_space<vmem>>, vector<16x1x16xbf16>,
    %c0_124 = arith.constant 0 : index
    %c2_125 = arith.constant 2 : index
    %c0_126 = arith.constant 0 : index
    %c0_127 = arith.constant 0 : index
    %203 = vector.load %arg6[%c0_124, %c2_125, %c0_126, %c0_127] : memref<1x4x16x20xf32, #tpu.memory_space<vmem>>, vector<1x1x16x20xf32>
    %204 = vector.shape_cast %203 : vector<1x1x16x20xf32> to vector<16x20xf32>
    %205 = arith.truncf %204 : vector<16x20xf32> to vector<16x20xbf16>
    %cst_128 = arith.constant dense<0.000000e+00> : vector<16x20xf32>
    %206 = tpu.matmul %199, %205, %cst_128 {dimension_numbers = #tpu.dot_dimension_numbers<[1], [0], [0], [1], [0, 0, 1, 1], [], []>} : vector<16x16xbf16>, vector<16x20xbf16>, vector<16x20xf32> -> vector<16x20xf32>
    %c0_129 = arith.constant 0 : index
    %c3 = arith.constant 3 : index
    %c0_130 = arith.constant 0 : index
    %c0_131 = arith.constant 0 : index
    %207 = vector.load %arg2[%c0_129, %c3, %c0_130, %c0_131] : memref<1x4x16x8xf32, #tpu.memory_space<vmem>>, vector<1x1x16x8xf32>
    %208 = vector.shape_cast %207 : vector<1x1x16x8xf32> to vector<16x8xf32>
    %209 = arith.truncf %208 : vector<16x8xf32> to vector<16x8xbf16>
    %c0_132 = arith.constant 0 : index
    %c3_133 = arith.constant 3 : index
    %c0_134 = arith.constant 0 : index
    %c0_135 = arith.constant 0 : index
    %210 = vector.load %arg3[%c0_132, %c3_133, %c0_134, %c0_135] : memref<1x4x16x8xf32, #tpu.memory_space<vmem>>, vector<1x1x16x8xf32>
    %211 = vector.shape_cast %210 : vector<1x1x16x8xf32> to vector<16x8xf32>
    %212 = arith.truncf %211 : vector<16x8xf32> to vector<16x8xbf16>
    %cst_136 = arith.constant dense<0.000000e+00> : vector<16x16xf32>
    %213 = tpu.matmul %209, %212, %cst_136 {dimension_numbers = #tpu.dot_dimension_numbers<[1], [1], [0], [0], [0, 0, 1, 0], [], []>} : vector<16x8xbf16>, vector<16x8xbf16>, vector<16x16xf32> -> vector<16x16xf32>
    %c0_137 = arith.constant 0 : index
    %c3_138 = arith.constant 3 : index
    %c0_139 = arith.constant 0 : index
    %c0_140 = arith.constant 0 : index
    %214 = vector.load %arg4[%c0_137, %c3_138, %c0_139, %c0_140] : memref<1x4x16x12xf32, #tpu.memory_space<vmem>>, vector<1x1x16x12xf32>
    %215 = vector.shape_cast %214 : vector<1x1x16x12xf32> to vector<16x12xf32>
    %216 = arith.truncf %215 : vector<16x12xf32> to vector<16x12xbf16>
    %c0_141 = arith.constant 0 : index
    %c3_142 = arith.constant 3 : index
    %c0_143 = arith.constant 0 : index
    %c0_144 = arith.constant 0 : index
    %217 = vector.load %arg5[%c0_141, %c3_142, %c0_143, %c0_144] : memref<1x4x16x12xf32, #tpu.memory_space<vmem>>, vector<1x1x16x12xf32>
    %218 = vector.shape_cast %217 : vector<1x1x16x12xf32> to vector<16x12xf32>
    %219 = arith.truncf %218 : vector<16x12xf32> to vector<16x12xbf16>
    %cst_145 = arith.constant dense<0.000000e+00> : vector<16x16xf32>
    %220 = tpu.matmul %216, %219, %cst_145 {dimension_numbers = #tpu.dot_dimension_numbers<[1], [1], [0], [0], [0, 0, 1, 0], [], []>} : vector<16x12xbf16>, vector<16x12xbf16>, vector<16x16xf32> -> vector<16x16xf32>
    %cst_146 = arith.constant 0.204124153 : f32
    %221 = vector.broadcast %cst_146 : f32 to vector<16x16xf32>
    %222 = arith.mulf %221, %213 : vector<16x16xf32>
    %cst_147 = arith.constant 0.136082768 : f32
    %223 = vector.broadcast %cst_147 : f32 to vector<16x16xf32>
    %224 = arith.mulf %223, %220 : vector<16x16xf32>
    %225 = arith.addf %222, %224 : vector<16x16xf32>
    %226 = vector.extract_strided_slice %6 {offsets = [3, 0, 0], sizes = [1, 16, 16], strides = [1, 1, 1]} : vector<4x16x16xf32> to vector<1x16x16xf32>
    %227 = vector.shape_cast %226 : vector<1x16x16xf32> to vector<16x16xf32>
    %228 = arith.addf %225, %227 : vector<16x16xf32>
    %cst_148 = arith.constant dense<0xFF800000> : vector<16xf32>
    %229 = vector.multi_reduction <maximumf>, %228, %cst_148 [1] : vector<16x16xf32> to vector<16xf32>
    %230 = vector.shape_cast %229 : vector<16xf32> to vector<16x1xf32>
    %231 = vector.broadcast %230 : vector<16x1xf32> to vector<16x16xf32>
    %232 = arith.subf %228, %231 : vector<16x16xf32>
    %233 = math.exp %232 : vector<16x16xf32>
    %cst_149 = arith.constant dense<0.000000e+00> : vector<16xf32>
    %234 = vector.multi_reduction <add>, %233, %cst_149 [1] : vector<16x16xf32> to vector<16xf32>
    %235 = vector.shape_cast %234 : vector<16xf32> to vector<16x1xf32>
    %236 = vector.broadcast %235 : vector<16x1xf32> to vector<16x16xf32>
    %237 = arith.divf %233, %236 : vector<16x16xf32>
    %c3_150 = arith.constant 3 : index
    %c0_151 = arith.constant 0 : index
    %c0_152 = arith.constant 0 : index
    %238 = vector.load %arg14[%c3_150, %c0_151, %c0_152] : memref<16x16x16xf32, #tpu.memory_space<vmem>>, vector<1x16x16xf32>
    %239 = vector.shape_cast %238 : vector<1x16x16xf32> to vector<16x16xf32>
    %240 = vector.shape_cast %237 : vector<16x16xf32> to vector<1x16x16xf32>
    tpu.vector_store %arg14[%c3_150, %c0_151, %c0_152], %240 {strides = array<i32>} : memref<16x16x16xf32, #tpu.memory_space<vmem>>, vector<1x16x16xf32>,
    %cst_153 = arith.constant dense<0xFF800000> : vector<16xf32>
    %241 = vector.multi_reduction <maximumf>, %220, %cst_153 [1] : vector<16x16xf32> to vector<16xf32>
    %242 = vector.shape_cast %241 : vector<16xf32> to vector<16x1xf32>
    %243 = vector.broadcast %242 : vector<16x1xf32> to vector<16x16xf32>
    %244 = arith.subf %220, %243 : vector<16x16xf32>
    %245 = math.exp %244 : vector<16x16xf32>
    %cst_154 = arith.constant dense<0.000000e+00> : vector<16xf32>
    %246 = vector.multi_reduction <add>, %245, %cst_154 [1] : vector<16x16xf32> to vector<16xf32>
    %247 = vector.shape_cast %246 : vector<16xf32> to vector<16x1xf32>
    %248 = vector.broadcast %247 : vector<16x1xf32> to vector<16x16xf32>
    %249 = arith.divf %245, %248 : vector<16x16xf32>
    %c7 = arith.constant 7 : index
    %c0_155 = arith.constant 0 : index
    %c0_156 = arith.constant 0 : index
    %250 = vector.load %arg14[%c7, %c0_155, %c0_156] : memref<16x16x16xf32, #tpu.memory_space<vmem>>, vector<1x16x16xf32>
    %251 = vector.shape_cast %250 : vector<1x16x16xf32> to vector<16x16xf32>
    %252 = vector.shape_cast %249 : vector<16x16xf32> to vector<1x16x16xf32>
    tpu.vector_store %arg14[%c7, %c0_155, %c0_156], %252 {strides = array<i32>} : memref<16x16x16xf32, #tpu.memory_space<vmem>>, vector<1x16x16xf32>,
    %cst_157 = arith.constant dense<0xFF800000> : vector<16xf32>
    %253 = vector.multi_reduction <maximumf>, %213, %cst_157 [1] : vector<16x16xf32> to vector<16xf32>
    %254 = vector.shape_cast %253 : vector<16xf32> to vector<16x1xf32>
    %255 = vector.broadcast %254 : vector<16x1xf32> to vector<16x16xf32>
    %256 = arith.subf %213, %255 : vector<16x16xf32>
    %257 = math.exp %256 : vector<16x16xf32>
    %cst_158 = arith.constant dense<0.000000e+00> : vector<16xf32>
    %258 = vector.multi_reduction <add>, %257, %cst_158 [1] : vector<16x16xf32> to vector<16xf32>
    %259 = vector.shape_cast %258 : vector<16xf32> to vector<16x1xf32>
    %260 = vector.broadcast %259 : vector<16x1xf32> to vector<16x16xf32>
    %261 = arith.divf %257, %260 : vector<16x16xf32>
    %c11 = arith.constant 11 : index
    %c0_159 = arith.constant 0 : index
    %c0_160 = arith.constant 0 : index
    %262 = vector.load %arg14[%c11, %c0_159, %c0_160] : memref<16x16x16xf32, #tpu.memory_space<vmem>>, vector<1x16x16xf32>
    %263 = vector.shape_cast %262 : vector<1x16x16xf32> to vector<16x16xf32>
    %264 = vector.shape_cast %261 : vector<16x16xf32> to vector<1x16x16xf32>
    tpu.vector_store %arg14[%c11, %c0_159, %c0_160], %264 {strides = array<i32>} : memref<16x16x16xf32, #tpu.memory_space<vmem>>, vector<1x16x16xf32>,
    %265 = arith.truncf %237 : vector<16x16xf32> to vector<16x16xbf16>
    %c0_161 = arith.constant 0 : index
    %c3_162 = arith.constant 3 : index
    %c0_163 = arith.constant 0 : index
    %266 = vector.load %arg15[%c0_161, %c3_162, %c0_163] : memref<16x4x16xbf16, #tpu.memory_space<vmem>>, vector<16x1x16xbf16>
    %267 = vector.shape_cast %266 : vector<16x1x16xbf16> to vector<16x16xbf16>
    %268 = vector.shape_cast %265 : vector<16x16xbf16> to vector<16x1x16xbf16>
    tpu.vector_store %arg15[%c0_161, %c3_162, %c0_163], %268 {strides = array<i32>} : memref<16x4x16xbf16, #tpu.memory_space<vmem>>, vector<16x1x16xbf16>,
    %c0_164 = arith.constant 0 : index
    %c3_165 = arith.constant 3 : index
    %c0_166 = arith.constant 0 : index
    %c0_167 = arith.constant 0 : index
    %269 = vector.load %arg6[%c0_164, %c3_165, %c0_166, %c0_167] : memref<1x4x16x20xf32, #tpu.memory_space<vmem>>, vector<1x1x16x20xf32>
    %270 = vector.shape_cast %269 : vector<1x1x16x20xf32> to vector<16x20xf32>
    %271 = arith.truncf %270 : vector<16x20xf32> to vector<16x20xbf16>
    %cst_168 = arith.constant dense<0.000000e+00> : vector<16x20xf32>
    %272 = tpu.matmul %265, %271, %cst_168 {dimension_numbers = #tpu.dot_dimension_numbers<[1], [0], [0], [1], [0, 0, 1, 1], [], []>} : vector<16x16xbf16>, vector<16x20xbf16>, vector<16x20xf32> -> vector<16x20xf32>
    %273 = tpu.concatenate %74, %140, %206, %272 in 1 : vector<16x20xf32>, vector<16x20xf32>, vector<16x20xf32>, vector<16x20xf32> -> vector<16x80xf32>
    %c0_169 = arith.constant 0 : index
    %c0_170 = arith.constant 0 : index
    %c0_171 = arith.constant 0 : index
    %274 = vector.load %arg11[%c0_169, %c0_170, %c0_171] : memref<1x16x80xf32, #tpu.memory_space<vmem>>, vector<1x16x80xf32>
    %275 = vector.shape_cast %274 : vector<1x16x80xf32> to vector<16x80xf32>
    %276 = vector.shape_cast %273 : vector<16x80xf32> to vector<1x16x80xf32>
    tpu.vector_store %arg11[%c0_169, %c0_170, %c0_171], %276 {strides = array<i32>} : memref<1x16x80xf32, #tpu.memory_space<vmem>>, vector<1x16x80xf32>,
    %c0_172 = arith.constant 0 : index
    %c0_173 = arith.constant 0 : index
    %c0_174 = arith.constant 0 : index
    %277 = vector.load %arg15[%c0_172, %c0_173, %c0_174] : memref<16x4x16xbf16, #tpu.memory_space<vmem>>, vector<16x4x16xbf16>
    %cst_175 = arith.constant dense<0.000000e+00> : vector<16x4x16xf32>
    %278 = tpu.matmul %277, %2, %cst_175 {dimension_numbers = #tpu.dot_dimension_numbers<[2], [1], [1], [2], [0, 0, 0, 1, 1, 2], [0], [0]>} : vector<16x4x16xbf16>, vector<16x16x16xbf16>, vector<16x4x16xf32> -> vector<16x4x16xf32>
    %279 = vector.shape_cast %278 : vector<16x4x16xf32> to vector<16x64xf32>
    %c0_176 = arith.constant 0 : index
    %c0_177 = arith.constant 0 : index
    %c0_178 = arith.constant 0 : index
    %280 = vector.load %arg12[%c0_176, %c0_177, %c0_178] : memref<1x16x64xf32, #tpu.memory_space<vmem>>, vector<1x16x64xf32>
    %281 = vector.shape_cast %280 : vector<1x16x64xf32> to vector<16x64xf32>
    %282 = vector.shape_cast %279 : vector<16x64xf32> to vector<1x16x64xf32>
    tpu.vector_store %arg12[%c0_176, %c0_177, %c0_178], %282 {strides = array<i32>} : memref<1x16x64xf32, #tpu.memory_space<vmem>>, vector<1x16x64xf32>,
    %c0_179 = arith.constant 0 : index
    %c0_180 = arith.constant 0 : index
    %c0_181 = arith.constant 0 : index
    %283 = vector.load %arg14[%c0_179, %c0_180, %c0_181] : memref<16x16x16xf32, #tpu.memory_space<vmem>>, vector<16x16x16xf32>
    %284 = vector.shape_cast %283 : vector<16x16x16xf32> to vector<16x256xf32>
    %285 = tpu.transpose %284, [1, 0] : vector<16x256xf32> -> vector<256x16xf32>
    %286 = arith.truncf %285 : vector<256x16xf32> to vector<256x16xbf16>
    %c0_182 = arith.constant 0 : index
    %c0_183 = arith.constant 0 : index
    %287 = vector.load %arg9[%c0_182, %c0_183] : memref<16x16xbf16, #tpu.memory_space<vmem>>, vector<16x16xbf16>
    %cst_184 = arith.constant dense<0.000000e+00> : vector<256x16xf32>
    %288 = tpu.matmul %286, %287, %cst_184 {dimension_numbers = #tpu.dot_dimension_numbers<[1], [0], [0], [1], [0, 0, 1, 1], [], []>} : vector<256x16xbf16>, vector<16x16xbf16>, vector<256x16xf32> -> vector<256x16xf32>
    %289 = vector.shape_cast %288 : vector<256x16xf32> to vector<16x16x16xf32>
    %c0_185 = arith.constant 0 : index
    %c0_186 = arith.constant 0 : index
    %290 = vector.load %arg10[%c0_185, %c0_186] : memref<1x16xf32, #tpu.memory_space<vmem>>, vector<1x16xf32>
    %291 = vector.shape_cast %290 : vector<1x16xf32> to vector<1x1x16xf32>
    %292 = vector.broadcast %291 : vector<1x1x16xf32> to vector<16x16x16xf32>
    %293 = arith.addf %289, %292 : vector<16x16x16xf32>
    %c0_187 = arith.constant 0 : index
    %c0_188 = arith.constant 0 : index
    %c0_189 = arith.constant 0 : index
    %c0_190 = arith.constant 0 : index
    %294 = vector.load %arg13[%c0_187, %c0_188, %c0_189, %c0_190] : memref<1x16x16x16xf32, #tpu.memory_space<vmem>>, vector<1x16x16x16xf32>
    %295 = vector.shape_cast %294 : vector<1x16x16x16xf32> to vector<16x16x16xf32>
    %296 = vector.shape_cast %293 : vector<16x16x16xf32> to vector<1x16x16x16xf32>
    tpu.vector_store %arg13[%c0_187, %c0_188, %c0_189, %c0_190], %296 {strides = array<i32>} : memref<1x16x16x16xf32, #tpu.memory_space<vmem>>, vector<1x16x16x16xf32>,
    return
  }
  func.func @transform_0(%arg0: i32, %arg1: i32) -> (i32, i32, i32, i32) {
    %c0_i32 = arith.constant 0 : i32
    %c0_i32_0 = arith.constant 0 : i32
    %c0_i32_1 = arith.constant 0 : i32
    return %arg0, %c0_i32, %arg1, %c0_i32_0 : i32, i32, i32, i32
  }
  func.func @transform_1(%arg0: i32, %arg1: i32) -> (i32, i32, i32, i32) {
    %c0_i32 = arith.constant 0 : i32
    %c0_i32_0 = arith.constant 0 : i32
    %c0_i32_1 = arith.constant 0 : i32
    %c0_i32_2 = arith.constant 0 : i32
    return %arg0, %c0_i32, %c0_i32_0, %c0_i32_1 : i32, i32, i32, i32
  }
  func.func @transform_2(%arg0: i32, %arg1: i32) -> (i32, i32, i32, i32) {
    %c0_i32 = arith.constant 0 : i32
    %c0_i32_0 = arith.constant 0 : i32
    %c0_i32_1 = arith.constant 0 : i32
    return %arg0, %c0_i32, %arg1, %c0_i32_0 : i32, i32, i32, i32
  }
  func.func @transform_3(%arg0: i32, %arg1: i32) -> (i32, i32, i32, i32) {
    %c0_i32 = arith.constant 0 : i32
    %c0_i32_0 = arith.constant 0 : i32
    %c0_i32_1 = arith.constant 0 : i32
    %c0_i32_2 = arith.constant 0 : i32
    return %arg0, %c0_i32, %c0_i32_0, %c0_i32_1 : i32, i32, i32, i32
  }
  func.func @transform_4(%arg0: i32, %arg1: i32) -> (i32, i32, i32, i32) {
    %c0_i32 = arith.constant 0 : i32
    %c0_i32_0 = arith.constant 0 : i32
    %c0_i32_1 = arith.constant 0 : i32
    %c0_i32_2 = arith.constant 0 : i32
    return %arg0, %c0_i32, %c0_i32_0, %c0_i32_1 : i32, i32, i32, i32
  }
  func.func @transform_5(%arg0: i32, %arg1: i32) -> (i32, i32, i32, i32) {
    %c0_i32 = arith.constant 0 : i32
    %c0_i32_0 = arith.constant 0 : i32
    %c0_i32_1 = arith.constant 0 : i32
    return %arg0, %arg1, %c0_i32, %c0_i32_0 : i32, i32, i32, i32
  }
  func.func @transform_6(%arg0: i32, %arg1: i32) -> (i32, i32) {
    %c0_i32 = arith.constant 0 : i32
    %c0_i32_0 = arith.constant 0 : i32
    %c0_i32_1 = arith.constant 0 : i32
    return %c0_i32, %c0_i32_0 : i32, i32
  }
  func.func @transform_7(%arg0: i32, %arg1: i32) -> (i32, i32) {
    %c0_i32 = arith.constant 0 : i32
    %c0_i32_0 = arith.constant 0 : i32
    %c0_i32_1 = arith.constant 0 : i32
    return %c0_i32, %c0_i32_0 : i32, i32
  }
  func.func @transform_8(%arg0: i32, %arg1: i32) -> (i32, i32) {
    %c0_i32 = arith.constant 0 : i32
    %c0_i32_0 = arith.constant 0 : i32
    %c0_i32_1 = arith.constant 0 : i32
    return %c0_i32, %c0_i32_0 : i32, i32
  }
  func.func @transform_9(%arg0: i32, %arg1: i32) -> (i32, i32, i32) {
    %c0_i32 = arith.constant 0 : i32
    %c0_i32_0 = arith.constant 0 : i32
    return %arg0, %arg1, %c0_i32 : i32, i32, i32
  }
  func.func @transform_10(%arg0: i32, %arg1: i32) -> (i32, i32, i32) {
    %c0_i32 = arith.constant 0 : i32
    %c0_i32_0 = arith.constant 0 : i32
    return %arg0, %arg1, %c0_i32 : i32, i32, i32
  }
  func.func @transform_11(%arg0: i32, %arg1: i32) -> (i32, i32, i32, i32) {
    %c0_i32 = arith.constant 0 : i32
    %c0_i32_0 = arith.constant 0 : i32
    %c0_i32_1 = arith.constant 0 : i32
    return %arg0, %arg1, %c0_i32, %c0_i32_0 : i32, i32, i32, i32
  }
}

module attributes {stable_mosaic.version = 11 : i64} {
  func.func @_linear_bias_kernel(%arg0: i32, %arg1: memref<32x160xf32, #tpu.memory_space<vmem>>, %arg2: memref<160x32xbf16, #tpu.memory_space<vmem>>, %arg3: memref<1x32xf32, #tpu.memory_space<vmem>>, %arg4: memref<32x32xf32, #tpu.memory_space<vmem>>) attributes {dimension_semantics = [#tpu.dimension_semantics<parallel>], iteration_bounds = array<i64: 1>, scalar_prefetch = 0 : i64, scratch_operands = 0 : i64, tpu.core_type = #tpu.core_type<tc>, window_params = [{transform_indices = @transform_0, window_bounds = array<i64: 32, 160>}, {pipeline_mode = #tpu.pipeline_mode<synchronous>, transform_indices = @transform_1, window_bounds = array<i64: 160, 32>}, {pipeline_mode = #tpu.pipeline_mode<synchronous>, transform_indices = @transform_2, window_bounds = array<i64: 1, 32>}, {transform_indices = @transform_3, window_bounds = array<i64: 32, 32>}]} {
    %c0 = arith.constant 0 : index
    %c0_0 = arith.constant 0 : index
    %0 = vector.load %arg1[%c0, %c0_0] : memref<32x160xf32, #tpu.memory_space<vmem>>, vector<32x160xf32>
    %1 = arith.truncf %0 : vector<32x160xf32> to vector<32x160xbf16>
    %c0_1 = arith.constant 0 : index
    %c0_2 = arith.constant 0 : index
    %2 = vector.load %arg2[%c0_1, %c0_2] : memref<160x32xbf16, #tpu.memory_space<vmem>>, vector<160x32xbf16>
    %cst = arith.constant dense<0.000000e+00> : vector<32x32xf32>
    %3 = tpu.matmul %1, %2, %cst {dimension_numbers = #tpu.dot_dimension_numbers<[1], [0], [0], [1], [0, 0, 1, 1], [], []>} : vector<32x160xbf16>, vector<160x32xbf16>, vector<32x32xf32> -> vector<32x32xf32>
    %c0_3 = arith.constant 0 : index
    %c0_4 = arith.constant 0 : index
    %4 = vector.load %arg3[%c0_3, %c0_4] : memref<1x32xf32, #tpu.memory_space<vmem>>, vector<1x32xf32>
    %5 = vector.broadcast %4 : vector<1x32xf32> to vector<32x32xf32>
    %6 = arith.addf %3, %5 : vector<32x32xf32>
    %c0_5 = arith.constant 0 : index
    %c0_6 = arith.constant 0 : index
    %7 = vector.load %arg4[%c0_5, %c0_6] : memref<32x32xf32, #tpu.memory_space<vmem>>, vector<32x32xf32>
    tpu.vector_store %arg4[%c0_5, %c0_6], %6 {strides = array<i32>} : memref<32x32xf32, #tpu.memory_space<vmem>>, vector<32x32xf32>,
    return
  }
  func.func @transform_0(%arg0: i32) -> (i32, i32) {
    %c0_i32 = arith.constant 0 : i32
    %c0_i32_0 = arith.constant 0 : i32
    return %arg0, %c0_i32 : i32, i32
  }
  func.func @transform_1(%arg0: i32) -> (i32, i32) {
    %c0_i32 = arith.constant 0 : i32
    %c0_i32_0 = arith.constant 0 : i32
    %c0_i32_1 = arith.constant 0 : i32
    return %c0_i32, %c0_i32_0 : i32, i32
  }
  func.func @transform_2(%arg0: i32) -> (i32, i32) {
    %c0_i32 = arith.constant 0 : i32
    %c0_i32_0 = arith.constant 0 : i32
    %c0_i32_1 = arith.constant 0 : i32
    return %c0_i32, %c0_i32_0 : i32, i32
  }
  func.func @transform_3(%arg0: i32) -> (i32, i32) {
    %c0_i32 = arith.constant 0 : i32
    %c0_i32_0 = arith.constant 0 : i32
    return %arg0, %c0_i32 : i32, i32
  }
}

module attributes {stable_mosaic.version = 11 : i64} {
  func.func @_linear_bias_kernel(%arg0: i32, %arg1: memref<32x32xf32, #tpu.memory_space<vmem>>, %arg2: memref<32x64xbf16, #tpu.memory_space<vmem>>, %arg3: memref<1x64xf32, #tpu.memory_space<vmem>>, %arg4: memref<32x64xf32, #tpu.memory_space<vmem>>) attributes {dimension_semantics = [#tpu.dimension_semantics<parallel>], iteration_bounds = array<i64: 1>, scalar_prefetch = 0 : i64, scratch_operands = 0 : i64, tpu.core_type = #tpu.core_type<tc>, window_params = [{transform_indices = @transform_0, window_bounds = array<i64: 32, 32>}, {pipeline_mode = #tpu.pipeline_mode<synchronous>, transform_indices = @transform_1, window_bounds = array<i64: 32, 64>}, {pipeline_mode = #tpu.pipeline_mode<synchronous>, transform_indices = @transform_2, window_bounds = array<i64: 1, 64>}, {transform_indices = @transform_3, window_bounds = array<i64: 32, 64>}]} {
    %c0 = arith.constant 0 : index
    %c0_0 = arith.constant 0 : index
    %0 = vector.load %arg1[%c0, %c0_0] : memref<32x32xf32, #tpu.memory_space<vmem>>, vector<32x32xf32>
    %1 = arith.truncf %0 : vector<32x32xf32> to vector<32x32xbf16>
    %c0_1 = arith.constant 0 : index
    %c0_2 = arith.constant 0 : index
    %2 = vector.load %arg2[%c0_1, %c0_2] : memref<32x64xbf16, #tpu.memory_space<vmem>>, vector<32x64xbf16>
    %cst = arith.constant dense<0.000000e+00> : vector<32x64xf32>
    %3 = tpu.matmul %1, %2, %cst {dimension_numbers = #tpu.dot_dimension_numbers<[1], [0], [0], [1], [0, 0, 1, 1], [], []>} : vector<32x32xbf16>, vector<32x64xbf16>, vector<32x64xf32> -> vector<32x64xf32>
    %c0_3 = arith.constant 0 : index
    %c0_4 = arith.constant 0 : index
    %4 = vector.load %arg3[%c0_3, %c0_4] : memref<1x64xf32, #tpu.memory_space<vmem>>, vector<1x64xf32>
    %5 = vector.broadcast %4 : vector<1x64xf32> to vector<32x64xf32>
    %6 = arith.addf %3, %5 : vector<32x64xf32>
    %c0_5 = arith.constant 0 : index
    %c0_6 = arith.constant 0 : index
    %7 = vector.load %arg4[%c0_5, %c0_6] : memref<32x64xf32, #tpu.memory_space<vmem>>, vector<32x64xf32>
    tpu.vector_store %arg4[%c0_5, %c0_6], %6 {strides = array<i32>} : memref<32x64xf32, #tpu.memory_space<vmem>>, vector<32x64xf32>,
    return
  }
  func.func @transform_0(%arg0: i32) -> (i32, i32) {
    %c0_i32 = arith.constant 0 : i32
    %c0_i32_0 = arith.constant 0 : i32
    return %arg0, %c0_i32 : i32, i32
  }
  func.func @transform_1(%arg0: i32) -> (i32, i32) {
    %c0_i32 = arith.constant 0 : i32
    %c0_i32_0 = arith.constant 0 : i32
    %c0_i32_1 = arith.constant 0 : i32
    return %c0_i32, %c0_i32_0 : i32, i32
  }
  func.func @transform_2(%arg0: i32) -> (i32, i32) {
    %c0_i32 = arith.constant 0 : i32
    %c0_i32_0 = arith.constant 0 : i32
    %c0_i32_1 = arith.constant 0 : i32
    return %c0_i32, %c0_i32_0 : i32, i32
  }
  func.func @transform_3(%arg0: i32) -> (i32, i32) {
    %c0_i32 = arith.constant 0 : i32
    %c0_i32_0 = arith.constant 0 : i32
    return %arg0, %c0_i32 : i32, i32
  }
}

module attributes {stable_mosaic.version = 11 : i64} {
  func.func @_linear_bias_kernel(%arg0: i32, %arg1: memref<32x64xf32, #tpu.memory_space<vmem>>, %arg2: memref<64x32xbf16, #tpu.memory_space<vmem>>, %arg3: memref<1x32xf32, #tpu.memory_space<vmem>>, %arg4: memref<32x32xf32, #tpu.memory_space<vmem>>) attributes {dimension_semantics = [#tpu.dimension_semantics<parallel>], iteration_bounds = array<i64: 1>, scalar_prefetch = 0 : i64, scratch_operands = 0 : i64, tpu.core_type = #tpu.core_type<tc>, window_params = [{transform_indices = @transform_0, window_bounds = array<i64: 32, 64>}, {pipeline_mode = #tpu.pipeline_mode<synchronous>, transform_indices = @transform_1, window_bounds = array<i64: 64, 32>}, {pipeline_mode = #tpu.pipeline_mode<synchronous>, transform_indices = @transform_2, window_bounds = array<i64: 1, 32>}, {transform_indices = @transform_3, window_bounds = array<i64: 32, 32>}]} {
    %c0 = arith.constant 0 : index
    %c0_0 = arith.constant 0 : index
    %0 = vector.load %arg1[%c0, %c0_0] : memref<32x64xf32, #tpu.memory_space<vmem>>, vector<32x64xf32>
    %1 = arith.truncf %0 : vector<32x64xf32> to vector<32x64xbf16>
    %c0_1 = arith.constant 0 : index
    %c0_2 = arith.constant 0 : index
    %2 = vector.load %arg2[%c0_1, %c0_2] : memref<64x32xbf16, #tpu.memory_space<vmem>>, vector<64x32xbf16>
    %cst = arith.constant dense<0.000000e+00> : vector<32x32xf32>
    %3 = tpu.matmul %1, %2, %cst {dimension_numbers = #tpu.dot_dimension_numbers<[1], [0], [0], [1], [0, 0, 1, 1], [], []>} : vector<32x64xbf16>, vector<64x32xbf16>, vector<32x32xf32> -> vector<32x32xf32>
    %c0_3 = arith.constant 0 : index
    %c0_4 = arith.constant 0 : index
    %4 = vector.load %arg3[%c0_3, %c0_4] : memref<1x32xf32, #tpu.memory_space<vmem>>, vector<1x32xf32>
    %5 = vector.broadcast %4 : vector<1x32xf32> to vector<32x32xf32>
    %6 = arith.addf %3, %5 : vector<32x32xf32>
    %c0_5 = arith.constant 0 : index
    %c0_6 = arith.constant 0 : index
    %7 = vector.load %arg4[%c0_5, %c0_6] : memref<32x32xf32, #tpu.memory_space<vmem>>, vector<32x32xf32>
    tpu.vector_store %arg4[%c0_5, %c0_6], %6 {strides = array<i32>} : memref<32x32xf32, #tpu.memory_space<vmem>>, vector<32x32xf32>,
    return
  }
  func.func @transform_0(%arg0: i32) -> (i32, i32) {
    %c0_i32 = arith.constant 0 : i32
    %c0_i32_0 = arith.constant 0 : i32
    return %arg0, %c0_i32 : i32, i32
  }
  func.func @transform_1(%arg0: i32) -> (i32, i32) {
    %c0_i32 = arith.constant 0 : i32
    %c0_i32_0 = arith.constant 0 : i32
    %c0_i32_1 = arith.constant 0 : i32
    return %c0_i32, %c0_i32_0 : i32, i32
  }
  func.func @transform_2(%arg0: i32) -> (i32, i32) {
    %c0_i32 = arith.constant 0 : i32
    %c0_i32_0 = arith.constant 0 : i32
    %c0_i32_1 = arith.constant 0 : i32
    return %c0_i32, %c0_i32_0 : i32, i32
  }
  func.func @transform_3(%arg0: i32) -> (i32, i32) {
    %c0_i32 = arith.constant 0 : i32
    %c0_i32_0 = arith.constant 0 : i32
    return %arg0, %c0_i32 : i32, i32
  }
}

module attributes {stable_mosaic.version = 11 : i64} {
  func.func @_linear_bias_kernel(%arg0: i32, %arg1: memref<512x16xf32, #tpu.memory_space<vmem>>, %arg2: memref<16x16xbf16, #tpu.memory_space<vmem>>, %arg3: memref<1x16xf32, #tpu.memory_space<vmem>>, %arg4: memref<512x16xf32, #tpu.memory_space<vmem>>) attributes {dimension_semantics = [#tpu.dimension_semantics<parallel>], iteration_bounds = array<i64: 1>, scalar_prefetch = 0 : i64, scratch_operands = 0 : i64, tpu.core_type = #tpu.core_type<tc>, window_params = [{transform_indices = @transform_0, window_bounds = array<i64: 512, 16>}, {pipeline_mode = #tpu.pipeline_mode<synchronous>, transform_indices = @transform_1, window_bounds = array<i64: 16, 16>}, {pipeline_mode = #tpu.pipeline_mode<synchronous>, transform_indices = @transform_2, window_bounds = array<i64: 1, 16>}, {transform_indices = @transform_3, window_bounds = array<i64: 512, 16>}]} {
    %c0 = arith.constant 0 : index
    %c0_0 = arith.constant 0 : index
    %0 = vector.load %arg1[%c0, %c0_0] : memref<512x16xf32, #tpu.memory_space<vmem>>, vector<512x16xf32>
    %1 = arith.truncf %0 : vector<512x16xf32> to vector<512x16xbf16>
    %c0_1 = arith.constant 0 : index
    %c0_2 = arith.constant 0 : index
    %2 = vector.load %arg2[%c0_1, %c0_2] : memref<16x16xbf16, #tpu.memory_space<vmem>>, vector<16x16xbf16>
    %cst = arith.constant dense<0.000000e+00> : vector<512x16xf32>
    %3 = tpu.matmul %1, %2, %cst {dimension_numbers = #tpu.dot_dimension_numbers<[1], [0], [0], [1], [0, 0, 1, 1], [], []>} : vector<512x16xbf16>, vector<16x16xbf16>, vector<512x16xf32> -> vector<512x16xf32>
    %c0_3 = arith.constant 0 : index
    %c0_4 = arith.constant 0 : index
    %4 = vector.load %arg3[%c0_3, %c0_4] : memref<1x16xf32, #tpu.memory_space<vmem>>, vector<1x16xf32>
    %5 = vector.broadcast %4 : vector<1x16xf32> to vector<512x16xf32>
    %6 = arith.addf %3, %5 : vector<512x16xf32>
    %c0_5 = arith.constant 0 : index
    %c0_6 = arith.constant 0 : index
    %7 = vector.load %arg4[%c0_5, %c0_6] : memref<512x16xf32, #tpu.memory_space<vmem>>, vector<512x16xf32>
    tpu.vector_store %arg4[%c0_5, %c0_6], %6 {strides = array<i32>} : memref<512x16xf32, #tpu.memory_space<vmem>>, vector<512x16xf32>,
    return
  }
  func.func @transform_0(%arg0: i32) -> (i32, i32) {
    %c0_i32 = arith.constant 0 : i32
    %c0_i32_0 = arith.constant 0 : i32
    return %arg0, %c0_i32 : i32, i32
  }
  func.func @transform_1(%arg0: i32) -> (i32, i32) {
    %c0_i32 = arith.constant 0 : i32
    %c0_i32_0 = arith.constant 0 : i32
    %c0_i32_1 = arith.constant 0 : i32
    return %c0_i32, %c0_i32_0 : i32, i32
  }
  func.func @transform_2(%arg0: i32) -> (i32, i32) {
    %c0_i32 = arith.constant 0 : i32
    %c0_i32_0 = arith.constant 0 : i32
    %c0_i32_1 = arith.constant 0 : i32
    return %c0_i32, %c0_i32_0 : i32, i32
  }
  func.func @transform_3(%arg0: i32) -> (i32, i32) {
    %c0_i32 = arith.constant 0 : i32
    %c0_i32_0 = arith.constant 0 : i32
    return %arg0, %c0_i32 : i32, i32
  }
}

</mosaic_0001>

<llo_original>
// kernel: block_forward.6
$region0: #{block_forward.6}
  #allocation0 [shape = 'u32[]', space=smem, size = 0x4, offset = 0x4, fixed_abs, tag = 'smem constant byte address 0x4 - core index']
  #allocation1 [shape = 'u32[144,128]{1,0:T(1,128)}', space=vmem, size = 0x12000, scoped, tag = 'internal scratch']
  %s0 = inlined_call_operand.vmem [shape: f32[32,32], index: 0, kind: input, shape index: {}]
  %s1 = inlined_call_operand.vmem [shape: bf16[32,240], index: 1, kind: input, shape index: {}]
  %s2 = inlined_call_operand.vmem [shape: f32[32,240], index: 2, kind: output, shape index: {}]
  %s3 = sld [smem:[#allocation0]]
  $region18: #{block_forward.6} parent=0
    _
  %s5 = ssub.s32 1, %s3
  %s6 = scalar_select 0, %s5, %s3
  // Predicated region
  $region2: #{block_forward.6} parent=0 // pred_check
    _
  $region3: #{block_forward.6} parent=0 // pred_check_branch
    %8 = sbr.rel (0) target = $region5
  $region4: #{block_forward.6} parent=0 // pred_region
    _
  $region5: #{block_forward.6} parent=0 // pred_fallthru
    _
  // Predicated region
  $region6: #{block_forward.6} parent=0 // pred_check
    _
  $region7: #{block_forward.6} parent=0 // pred_check_branch
    %10 = sbr.rel (0) target = $region9
  $region8: #{block_forward.6} parent=0 // pred_region
    _
  $region9: #{block_forward.6} parent=0 // pred_fallthru
    _
  %v12 = vld [vmem:[%s0] sm:$0xff]
  %v13 = vld [vmem:[%s0 + $0x8] sm:$0xff]
  %v14 = vld [vmem:[%s0 + $0x10] sm:$0xff]
  %v15 = vld [vmem:[%s0 + $0x18] sm:$0xff]
  %v16 = vpack.c.bf16 %v13, %v12
  %v17 = vpack.c.bf16 %v15, %v14
  %v18 = vld [vmem:[%s1] sm:$0xff]
  %v19 = vld [vmem:[%s1 + $0x8] sm:$0xff]
  %v20 = vld [vmem:[%s1 + $0x10] sm:$0xff]
  %v21 = vld [vmem:[%s1 + $0x18] sm:$0xff]
  %v26 = vunpack.c.l.b16 %v18
  %v27 = vunpack.c.h.b16 %v18
  %v28 = vunpack.c.l.b16 %v19
  %v29 = vunpack.c.h.b16 %v19
  %v30 = vunpack.c.l.b16 %v20
  %v31 = vunpack.c.h.b16 %v20
  %v32 = vunpack.c.l.b16 %v21
  %v33 = vunpack.c.h.b16 %v21
  %v34 = vpack.c.b16 %v28, %v26
  %v35 = vpack.c.b16 %v29, %v27
  %v36 = vpack.c.b16 %v32, %v30
  %v37 = vpack.c.b16 %v33, %v31
  %vm42 = vcmask 261120
  %v44 = vsel %vm42, %v16, 0
  %v47 = vsel %vm42, %v17, 0
  %49 = vmatprep.subr.bf16.mxu0 0
  %50 = vmatpush1.bf16.msra.mxu0 0
  %51 = vmatprep.subr.bf16.mxu0 0
  %52 = vmatpush1.bf16.msra.mxu0 0
  %53 = vmatprep.subr.bf16.mxu0 0
  %54 = vmatpush1.bf16.msra.mxu0 0
  %55 = vmatprep.subr.bf16.mxu0 0
  %56 = vmatpush1.bf16.msra.mxu0 0
  %57 = vmatprep.subr.bf16.mxu0 0
  %58 = vmatpush1.bf16.msra.mxu0 0
  %59 = vmatprep.subr.bf16.mxu0 0
  %60 = vmatpush1.bf16.msra.mxu0 0
  %61 = vmatprep.subr.bf16.mxu0 %v37
  %62 = vmatpush1.bf16.msra.mxu0 %v36
  %63 = vmatprep.subr.bf16.mxu0 %v35
  %64 = vmatpush1.bf16.msra.mxu0 %v34
  %65 = vmatprep.subr.bf16.mxu0 0
  %66 = vmatpush2.bf16.msra.mxu0 0
  %67 = vmatprep.subr.bf16.mxu0 0
  %68 = vmatpush2.bf16.msra.mxu0 0
  %69 = vmatprep.subr.bf16.mxu0 0
  %70 = vmatpush2.bf16.msra.mxu0 0
  %71 = vmatprep.subr.bf16.mxu0 0
  %72 = vmatpush2.bf16.msra.mxu0 0
  %73 = vmatprep.subr.bf16.mxu0 0
  %74 = vmatpush2.bf16.msra.mxu0 0
  %75 = vmatprep.subr.bf16.mxu0 0
  %76 = vmatpush2.bf16.msra.mxu0 0
  %77 = vmatprep.subr.bf16.mxu0 0
  %78 = vmatpush2.bf16.msra.mxu0 0
  %79 = vmatprep.subr.bf16.mxu0 0
  %80 = vmatpush2.bf16.msra.mxu0 0
  %81 = vmatprep.mubr.bf16.mxu0 0
  %82 = vmatmul.mubr.bf16.gmra.mxu0 %v44
  %v83 = vpop.f32.mrf.mxu0
  %v84 = vadd.f32 0.0, %v83
  %v85 = vpop.f32.mrf.mxu0
  %v86 = vadd.f32 0.0, %v85
  %v87 = vpop.f32.mrf.mxu0
  %v88 = vadd.f32 0.0, %v87
  %v89 = vpop.f32.mrf.mxu0
  %v90 = vadd.f32 0.0, %v89
  %91 = vmatprep.mubr.bf16.mxu0 0
  %92 = vmatmul.mubr.bf16.gmra.mxu0 %v47
  %v93 = vpop.f32.mrf.mxu0
  %v94 = vadd.f32 0.0, %v93
  %v95 = vpop.f32.mrf.mxu0
  %v96 = vadd.f32 0.0, %v95
  %v97 = vpop.f32.mrf.mxu0
  %v98 = vadd.f32 0.0, %v97
  %v99 = vpop.f32.mrf.mxu0
  %v100 = vadd.f32 0.0, %v99
  %101 = vdwg.mxu0
  %102 = vst [vmem:[%s2] sm:$0xff] %v84
  %vm103 = vcmask 916480
  %104 = vst.msk [vmem:[%s2 + $0x8] sm:$0xff] %vm103, %v86
  %105 = vst [vmem:[%s2 + $0x10] sm:$0xff] %v88
  %106 = vst.msk [vmem:[%s2 + $0x18] sm:$0xff] %vm103, %v90
  %107 = vst [vmem:[%s2 + $0x20] sm:$0xff] %v94
  %108 = vst.msk [vmem:[%s2 + $0x28] sm:$0xff] %vm103, %v96
  %109 = vst [vmem:[%s2 + $0x30] sm:$0xff] %v98
  %110 = vst.msk [vmem:[%s2 + $0x38] sm:$0xff] %vm103, %v100
  // Predicated region
  $region10: #{block_forward.6} parent=0 // pred_check
    _
  $region11: #{block_forward.6} parent=0 // pred_check_branch
    %112 = sbr.rel (0) target = $region13
  $region12: #{block_forward.6} parent=0 // pred_region
    _
  $region13: #{block_forward.6} parent=0 // pred_fallthru
    _
  // Predicated region
  $region14: #{block_forward.6} parent=0 // pred_check
    _
  $region15: #{block_forward.6} parent=0 // pred_check_branch
    %114 = sbr.rel (0) target = $region17
  $region16: #{block_forward.6} parent=0 // pred_region
    _
  $region17: #{block_forward.6} parent=0 // pred_fallthru
    _

// kernel: block_forward.8
$region0: #{block_forward.8}
  #allocation0 [shape = 'u32[]', space=smem, size = 0x4, offset = 0x4, fixed_abs, tag = 'smem constant byte address 0x4 - core index']
  #allocation1 [shape = 'u32[144,128]{1,0:T(1,128)}', space=vmem, size = 0x12000, scoped, tag = 'internal scratch']
  %s0 = inlined_call_operand.vmem [shape: f32[32,160], index: 0, kind: input, shape index: {}]
  %s1 = inlined_call_operand.vmem [shape: bf16[160,32], index: 1, kind: input, shape index: {}]
  %s2 = inlined_call_operand.vmem [shape: f32[1,32], index: 2, kind: input, shape index: {}]
  %s3 = inlined_call_operand.vmem [shape: f32[32,32], index: 3, kind: output, shape index: {}]
  %s4 = sld [smem:[#allocation0]]
  $region22: #{block_forward.8} parent=0
    _
  %s6 = ssub.s32 1, %s4
  %s7 = scalar_select 0, %s6, %s4
  // Predicated region
  $region2: #{block_forward.8} parent=0 // pred_check
    _
  $region3: #{block_forward.8} parent=0 // pred_check_branch
    %9 = sbr.rel (0) target = $region5
  $region4: #{block_forward.8} parent=0 // pred_region
    _
  $region5: #{block_forward.8} parent=0 // pred_fallthru
    _
  // Predicated region
  $region6: #{block_forward.8} parent=0 // pred_check
    _
  $region7: #{block_forward.8} parent=0 // pred_check_branch
    %11 = sbr.rel (0) target = $region9
  $region8: #{block_forward.8} parent=0 // pred_region
    _
  $region9: #{block_forward.8} parent=0 // pred_fallthru
    _
  // Predicated region
  $region10: #{block_forward.8} parent=0 // pred_check
    _
  $region11: #{block_forward.8} parent=0 // pred_check_branch
    %13 = sbr.rel (0) target = $region13
  $region12: #{block_forward.8} parent=0 // pred_region
    _
  $region13: #{block_forward.8} parent=0 // pred_fallthru
    _
  %v15 = vld [vmem:[%s0] sm:$0xff]
  %v16 = vld [vmem:[%s0 + $0x8] sm:$0xff]
  %v17 = vld [vmem:[%s0 + $0x10] sm:$0xff]
  %v18 = vld [vmem:[%s0 + $0x18] sm:$0xff]
  %v19 = vld [vmem:[%s0 + $0x20] sm:$0xff]
  %v20 = vld [vmem:[%s0 + $0x28] sm:$0xff]
  %v21 = vld [vmem:[%s0 + $0x30] sm:$0xff]
  %v22 = vld [vmem:[%s0 + $0x38] sm:$0xff]
  %v23 = vpack.c.bf16 %v17, %v15
  %v24 = vpack.c.bf16 %v18, %v16
  %v25 = vpack.c.bf16 %v21, %v19
  %v26 = vpack.c.bf16 %v22, %v20
  %v27 = vld [vmem:[%s1] sm:$0xf]
  %v28 = vld [vmem:[%s1 + $0x4] sm:$0xf]
  %v29 = vld [vmem:[%s1 + $0x8] sm:$0xf]
  %v30 = vld [vmem:[%s1 + $0xc] sm:$0xf]
  %v31 = vld [vmem:[%s1 + $0x10] sm:$0xf]
  %v32 = vld [vmem:[%s1 + $0x14] sm:$0xf]
  %v33 = vld [vmem:[%s1 + $0x18] sm:$0xf]
  %v34 = vld [vmem:[%s1 + $0x1c] sm:$0xf]
  %v35 = vld [vmem:[%s1 + $0x20] sm:$0xf]
  %v36 = vld [vmem:[%s1 + $0x24] sm:$0xf]
  %v37 = vld [vmem:[%s1 + $0x28] sm:$0xf]
  %v38 = vld [vmem:[%s1 + $0x2c] sm:$0xf]
  %v39 = vld [vmem:[%s1 + $0x30] sm:$0xf]
  %v40 = vld [vmem:[%s1 + $0x34] sm:$0xf]
  %v41 = vld [vmem:[%s1 + $0x38] sm:$0xf]
  %v42 = vld [vmem:[%s1 + $0x3c] sm:$0xf]
  %v43 = vld [vmem:[%s1 + $0x40] sm:$0xf]
  %v44 = vld [vmem:[%s1 + $0x44] sm:$0xf]
  %v45 = vld [vmem:[%s1 + $0x48] sm:$0xf]
  %v46 = vld [vmem:[%s1 + $0x4c] sm:$0xf]
  %v47 = vld [vmem:[%s2] sm:$0x1]
  %v49 = vlaneseq
  %v50 = vshrl.u32 %v49, 7
  %v51 = vsub.s32 0, %v50
  %v52 = vrot.slane %v47, %v51
  %v74 = vunpack.c.l.b16 %v27
  %v75 = vunpack.c.l.b16 %v28
  %v76 = vunpack.c.l.b16 %v29
  %v77 = vunpack.c.l.b16 %v30
  %v78 = vunpack.c.l.b16 %v31
  %v79 = vunpack.c.l.b16 %v32
  %v80 = vunpack.c.l.b16 %v33
  %v81 = vunpack.c.l.b16 %v34
  %v82 = vunpack.c.l.b16 %v35
  %v83 = vunpack.c.l.b16 %v36
  %v84 = vunpack.c.l.b16 %v37
  %v85 = vunpack.c.l.b16 %v38
  %v86 = vunpack.c.l.b16 %v39
  %v87 = vunpack.c.l.b16 %v40
  %v88 = vunpack.c.l.b16 %v41
  %v89 = vunpack.c.l.b16 %v42
  %v90 = vunpack.c.l.b16 %v43
  %v91 = vunpack.c.l.b16 %v44
  %v92 = vunpack.c.l.b16 %v45
  %v93 = vunpack.c.l.b16 %v46
  %v94 = vpack.c.b16 %v75, %v74
  %v95 = vpack.c.b16 %v77, %v76
  %v96 = vpack.c.b16 %v79, %v78
  %v97 = vpack.c.b16 %v81, %v80
  %v98 = vpack.c.b16 %v83, %v82
  %v99 = vpack.c.b16 %v85, %v84
  %v100 = vpack.c.b16 %v87, %v86
  %v101 = vpack.c.b16 %v89, %v88
  %v102 = vpack.c.b16 %v91, %v90
  %v103 = vpack.c.b16 %v93, %v92
  %vm114 = vcmask 261120
  %v116 = vsel %vm114, %v24, 0
  %v119 = vsel %vm114, %v26, 0
  %121 = vmatprep.subr.bf16.mxu0 0
  %122 = vmatpush1.bf16.msra.mxu0 %v101
  %123 = vmatprep.subr.bf16.mxu0 0
  %124 = vmatpush1.bf16.msra.mxu0 %v100
  %125 = vmatprep.subr.bf16.mxu0 0
  %126 = vmatpush1.bf16.msra.mxu0 %v99
  %127 = vmatprep.subr.bf16.mxu0 0
  %128 = vmatpush1.bf16.msra.mxu0 %v98
  %129 = vmatprep.subr.bf16.mxu0 0
  %130 = vmatpush1.bf16.msra.mxu0 %v97
  %131 = vmatprep.subr.bf16.mxu0 0
  %132 = vmatpush1.bf16.msra.mxu0 %v96
  %133 = vmatprep.subr.bf16.mxu0 0
  %134 = vmatpush1.bf16.msra.mxu0 %v95
  %135 = vmatprep.subr.bf16.mxu0 0
  %136 = vmatpush1.bf16.msra.mxu0 %v94
  %137 = vmatprep.subr.bf16.mxu0 0
  %138 = vmatpush2.bf16.msra.mxu0 0
  %139 = vmatprep.subr.bf16.mxu0 0
  %140 = vmatpush2.bf16.msra.mxu0 0
  %141 = vmatprep.subr.bf16.mxu0 0
  %142 = vmatpush2.bf16.msra.mxu0 0
  %143 = vmatprep.subr.bf16.mxu0 0
  %144 = vmatpush2.bf16.msra.mxu0 0
  %145 = vmatprep.subr.bf16.mxu0 0
  %146 = vmatpush2.bf16.msra.mxu0 0
  %147 = vmatprep.subr.bf16.mxu0 0
  %148 = vmatpush2.bf16.msra.mxu0 0
  %149 = vmatprep.subr.bf16.mxu0 0
  %150 = vmatpush2.bf16.msra.mxu0 %v103
  %151 = vmatprep.subr.bf16.mxu0 0
  %152 = vmatpush2.bf16.msra.mxu0 %v102
  %153 = vmatprep.mubr.bf16.mxu0 %v116
  %154 = vmatmul.mubr.bf16.gmra.mxu0 %v23
  %v155 = vpop.f32.mrf.mxu0
  %v156 = vadd.f32 %v52, %v155
  %v157 = vpop.f32.mrf.mxu0
  %v158 = vpop.f32.mrf.mxu0
  %v159 = vadd.f32 %v52, %v158
  %v160 = vpop.f32.mrf.mxu0
  %161 = vmatprep.mubr.bf16.mxu0 %v119
  %162 = vmatmul.mubr.bf16.gmra.mxu0 %v25
  %v163 = vpop.f32.mrf.mxu0
  %v164 = vadd.f32 %v52, %v163
  %v165 = vpop.f32.mrf.mxu0
  %v166 = vpop.f32.mrf.mxu0
  %v167 = vadd.f32 %v52, %v166
  %v168 = vpop.f32.mrf.mxu0
  %169 = vdwg.mxu0
  %170 = vst.msk [vmem:[%s3] sm:$0xff] %vm114, %v156
  %171 = vst.msk [vmem:[%s3 + $0x8] sm:$0xff] %vm114, %v159
  %172 = vst.msk [vmem:[%s3 + $0x10] sm:$0xff] %vm114, %v164
  %173 = vst.msk [vmem:[%s3 + $0x18] sm:$0xff] %vm114, %v167
  // Predicated region
  $region14: #{block_forward.8} parent=0 // pred_check
    _
  $region15: #{block_forward.8} parent=0 // pred_check_branch
    %175 = sbr.rel (0) target = $region17
  $region16: #{block_forward.8} parent=0 // pred_region
    _
  $region17: #{block_forward.8} parent=0 // pred_fallthru
    _
  // Predicated region
  $region18: #{block_forward.8} parent=0 // pred_check
    _
  $region19: #{block_forward.8} parent=0 // pred_check_branch
    %177 = sbr.rel (0) target = $region21
  $region20: #{block_forward.8} parent=0 // pred_region
    _
  $region21: #{block_forward.8} parent=0 // pred_fallthru
    _

// kernel: block_forward.10
$region0: #{block_forward.10}
  #allocation0 [shape = 'u32[]', space=smem, size = 0x4, offset = 0x4, fixed_abs, tag = 'smem constant byte address 0x4 - core index']
  #allocation1 [shape = 'u32[144,128]{1,0:T(1,128)}', space=vmem, size = 0x12000, scoped, tag = 'internal scratch']
  %s0 = inlined_call_operand.vmem [shape: f32[32,32], index: 0, kind: input, shape index: {}]
  %s1 = inlined_call_operand.vmem [shape: bf16[32,64], index: 1, kind: input, shape index: {}]
  %s2 = inlined_call_operand.vmem [shape: f32[1,64], index: 2, kind: input, shape index: {}]
  %s3 = inlined_call_operand.vmem [shape: f32[32,64], index: 3, kind: output, shape index: {}]
  %s4 = sld [smem:[#allocation0]]
  $region22: #{block_forward.10} parent=0
    _
  %s6 = ssub.s32 1, %s4
  %s7 = scalar_select 0, %s6, %s4
  // Predicated region
  $region2: #{block_forward.10} parent=0 // pred_check
    _
  $region3: #{block_forward.10} parent=0 // pred_check_branch
    %9 = sbr.rel (0) target = $region5
  $region4: #{block_forward.10} parent=0 // pred_region
    _
  $region5: #{block_forward.10} parent=0 // pred_fallthru
    _
  // Predicated region
  $region6: #{block_forward.10} parent=0 // pred_check
    _
  $region7: #{block_forward.10} parent=0 // pred_check_branch
    %11 = sbr.rel (0) target = $region9
  $region8: #{block_forward.10} parent=0 // pred_region
    _
  $region9: #{block_forward.10} parent=0 // pred_fallthru
    _
  // Predicated region
  $region10: #{block_forward.10} parent=0 // pred_check
    _
  $region11: #{block_forward.10} parent=0 // pred_check_branch
    %13 = sbr.rel (0) target = $region13
  $region12: #{block_forward.10} parent=0 // pred_region
    _
  $region13: #{block_forward.10} parent=0 // pred_fallthru
    _
  %v15 = vld [vmem:[%s0] sm:$0xff]
  %v16 = vld [vmem:[%s0 + $0x8] sm:$0xff]
  %v17 = vld [vmem:[%s0 + $0x10] sm:$0xff]
  %v18 = vld [vmem:[%s0 + $0x18] sm:$0xff]
  %v19 = vpack.c.bf16 %v16, %v15
  %v20 = vpack.c.bf16 %v18, %v17
  %v21 = vld [vmem:[%s1] sm:$0xf]
  %v22 = vld [vmem:[%s1 + $0x4] sm:$0xf]
  %v23 = vld [vmem:[%s1 + $0x8] sm:$0xf]
  %v24 = vld [vmem:[%s1 + $0xc] sm:$0xf]
  %v25 = vld [vmem:[%s2] sm:$0x1]
  %v27 = vlaneseq
  %v28 = vshrl.u32 %v27, 7
  %v29 = vsub.s32 0, %v28
  %v30 = vrot.slane %v25, %v29
  %v36 = vunpack.c.l.b16 %v21
  %v37 = vunpack.c.l.b16 %v22
  %v38 = vunpack.c.l.b16 %v23
  %v39 = vunpack.c.l.b16 %v24
  %v40 = vpack.c.b16 %v37, %v36
  %v41 = vpack.c.b16 %v39, %v38
  %vm44 = vcmask 261120
  %v46 = vsel %vm44, %v19, 0
  %v49 = vsel %vm44, %v20, 0
  %51 = vmatprep.subr.bf16.mxu0 0
  %52 = vmatpush1.bf16.msra.mxu0 0
  %53 = vmatprep.subr.bf16.mxu0 0
  %54 = vmatpush1.bf16.msra.mxu0 0
  %55 = vmatprep.subr.bf16.mxu0 0
  %56 = vmatpush1.bf16.msra.mxu0 0
  %57 = vmatprep.subr.bf16.mxu0 0
  %58 = vmatpush1.bf16.msra.mxu0 0
  %59 = vmatprep.subr.bf16.mxu0 0
  %60 = vmatpush1.bf16.msra.mxu0 0
  %61 = vmatprep.subr.bf16.mxu0 0
  %62 = vmatpush1.bf16.msra.mxu0 0
  %63 = vmatprep.subr.bf16.mxu0 0
  %64 = vmatpush1.bf16.msra.mxu0 %v41
  %65 = vmatprep.subr.bf16.mxu0 0
  %66 = vmatpush1.bf16.msra.mxu0 %v40
  %67 = vmatprep.subr.bf16.mxu0 0
  %68 = vmatpush2.bf16.msra.mxu0 0
  %69 = vmatprep.subr.bf16.mxu0 0
  %70 = vmatpush2.bf16.msra.mxu0 0
  %71 = vmatprep.subr.bf16.mxu0 0
  %72 = vmatpush2.bf16.msra.mxu0 0
  %73 = vmatprep.subr.bf16.mxu0 0
  %74 = vmatpush2.bf16.msra.mxu0 0
  %75 = vmatprep.subr.bf16.mxu0 0
  %76 = vmatpush2.bf16.msra.mxu0 0
  %77 = vmatprep.subr.bf16.mxu0 0
  %78 = vmatpush2.bf16.msra.mxu0 0
  %79 = vmatprep.subr.bf16.mxu0 0
  %80 = vmatpush2.bf16.msra.mxu0 0
  %81 = vmatprep.subr.bf16.mxu0 0
  %82 = vmatpush2.bf16.msra.mxu0 0
  %83 = vmatprep.mubr.bf16.mxu0 0
  %84 = vmatmul.mubr.bf16.gmra.mxu0 %v46
  %v85 = vpop.f32.mrf.mxu0
  %v86 = vadd.f32 %v30, %v85
  %v87 = vpop.f32.mrf.mxu0
  %v88 = vpop.f32.mrf.mxu0
  %v89 = vadd.f32 %v30, %v88
  %v90 = vpop.f32.mrf.mxu0
  %91 = vmatprep.mubr.bf16.mxu0 0
  %92 = vmatmul.mubr.bf16.gmra.mxu0 %v49
  %v93 = vpop.f32.mrf.mxu0
  %v94 = vadd.f32 %v30, %v93
  %v95 = vpop.f32.mrf.mxu0
  %v96 = vpop.f32.mrf.mxu0
  %v97 = vadd.f32 %v30, %v96
  %v98 = vpop.f32.mrf.mxu0
  %99 = vdwg.mxu0
  %vm100 = vcmask 523264
  %101 = vst.msk [vmem:[%s3] sm:$0xff] %vm100, %v86
  %102 = vst.msk [vmem:[%s3 + $0x8] sm:$0xff] %vm100, %v89
  %103 = vst.msk [vmem:[%s3 + $0x10] sm:$0xff] %vm100, %v94
  %104 = vst.msk [vmem:[%s3 + $0x18] sm:$0xff] %vm100, %v97
  // Predicated region
  $region14: #{block_forward.10} parent=0 // pred_check
    _
  $region15: #{block_forward.10} parent=0 // pred_check_branch
    %106 = sbr.rel (0) target = $region17
  $region16: #{block_forward.10} parent=0 // pred_region
    _
  $region17: #{block_forward.10} parent=0 // pred_fallthru
    _
  // Predicated region
  $region18: #{block_forward.10} parent=0 // pred_check
    _
  $region19: #{block_forward.10} parent=0 // pred_check_branch
    %108 = sbr.rel (0) target = $region21
  $region20: #{block_forward.10} parent=0 // pred_region
    _
  $region21: #{block_forward.10} parent=0 // pred_fallthru
    _

// kernel: block_forward.11
$region0: #{block_forward.11}
  #allocation0 [shape = 'u32[]', space=smem, size = 0x4, offset = 0x4, fixed_abs, tag = 'smem constant byte address 0x4 - core index']
  #allocation1 [shape = 'u32[144,128]{1,0:T(1,128)}', space=vmem, size = 0x12000, scoped, tag = 'internal scratch']
  %s0 = inlined_call_operand.vmem [shape: f32[32,64], index: 0, kind: input, shape index: {}]
  %s1 = inlined_call_operand.vmem [shape: bf16[64,32], index: 1, kind: input, shape index: {}]
  %s2 = inlined_call_operand.vmem [shape: f32[1,32], index: 2, kind: input, shape index: {}]
  %s3 = inlined_call_operand.vmem [shape: f32[32,32], index: 3, kind: output, shape index: {}]
  %s4 = sld [smem:[#allocation0]]
  $region22: #{block_forward.11} parent=0
    _
  %s6 = ssub.s32 1, %s4
  %s7 = scalar_select 0, %s6, %s4
  // Predicated region
  $region2: #{block_forward.11} parent=0 // pred_check
    _
  $region3: #{block_forward.11} parent=0 // pred_check_branch
    %9 = sbr.rel (0) target = $region5
  $region4: #{block_forward.11} parent=0 // pred_region
    _
  $region5: #{block_forward.11} parent=0 // pred_fallthru
    _
  // Predicated region
  $region6: #{block_forward.11} parent=0 // pred_check
    _
  $region7: #{block_forward.11} parent=0 // pred_check_branch
    %11 = sbr.rel (0) target = $region9
  $region8: #{block_forward.11} parent=0 // pred_region
    _
  $region9: #{block_forward.11} parent=0 // pred_fallthru
    _
  // Predicated region
  $region10: #{block_forward.11} parent=0 // pred_check
    _
  $region11: #{block_forward.11} parent=0 // pred_check_branch
    %13 = sbr.rel (0) target = $region13
  $region12: #{block_forward.11} parent=0 // pred_region
    _
  $region13: #{block_forward.11} parent=0 // pred_fallthru
    _
  %v15 = vld [vmem:[%s0] sm:$0xff]
  %v16 = vld [vmem:[%s0 + $0x8] sm:$0xff]
  %v17 = vld [vmem:[%s0 + $0x10] sm:$0xff]
  %v18 = vld [vmem:[%s0 + $0x18] sm:$0xff]
  %v19 = vpack.c.bf16 %v16, %v15
  %v20 = vpack.c.bf16 %v18, %v17
  %v21 = vld [vmem:[%s1] sm:$0xf]
  %v22 = vld [vmem:[%s1 + $0x4] sm:$0xf]
  %v23 = vld [vmem:[%s1 + $0x8] sm:$0xf]
  %v24 = vld [vmem:[%s1 + $0xc] sm:$0xf]
  %v25 = vld [vmem:[%s1 + $0x10] sm:$0xf]
  %v26 = vld [vmem:[%s1 + $0x14] sm:$0xf]
  %v27 = vld [vmem:[%s1 + $0x18] sm:$0xf]
  %v28 = vld [vmem:[%s1 + $0x1c] sm:$0xf]
  %v29 = vld [vmem:[%s2] sm:$0x1]
  %v31 = vlaneseq
  %v32 = vshrl.u32 %v31, 7
  %v33 = vsub.s32 0, %v32
  %v34 = vrot.slane %v29, %v33
  %v44 = vunpack.c.l.b16 %v21
  %v45 = vunpack.c.l.b16 %v22
  %v46 = vunpack.c.l.b16 %v23
  %v47 = vunpack.c.l.b16 %v24
  %v48 = vunpack.c.l.b16 %v25
  %v49 = vunpack.c.l.b16 %v26
  %v50 = vunpack.c.l.b16 %v27
  %v51 = vunpack.c.l.b16 %v28
  %v52 = vpack.c.b16 %v45, %v44
  %v53 = vpack.c.b16 %v47, %v46
  %v54 = vpack.c.b16 %v49, %v48
  %v55 = vpack.c.b16 %v51, %v50
  %vm60 = vcmask 523264
  %v62 = vsel %vm60, %v19, 0
  %v65 = vsel %vm60, %v20, 0
  %67 = vmatprep.subr.bf16.mxu0 0
  %68 = vmatpush1.bf16.msra.mxu0 0
  %69 = vmatprep.subr.bf16.mxu0 0
  %70 = vmatpush1.bf16.msra.mxu0 0
  %71 = vmatprep.subr.bf16.mxu0 0
  %72 = vmatpush1.bf16.msra.mxu0 0
  %73 = vmatprep.subr.bf16.mxu0 0
  %74 = vmatpush1.bf16.msra.mxu0 0
  %75 = vmatprep.subr.bf16.mxu0 0
  %76 = vmatpush1.bf16.msra.mxu0 %v55
  %77 = vmatprep.subr.bf16.mxu0 0
  %78 = vmatpush1.bf16.msra.mxu0 %v54
  %79 = vmatprep.subr.bf16.mxu0 0
  %80 = vmatpush1.bf16.msra.mxu0 %v53
  %81 = vmatprep.subr.bf16.mxu0 0
  %82 = vmatpush1.bf16.msra.mxu0 %v52
  %83 = vmatprep.subr.bf16.mxu0 0
  %84 = vmatpush2.bf16.msra.mxu0 0
  %85 = vmatprep.subr.bf16.mxu0 0
  %86 = vmatpush2.bf16.msra.mxu0 0
  %87 = vmatprep.subr.bf16.mxu0 0
  %88 = vmatpush2.bf16.msra.mxu0 0
  %89 = vmatprep.subr.bf16.mxu0 0
  %90 = vmatpush2.bf16.msra.mxu0 0
  %91 = vmatprep.subr.bf16.mxu0 0
  %92 = vmatpush2.bf16.msra.mxu0 0
  %93 = vmatprep.subr.bf16.mxu0 0
  %94 = vmatpush2.bf16.msra.mxu0 0
  %95 = vmatprep.subr.bf16.mxu0 0
  %96 = vmatpush2.bf16.msra.mxu0 0
  %97 = vmatprep.subr.bf16.mxu0 0
  %98 = vmatpush2.bf16.msra.mxu0 0
  %99 = vmatprep.mubr.bf16.mxu0 0
  %100 = vmatmul.mubr.bf16.gmra.mxu0 %v62
  %v101 = vpop.f32.mrf.mxu0
  %v102 = vadd.f32 %v34, %v101
  %v103 = vpop.f32.mrf.mxu0
  %v104 = vpop.f32.mrf.mxu0
  %v105 = vadd.f32 %v34, %v104
  %v106 = vpop.f32.mrf.mxu0
  %107 = vmatprep.mubr.bf16.mxu0 0
  %108 = vmatmul.mubr.bf16.gmra.mxu0 %v65
  %v109 = vpop.f32.mrf.mxu0
  %v110 = vadd.f32 %v34, %v109
  %v111 = vpop.f32.mrf.mxu0
  %v112 = vpop.f32.mrf.mxu0
  %v113 = vadd.f32 %v34, %v112
  %v114 = vpop.f32.mrf.mxu0
  %115 = vdwg.mxu0
  %vm116 = vcmask 261120
  %117 = vst.msk [vmem:[%s3] sm:$0xff] %vm116, %v102
  %118 = vst.msk [vmem:[%s3 + $0x8] sm:$0xff] %vm116, %v105
  %119 = vst.msk [vmem:[%s3 + $0x10] sm:$0xff] %vm116, %v110
  %120 = vst.msk [vmem:[%s3 + $0x18] sm:$0xff] %vm116, %v113
  // Predicated region
  $region14: #{block_forward.11} parent=0 // pred_check
    _
  $region15: #{block_forward.11} parent=0 // pred_check_branch
    %122 = sbr.rel (0) target = $region17
  $region16: #{block_forward.11} parent=0 // pred_region
    _
  $region17: #{block_forward.11} parent=0 // pred_fallthru
    _
  // Predicated region
  $region18: #{block_forward.11} parent=0 // pred_check
    _
  $region19: #{block_forward.11} parent=0 // pred_check_branch
    %124 = sbr.rel (0) target = $region21
  $region20: #{block_forward.11} parent=0 // pred_region
    _
  $region21: #{block_forward.11} parent=0 // pred_fallthru
    _

// kernel: block_forward.9
$region0: #{block_forward.9}
  #allocation0 [shape = 'u32[]', space=smem, size = 0x4, offset = 0x4, fixed_abs, tag = 'smem constant byte address 0x4 - core index']
  #allocation1 [shape = 'u32[144,128]{1,0:T(1,128)}', space=vmem, size = 0x12000, scoped, tag = 'internal scratch']
  %s0 = inlined_call_operand.vmem [shape: f32[512,16], index: 0, kind: input, shape index: {}]
  %s1 = inlined_call_operand.vmem [shape: bf16[16,16], index: 1, kind: input, shape index: {}]
  %s2 = inlined_call_operand.vmem [shape: f32[1,16], index: 2, kind: input, shape index: {}]
  %s3 = inlined_call_operand.hbm [shape: f32[512,16], index: 3, kind: output, shape index: {}]
  %s4 = sld [smem:[#allocation0]]
  $region22: #{block_forward.9} parent=0
    _
  %s6 = ssub.s32 1, %s4
  %s7 = scalar_select 0, %s6, %s4
  $region1: #{block_forward.9} parent=0
    #allocation2 [shape = 'u8[262144]{0}', space=vmem, size = 0x40000, scoped, tag = 'output window, operand 0, single buffered']
    #allocation3 [shape = 's32[1]{0}', space=sflag, size = 0x4, scoped, tag = 'scoped memory for block_forward.9']
    %8 = vsyncpa [#allocation3], 0
    // Predicated region
    $region2: #{block_forward.9} parent=1 // pred_check
      _
    $region3: #{block_forward.9} parent=1 // pred_check_branch
      %10 = sbr.rel (0) target = $region5
    $region4: #{block_forward.9} parent=1 // pred_region
      _
    $region5: #{block_forward.9} parent=1 // pred_fallthru
      _
    // Predicated region
    $region6: #{block_forward.9} parent=1 // pred_check
      _
    $region7: #{block_forward.9} parent=1 // pred_check_branch
      %12 = sbr.rel (0) target = $region9
    $region8: #{block_forward.9} parent=1 // pred_region
      _
    $region9: #{block_forward.9} parent=1 // pred_fallthru
      _
    // Predicated region
    $region10: #{block_forward.9} parent=1 // pred_check
      _
    $region11: #{block_forward.9} parent=1 // pred_check_branch
      %14 = sbr.rel (0) target = $region13
    $region12: #{block_forward.9} parent=1 // pred_region
      _
    $region13: #{block_forward.9} parent=1 // pred_fallthru
      _
    %v16 = vld [vmem:[%s0] sm:$0xff]
    %v17 = vld [vmem:[%s0 + $0x8] sm:$0xff]
    %v18 = vld [vmem:[%s0 + $0x10] sm:$0xff]
    %v19 = vld [vmem:[%s0 + $0x18] sm:$0xff]
    %v20 = vld [vmem:[%s0 + $0x20] sm:$0xff]
    %v21 = vld [vmem:[%s0 + $0x28] sm:$0xff]
    %v22 = vld [vmem:[%s0 + $0x30] sm:$0xff]
    %v23 = vld [vmem:[%s0 + $0x38] sm:$0xff]
    %v24 = vld [vmem:[%s0 + $0x40] sm:$0xff]
    %v25 = vld [vmem:[%s0 + $0x48] sm:$0xff]
    %v26 = vld [vmem:[%s0 + $0x50] sm:$0xff]
    %v27 = vld [vmem:[%s0 + $0x58] sm:$0xff]
    %v28 = vld [vmem:[%s0 + $0x60] sm:$0xff]
    %v29 = vld [vmem:[%s0 + $0x68] sm:$0xff]
    %v30 = vld [vmem:[%s0 + $0x70] sm:$0xff]
    %v31 = vld [vmem:[%s0 + $0x78] sm:$0xff]
    %v32 = vld [vmem:[%s0 + $0x80] sm:$0xff]
    %v33 = vld [vmem:[%s0 + $0x88] sm:$0xff]
    %v34 = vld [vmem:[%s0 + $0x90] sm:$0xff]
    %v35 = vld [vmem:[%s0 + $0x98] sm:$0xff]
    %v36 = vld [vmem:[%s0 + $0xa0] sm:$0xff]
    %v37 = vld [vmem:[%s0 + $0xa8] sm:$0xff]
    %v38 = vld [vmem:[%s0 + $0xb0] sm:$0xff]
    %v39 = vld [vmem:[%s0 + $0xb8] sm:$0xff]
    %v40 = vld [vmem:[%s0 + $0xc0] sm:$0xff]
    %v41 = vld [vmem:[%s0 + $0xc8] sm:$0xff]
    %v42 = vld [vmem:[%s0 + $0xd0] sm:$0xff]
    %v43 = vld [vmem:[%s0 + $0xd8] sm:$0xff]
    %v44 = vld [vmem:[%s0 + $0xe0] sm:$0xff]
    %v45 = vld [vmem:[%s0 + $0xe8] sm:$0xff]
    %v46 = vld [vmem:[%s0 + $0xf0] sm:$0xff]
    %v47 = vld [vmem:[%s0 + $0xf8] sm:$0xff]
    %v48 = vld [vmem:[%s0 + $0x100] sm:$0xff]
    %v49 = vld [vmem:[%s0 + $0x108] sm:$0xff]
    %v50 = vld [vmem:[%s0 + $0x110] sm:$0xff]
    %v51 = vld [vmem:[%s0 + $0x118] sm:$0xff]
    %v52 = vld [vmem:[%s0 + $0x120] sm:$0xff]
    %v53 = vld [vmem:[%s0 + $0x128] sm:$0xff]
    %v54 = vld [vmem:[%s0 + $0x130] sm:$0xff]
    %v55 = vld [vmem:[%s0 + $0x138] sm:$0xff]
    %v56 = vld [vmem:[%s0 + $0x140] sm:$0xff]
    %v57 = vld [vmem:[%s0 + $0x148] sm:$0xff]
    %v58 = vld [vmem:[%s0 + $0x150] sm:$0xff]
    %v59 = vld [vmem:[%s0 + $0x158] sm:$0xff]
    %v60 = vld [vmem:[%s0 + $0x160] sm:$0xff]
    %v61 = vld [vmem:[%s0 + $0x168] sm:$0xff]
    %v62 = vld [vmem:[%s0 + $0x170] sm:$0xff]
    %v63 = vld [vmem:[%s0 + $0x178] sm:$0xff]
    %v64 = vld [vmem:[%s0 + $0x180] sm:$0xff]
    %v65 = vld [vmem:[%s0 + $0x188] sm:$0xff]
    %v66 = vld [vmem:[%s0 + $0x190] sm:$0xff]
    %v67 = vld [vmem:[%s0 + $0x198] sm:$0xff]
    %v68 = vld [vmem:[%s0 + $0x1a0] sm:$0xff]
    %v69 = vld [vmem:[%s0 + $0x1a8] sm:$0xff]
    %v70 = vld [vmem:[%s0 + $0x1b0] sm:$0xff]
    %v71 = vld [vmem:[%s0 + $0x1b8] sm:$0xff]
    %v72 = vld [vmem:[%s0 + $0x1c0] sm:$0xff]
    %v73 = vld [vmem:[%s0 + $0x1c8] sm:$0xff]
    %v74 = vld [vmem:[%s0 + $0x1d0] sm:$0xff]
    %v75 = vld [vmem:[%s0 + $0x1d8] sm:$0xff]
    %v76 = vld [vmem:[%s0 + $0x1e0] sm:$0xff]
    %v77 = vld [vmem:[%s0 + $0x1e8] sm:$0xff]
    %v78 = vld [vmem:[%s0 + $0x1f0] sm:$0xff]
    %v79 = vld [vmem:[%s0 + $0x1f8] sm:$0xff]
    %v80 = vpack.c.bf16 %v17, %v16
    %v81 = vpack.c.bf16 %v19, %v18
    %v82 = vpack.c.bf16 %v21, %v20
    %v83 = vpack.c.bf16 %v23, %v22
    %v84 = vpack.c.bf16 %v25, %v24
    %v85 = vpack.c.bf16 %v27, %v26
    %v86 = vpack.c.bf16 %v29, %v28
    %v87 = vpack.c.bf16 %v31, %v30
    %v88 = vpack.c.bf16 %v33, %v32
    %v89 = vpack.c.bf16 %v35, %v34
    %v90 = vpack.c.bf16 %v37, %v36
    %v91 = vpack.c.bf16 %v39, %v38
    %v92 = vpack.c.bf16 %v41, %v40
    %v93 = vpack.c.bf16 %v43, %v42
    %v94 = vpack.c.bf16 %v45, %v44
    %v95 = vpack.c.bf16 %v47, %v46
    %v96 = vpack.c.bf16 %v49, %v48
    %v97 = vpack.c.bf16 %v51, %v50
    %v98 = vpack.c.bf16 %v53, %v52
    %v99 = vpack.c.bf16 %v55, %v54
    %v100 = vpack.c.bf16 %v57, %v56
    %v101 = vpack.c.bf16 %v59, %v58
    %v102 = vpack.c.bf16 %v61, %v60
    %v103 = vpack.c.bf16 %v63, %v62
    %v104 = vpack.c.bf16 %v65, %v64
    %v105 = vpack.c.bf16 %v67, %v66
    %v106 = vpack.c.bf16 %v69, %v68
    %v107 = vpack.c.bf16 %v71, %v70
    %v108 = vpack.c.bf16 %v73, %v72
    %v109 = vpack.c.bf16 %v75, %v74
    %v110 = vpack.c.bf16 %v77, %v76
    %v111 = vpack.c.bf16 %v79, %v78
    %v112 = vld [vmem:[%s1] sm:$0xf]
    %v113 = vld [vmem:[%s1 + $0x4] sm:$0xf]
    %v114 = vld [vmem:[%s2] sm:$0x1]
    %v116 = vlaneseq
    %v117 = vshrl.u32 %v116, 7
    %v118 = vsub.s32 0, %v117
    %v119 = vrot.slane %v114, %v118
    %v123 = vunpack.c.l.b16 %v112
    %v124 = vunpack.c.l.b16 %v113
    %v125 = vpack.c.b16 %v124, %v123
    %vm127 = vcmask 130048
    %v129 = vsel %vm127, %v80, 0
    %v132 = vsel %vm127, %v81, 0
    %v135 = vsel %vm127, %v82, 0
    %v138 = vsel %vm127, %v83, 0
    %v141 = vsel %vm127, %v84, 0
    %v144 = vsel %vm127, %v85, 0
    %v147 = vsel %vm127, %v86, 0
    %v150 = vsel %vm127, %v87, 0
    %v153 = vsel %vm127, %v88, 0
    %v156 = vsel %vm127, %v89, 0
    %v159 = vsel %vm127, %v90, 0
    %v162 = vsel %vm127, %v91, 0
    %v165 = vsel %vm127, %v92, 0
    %v168 = vsel %vm127, %v93, 0
    %v171 = vsel %vm127, %v94, 0
    %v174 = vsel %vm127, %v95, 0
    %v177 = vsel %vm127, %v96, 0
    %v180 = vsel %vm127, %v97, 0
    %v183 = vsel %vm127, %v98, 0
    %v186 = vsel %vm127, %v99, 0
    %v189 = vsel %vm127, %v100, 0
    %v192 = vsel %vm127, %v101, 0
    %v195 = vsel %vm127, %v102, 0
    %v198 = vsel %vm127, %v103, 0
    %v201 = vsel %vm127, %v104, 0
    %v204 = vsel %vm127, %v105, 0
    %v207 = vsel %vm127, %v106, 0
    %v210 = vsel %vm127, %v107, 0
    %v213 = vsel %vm127, %v108, 0
    %v216 = vsel %vm127, %v109, 0
    %v219 = vsel %vm127, %v110, 0
    %v222 = vsel %vm127, %v111, 0
    %224 = vmatprep.subr.bf16.mxu0 0
    %225 = vmatpush1.bf16.msra.mxu0 0
    %226 = vmatprep.subr.bf16.mxu0 0
    %227 = vmatpush1.bf16.msra.mxu0 0
    %228 = vmatprep.subr.bf16.mxu0 0
    %229 = vmatpush1.bf16.msra.mxu0 0
    %230 = vmatprep.subr.bf16.mxu0 0
    %231 = vmatpush1.bf16.msra.mxu0 0
    %232 = vmatprep.subr.bf16.mxu0 0
    %233 = vmatpush1.bf16.msra.mxu0 0
    %234 = vmatprep.subr.bf16.mxu0 0
    %235 = vmatpush1.bf16.msra.mxu0 0
    %236 = vmatprep.subr.bf16.mxu0 0
    %237 = vmatpush1.bf16.msra.mxu0 0
    %238 = vmatprep.subr.bf16.mxu0 0
    %239 = vmatpush1.bf16.msra.mxu0 %v125
    %240 = vmatprep.subr.bf16.mxu0 0
    %241 = vmatpush2.bf16.msra.mxu0 0
    %242 = vmatprep.subr.bf16.mxu0 0
    %243 = vmatpush2.bf16.msra.mxu0 0
    %244 = vmatprep.subr.bf16.mxu0 0
    %245 = vmatpush2.bf16.msra.mxu0 0
    %246 = vmatprep.subr.bf16.mxu0 0
    %247 = vmatpush2.bf16.msra.mxu0 0
    %248 = vmatprep.subr.bf16.mxu0 0
    %249 = vmatpush2.bf16.msra.mxu0 0
    %250 = vmatprep.subr.bf16.mxu0 0
    %251 = vmatpush2.bf16.msra.mxu0 0
    %252 = vmatprep.subr.bf16.mxu0 0
    %253 = vmatpush2.bf16.msra.mxu0 0
    %254 = vmatprep.subr.bf16.mxu0 0
    %255 = vmatpush2.bf16.msra.mxu0 0
    %256 = vmatprep.mubr.bf16.mxu0 0
    %257 = vmatmul.mubr.bf16.gmra.mxu0 %v129
    %v258 = vpop.f32.mrf.mxu0
    %v259 = vadd.f32 %v119, %v258
    %v260 = vpop.f32.mrf.mxu0
    %v261 = vpop.f32.mrf.mxu0
    %v262 = vadd.f32 %v119, %v261
    %v263 = vpop.f32.mrf.mxu0
    %264 = vmatprep.mubr.bf16.mxu0 0
    %265 = vmatmul.mubr.bf16.gmra.mxu0 %v132
    %v266 = vpop.f32.mrf.mxu0
    %v267 = vadd.f32 %v119, %v266
    %v268 = vpop.f32.mrf.mxu0
    %v269 = vpop.f32.mrf.mxu0
    %v270 = vadd.f32 %v119, %v269
    %v271 = vpop.f32.mrf.mxu0
    %272 = vmatprep.mubr.bf16.mxu0 0
    %273 = vmatmul.mubr.bf16.gmra.mxu0 %v135
    %v274 = vpop.f32.mrf.mxu0
    %v275 = vadd.f32 %v119, %v274
    %v276 = vpop.f32.mrf.mxu0
    %v277 = vpop.f32.mrf.mxu0
    %v278 = vadd.f32 %v119, %v277
    %v279 = vpop.f32.mrf.mxu0
    %280 = vmatprep.mubr.bf16.mxu0 0
    %281 = vmatmul.mubr.bf16.gmra.mxu0 %v138
    %v282 = vpop.f32.mrf.mxu0
    %v283 = vadd.f32 %v119, %v282
    %v284 = vpop.f32.mrf.mxu0
    %v285 = vpop.f32.mrf.mxu0
    %v286 = vadd.f32 %v119, %v285
    %v287 = vpop.f32.mrf.mxu0
    %288 = vmatprep.mubr.bf16.mxu0 0
    %289 = vmatmul.mubr.bf16.gmra.mxu0 %v141
    %v290 = vpop.f32.mrf.mxu0
    %v291 = vadd.f32 %v119, %v290
    %v292 = vpop.f32.mrf.mxu0
    %v293 = vpop.f32.mrf.mxu0
    %v294 = vadd.f32 %v119, %v293
    %v295 = vpop.f32.mrf.mxu0
    %296 = vmatprep.mubr.bf16.mxu0 0
    %297 = vmatmul.mubr.bf16.gmra.mxu0 %v144
    %v298 = vpop.f32.mrf.mxu0
    %v299 = vadd.f32 %v119, %v298
    %v300 = vpop.f32.mrf.mxu0
    %v301 = vpop.f32.mrf.mxu0
    %v302 = vadd.f32 %v119, %v301
    %v303 = vpop.f32.mrf.mxu0
    %304 = vmatprep.mubr.bf16.mxu0 0
    %305 = vmatmul.mubr.bf16.gmra.mxu0 %v147
    %v306 = vpop.f32.mrf.mxu0
    %v307 = vadd.f32 %v119, %v306
    %v308 = vpop.f32.mrf.mxu0
    %v309 = vpop.f32.mrf.mxu0
    %v310 = vadd.f32 %v119, %v309
    %v311 = vpop.f32.mrf.mxu0
    %312 = vmatprep.mubr.bf16.mxu0 0
    %313 = vmatmul.mubr.bf16.gmra.mxu0 %v150
    %v314 = vpop.f32.mrf.mxu0
    %v315 = vadd.f32 %v119, %v314
    %v316 = vpop.f32.mrf.mxu0
    %v317 = vpop.f32.mrf.mxu0
    %v318 = vadd.f32 %v119, %v317
    %v319 = vpop.f32.mrf.mxu0
    %320 = vmatprep.mubr.bf16.mxu0 0
    %321 = vmatmul.mubr.bf16.gmra.mxu0 %v153
    %v322 = vpop.f32.mrf.mxu0
    %v323 = vadd.f32 %v119, %v322
    %v324 = vpop.f32.mrf.mxu0
    %v325 = vpop.f32.mrf.mxu0
    %v326 = vadd.f32 %v119, %v325
    %v327 = vpop.f32.mrf.mxu0
    %328 = vmatprep.mubr.bf16.mxu0 0
    %329 = vmatmul.mubr.bf16.gmra.mxu0 %v156
    %v330 = vpop.f32.mrf.mxu0
    %v331 = vadd.f32 %v119, %v330
    %v332 = vpop.f32.mrf.mxu0
    %v333 = vpop.f32.mrf.mxu0
    %v334 = vadd.f32 %v119, %v333
    %v335 = vpop.f32.mrf.mxu0
    %336 = vmatprep.mubr.bf16.mxu0 0
    %337 = vmatmul.mubr.bf16.gmra.mxu0 %v159
    %v338 = vpop.f32.mrf.mxu0
    %v339 = vadd.f32 %v119, %v338
    %v340 = vpop.f32.mrf.mxu0
    %v341 = vpop.f32.mrf.mxu0
    %v342 = vadd.f32 %v119, %v341
    %v343 = vpop.f32.mrf.mxu0
    %344 = vmatprep.mubr.bf16.mxu0 0
    %345 = vmatmul.mubr.bf16.gmra.mxu0 %v162
    %v346 = vpop.f32.mrf.mxu0
    %v347 = vadd.f32 %v119, %v346
    %v348 = vpop.f32.mrf.mxu0
    %v349 = vpop.f32.mrf.mxu0
    %v350 = vadd.f32 %v119, %v349
    %v351 = vpop.f32.mrf.mxu0
    %352 = vmatprep.mubr.bf16.mxu0 0
    %353 = vmatmul.mubr.bf16.gmra.mxu0 %v165
    %v354 = vpop.f32.mrf.mxu0
    %v355 = vadd.f32 %v119, %v354
    %v356 = vpop.f32.mrf.mxu0
    %v357 = vpop.f32.mrf.mxu0
    %v358 = vadd.f32 %v119, %v357
    %v359 = vpop.f32.mrf.mxu0
    %360 = vmatprep.mubr.bf16.mxu0 0
    %361 = vmatmul.mubr.bf16.gmra.mxu0 %v168
    %v362 = vpop.f32.mrf.mxu0
    %v363 = vadd.f32 %v119, %v362
    %v364 = vpop.f32.mrf.mxu0
    %v365 = vpop.f32.mrf.mxu0
    %v366 = vadd.f32 %v119, %v365
    %v367 = vpop.f32.mrf.mxu0
    %368 = vmatprep.mubr.bf16.mxu0 0
    %369 = vmatmul.mubr.bf16.gmra.mxu0 %v171
    %v370 = vpop.f32.mrf.mxu0
    %v371 = vadd.f32 %v119, %v370
    %v372 = vpop.f32.mrf.mxu0
    %v373 = vpop.f32.mrf.mxu0
    %v374 = vadd.f32 %v119, %v373
    %v375 = vpop.f32.mrf.mxu0
    %376 = vmatprep.mubr.bf16.mxu0 0
    %377 = vmatmul.mubr.bf16.gmra.mxu0 %v174
    %v378 = vpop.f32.mrf.mxu0
    %v379 = vadd.f32 %v119, %v378
    %v380 = vpop.f32.mrf.mxu0
    %v381 = vpop.f32.mrf.mxu0
    %v382 = vadd.f32 %v119, %v381
    %v383 = vpop.f32.mrf.mxu0
    %384 = vmatprep.mubr.bf16.mxu0 0
    %385 = vmatmul.mubr.bf16.gmra.mxu0 %v177
    %v386 = vpop.f32.mrf.mxu0
    %v387 = vadd.f32 %v119, %v386
    %v388 = vpop.f32.mrf.mxu0
    %v389 = vpop.f32.mrf.mxu0
    %v390 = vadd.f32 %v119, %v389
    %v391 = vpop.f32.mrf.mxu0
    %392 = vmatprep.mubr.bf16.mxu0 0
    %393 = vmatmul.mubr.bf16.gmra.mxu0 %v180
    %v394 = vpop.f32.mrf.mxu0
    %v395 = vadd.f32 %v119, %v394
    %v396 = vpop.f32.mrf.mxu0
    %v397 = vpop.f32.mrf.mxu0
    %v398 = vadd.f32 %v119, %v397
    %v399 = vpop.f32.mrf.mxu0
    %400 = vmatprep.mubr.bf16.mxu0 0
    %401 = vmatmul.mubr.bf16.gmra.mxu0 %v183
    %v402 = vpop.f32.mrf.mxu0
    %v403 = vadd.f32 %v119, %v402
    %v404 = vpop.f32.mrf.mxu0
    %v405 = vpop.f32.mrf.mxu0
    %v406 = vadd.f32 %v119, %v405
    %v407 = vpop.f32.mrf.mxu0
    %408 = vmatprep.mubr.bf16.mxu0 0
    %409 = vmatmul.mubr.bf16.gmra.mxu0 %v186
    %v410 = vpop.f32.mrf.mxu0
    %v411 = vadd.f32 %v119, %v410
    %v412 = vpop.f32.mrf.mxu0
    %v413 = vpop.f32.mrf.mxu0
    %v414 = vadd.f32 %v119, %v413
    %v415 = vpop.f32.mrf.mxu0
    %416 = vmatprep.mubr.bf16.mxu0 0
    %417 = vmatmul.mubr.bf16.gmra.mxu0 %v189
    %v418 = vpop.f32.mrf.mxu0
    %v419 = vadd.f32 %v119, %v418
    %v420 = vpop.f32.mrf.mxu0
    %v421 = vpop.f32.mrf.mxu0
    %v422 = vadd.f32 %v119, %v421
    %v423 = vpop.f32.mrf.mxu0
    %424 = vmatprep.mubr.bf16.mxu0 0
    %425 = vmatmul.mubr.bf16.gmra.mxu0 %v192
    %v426 = vpop.f32.mrf.mxu0
    %v427 = vadd.f32 %v119, %v426
    %v428 = vpop.f32.mrf.mxu0
    %v429 = vpop.f32.mrf.mxu0
    %v430 = vadd.f32 %v119, %v429
    %v431 = vpop.f32.mrf.mxu0
    %432 = vmatprep.mubr.bf16.mxu0 0
    %433 = vmatmul.mubr.bf16.gmra.mxu0 %v195
    %v434 = vpop.f32.mrf.mxu0
    %v435 = vadd.f32 %v119, %v434
    %v436 = vpop.f32.mrf.mxu0
    %v437 = vpop.f32.mrf.mxu0
    %v438 = vadd.f32 %v119, %v437
    %v439 = vpop.f32.mrf.mxu0
    %440 = vmatprep.mubr.bf16.mxu0 0
    %441 = vmatmul.mubr.bf16.gmra.mxu0 %v198
    %v442 = vpop.f32.mrf.mxu0
    %v443 = vadd.f32 %v119, %v442
    %v444 = vpop.f32.mrf.mxu0
    %v445 = vpop.f32.mrf.mxu0
    %v446 = vadd.f32 %v119, %v445
    %v447 = vpop.f32.mrf.mxu0
    %448 = vmatprep.mubr.bf16.mxu0 0
    %449 = vmatmul.mubr.bf16.gmra.mxu0 %v201
    %v450 = vpop.f32.mrf.mxu0
    %v451 = vadd.f32 %v119, %v450
    %v452 = vpop.f32.mrf.mxu0
    %v453 = vpop.f32.mrf.mxu0
    %v454 = vadd.f32 %v119, %v453
    %v455 = vpop.f32.mrf.mxu0
    %456 = vmatprep.mubr.bf16.mxu0 0
    %457 = vmatmul.mubr.bf16.gmra.mxu0 %v204
    %v458 = vpop.f32.mrf.mxu0
    %v459 = vadd.f32 %v119, %v458
    %v460 = vpop.f32.mrf.mxu0
    %v461 = vpop.f32.mrf.mxu0
    %v462 = vadd.f32 %v119, %v461
    %v463 = vpop.f32.mrf.mxu0
    %464 = vmatprep.mubr.bf16.mxu0 0
    %465 = vmatmul.mubr.bf16.gmra.mxu0 %v207
    %v466 = vpop.f32.mrf.mxu0
    %v467 = vadd.f32 %v119, %v466
    %v468 = vpop.f32.mrf.mxu0
    %v469 = vpop.f32.mrf.mxu0
    %v470 = vadd.f32 %v119, %v469
    %v471 = vpop.f32.mrf.mxu0
    %472 = vmatprep.mubr.bf16.mxu0 0
    %473 = vmatmul.mubr.bf16.gmra.mxu0 %v210
    %v474 = vpop.f32.mrf.mxu0
    %v475 = vadd.f32 %v119, %v474
    %v476 = vpop.f32.mrf.mxu0
    %v477 = vpop.f32.mrf.mxu0
    %v478 = vadd.f32 %v119, %v477
    %v479 = vpop.f32.mrf.mxu0
    %480 = vmatprep.mubr.bf16.mxu0 0
    %481 = vmatmul.mubr.bf16.gmra.mxu0 %v213
    %v482 = vpop.f32.mrf.mxu0
    %v483 = vadd.f32 %v119, %v482
    %v484 = vpop.f32.mrf.mxu0
    %v485 = vpop.f32.mrf.mxu0
    %v486 = vadd.f32 %v119, %v485
    %v487 = vpop.f32.mrf.mxu0
    %488 = vmatprep.mubr.bf16.mxu0 0
    %489 = vmatmul.mubr.bf16.gmra.mxu0 %v216
    %v490 = vpop.f32.mrf.mxu0
    %v491 = vadd.f32 %v119, %v490
    %v492 = vpop.f32.mrf.mxu0
    %v493 = vpop.f32.mrf.mxu0
    %v494 = vadd.f32 %v119, %v493
    %v495 = vpop.f32.mrf.mxu0
    %496 = vmatprep.mubr.bf16.mxu0 0
    %497 = vmatmul.mubr.bf16.gmra.mxu0 %v219
    %v498 = vpop.f32.mrf.mxu0
    %v499 = vadd.f32 %v119, %v498
    %v500 = vpop.f32.mrf.mxu0
    %v501 = vpop.f32.mrf.mxu0
    %v502 = vadd.f32 %v119, %v501
    %v503 = vpop.f32.mrf.mxu0
    %504 = vmatprep.mubr.bf16.mxu0 0
    %505 = vmatmul.mubr.bf16.gmra.mxu0 %v222
    %v506 = vpop.f32.mrf.mxu0
    %v507 = vadd.f32 %v119, %v506
    %v508 = vpop.f32.mrf.mxu0
    %v509 = vpop.f32.mrf.mxu0
    %v510 = vadd.f32 %v119, %v509
    %v511 = vpop.f32.mrf.mxu0
    %512 = vdwg.mxu0
    %513 = vst.msk [vmem:[#allocation2] sm:$0xff] %vm127, %v259
    %514 = vst.msk [vmem:[#allocation2 + $0x8] sm:$0xff] %vm127, %v262
    %515 = vst.msk [vmem:[#allocation2 + $0x10] sm:$0xff] %vm127, %v267
    %516 = vst.msk [vmem:[#allocation2 + $0x18] sm:$0xff] %vm127, %v270
    %517 = vst.msk [vmem:[#allocation2 + $0x20] sm:$0xff] %vm127, %v275
    %518 = vst.msk [vmem:[#allocation2 + $0x28] sm:$0xff] %vm127, %v278
    %519 = vst.msk [vmem:[#allocation2 + $0x30] sm:$0xff] %vm127, %v283
    %520 = vst.msk [vmem:[#allocation2 + $0x38] sm:$0xff] %vm127, %v286
    %521 = vst.msk [vmem:[#allocation2 + $0x40] sm:$0xff] %vm127, %v291
    %522 = vst.msk [vmem:[#allocation2 + $0x48] sm:$0xff] %vm127, %v294
    %523 = vst.msk [vmem:[#allocation2 + $0x50] sm:$0xff] %vm127, %v299
    %524 = vst.msk [vmem:[#allocation2 + $0x58] sm:$0xff] %vm127, %v302
    %525 = vst.msk [vmem:[#allocation2 + $0x60] sm:$0xff] %vm127, %v307
    %526 = vst.msk [vmem:[#allocation2 + $0x68] sm:$0xff] %vm127, %v310
    %527 = vst.msk [vmem:[#allocation2 + $0x70] sm:$0xff] %vm127, %v315
    %528 = vst.msk [vmem:[#allocation2 + $0x78] sm:$0xff] %vm127, %v318
    %529 = vst.msk [vmem:[#allocation2 + $0x80] sm:$0xff] %vm127, %v323
    %530 = vst.msk [vmem:[#allocation2 + $0x88] sm:$0xff] %vm127, %v326
    %531 = vst.msk [vmem:[#allocation2 + $0x90] sm:$0xff] %vm127, %v331
    %532 = vst.msk [vmem:[#allocation2 + $0x98] sm:$0xff] %vm127, %v334
    %533 = vst.msk [vmem:[#allocation2 + $0xa0] sm:$0xff] %vm127, %v339
    %534 = vst.msk [vmem:[#allocation2 + $0xa8] sm:$0xff] %vm127, %v342
    %535 = vst.msk [vmem:[#allocation2 + $0xb0] sm:$0xff] %vm127, %v347
    %536 = vst.msk [vmem:[#allocation2 + $0xb8] sm:$0xff] %vm127, %v350
    %537 = vst.msk [vmem:[#allocation2 + $0xc0] sm:$0xff] %vm127, %v355
    %538 = vst.msk [vmem:[#allocation2 + $0xc8] sm:$0xff] %vm127, %v358
    %539 = vst.msk [vmem:[#allocation2 + $0xd0] sm:$0xff] %vm127, %v363
    %540 = vst.msk [vmem:[#allocation2 + $0xd8] sm:$0xff] %vm127, %v366
    %541 = vst.msk [vmem:[#allocation2 + $0xe0] sm:$0xff] %vm127, %v371
    %542 = vst.msk [vmem:[#allocation2 + $0xe8] sm:$0xff] %vm127, %v374
    %543 = vst.msk [vmem:[#allocation2 + $0xf0] sm:$0xff] %vm127, %v379
    %544 = vst.msk [vmem:[#allocation2 + $0xf8] sm:$0xff] %vm127, %v382
    %545 = vst.msk [vmem:[#allocation2 + $0x100] sm:$0xff] %vm127, %v387
    %546 = vst.msk [vmem:[#allocation2 + $0x108] sm:$0xff] %vm127, %v390
    %547 = vst.msk [vmem:[#allocation2 + $0x110] sm:$0xff] %vm127, %v395
    %548 = vst.msk [vmem:[#allocation2 + $0x118] sm:$0xff] %vm127, %v398
    %549 = vst.msk [vmem:[#allocation2 + $0x120] sm:$0xff] %vm127, %v403
    %550 = vst.msk [vmem:[#allocation2 + $0x128] sm:$0xff] %vm127, %v406
    %551 = vst.msk [vmem:[#allocation2 + $0x130] sm:$0xff] %vm127, %v411
    %552 = vst.msk [vmem:[#allocation2 + $0x138] sm:$0xff] %vm127, %v414
    %553 = vst.msk [vmem:[#allocation2 + $0x140] sm:$0xff] %vm127, %v419
    %554 = vst.msk [vmem:[#allocation2 + $0x148] sm:$0xff] %vm127, %v422
    %555 = vst.msk [vmem:[#allocation2 + $0x150] sm:$0xff] %vm127, %v427
    %556 = vst.msk [vmem:[#allocation2 + $0x158] sm:$0xff] %vm127, %v430
    %557 = vst.msk [vmem:[#allocation2 + $0x160] sm:$0xff] %vm127, %v435
    %558 = vst.msk [vmem:[#allocation2 + $0x168] sm:$0xff] %vm127, %v438
    %559 = vst.msk [vmem:[#allocation2 + $0x170] sm:$0xff] %vm127, %v443
    %560 = vst.msk [vmem:[#allocation2 + $0x178] sm:$0xff] %vm127, %v446
    %561 = vst.msk [vmem:[#allocation2 + $0x180] sm:$0xff] %vm127, %v451
    %562 = vst.msk [vmem:[#allocation2 + $0x188] sm:$0xff] %vm127, %v454
    %563 = vst.msk [vmem:[#allocation2 + $0x190] sm:$0xff] %vm127, %v459
    %564 = vst.msk [vmem:[#allocation2 + $0x198] sm:$0xff] %vm127, %v462
    %565 = vst.msk [vmem:[#allocation2 + $0x1a0] sm:$0xff] %vm127, %v467
    %566 = vst.msk [vmem:[#allocation2 + $0x1a8] sm:$0xff] %vm127, %v470
    %567 = vst.msk [vmem:[#allocation2 + $0x1b0] sm:$0xff] %vm127, %v475
    %568 = vst.msk [vmem:[#allocation2 + $0x1b8] sm:$0xff] %vm127, %v478
    %569 = vst.msk [vmem:[#allocation2 + $0x1c0] sm:$0xff] %vm127, %v483
    %570 = vst.msk [vmem:[#allocation2 + $0x1c8] sm:$0xff] %vm127, %v486
    %571 = vst.msk [vmem:[#allocation2 + $0x1d0] sm:$0xff] %vm127, %v491
    %572 = vst.msk [vmem:[#allocation2 + $0x1d8] sm:$0xff] %vm127, %v494
    %573 = vst.msk [vmem:[#allocation2 + $0x1e0] sm:$0xff] %vm127, %v499
    %574 = vst.msk [vmem:[#allocation2 + $0x1e8] sm:$0xff] %vm127, %v502
    %575 = vst.msk [vmem:[#allocation2 + $0x1f0] sm:$0xff] %vm127, %v507
    %576 = vst.msk [vmem:[#allocation2 + $0x1f8] sm:$0xff] %vm127, %v510
    // Predicated region
    $region14: #{block_forward.9} parent=1 // pred_check
      _
    $region15: #{block_forward.9} parent=1 // pred_check_branch
      %578 = sbr.rel (0) target = $region17
    $region16: #{block_forward.9} parent=1 // pred_region
      %s580 = ssub.s32 8192, 8192
      %581 = vsyncadd [#allocation3], %s580
      %s582 = sshll.u32 [#allocation2], 4
      %s583 = int_to_ptr.vmem [resolvable:$true] %s582
      %588 = dma.vmem_to_hbm [thread:$0]  %s583, 8192, %s3, [#allocation3], 128, 128, 8
    $region17: #{block_forward.9} parent=1 // pred_fallthru
      _
    // Predicated region
    $region18: #{block_forward.9} parent=1 // pred_check
      _
    $region19: #{block_forward.9} parent=1 // pred_check_branch
      %590 = sbr.rel (0) target = $region21
    $region20: #{block_forward.9} parent=1 // pred_region
      %591 = dma.done [#allocation3], 8192
    $region21: #{block_forward.9} parent=1 // pred_fallthru
      _
    %592 = vsyncpa [#allocation3], 1

// kernel: block_forward.7
$region0: #{block_forward.7}
  #allocation0 [shape = 'u32[]', space=smem, size = 0x4, offset = 0x4, fixed_abs, tag = 'smem constant byte address 0x4 - core index']
  #allocation1 [shape = 'u32[144,128]{1,0:T(1,128)}', space=vmem, size = 0x12000, scoped, tag = 'internal scratch']
  #allocation2 [shape = 'f32[16,16,16]{2,1,0:T(8,128)}', space=vmem, size = 0x20000, scoped, tag = 'scratch operand']
  #allocation3 [shape = 'bf16[16,4,16]{2,1,0:T(4,128)(2,1)}', space=vmem, size = 0x4000, scoped, tag = 'scratch operand']
  %s0 = inlined_call_operand.vmem [shape: f32[2,4,16,8], index: 0, kind: input, shape index: {}]
  %s1 = inlined_call_operand.vmem [shape: f32[2,4,16,8], index: 1, kind: input, shape index: {}]
  %s2 = inlined_call_operand.vmem [shape: f32[2,4,16,12], index: 2, kind: input, shape index: {}]
  %s3 = inlined_call_operand.vmem [shape: f32[2,4,16,12], index: 3, kind: input, shape index: {}]
  %s4 = inlined_call_operand.vmem [shape: f32[2,4,16,20], index: 4, kind: input, shape index: {}]
  %s5 = inlined_call_operand.vmem [shape: f32[2,16,16,16], index: 5, kind: input, shape index: {}]
  %s6 = inlined_call_operand.vmem [shape: bf16[4,16], index: 6, kind: input, shape index: {}]
  %s7 = inlined_call_operand.vmem [shape: bf16[16,16], index: 7, kind: input, shape index: {}]
  %s8 = inlined_call_operand.vmem [shape: f32[1,16], index: 8, kind: input, shape index: {}]
  %s9 = inlined_call_operand.vmem [shape: f32[2,16,80], index: 9, kind: output, shape index: {0}]
  %s10 = inlined_call_operand.vmem [shape: f32[2,16,64], index: 10, kind: output, shape index: {1}]
  %s11 = inlined_call_operand.vmem [shape: f32[2,16,16,16], index: 11, kind: output, shape index: {2}]
  %12 = xla_tuple %s9, %s10, %s11
  %s13 = sld [smem:[#allocation0]]
  $region85: #{block_forward.7} parent=0
    _
  %s15 = ssub.s32 1, %s13
  %s16 = scalar_select 0, %s15, %s13
  loop: start=0, step=1, limit=4
  $region2: #{block_forward.7} parent=0 // loop_pre_header
    _
  $region3: #{block_forward.7} parent=0 // loop_header
    %s18 = sphi 0, %s22
    %p19 = scmp.ge.s32.totalorder %s18, 4
    %s25 = sphi 0, %s37
    %s26 = sphi 0, %s33
    %s27 = sphi 0, %s25
    %s28 = sphi 0, %s26
    %s29 = sphi 0, %s27
    %s30 = sphi 0, %s28
    %s42 = sphi 0, %s44
    %s45 = sphi 0, %s42
    %s46 = sphi 0, %s45
    %s62 = sphi 0, %s46
    %s68 = sphi 0, %s70
    %s71 = sphi 0, %s68
    %s72 = sphi 0, %s71
    %s88 = sphi 0, %s72
    %s96 = sphi 0, %s98
    %s99 = sphi 0, %s96
    %s100 = sphi 0, %s99
    %s116 = sphi 0, %s100
    %s122 = sphi 0, %s124
    %s125 = sphi 0, %s122
    %s126 = sphi 0, %s125
    %s142 = sphi 0, %s126
    %s148 = sphi 0, %s150
    %s151 = sphi 0, %s148
    %s152 = sphi 0, %s151
    %s168 = sphi 0, %s152
    %s176 = sphi 0, %s178
    %s179 = sphi 0, %s176
    %s180 = sphi 0, %s179
    %s196 = sphi 0, %s180
    %s200 = sphi 0, %s200
    %s202 = sphi 0, %s200
    %s203 = sphi 0, %s202
    %s217 = sphi 0, %s203
    %s221 = sphi 0, %s221
    %s223 = sphi 0, %s221
    %s224 = sphi 0, %s223
    %s238 = sphi 0, %s224
    %s242 = sphi 0, %s242
    %s244 = sphi 0, %s242
    %s245 = sphi 0, %s244
    %s259 = sphi 0, %s245
    %s267 = sphi 0, %s269
    %s270 = sphi 0, %s267
    %s271 = sphi 0, %s270
    %s287 = sphi 0, %s271
    %s295 = sphi 0, %s297
    %s298 = sphi 0, %s295
    %s299 = sphi 0, %s298
    %s315 = sphi 0, %s299
    %s323 = sphi 0, %s325
    %s326 = sphi 0, %s323
    %s327 = sphi 0, %s326
    %s343 = sphi 0, %s327
  $region4: #{block_forward.7} parent=0 // loop_header_branch
    %21 = sbr.rel (%p19) target = $region8
  $region5: #{block_forward.7} parent=0 // loop_body
    %s23 = ssub.s32 %s18, 1
    %s24 = ssub.s32 %s18, 2
    %s31 = sadd.s32 1, %s26
    %p32 = scmp.ge.s32.totalorder %s31, 1
    %s33 = scalar_select %p32, 0, %s31
    %s34 = sadd.s32 1, %s25
    %s35 = scalar_select %p32, %s34, %s25
    %p36 = scmp.ge.s32.totalorder %s35, 2
    %s37 = scalar_select %p36, 0, %s35
    %s38 = ssub.s32 %s25, %s37
    %s39 = ssub.s32 %s26, %s33
    %s40 = sor.u32 %s38, %s39
    %p41 = scmp.eq.s32.totalorder %s40, 0
    %s43 = sadd.s32 %s42, 1
    %s44 = scalar_select %p41, %s42, %s43
    %p47 = pneg %p41
    %p48 = scmp.eq.s32.totalorder %s18, 1
    %p49 = por %p47, %p48
    %p50 = scmp.ne.s32.totalorder %s42, %s45
    %p51 = scmp.eq.s32.totalorder %s18, 0
    %p52 = por %p50, %p51
    %p53 = scmp.ne.s32.totalorder %s42, %s45
    %p54 = scmp.eq.s32.totalorder %s23, 1
    %p55 = por %p53, %p54
    %p56 = scmp.ne.s32.totalorder %s45, %s46
    %p57 = scmp.eq.s32.totalorder %s23, 0
    %p58 = por %p56, %p57
    %p59 = scmp.ne.s32.totalorder %s45, %s46
    %p60 = scmp.eq.s32.totalorder %s24, 1
    %p61 = por %p59, %p60
    %p63 = scmp.ne.s32.totalorder %s46, %s62
    %p64 = scmp.eq.s32.totalorder %s24, 0
    %p65 = por %p63, %p64
    %s66 = ssub.s32 %s25, %s37
    %p67 = scmp.eq.s32.totalorder %s66, 0
    %s69 = sadd.s32 %s68, 1
    %s70 = scalar_select %p67, %s68, %s69
    %p73 = pneg %p67
    %p74 = scmp.eq.s32.totalorder %s18, 1
    %p75 = por %p73, %p74
    %p76 = scmp.ne.s32.totalorder %s68, %s71
    %p77 = scmp.eq.s32.totalorder %s18, 0
    %p78 = por %p76, %p77
    %p79 = scmp.ne.s32.totalorder %s68, %s71
    %p80 = scmp.eq.s32.totalorder %s23, 1
    %p81 = por %p79, %p80
    %p82 = scmp.ne.s32.totalorder %s71, %s72
    %p83 = scmp.eq.s32.totalorder %s23, 0
    %p84 = por %p82, %p83
    %p85 = scmp.ne.s32.totalorder %s71, %s72
    %p86 = scmp.eq.s32.totalorder %s24, 1
    %p87 = por %p85, %p86
    %p89 = scmp.ne.s32.totalorder %s72, %s88
    %p90 = scmp.eq.s32.totalorder %s24, 0
    %p91 = por %p89, %p90
    %s92 = ssub.s32 %s25, %s37
    %s93 = ssub.s32 %s26, %s33
    %s94 = sor.u32 %s92, %s93
    %p95 = scmp.eq.s32.totalorder %s94, 0
    %s97 = sadd.s32 %s96, 1
    %s98 = scalar_select %p95, %s96, %s97
    %p101 = pneg %p95
    %p102 = scmp.eq.s32.totalorder %s18, 1
    %p103 = por %p101, %p102
    %p104 = scmp.ne.s32.totalorder %s96, %s99
    %p105 = scmp.eq.s32.totalorder %s18, 0
    %p106 = por %p104, %p105
    %p107 = scmp.ne.s32.totalorder %s96, %s99
    %p108 = scmp.eq.s32.totalorder %s23, 1
    %p109 = por %p107, %p108
    %p110 = scmp.ne.s32.totalorder %s99, %s100
    %p111 = scmp.eq.s32.totalorder %s23, 0
    %p112 = por %p110, %p111
    %p113 = scmp.ne.s32.totalorder %s99, %s100
    %p114 = scmp.eq.s32.totalorder %s24, 1
    %p115 = por %p113, %p114
    %p117 = scmp.ne.s32.totalorder %s100, %s116
    %p118 = scmp.eq.s32.totalorder %s24, 0
    %p119 = por %p117, %p118
    %s120 = ssub.s32 %s25, %s37
    %p121 = scmp.eq.s32.totalorder %s120, 0
    %s123 = sadd.s32 %s122, 1
    %s124 = scalar_select %p121, %s122, %s123
    %p127 = pneg %p121
    %p128 = scmp.eq.s32.totalorder %s18, 1
    %p129 = por %p127, %p128
    %p130 = scmp.ne.s32.totalorder %s122, %s125
    %p131 = scmp.eq.s32.totalorder %s18, 0
    %p132 = por %p130, %p131
    %p133 = scmp.ne.s32.totalorder %s122, %s125
    %p134 = scmp.eq.s32.totalorder %s23, 1
    %p135 = por %p133, %p134
    %p136 = scmp.ne.s32.totalorder %s125, %s126
    %p137 = scmp.eq.s32.totalorder %s23, 0
    %p138 = por %p136, %p137
    %p139 = scmp.ne.s32.totalorder %s125, %s126
    %p140 = scmp.eq.s32.totalorder %s24, 1
    %p141 = por %p139, %p140
    %p143 = scmp.ne.s32.totalorder %s126, %s142
    %p144 = scmp.eq.s32.totalorder %s24, 0
    %p145 = por %p143, %p144
    %s146 = ssub.s32 %s25, %s37
    %p147 = scmp.eq.s32.totalorder %s146, 0
    %s149 = sadd.s32 %s148, 1
    %s150 = scalar_select %p147, %s148, %s149
    %p153 = pneg %p147
    %p154 = scmp.eq.s32.totalorder %s18, 1
    %p155 = por %p153, %p154
    %p156 = scmp.ne.s32.totalorder %s148, %s151
    %p157 = scmp.eq.s32.totalorder %s18, 0
    %p158 = por %p156, %p157
    %p159 = scmp.ne.s32.totalorder %s148, %s151
    %p160 = scmp.eq.s32.totalorder %s23, 1
    %p161 = por %p159, %p160
    %p162 = scmp.ne.s32.totalorder %s151, %s152
    %p163 = scmp.eq.s32.totalorder %s23, 0
    %p164 = por %p162, %p163
    %p165 = scmp.ne.s32.totalorder %s151, %s152
    %p166 = scmp.eq.s32.totalorder %s24, 1
    %p167 = por %p165, %p166
    %p169 = scmp.ne.s32.totalorder %s152, %s168
    %p170 = scmp.eq.s32.totalorder %s24, 0
    %p171 = por %p169, %p170
    %s172 = ssub.s32 %s25, %s37
    %s173 = ssub.s32 %s26, %s33
    %s174 = sor.u32 %s172, %s173
    %p175 = scmp.eq.s32.totalorder %s174, 0
    %s177 = sadd.s32 %s176, 1
    %s178 = scalar_select %p175, %s176, %s177
    %p181 = pneg %p175
    %p182 = scmp.eq.s32.totalorder %s18, 1
    %p183 = por %p181, %p182
    %p184 = scmp.ne.s32.totalorder %s176, %s179
    %p185 = scmp.eq.s32.totalorder %s18, 0
    %p186 = por %p184, %p185
    %p187 = scmp.ne.s32.totalorder %s176, %s179
    %p188 = scmp.eq.s32.totalorder %s23, 1
    %p189 = por %p187, %p188
    %p190 = scmp.ne.s32.totalorder %s179, %s180
    %p191 = scmp.eq.s32.totalorder %s23, 0
    %p192 = por %p190, %p191
    %p193 = scmp.ne.s32.totalorder %s179, %s180
    %p194 = scmp.eq.s32.totalorder %s24, 1
    %p195 = por %p193, %p194
    %p197 = scmp.ne.s32.totalorder %s180, %s196
    %p198 = scmp.eq.s32.totalorder %s24, 0
    %p199 = por %p197, %p198
    %s201 = sadd.s32 %s200, 1
    %p204 = scmp.eq.s32.totalorder %s18, 1
    %p205 = scmp.ne.s32.totalorder %s200, %s202
    %p206 = scmp.eq.s32.totalorder %s18, 0
    %p207 = por %p205, %p206
    %p208 = scmp.ne.s32.totalorder %s200, %s202
    %p209 = scmp.eq.s32.totalorder %s23, 1
    %p210 = por %p208, %p209
    %p211 = scmp.ne.s32.totalorder %s202, %s203
    %p212 = scmp.eq.s32.totalorder %s23, 0
    %p213 = por %p211, %p212
    %p214 = scmp.ne.s32.totalorder %s202, %s203
    %p215 = scmp.eq.s32.totalorder %s24, 1
    %p216 = por %p214, %p215
    %p218 = scmp.ne.s32.totalorder %s203, %s217
    %p219 = scmp.eq.s32.totalorder %s24, 0
    %p220 = por %p218, %p219
    %s222 = sadd.s32 %s221, 1
    %p225 = scmp.eq.s32.totalorder %s18, 1
    %p226 = scmp.ne.s32.totalorder %s221, %s223
    %p227 = scmp.eq.s32.totalorder %s18, 0
    %p228 = por %p226, %p227
    %p229 = scmp.ne.s32.totalorder %s221, %s223
    %p230 = scmp.eq.s32.totalorder %s23, 1
    %p231 = por %p229, %p230
    %p232 = scmp.ne.s32.totalorder %s223, %s224
    %p233 = scmp.eq.s32.totalorder %s23, 0
    %p234 = por %p232, %p233
    %p235 = scmp.ne.s32.totalorder %s223, %s224
    %p236 = scmp.eq.s32.totalorder %s24, 1
    %p237 = por %p235, %p236
    %p239 = scmp.ne.s32.totalorder %s224, %s238
    %p240 = scmp.eq.s32.totalorder %s24, 0
    %p241 = por %p239, %p240
    %s243 = sadd.s32 %s242, 1
    %p246 = scmp.eq.s32.totalorder %s18, 1
    %p247 = scmp.ne.s32.totalorder %s242, %s244
    %p248 = scmp.eq.s32.totalorder %s18, 0
    %p249 = por %p247, %p248
    %p250 = scmp.ne.s32.totalorder %s242, %s244
    %p251 = scmp.eq.s32.totalorder %s23, 1
    %p252 = por %p250, %p251
    %p253 = scmp.ne.s32.totalorder %s244, %s245
    %p254 = scmp.eq.s32.totalorder %s23, 0
    %p255 = por %p253, %p254
    %p256 = scmp.ne.s32.totalorder %s244, %s245
    %p257 = scmp.eq.s32.totalorder %s24, 1
    %p258 = por %p256, %p257
    %p260 = scmp.ne.s32.totalorder %s245, %s259
    %p261 = scmp.eq.s32.totalorder %s24, 0
    %p262 = por %p260, %p261
    %s263 = ssub.s32 %s25, %s37
    %s264 = ssub.s32 %s26, %s33
    %s265 = sor.u32 %s263, %s264
    %p266 = scmp.eq.s32.totalorder %s265, 0
    %s268 = sadd.s32 %s267, 1
    %s269 = scalar_select %p266, %s267, %s268
    %p272 = pneg %p266
    %p273 = scmp.eq.s32.totalorder %s18, 1
    %p274 = por %p272, %p273
    %p275 = scmp.ne.s32.totalorder %s267, %s270
    %p276 = scmp.eq.s32.totalorder %s18, 0
    %p277 = por %p275, %p276
    %p278 = scmp.ne.s32.totalorder %s267, %s270
    %p279 = scmp.eq.s32.totalorder %s23, 1
    %p280 = por %p278, %p279
    %p281 = scmp.ne.s32.totalorder %s270, %s271
    %p282 = scmp.eq.s32.totalorder %s23, 0
    %p283 = por %p281, %p282
    %p284 = scmp.ne.s32.totalorder %s270, %s271
    %p285 = scmp.eq.s32.totalorder %s24, 1
    %p286 = por %p284, %p285
    %p288 = scmp.ne.s32.totalorder %s271, %s287
    %p289 = scmp.eq.s32.totalorder %s24, 0
    %p290 = por %p288, %p289
    %s291 = ssub.s32 %s25, %s37
    %s292 = ssub.s32 %s26, %s33
    %s293 = sor.u32 %s291, %s292
    %p294 = scmp.eq.s32.totalorder %s293, 0
    %s296 = sadd.s32 %s295, 1
    %s297 = scalar_select %p294, %s295, %s296
    %p300 = pneg %p294
    %p301 = scmp.eq.s32.totalorder %s18, 1
    %p302 = por %p300, %p301
    %p303 = scmp.ne.s32.totalorder %s295, %s298
    %p304 = scmp.eq.s32.totalorder %s18, 0
    %p305 = por %p303, %p304
    %p306 = scmp.ne.s32.totalorder %s295, %s298
    %p307 = scmp.eq.s32.totalorder %s23, 1
    %p308 = por %p306, %p307
    %p309 = scmp.ne.s32.totalorder %s298, %s299
    %p310 = scmp.eq.s32.totalorder %s23, 0
    %p311 = por %p309, %p310
    %p312 = scmp.ne.s32.totalorder %s298, %s299
    %p313 = scmp.eq.s32.totalorder %s24, 1
    %p314 = por %p312, %p313
    %p316 = scmp.ne.s32.totalorder %s299, %s315
    %p317 = scmp.eq.s32.totalorder %s24, 0
    %p318 = por %p316, %p317
    %s319 = ssub.s32 %s25, %s37
    %s320 = ssub.s32 %s26, %s33
    %s321 = sor.u32 %s319, %s320
    %p322 = scmp.eq.s32.totalorder %s321, 0
    %s324 = sadd.s32 %s323, 1
    %s325 = scalar_select %p322, %s323, %s324
    %p328 = pneg %p322
    %p329 = scmp.eq.s32.totalorder %s18, 1
    %p330 = por %p328, %p329
    %p331 = scmp.ne.s32.totalorder %s323, %s326
    %p332 = scmp.eq.s32.totalorder %s18, 0
    %p333 = por %p331, %p332
    %p334 = scmp.ne.s32.totalorder %s323, %s326
    %p335 = scmp.eq.s32.totalorder %s23, 1
    %p336 = por %p334, %p335
    %p337 = scmp.ne.s32.totalorder %s326, %s327
    %p338 = scmp.eq.s32.totalorder %s23, 0
    %p339 = por %p337, %p338
    %p340 = scmp.ne.s32.totalorder %s326, %s327
    %p341 = scmp.eq.s32.totalorder %s24, 1
    %p342 = por %p340, %p341
    %p344 = scmp.ne.s32.totalorder %s327, %s343
    %p345 = scmp.eq.s32.totalorder %s24, 0
    %p346 = por %p344, %p345
    %p347 = scmp.le.s32.totalorder 1, %s18
    %p348 = scmp.lt.s32.totalorder %s18, 3
    %p349 = pnand %p347, %p348
    %p350 = pneg %p349
    // Predicated region
    $region9: #{block_forward.7} parent=5 // pred_check
      _
    $region10: #{block_forward.7} parent=5 // pred_check_branch
      %352 = sbr.rel (%p349) target = $region12
    $region11: #{block_forward.7} parent=5 // pred_region
      %s353 = ssub.s32 %s18, 1
      // Predicated region
      $region13: #{block_forward.7} parent=11 // pred_check
        %p354 = pneg %p213
      $region14: #{block_forward.7} parent=11 // pred_check_branch
        %356 = sbr.rel (%p354) target = $region16
      $region15: #{block_forward.7} parent=11 // pred_region
        _
      $region16: #{block_forward.7} parent=11 // pred_fallthru
        _
      // Predicated region
      $region17: #{block_forward.7} parent=11 // pred_check
        %p357 = pneg %p234
      $region18: #{block_forward.7} parent=11 // pred_check_branch
        %359 = sbr.rel (%p357) target = $region20
      $region19: #{block_forward.7} parent=11 // pred_region
        _
      $region20: #{block_forward.7} parent=11 // pred_fallthru
        _
      // Predicated region
      $region21: #{block_forward.7} parent=11 // pred_check
        %p360 = pneg %p255
      $region22: #{block_forward.7} parent=11 // pred_check_branch
        %362 = sbr.rel (%p360) target = $region24
      $region23: #{block_forward.7} parent=11 // pred_region
        _
      $region24: #{block_forward.7} parent=11 // pred_fallthru
        _
    $region12: #{block_forward.7} parent=5 // pred_fallthru
      _
    %p363 = scmp.lt.s32.totalorder %s18, 2
    // Predicated region
    $region25: #{block_forward.7} parent=5 // pred_check
      %p364 = pneg %p363
    $region26: #{block_forward.7} parent=5 // pred_check_branch
      %366 = sbr.rel (%p364) target = $region28
    $region27: #{block_forward.7} parent=5 // pred_region
      // Predicated region
      $region29: #{block_forward.7} parent=27 // pred_check
        %p367 = pneg %p52
      $region30: #{block_forward.7} parent=27 // pred_check_branch
        %369 = sbr.rel (%p367) target = $region32
      $region31: #{block_forward.7} parent=27 // pred_region
        %s370 = smul.u32 2, %s26
        %p371 = scmp.lt.s32.totalorder %s25, 1
        %s372 = scalar_select %p371, %s25, 1
        %p373 = scmp.lt.s32.totalorder %s370, 1
        %s374 = scalar_select %p373, %s370, 1
        %s375 = smul.addr %s372, 8
        %s376 = sadd.s32 %s374, %s375
        %s377 = smul.addr %s376, 8
        %s378 = scalar_lea.vmem %s0, %s377
        %s379 = smul.u32 2, %s26
      $region32: #{block_forward.7} parent=27 // pred_fallthru
        _
      // Predicated region
      $region33: #{block_forward.7} parent=27 // pred_check
        %p380 = pneg %p78
      $region34: #{block_forward.7} parent=27 // pred_check_branch
        %382 = sbr.rel (%p380) target = $region36
      $region35: #{block_forward.7} parent=27 // pred_region
        %p383 = scmp.lt.s32.totalorder %s25, 1
        %s384 = scalar_select %p383, %s25, 1
        %s385 = smul.addr %s384, 8
        %s386 = smul.addr %s385, 8
        %s387 = scalar_lea.vmem %s1, %s386
      $region36: #{block_forward.7} parent=27 // pred_fallthru
        _
      // Predicated region
      $region37: #{block_forward.7} parent=27 // pred_check
        %p388 = pneg %p106
      $region38: #{block_forward.7} parent=27 // pred_check_branch
        %390 = sbr.rel (%p388) target = $region40
      $region39: #{block_forward.7} parent=27 // pred_region
        %s391 = smul.u32 2, %s26
        %p392 = scmp.lt.s32.totalorder %s25, 1
        %s393 = scalar_select %p392, %s25, 1
        %p394 = scmp.lt.s32.totalorder %s391, 1
        %s395 = scalar_select %p394, %s391, 1
        %s396 = smul.addr %s393, 8
        %s397 = sadd.s32 %s395, %s396
        %s398 = smul.addr %s397, 8
        %s399 = scalar_lea.vmem %s2, %s398
        %s400 = smul.u32 2, %s26
      $region40: #{block_forward.7} parent=27 // pred_fallthru
        _
      // Predicated region
      $region41: #{block_forward.7} parent=27 // pred_check
        %p401 = pneg %p132
      $region42: #{block_forward.7} parent=27 // pred_check_branch
        %403 = sbr.rel (%p401) target = $region44
      $region43: #{block_forward.7} parent=27 // pred_region
        %p404 = scmp.lt.s32.totalorder %s25, 1
        %s405 = scalar_select %p404, %s25, 1
        %s406 = smul.addr %s405, 8
        %s407 = smul.addr %s406, 8
        %s408 = scalar_lea.vmem %s3, %s407
      $region44: #{block_forward.7} parent=27 // pred_fallthru
        _
      // Predicated region
      $region45: #{block_forward.7} parent=27 // pred_check
        %p409 = pneg %p158
      $region46: #{block_forward.7} parent=27 // pred_check_branch
        %411 = sbr.rel (%p409) target = $region48
      $region47: #{block_forward.7} parent=27 // pred_region
        %p412 = scmp.lt.s32.totalorder %s25, 1
        %s413 = scalar_select %p412, %s25, 1
        %s414 = smul.addr %s413, 8
        %s415 = smul.addr %s414, 8
        %s416 = scalar_lea.vmem %s4, %s415
      $region48: #{block_forward.7} parent=27 // pred_fallthru
        _
      // Predicated region
      $region49: #{block_forward.7} parent=27 // pred_check
        %p417 = pneg %p186
      $region50: #{block_forward.7} parent=27 // pred_check_branch
        %419 = sbr.rel (%p417) target = $region52
      $region51: #{block_forward.7} parent=27 // pred_region
        %s420 = smul.u32 16, %s26
        %p421 = scmp.lt.s32.totalorder %s25, 1
        %s422 = scalar_select %p421, %s25, 1
        %p423 = scmp.lt.s32.totalorder %s420, 15
        %s424 = scalar_select %p423, %s420, 15
        %s425 = smul.addr %s424, 2
        %s426 = smul.addr %s422, 32
        %s427 = sadd.s32 %s425, %s426
        %s428 = smul.addr %s427, 8
        %s429 = scalar_lea.vmem %s5, %s428
        %s430 = smul.u32 16, %s26
      $region52: #{block_forward.7} parent=27 // pred_fallthru
        _
    $region28: #{block_forward.7} parent=5 // pred_fallthru
      _
    %p431 = scmp.le.s32.totalorder 1, %s18
    %p432 = scmp.lt.s32.totalorder %s18, 3
    %p433 = pnand %p431, %p432
    %p434 = pneg %p433
    // Predicated region
    $region53: #{block_forward.7} parent=5 // pred_check
      _
    $region54: #{block_forward.7} parent=5 // pred_check_branch
      %436 = sbr.rel (%p433) target = $region56
    $region55: #{block_forward.7} parent=5 // pred_region
      %s437 = ssub.s32 %s18, 1
      %s438 = smul.u32 2, %s28
      %p439 = scmp.lt.s32.totalorder %s27, 1
      %s440 = scalar_select %p439, %s27, 1
      %p441 = scmp.lt.s32.totalorder %s438, 1
      %s442 = scalar_select %p441, %s438, 1
      %s443 = smul.addr %s440, 8
      %s444 = sadd.s32 %s442, %s443
      %s445 = smul.addr %s444, 8
      %s446 = scalar_lea.vmem %s0, %s445
      %p447 = pneg %p58
      %p448 = pneg %p55
      %p449 = scmp.lt.s32.totalorder %s27, 1
      %s450 = scalar_select %p449, %s27, 1
      %s451 = smul.addr %s450, 8
      %s452 = smul.addr %s451, 8
      %s453 = scalar_lea.vmem %s1, %s452
      %p454 = pneg %p84
      %p455 = pneg %p81
      %s456 = smul.u32 2, %s28
      %p457 = scmp.lt.s32.totalorder %s27, 1
      %s458 = scalar_select %p457, %s27, 1
      %p459 = scmp.lt.s32.totalorder %s456, 1
      %s460 = scalar_select %p459, %s456, 1
      %s461 = smul.addr %s458, 8
      %s462 = sadd.s32 %s460, %s461
      %s463 = smul.addr %s462, 8
      %s464 = scalar_lea.vmem %s2, %s463
      %p465 = pneg %p112
      %p466 = pneg %p109
      %p467 = scmp.lt.s32.totalorder %s27, 1
      %s468 = scalar_select %p467, %s27, 1
      %s469 = smul.addr %s468, 8
      %s470 = smul.addr %s469, 8
      %s471 = scalar_lea.vmem %s3, %s470
      %p472 = pneg %p138
      %p473 = pneg %p135
      %p474 = scmp.lt.s32.totalorder %s27, 1
      %s475 = scalar_select %p474, %s27, 1
      %s476 = smul.addr %s475, 8
      %s477 = smul.addr %s476, 8
      %s478 = scalar_lea.vmem %s4, %s477
      %p479 = pneg %p164
      %p480 = pneg %p161
      %s481 = smul.u32 16, %s28
      %p482 = scmp.lt.s32.totalorder %s27, 1
      %s483 = scalar_select %p482, %s27, 1
      %p484 = scmp.lt.s32.totalorder %s481, 15
      %s485 = scalar_select %p484, %s481, 15
      %s486 = smul.addr %s485, 2
      %s487 = smul.addr %s483, 32
      %s488 = sadd.s32 %s486, %s487
      %s489 = smul.addr %s488, 8
      %s490 = scalar_lea.vmem %s5, %s489
      %p491 = pneg %p192
      %p492 = pneg %p189
      %p493 = pneg %p213
      %p494 = pneg %p210
      %p495 = pneg %p234
      %p496 = pneg %p231
      %p497 = pneg %p255
      %p498 = pneg %p252
      %p499 = pneg %p283
      %p500 = pneg %p280
      %s501 = smul.u32 2, %s28
      %p502 = scmp.lt.s32.totalorder %s27, 1
      %s503 = scalar_select %p502, %s27, 1
      %p504 = scmp.lt.s32.totalorder %s501, 1
      %s505 = scalar_select %p504, %s501, 1
      %s506 = smul.addr %s503, 2
      %s507 = sadd.s32 %s505, %s506
      %s508 = smul.addr %s507, 8
      %s509 = scalar_lea.vmem %s9, %s508
      %p510 = pneg %p311
      %p511 = pneg %p308
      %s512 = smul.u32 2, %s28
      %p513 = scmp.lt.s32.totalorder %s27, 1
      %s514 = scalar_select %p513, %s27, 1
      %p515 = scmp.lt.s32.totalorder %s512, 1
      %s516 = scalar_select %p515, %s512, 1
      %s517 = smul.addr %s514, 2
      %s518 = sadd.s32 %s516, %s517
      %s519 = smul.addr %s518, 8
      %s520 = scalar_lea.vmem %s10, %s519
      %p521 = pneg %p339
      %p522 = pneg %p336
      %s523 = smul.u32 16, %s28
      %p524 = scmp.lt.s32.totalorder %s27, 1
      %s525 = scalar_select %p524, %s27, 1
      %p526 = scmp.lt.s32.totalorder %s523, 15
      %s527 = scalar_select %p526, %s523, 15
      %s528 = smul.addr %s527, 2
      %s529 = smul.addr %s525, 32
      %s530 = sadd.s32 %s528, %s529
      %s531 = smul.addr %s530, 8
      %s532 = scalar_lea.vmem %s11, %s531
      %s533 = smul.u32 2, %s28
      %p534 = scmp.lt.s32.totalorder %s27, 1
      %s535 = scalar_select %p534, %s27, 1
      %p536 = scmp.lt.s32.totalorder %s533, 1
      %s537 = scalar_select %p536, %s533, 1
      %s538 = smul.addr %s535, 8
      %s539 = sadd.s32 %s537, %s538
      %s540 = smul.addr %s539, 8
      %s541 = scalar_lea.vmem %s0, %s540
      %s542 = smul.u32 2, %s28
      %p543 = scmp.lt.s32.totalorder %s27, 1
      %s544 = scalar_select %p543, %s27, 1
      %s545 = smul.addr %s544, 8
      %s546 = smul.addr %s545, 8
      %s547 = scalar_lea.vmem %s1, %s546
      %s548 = smul.u32 2, %s28
      %p549 = scmp.lt.s32.totalorder %s27, 1
      %s550 = scalar_select %p549, %s27, 1
      %p551 = scmp.lt.s32.totalorder %s548, 1
      %s552 = scalar_select %p551, %s548, 1
      %s553 = smul.addr %s550, 8
      %s554 = sadd.s32 %s552, %s553
      %s555 = smul.addr %s554, 8
      %s556 = scalar_lea.vmem %s2, %s555
      %s557 = smul.u32 2, %s28
      %p558 = scmp.lt.s32.totalorder %s27, 1
      %s559 = scalar_select %p558, %s27, 1
      %s560 = smul.addr %s559, 8
      %s561 = smul.addr %s560, 8
      %s562 = scalar_lea.vmem %s3, %s561
      %p563 = scmp.lt.s32.totalorder %s27, 1
      %s564 = scalar_select %p563, %s27, 1
      %s565 = smul.addr %s564, 8
      %s566 = smul.addr %s565, 8
      %s567 = scalar_lea.vmem %s4, %s566
      %s568 = smul.u32 16, %s28
      %p569 = scmp.lt.s32.totalorder %s27, 1
      %s570 = scalar_select %p569, %s27, 1
      %p571 = scmp.lt.s32.totalorder %s568, 15
      %s572 = scalar_select %p571, %s568, 15
      %s573 = smul.addr %s572, 2
      %s574 = smul.addr %s570, 32
      %s575 = sadd.s32 %s573, %s574
      %s576 = smul.addr %s575, 8
      %s577 = scalar_lea.vmem %s5, %s576
      %s578 = smul.u32 16, %s28
      %s579 = smul.u32 2, %s28
      %p580 = scmp.lt.s32.totalorder %s27, 1
      %s581 = scalar_select %p580, %s27, 1
      %p582 = scmp.lt.s32.totalorder %s579, 1
      %s583 = scalar_select %p582, %s579, 1
      %s584 = smul.addr %s581, 2
      %s585 = sadd.s32 %s583, %s584
      %s586 = smul.addr %s585, 8
      %s587 = scalar_lea.vmem %s9, %s586
      %s588 = smul.u32 2, %s28
      %s589 = smul.u32 2, %s28
      %p590 = scmp.lt.s32.totalorder %s27, 1
      %s591 = scalar_select %p590, %s27, 1
      %p592 = scmp.lt.s32.totalorder %s589, 1
      %s593 = scalar_select %p592, %s589, 1
      %s594 = smul.addr %s591, 2
      %s595 = sadd.s32 %s593, %s594
      %s596 = smul.addr %s595, 8
      %s597 = scalar_lea.vmem %s10, %s596
      %s598 = smul.u32 2, %s28
      %s599 = smul.u32 16, %s28
      %p600 = scmp.lt.s32.totalorder %s27, 1
      %s601 = scalar_select %p600, %s27, 1
      %p602 = scmp.lt.s32.totalorder %s599, 15
      %s603 = scalar_select %p602, %s599, 15
      %s604 = smul.addr %s603, 2
      %s605 = smul.addr %s601, 32
      %s606 = sadd.s32 %s604, %s605
      %s607 = smul.addr %s606, 8
      %s608 = scalar_lea.vmem %s11, %s607
      %s609 = smul.u32 16, %s28
      %v611 = vld [vmem:[%s577] sm:$0xff]
      %v612 = vld [vmem:[%s577 + $0x8] sm:$0xff]
      %v613 = vld [vmem:[%s577 + $0x10] sm:$0xff]
      %v614 = vld [vmem:[%s577 + $0x18] sm:$0xff]
      %v615 = vld [vmem:[%s577 + $0x20] sm:$0xff]
      %v616 = vld [vmem:[%s577 + $0x28] sm:$0xff]
      %v617 = vld [vmem:[%s577 + $0x30] sm:$0xff]
      %v618 = vld [vmem:[%s577 + $0x38] sm:$0xff]
      %v619 = vld [vmem:[%s577 + $0x40] sm:$0xff]
      %v620 = vld [vmem:[%s577 + $0x48] sm:$0xff]
      %v621 = vld [vmem:[%s577 + $0x50] sm:$0xff]
      %v622 = vld [vmem:[%s577 + $0x58] sm:$0xff]
      %v623 = vld [vmem:[%s577 + $0x60] sm:$0xff]
      %v624 = vld [vmem:[%s577 + $0x68] sm:$0xff]
      %v625 = vld [vmem:[%s577 + $0x70] sm:$0xff]
      %v626 = vld [vmem:[%s577 + $0x78] sm:$0xff]
      %v627 = vld [vmem:[%s577 + $0x80] sm:$0xff]
      %v628 = vld [vmem:[%s577 + $0x88] sm:$0xff]
      %v629 = vld [vmem:[%s577 + $0x90] sm:$0xff]
      %v630 = vld [vmem:[%s577 + $0x98] sm:$0xff]
      %v631 = vld [vmem:[%s577 + $0xa0] sm:$0xff]
      %v632 = vld [vmem:[%s577 + $0xa8] sm:$0xff]
      %v633 = vld [vmem:[%s577 + $0xb0] sm:$0xff]
      %v634 = vld [vmem:[%s577 + $0xb8] sm:$0xff]
      %v635 = vld [vmem:[%s577 + $0xc0] sm:$0xff]
      %v636 = vld [vmem:[%s577 + $0xc8] sm:$0xff]
      %v637 = vld [vmem:[%s577 + $0xd0] sm:$0xff]
      %v638 = vld [vmem:[%s577 + $0xd8] sm:$0xff]
      %v639 = vld [vmem:[%s577 + $0xe0] sm:$0xff]
      %v640 = vld [vmem:[%s577 + $0xe8] sm:$0xff]
      %v641 = vld [vmem:[%s577 + $0xf0] sm:$0xff]
      %v642 = vld [vmem:[%s577 + $0xf8] sm:$0xff]
      %v643 = vpack.c.bf16 %v612, %v611
      %v644 = vpack.c.bf16 %v614, %v613
      %v645 = vpack.c.bf16 %v616, %v615
      %v646 = vpack.c.bf16 %v618, %v617
      %v647 = vpack.c.bf16 %v620, %v619
      %v648 = vpack.c.bf16 %v622, %v621
      %v649 = vpack.c.bf16 %v624, %v623
      %v650 = vpack.c.bf16 %v626, %v625
      %v651 = vpack.c.bf16 %v628, %v627
      %v652 = vpack.c.bf16 %v630, %v629
      %v653 = vpack.c.bf16 %v632, %v631
      %v654 = vpack.c.bf16 %v634, %v633
      %v655 = vpack.c.bf16 %v636, %v635
      %v656 = vpack.c.bf16 %v638, %v637
      %v657 = vpack.c.bf16 %v640, %v639
      %v658 = vpack.c.bf16 %v642, %v641
      %v659 = vld [vmem:[%s6] sm:$0x3]
      %vm660 = vcmask 130048
      %v662 = vsel %vm660, %v659, 0
      %v665 = vsel %vm660, %v643, 0
      %v668 = vsel %vm660, %v644, 0
      %v671 = vsel %vm660, %v645, 0
      %v674 = vsel %vm660, %v646, 0
      %v677 = vsel %vm660, %v647, 0
      %v680 = vsel %vm660, %v648, 0
      %v683 = vsel %vm660, %v649, 0
      %v686 = vsel %vm660, %v650, 0
      %v689 = vsel %vm660, %v651, 0
      %v692 = vsel %vm660, %v652, 0
      %v695 = vsel %vm660, %v653, 0
      %v698 = vsel %vm660, %v654, 0
      %v701 = vsel %vm660, %v655, 0
      %v704 = vsel %vm660, %v656, 0
      %v707 = vsel %vm660, %v657, 0
      %v710 = vsel %vm660, %v658, 0
      %712 = vmatprep.subr.bf16.mxu0 0
      %713 = vmatpush1.bf16.xpose.msra.mxu0 %v686
      %714 = vmatprep.subr.bf16.mxu0 0
      %715 = vmatpush1.bf16.xpose.msra.mxu0 %v683
      %716 = vmatprep.subr.bf16.mxu0 0
      %717 = vmatpush1.bf16.xpose.msra.mxu0 %v680
      %718 = vmatprep.subr.bf16.mxu0 0
      %719 = vmatpush1.bf16.xpose.msra.mxu0 %v677
      %720 = vmatprep.subr.bf16.mxu0 0
      %721 = vmatpush1.bf16.xpose.msra.mxu0 %v674
      %722 = vmatprep.subr.bf16.mxu0 0
      %723 = vmatpush1.bf16.xpose.msra.mxu0 %v671
      %724 = vmatprep.subr.bf16.mxu0 0
      %725 = vmatpush1.bf16.xpose.msra.mxu0 %v668
      %726 = vmatprep.subr.bf16.mxu0 0
      %727 = vmatpush1.bf16.xpose.msra.mxu0 %v665
      %728 = vmatprep.subr.bf16.mxu0 0
      %729 = vmatpush2.bf16.xpose.msra.mxu0 %v710
      %730 = vmatprep.subr.bf16.mxu0 0
      %731 = vmatpush2.bf16.xpose.msra.mxu0 %v707
      %732 = vmatprep.subr.bf16.mxu0 0
      %733 = vmatpush2.bf16.xpose.msra.mxu0 %v704
      %734 = vmatprep.subr.bf16.mxu0 0
      %735 = vmatpush2.bf16.xpose.msra.mxu0 %v701
      %736 = vmatprep.subr.bf16.mxu0 0
      %737 = vmatpush2.bf16.xpose.msra.mxu0 %v698
      %738 = vmatprep.subr.bf16.mxu0 0
      %739 = vmatpush2.bf16.xpose.msra.mxu0 %v695
      %740 = vmatprep.subr.bf16.mxu0 0
      %741 = vmatpush2.bf16.xpose.msra.mxu0 %v692
      %742 = vmatprep.subr.bf16.mxu0 0
      %743 = vmatpush2.bf16.xpose.msra.mxu0 %v689
      %744 = vmatprep.mubr.bf16.mxu0 0
      %745 = vmatmul.mubr.bf16.gmra.mxu0 %v662
      %v746 = vpop.f32.mrf.mxu0
      %v747 = vadd.f32 0.0, %v746
      %v748 = vpop.f32.mrf.mxu0
      %v749 = vadd.f32 0.0, %v748
      %v750 = vpop.f32.mrf.mxu0
      %v751 = vpop.f32.mrf.mxu0
      %752 = vdwg.mxu0
      %754 = vrot.lane.b32.xlu0 %v747, 112
      %v755 = vpop.permute.xlu0 %754
      %757 = vrot.lane.b32.xlu0 %v747, 96
      %v758 = vpop.permute.xlu0 %757
      %760 = vrot.lane.b32.xlu0 %v747, 80
      %v761 = vpop.permute.xlu0 %760
      %763 = vrot.lane.b32.xlu0 %v747, 64
      %v764 = vpop.permute.xlu0 %763
      %766 = vrot.lane.b32.xlu0 %v747, 48
      %v767 = vpop.permute.xlu0 %766
      %769 = vrot.lane.b32.xlu0 %v747, 32
      %v770 = vpop.permute.xlu0 %769
      %772 = vrot.lane.b32.xlu0 %v747, 16
      %v773 = vpop.permute.xlu0 %772
      %776 = vrot.lane.b32.xlu0 %v749, 112
      %v777 = vpop.permute.xlu0 %776
      %779 = vrot.lane.b32.xlu0 %v749, 96
      %v780 = vpop.permute.xlu0 %779
      %782 = vrot.lane.b32.xlu0 %v749, 80
      %v783 = vpop.permute.xlu0 %782
      %785 = vrot.lane.b32.xlu0 %v749, 64
      %v786 = vpop.permute.xlu0 %785
      %788 = vrot.lane.b32.xlu0 %v749, 48
      %v789 = vpop.permute.xlu0 %788
      %791 = vrot.lane.b32.xlu0 %v749, 32
      %v792 = vpop.permute.xlu0 %791
      %794 = vrot.lane.b32.xlu0 %v749, 16
      %v795 = vpop.permute.xlu0 %794
      %v797 = vcombine.low %v747, %v758
      %v799 = vunpack.c.l.s4 1983009808
      %v800 = vunpack.c.0.s8 %v799
      %v801 = vlaneseq
      %v802 = vshrl.u32 %v801, 7
      %v803 = vsub.s32 %v800, %v802
      %v804 = vrot.slane %v797, %v803
      %v805 = vcombine.low %v755, %v761
      %v807 = vunpack.c.l.s4 1983009808
      %v808 = vunpack.c.0.s8 %v807
      %v809 = vlaneseq
      %v810 = vshrl.u32 %v809, 7
      %v811 = vsub.s32 %v808, %v810
      %v812 = vrot.slane %v805, %v811
      %v813 = vcombine.low %v764, %v770
      %v815 = vunpack.c.l.s4 1983009808
      %v816 = vunpack.c.0.s8 %v815
      %v817 = vlaneseq
      %v818 = vshrl.u32 %v817, 7
      %v819 = vsub.s32 %v816, %v818
      %v820 = vrot.slane %v813, %v819
      %v821 = vcombine.low %v767, %v773
      %v823 = vunpack.c.l.s4 1983009808
      %v824 = vunpack.c.0.s8 %v823
      %v825 = vlaneseq
      %v826 = vshrl.u32 %v825, 7
      %v827 = vsub.s32 %v824, %v826
      %v828 = vrot.slane %v821, %v827
      %v829 = vcombine.low %v804, %v812
      %v830 = vcombine.high %v804, %v812
      %v832 = vunpack.c.l.s4 1934713408
      %v833 = vunpack.c.0.s8 %v832
      %v834 = vlaneseq
      %v835 = vshrl.u32 %v834, 7
      %v836 = vsub.s32 %v833, %v835
      %v837 = vrot.slane %v829, %v836
      %v839 = vunpack.c.l.s4 1934713408
      %v840 = vunpack.c.0.s8 %v839
      %v841 = vlaneseq
      %v842 = vshrl.u32 %v841, 7
      %v843 = vsub.s32 %v840, %v842
      %v844 = vrot.slane %v830, %v843
      %v845 = vcombine.low %v820, %v828
      %v846 = vcombine.high %v820, %v828
      %v848 = vunpack.c.l.s4 1934713408
      %v849 = vunpack.c.0.s8 %v848
      %v850 = vlaneseq
      %v851 = vshrl.u32 %v850, 7
      %v852 = vsub.s32 %v849, %v851
      %v853 = vrot.slane %v845, %v852
      %v855 = vunpack.c.l.s4 1934713408
      %v856 = vunpack.c.0.s8 %v855
      %v857 = vlaneseq
      %v858 = vshrl.u32 %v857, 7
      %v859 = vsub.s32 %v856, %v858
      %v860 = vrot.slane %v846, %v859
      %v861 = vcombine.low %v837, %v853
      %v862 = vcombine.high %v837, %v853
      %v863 = vcombine.low %v844, %v860
      %v864 = vcombine.high %v844, %v860
      %v865 = vcombine.low %v749, %v780
      %v867 = vunpack.c.l.s4 1983009808
      %v868 = vunpack.c.0.s8 %v867
      %v869 = vlaneseq
      %v870 = vshrl.u32 %v869, 7
      %v871 = vsub.s32 %v868, %v870
      %v872 = vrot.slane %v865, %v871
      %v873 = vcombine.low %v777, %v783
      %v875 = vunpack.c.l.s4 1983009808
      %v876 = vunpack.c.0.s8 %v875
      %v877 = vlaneseq
      %v878 = vshrl.u32 %v877, 7
      %v879 = vsub.s32 %v876, %v878
      %v880 = vrot.slane %v873, %v879
      %v881 = vcombine.low %v786, %v792
      %v883 = vunpack.c.l.s4 1983009808
      %v884 = vunpack.c.0.s8 %v883
      %v885 = vlaneseq
      %v886 = vshrl.u32 %v885, 7
      %v887 = vsub.s32 %v884, %v886
      %v888 = vrot.slane %v881, %v887
      %v889 = vcombine.low %v789, %v795
      %v891 = vunpack.c.l.s4 1983009808
      %v892 = vunpack.c.0.s8 %v891
      %v893 = vlaneseq
      %v894 = vshrl.u32 %v893, 7
      %v895 = vsub.s32 %v892, %v894
      %v896 = vrot.slane %v889, %v895
      %v897 = vcombine.low %v872, %v880
      %v898 = vcombine.high %v872, %v880
      %v900 = vunpack.c.l.s4 1934713408
      %v901 = vunpack.c.0.s8 %v900
      %v902 = vlaneseq
      %v903 = vshrl.u32 %v902, 7
      %v904 = vsub.s32 %v901, %v903
      %v905 = vrot.slane %v897, %v904
      %v907 = vunpack.c.l.s4 1934713408
      %v908 = vunpack.c.0.s8 %v907
      %v909 = vlaneseq
      %v910 = vshrl.u32 %v909, 7
      %v911 = vsub.s32 %v908, %v910
      %v912 = vrot.slane %v898, %v911
      %v913 = vcombine.low %v888, %v896
      %v914 = vcombine.high %v888, %v896
      %v916 = vunpack.c.l.s4 1934713408
      %v917 = vunpack.c.0.s8 %v916
      %v918 = vlaneseq
      %v919 = vshrl.u32 %v918, 7
      %v920 = vsub.s32 %v917, %v919
      %v921 = vrot.slane %v913, %v920
      %v923 = vunpack.c.l.s4 1934713408
      %v924 = vunpack.c.0.s8 %v923
      %v925 = vlaneseq
      %v926 = vshrl.u32 %v925, 7
      %v927 = vsub.s32 %v924, %v926
      %v928 = vrot.slane %v914, %v927
      %v929 = vcombine.low %v905, %v921
      %v930 = vcombine.high %v905, %v921
      %v931 = vcombine.low %v912, %v928
      %v932 = vcombine.high %v912, %v928
      %s933 = scalar_lea.vmem [#allocation2], 192
      %934 = vst.msk [vmem:[%s933] sm:$0xff] %vm660, 0.0
      %935 = vst.msk [vmem:[%s933 + $0x8] sm:$0xff] %vm660, 0.0
      %936 = vst.msk [vmem:[%s933 + $0x10] sm:$0xff] %vm660, 0.0
      %937 = vst.msk [vmem:[%s933 + $0x18] sm:$0xff] %vm660, 0.0
      %938 = vst.msk [vmem:[%s933 + $0x20] sm:$0xff] %vm660, 0.0
      %939 = vst.msk [vmem:[%s933 + $0x28] sm:$0xff] %vm660, 0.0
      %940 = vst.msk [vmem:[%s933 + $0x30] sm:$0xff] %vm660, 0.0
      %941 = vst.msk [vmem:[%s933 + $0x38] sm:$0xff] %vm660, 0.0
      %v942 = vld [vmem:[%s541] sm:$0xff]
      %v943 = vld [vmem:[%s541 + $0x8] sm:$0xff]
      %v944 = vpack.c.bf16 %v943, %v942
      %v945 = vld [vmem:[%s547] sm:$0xff]
      %v946 = vld [vmem:[%s547 + $0x8] sm:$0xff]
      %v947 = vpack.c.bf16 %v946, %v945
      %vm948 = vcmask 64512
      %v950 = vsel %vm948, %v944, 0
      %v953 = vsel %vm948, %v947, 0
      %955 = vmatprep.subr.bf16.mxu0 0
      %956 = vmatpush1.bf16.xpose.msra.mxu0 0
      %957 = vmatprep.subr.bf16.mxu0 0
      %958 = vmatpush1.bf16.xpose.msra.mxu0 0
      %959 = vmatprep.subr.bf16.mxu0 0
      %960 = vmatpush1.bf16.xpose.msra.mxu0 0
      %961 = vmatprep.subr.bf16.mxu0 0
      %962 = vmatpush1.bf16.xpose.msra.mxu0 0
      %963 = vmatprep.subr.bf16.mxu0 0
      %964 = vmatpush1.bf16.xpose.msra.mxu0 0
      %965 = vmatprep.subr.bf16.mxu0 0
      %966 = vmatpush1.bf16.xpose.msra.mxu0 0
      %967 = vmatprep.subr.bf16.mxu0 0
      %968 = vmatpush1.bf16.xpose.msra.mxu0 0
      %969 = vmatprep.subr.bf16.mxu0 0
      %970 = vmatpush1.bf16.xpose.msra.mxu0 %v953
      %971 = vmatprep.subr.bf16.mxu0 0
      %972 = vmatpush2.bf16.xpose.msra.mxu0 0
      %973 = vmatprep.subr.bf16.mxu0 0
      %974 = vmatpush2.bf16.xpose.msra.mxu0 0
      %975 = vmatprep.subr.bf16.mxu0 0
      %976 = vmatpush2.bf16.xpose.msra.mxu0 0
      %977 = vmatprep.subr.bf16.mxu0 0
      %978 = vmatpush2.bf16.xpose.msra.mxu0 0
      %979 = vmatprep.subr.bf16.mxu0 0
      %980 = vmatpush2.bf16.xpose.msra.mxu0 0
      %981 = vmatprep.subr.bf16.mxu0 0
      %982 = vmatpush2.bf16.xpose.msra.mxu0 0
      %983 = vmatprep.subr.bf16.mxu0 0
      %984 = vmatpush2.bf16.xpose.msra.mxu0 0
      %985 = vmatprep.subr.bf16.mxu0 0
      %986 = vmatpush2.bf16.xpose.msra.mxu0 0
      %987 = vmatprep.mubr.bf16.mxu0 0
      %988 = vmatmul.mubr.bf16.gmra.mxu0 %v950
      %v989 = vpop.f32.mrf.mxu0
      %v990 = vadd.f32 0.0, %v989
      %v991 = vpop.f32.mrf.mxu0
      %v992 = vpop.f32.mrf.mxu0
      %v993 = vadd.f32 0.0, %v992
      %v994 = vpop.f32.mrf.mxu0
      %995 = vdwg.mxu0
      %v996 = vld [vmem:[%s556] sm:$0xff]
      %v997 = vld [vmem:[%s556 + $0x8] sm:$0xff]
      %v998 = vpack.c.bf16 %v997, %v996
      %v999 = vld [vmem:[%s562] sm:$0xff]
      %v1000 = vld [vmem:[%s562 + $0x8] sm:$0xff]
      %v1001 = vpack.c.bf16 %v1000, %v999
      %vm1002 = vcmask 97280
      %v1004 = vsel %vm1002, %v998, 0
      %v1007 = vsel %vm1002, %v1001, 0
      %1009 = vmatprep.subr.bf16.mxu0 0
      %1010 = vmatpush1.bf16.xpose.msra.mxu0 0
      %1011 = vmatprep.subr.bf16.mxu0 0
      %1012 = vmatpush1.bf16.xpose.msra.mxu0 0
      %1013 = vmatprep.subr.bf16.mxu0 0
      %1014 = vmatpush1.bf16.xpose.msra.mxu0 0
      %1015 = vmatprep.subr.bf16.mxu0 0
      %1016 = vmatpush1.bf16.xpose.msra.mxu0 0
      %1017 = vmatprep.subr.bf16.mxu0 0
      %1018 = vmatpush1.bf16.xpose.msra.mxu0 0
      %1019 = vmatprep.subr.bf16.mxu0 0
      %1020 = vmatpush1.bf16.xpose.msra.mxu0 0
      %1021 = vmatprep.subr.bf16.mxu0 0
      %1022 = vmatpush1.bf16.xpose.msra.mxu0 0
      %1023 = vmatprep.subr.bf16.mxu0 0
      %1024 = vmatpush1.bf16.xpose.msra.mxu0 %v1007
      %1025 = vmatprep.subr.bf16.mxu0 0
      %1026 = vmatpush2.bf16.xpose.msra.mxu0 0
      %1027 = vmatprep.subr.bf16.mxu0 0
      %1028 = vmatpush2.bf16.xpose.msra.mxu0 0
      %1029 = vmatprep.subr.bf16.mxu0 0
      %1030 = vmatpush2.bf16.xpose.msra.mxu0 0
      %1031 = vmatprep.subr.bf16.mxu0 0
      %1032 = vmatpush2.bf16.xpose.msra.mxu0 0
      %1033 = vmatprep.subr.bf16.mxu0 0
      %1034 = vmatpush2.bf16.xpose.msra.mxu0 0
      %1035 = vmatprep.subr.bf16.mxu0 0
      %1036 = vmatpush2.bf16.xpose.msra.mxu0 0
      %1037 = vmatprep.subr.bf16.mxu0 0
      %1038 = vmatpush2.bf16.xpose.msra.mxu0 0
      %1039 = vmatprep.subr.bf16.mxu0 0
      %1040 = vmatpush2.bf16.xpose.msra.mxu0 0
      %1041 = vmatprep.mubr.bf16.mxu0 0
      %1042 = vmatmul.mubr.bf16.gmra.mxu0 %v1004
      %v1043 = vpop.f32.mrf.mxu0
      %v1044 = vadd.f32 0.0, %v1043
      %v1045 = vpop.f32.mrf.mxu0
      %v1046 = vpop.f32.mrf.mxu0
      %v1047 = vadd.f32 0.0, %v1046
      %v1048 = vpop.f32.mrf.mxu0
      %1049 = vdwg.mxu0
      %v1050 = vmul.f32 %v990, 0.20412415
      %v1051 = vmul.f32 %v993, 0.20412415
      %v1052 = vmul.f32 %v1044, 0.13608277
      %v1053 = vmul.f32 %v1047, 0.13608277
      %v1054 = vadd.f32 %v1050, %v1052
      %v1055 = vadd.f32 %v1051, %v1053
      %v1056 = vadd.f32 %v1054, %v861
      %v1057 = vadd.f32 %v1055, %v929
      %v1058 = vsel %vm660, %v1056, -inf
      %1059 = vmax.xlane.f32.xlu0 %v1058
      %v1060 = vpop.xlane.xlu0 %1059
      %v1061 = vsel %vm660, %v1057, -inf
      %1062 = vmax.xlane.f32.xlu0 %v1061
      %v1063 = vpop.xlane.xlu0 %1062
      %v1064 = vsub.f32 %v1056, %v1060
      %v1065 = vsub.f32 %v1057, %v1063
      %v1066 = vmul.f32 %v1064, 1.442695
      %v1067 = vpow.pop %v1066
      %v1068 = vmul.f32 %v1065, 1.442695
      %v1069 = vpow.pop %v1068
      %v1070 = vsel %vm660, %v1067, 0.0
      %1071 = vadd.xlane.f32.xlu0 %v1070
      %v1072 = vpop.xlane.xlu0 %1071
      %v1073 = vsel %vm660, %v1069, 0.0
      %1074 = vadd.xlane.f32.xlu0 %v1073
      %v1075 = vpop.xlane.xlu0 %1074
      %v1076 = vrcp.pop %v1072
      %v1077 = vmul.f32 %v1067, %v1076
      %v1078 = vrcp.pop %v1075
      %v1079 = vmul.f32 %v1069, %v1078
      %1080 = vst.msk [vmem:[#allocation2] sm:$0xff] %vm660, %v1077
      %1081 = vst.msk [vmem:[#allocation2 + $0x8] sm:$0xff] %vm660, %v1079
      %v1082 = vsel %vm660, %v1044, -inf
      %1083 = vmax.xlane.f32.xlu0 %v1082
      %v1084 = vpop.xlane.xlu0 %1083
      %v1085 = vsel %vm660, %v1047, -inf
      %1086 = vmax.xlane.f32.xlu0 %v1085
      %v1087 = vpop.xlane.xlu0 %1086
      %v1088 = vsub.f32 %v1044, %v1084
      %v1089 = vsub.f32 %v1047, %v1087
      %v1090 = vmul.f32 %v1088, 1.442695
      %v1091 = vpow.pop %v1090
      %v1092 = vmul.f32 %v1089, 1.442695
      %v1093 = vpow.pop %v1092
      %v1094 = vsel %vm660, %v1091, 0.0
      %1095 = vadd.xlane.f32.xlu0 %v1094
      %v1096 = vpop.xlane.xlu0 %1095
      %v1097 = vsel %vm660, %v1093, 0.0
      %1098 = vadd.xlane.f32.xlu0 %v1097
      %v1099 = vpop.xlane.xlu0 %1098
      %v1100 = vrcp.pop %v1096
      %v1101 = vmul.f32 %v1091, %v1100
      %v1102 = vrcp.pop %v1099
      %v1103 = vmul.f32 %v1093, %v1102
      %s1104 = scalar_lea.vmem [#allocation2], 64
      %1105 = vst.msk [vmem:[%s1104] sm:$0xff] %vm660, %v1101
      %1106 = vst.msk [vmem:[%s1104 + $0x8] sm:$0xff] %vm660, %v1103
      %v1107 = vsel %vm660, %v990, -inf
      %1108 = vmax.xlane.f32.xlu0 %v1107
      %v1109 = vpop.xlane.xlu0 %1108
      %v1110 = vsel %vm660, %v993, -inf
      %1111 = vmax.xlane.f32.xlu0 %v1110
      %v1112 = vpop.xlane.xlu0 %1111
      %v1113 = vsub.f32 %v990, %v1109
      %v1114 = vsub.f32 %v993, %v1112
      %v1115 = vmul.f32 %v1113, 1.442695
      %v1116 = vpow.pop %v1115
      %v1117 = vmul.f32 %v1114, 1.442695
      %v1118 = vpow.pop %v1117
      %v1119 = vsel %vm660, %v1116, 0.0
      %1120 = vadd.xlane.f32.xlu0 %v1119
      %v1121 = vpop.xlane.xlu0 %1120
      %v1122 = vsel %vm660, %v1118, 0.0
      %1123 = vadd.xlane.f32.xlu0 %v1122
      %v1124 = vpop.xlane.xlu0 %1123
      %v1125 = vrcp.pop %v1121
      %v1126 = vmul.f32 %v1116, %v1125
      %v1127 = vrcp.pop %v1124
      %v1128 = vmul.f32 %v1118, %v1127
      %s1129 = scalar_lea.vmem [#allocation2], 128
      %1130 = vst.msk [vmem:[%s1129] sm:$0xff] %vm660, %v1126
      %1131 = vst.msk [vmem:[%s1129 + $0x8] sm:$0xff] %vm660, %v1128
      %v1132 = vpack.c.bf16 %v1079, %v1077
      %v1134 = vcombine.high %v1132, %v1132
      %v1136 = vunpack.c.l.s4 1966171168
      %v1137 = vunpack.c.0.s8 %v1136
      %v1138 = vlaneseq
      %v1139 = vshrl.u32 %v1138, 7
      %v1140 = vsub.s32 %v1137, %v1139
      %v1141 = vrot.slane %v1132, %v1140
      %v1143 = vunpack.c.l.s4 1966171168
      %v1144 = vunpack.c.0.s8 %v1143
      %v1145 = vlaneseq
      %v1146 = vshrl.u32 %v1145, 7
      %v1147 = vsub.s32 %v1144, %v1146
      %v1148 = vrot.slane %v1134, %v1147
      %v1149 = vcombine.high %v1141, %v1141
      %v1150 = vcombine.high %v1148, %v1148
      %v1152 = vunpack.c.l.s4 1966171168
      %v1153 = vunpack.c.0.s8 %v1152
      %v1154 = vlaneseq
      %v1155 = vshrl.u32 %v1154, 7
      %v1156 = vsub.s32 %v1153, %v1155
      %v1157 = vrot.slane %v1141, %v1156
      %v1159 = vunpack.c.l.s4 1966171168
      %v1160 = vunpack.c.0.s8 %v1159
      %v1161 = vlaneseq
      %v1162 = vshrl.u32 %v1161, 7
      %v1163 = vsub.s32 %v1160, %v1162
      %v1164 = vrot.slane %v1148, %v1163
      %v1166 = vunpack.c.l.s4 1966171168
      %v1167 = vunpack.c.0.s8 %v1166
      %v1168 = vlaneseq
      %v1169 = vshrl.u32 %v1168, 7
      %v1170 = vsub.s32 %v1167, %v1169
      %v1171 = vrot.slane %v1149, %v1170
      %v1173 = vunpack.c.l.s4 1966171168
      %v1174 = vunpack.c.0.s8 %v1173
      %v1175 = vlaneseq
      %v1176 = vshrl.u32 %v1175, 7
      %v1177 = vsub.s32 %v1174, %v1176
      %v1178 = vrot.slane %v1150, %v1177
      %v1179 = vcombine.high %v1157, %v1157
      %v1180 = vcombine.high %v1164, %v1164
      %v1181 = vcombine.high %v1171, %v1171
      %v1182 = vcombine.high %v1178, %v1178
      %v1183 = vunpack.i.l.s16 %v1157
      %v1184 = vunpack.i.h.s16 %v1157
      %v1185 = vunpack.i.l.s16 %v1171
      %v1186 = vunpack.i.h.s16 %v1171
      %v1187 = vunpack.i.l.s16 %v1179
      %v1188 = vunpack.i.h.s16 %v1179
      %v1189 = vunpack.i.l.s16 %v1181
      %v1190 = vunpack.i.h.s16 %v1181
      %v1191 = vunpack.i.l.s16 %v1164
      %v1192 = vunpack.i.h.s16 %v1164
      %v1193 = vunpack.i.l.s16 %v1178
      %v1194 = vunpack.i.h.s16 %v1178
      %v1195 = vunpack.i.l.s16 %v1180
      %v1196 = vunpack.i.h.s16 %v1180
      %v1197 = vunpack.i.l.s16 %v1182
      %v1198 = vunpack.i.h.s16 %v1182
      %v1199 = vpack.i.b16 %v1183, %v1183
      %v1200 = vpack.i.b16 %v1184, %v1184
      %v1201 = vpack.i.b16 %v1185, %v1185
      %v1202 = vpack.i.b16 %v1186, %v1186
      %v1203 = vpack.i.b16 %v1187, %v1187
      %v1204 = vpack.i.b16 %v1188, %v1188
      %v1205 = vpack.i.b16 %v1189, %v1189
      %v1206 = vpack.i.b16 %v1190, %v1190
      %v1207 = vpack.i.b16 %v1191, %v1191
      %v1208 = vpack.i.b16 %v1192, %v1192
      %v1209 = vpack.i.b16 %v1193, %v1193
      %v1210 = vpack.i.b16 %v1194, %v1194
      %v1211 = vpack.i.b16 %v1195, %v1195
      %v1212 = vpack.i.b16 %v1196, %v1196
      %v1213 = vpack.i.b16 %v1197, %v1197
      %v1214 = vpack.i.b16 %v1198, %v1198
      %v1216 = vunpack.c.l.s4 857870592
      %v1217 = vunpack.c.0.s8 %v1216
      %v1218 = vlaneseq
      %v1219 = vshrl.u32 %v1218, 7
      %v1220 = vsub.s32 %v1217, %v1219
      %v1221 = vrot.slane %v1199, %v1220
      %v1223 = vunpack.c.l.s4 857870592
      %v1224 = vunpack.c.0.s8 %v1223
      %v1225 = vlaneseq
      %v1226 = vshrl.u32 %v1225, 7
      %v1227 = vsub.s32 %v1224, %v1226
      %v1228 = vrot.slane %v1200, %v1227
      %v1230 = vunpack.c.l.s4 857870592
      %v1231 = vunpack.c.0.s8 %v1230
      %v1232 = vlaneseq
      %v1233 = vshrl.u32 %v1232, 7
      %v1234 = vsub.s32 %v1231, %v1233
      %v1235 = vrot.slane %v1201, %v1234
      %v1237 = vunpack.c.l.s4 857870592
      %v1238 = vunpack.c.0.s8 %v1237
      %v1239 = vlaneseq
      %v1240 = vshrl.u32 %v1239, 7
      %v1241 = vsub.s32 %v1238, %v1240
      %v1242 = vrot.slane %v1202, %v1241
      %v1244 = vunpack.c.l.s4 857870592
      %v1245 = vunpack.c.0.s8 %v1244
      %v1246 = vlaneseq
      %v1247 = vshrl.u32 %v1246, 7
      %v1248 = vsub.s32 %v1245, %v1247
      %v1249 = vrot.slane %v1203, %v1248
      %v1251 = vunpack.c.l.s4 857870592
      %v1252 = vunpack.c.0.s8 %v1251
      %v1253 = vlaneseq
      %v1254 = vshrl.u32 %v1253, 7
      %v1255 = vsub.s32 %v1252, %v1254
      %v1256 = vrot.slane %v1204, %v1255
      %v1258 = vunpack.c.l.s4 857870592
      %v1259 = vunpack.c.0.s8 %v1258
      %v1260 = vlaneseq
      %v1261 = vshrl.u32 %v1260, 7
      %v1262 = vsub.s32 %v1259, %v1261
      %v1263 = vrot.slane %v1205, %v1262
      %v1265 = vunpack.c.l.s4 857870592
      %v1266 = vunpack.c.0.s8 %v1265
      %v1267 = vlaneseq
      %v1268 = vshrl.u32 %v1267, 7
      %v1269 = vsub.s32 %v1266, %v1268
      %v1270 = vrot.slane %v1206, %v1269
      %v1272 = vunpack.c.l.s4 857870592
      %v1273 = vunpack.c.0.s8 %v1272
      %v1274 = vlaneseq
      %v1275 = vshrl.u32 %v1274, 7
      %v1276 = vsub.s32 %v1273, %v1275
      %v1277 = vrot.slane %v1207, %v1276
      %v1279 = vunpack.c.l.s4 857870592
      %v1280 = vunpack.c.0.s8 %v1279
      %v1281 = vlaneseq
      %v1282 = vshrl.u32 %v1281, 7
      %v1283 = vsub.s32 %v1280, %v1282
      %v1284 = vrot.slane %v1208, %v1283
      %v1286 = vunpack.c.l.s4 857870592
      %v1287 = vunpack.c.0.s8 %v1286
      %v1288 = vlaneseq
      %v1289 = vshrl.u32 %v1288, 7
      %v1290 = vsub.s32 %v1287, %v1289
      %v1291 = vrot.slane %v1209, %v1290
      %v1293 = vunpack.c.l.s4 857870592
      %v1294 = vunpack.c.0.s8 %v1293
      %v1295 = vlaneseq
      %v1296 = vshrl.u32 %v1295, 7
      %v1297 = vsub.s32 %v1294, %v1296
      %v1298 = vrot.slane %v1210, %v1297
      %v1300 = vunpack.c.l.s4 857870592
      %v1301 = vunpack.c.0.s8 %v1300
      %v1302 = vlaneseq
      %v1303 = vshrl.u32 %v1302, 7
      %v1304 = vsub.s32 %v1301, %v1303
      %v1305 = vrot.slane %v1211, %v1304
      %v1307 = vunpack.c.l.s4 857870592
      %v1308 = vunpack.c.0.s8 %v1307
      %v1309 = vlaneseq
      %v1310 = vshrl.u32 %v1309, 7
      %v1311 = vsub.s32 %v1308, %v1310
      %v1312 = vrot.slane %v1212, %v1311
      %v1314 = vunpack.c.l.s4 857870592
      %v1315 = vunpack.c.0.s8 %v1314
      %v1316 = vlaneseq
      %v1317 = vshrl.u32 %v1316, 7
      %v1318 = vsub.s32 %v1315, %v1317
      %v1319 = vrot.slane %v1213, %v1318
      %v1321 = vunpack.c.l.s4 857870592
      %v1322 = vunpack.c.0.s8 %v1321
      %v1323 = vlaneseq
      %v1324 = vshrl.u32 %v1323, 7
      %v1325 = vsub.s32 %v1322, %v1324
      %v1326 = vrot.slane %v1214, %v1325
      %vm1343 = vcmask 122880
      %vm1344 = vsmask.f32 256
      %vm1345 = vmand %vm1343, %vm1344
      %v1346 = vld [vmem:[#allocation3] sm:$0x1]
      %v1347 = vsel %vm1345, %v1221, %v1346
      %1348 = vst [vmem:[#allocation3] sm:$0x1] %v1347
      %v1349 = vld [vmem:[#allocation3 + $0x2] sm:$0x1]
      %v1350 = vsel %vm1345, %v1228, %v1349
      %1351 = vst [vmem:[#allocation3 + $0x2] sm:$0x1] %v1350
      %v1352 = vld [vmem:[#allocation3 + $0x4] sm:$0x1]
      %v1353 = vsel %vm1345, %v1235, %v1352
      %1354 = vst [vmem:[#allocation3 + $0x4] sm:$0x1] %v1353
      %v1355 = vld [vmem:[#allocation3 + $0x6] sm:$0x1]
      %v1356 = vsel %vm1345, %v1242, %v1355
      %1357 = vst [vmem:[#allocation3 + $0x6] sm:$0x1] %v1356
      %v1358 = vld [vmem:[#allocation3 + $0x8] sm:$0x1]
      %v1359 = vsel %vm1345, %v1249, %v1358
      %1360 = vst [vmem:[#allocation3 + $0x8] sm:$0x1] %v1359
      %v1361 = vld [vmem:[#allocation3 + $0xa] sm:$0x1]
      %v1362 = vsel %vm1345, %v1256, %v1361
      %1363 = vst [vmem:[#allocation3 + $0xa] sm:$0x1] %v1362
      %v1364 = vld [vmem:[#allocation3 + $0xc] sm:$0x1]
      %v1365 = vsel %vm1345, %v1263, %v1364
      %1366 = vst [vmem:[#allocation3 + $0xc] sm:$0x1] %v1365
      %v1367 = vld [vmem:[#allocation3 + $0xe] sm:$0x1]
      %v1368 = vsel %vm1345, %v1270, %v1367
      %1369 = vst [vmem:[#allocation3 + $0xe] sm:$0x1] %v1368
      %v1370 = vld [vmem:[#allocation3 + $0x10] sm:$0x1]
      %v1371 = vsel %vm1345, %v1277, %v1370
      %1372 = vst [vmem:[#allocation3 + $0x10] sm:$0x1] %v1371
      %v1373 = vld [vmem:[#allocation3 + $0x12] sm:$0x1]
      %v1374 = vsel %vm1345, %v1284, %v1373
      %1375 = vst [vmem:[#allocation3 + $0x12] sm:$0x1] %v1374
      %v1376 = vld [vmem:[#allocation3 + $0x14] sm:$0x1]
      %v1377 = vsel %vm1345, %v1291, %v1376
      %1378 = vst [vmem:[#allocation3 + $0x14] sm:$0x1] %v1377
      %v1379 = vld [vmem:[#allocation3 + $0x16] sm:$0x1]
      %v1380 = vsel %vm1345, %v1298, %v1379
      %1381 = vst [vmem:[#allocation3 + $0x16] sm:$0x1] %v1380
      %v1382 = vld [vmem:[#allocation3 + $0x18] sm:$0x1]
      %v1383 = vsel %vm1345, %v1305, %v1382
      %1384 = vst [vmem:[#allocation3 + $0x18] sm:$0x1] %v1383
      %v1385 = vld [vmem:[#allocation3 + $0x1a] sm:$0x1]
      %v1386 = vsel %vm1345, %v1312, %v1385
      %1387 = vst [vmem:[#allocation3 + $0x1a] sm:$0x1] %v1386
      %v1388 = vld [vmem:[#allocation3 + $0x1c] sm:$0x1]
      %v1389 = vsel %vm1345, %v1319, %v1388
      %1390 = vst [vmem:[#allocation3 + $0x1c] sm:$0x1] %v1389
      %v1391 = vld [vmem:[#allocation3 + $0x1e] sm:$0x1]
      %v1392 = vsel %vm1345, %v1326, %v1391
      %1393 = vst [vmem:[#allocation3 + $0x1e] sm:$0x1] %v1392
      %v1394 = vld [vmem:[%s567] sm:$0xff]
      %v1395 = vld [vmem:[%s567 + $0x8] sm:$0xff]
      %v1396 = vpack.c.bf16 %v1395, %v1394
      %v1398 = vsel %vm660, %v1132, 0
      %1400 = vmatprep.subr.bf16.mxu0 0
      %1401 = vmatpush1.bf16.msra.mxu0 0
      %1402 = vmatprep.subr.bf16.mxu0 0
      %1403 = vmatpush1.bf16.msra.mxu0 0
      %1404 = vmatprep.subr.bf16.mxu0 0
      %1405 = vmatpush1.bf16.msra.mxu0 0
      %1406 = vmatprep.subr.bf16.mxu0 0
      %1407 = vmatpush1.bf16.msra.mxu0 0
      %1408 = vmatprep.subr.bf16.mxu0 0
      %1409 = vmatpush1.bf16.msra.mxu0 0
      %1410 = vmatprep.subr.bf16.mxu0 0
      %1411 = vmatpush1.bf16.msra.mxu0 0
      %1412 = vmatprep.subr.bf16.mxu0 0
      %1413 = vmatpush1.bf16.msra.mxu0 0
      %1414 = vmatprep.subr.bf16.mxu0 0
      %1415 = vmatpush1.bf16.msra.mxu0 %v1396
      %1416 = vmatprep.subr.bf16.mxu0 0
      %1417 = vmatpush2.bf16.msra.mxu0 0
      %1418 = vmatprep.subr.bf16.mxu0 0
      %1419 = vmatpush2.bf16.msra.mxu0 0
      %1420 = vmatprep.subr.bf16.mxu0 0
      %1421 = vmatpush2.bf16.msra.mxu0 0
      %1422 = vmatprep.subr.bf16.mxu0 0
      %1423 = vmatpush2.bf16.msra.mxu0 0
      %1424 = vmatprep.subr.bf16.mxu0 0
      %1425 = vmatpush2.bf16.msra.mxu0 0
      %1426 = vmatprep.subr.bf16.mxu0 0
      %1427 = vmatpush2.bf16.msra.mxu0 0
      %1428 = vmatprep.subr.bf16.mxu0 0
      %1429 = vmatpush2.bf16.msra.mxu0 0
      %1430 = vmatprep.subr.bf16.mxu0 0
      %1431 = vmatpush2.bf16.msra.mxu0 0
      %1432 = vmatprep.mubr.bf16.mxu0 0
      %1433 = vmatmul.mubr.bf16.gmra.mxu0 %v1398
      %v1434 = vpop.f32.mrf.mxu0
      %v1435 = vadd.f32 0.0, %v1434
      %v1436 = vpop.f32.mrf.mxu0
      %v1437 = vpop.f32.mrf.mxu0
      %v1438 = vadd.f32 0.0, %v1437
      %v1439 = vpop.f32.mrf.mxu0
      %1440 = vdwg.mxu0
      %s1441 = scalar_lea.vmem %s541, 16
      %v1442 = vld [vmem:[%s1441] sm:$0xff]
      %v1443 = vld [vmem:[%s1441 + $0x8] sm:$0xff]
      %v1444 = vpack.c.bf16 %v1443, %v1442
      %s1445 = scalar_lea.vmem %s547, 16
      %v1446 = vld [vmem:[%s1445] sm:$0xff]
      %v1447 = vld [vmem:[%s1445 + $0x8] sm:$0xff]
      %v1448 = vpack.c.bf16 %v1447, %v1446
      %v1450 = vsel %vm948, %v1444, 0
      %v1453 = vsel %vm948, %v1448, 0
      %1455 = vmatprep.subr.bf16.mxu0 0
      %1456 = vmatpush1.bf16.xpose.msra.mxu0 0
      %1457 = vmatprep.subr.bf16.mxu0 0
      %1458 = vmatpush1.bf16.xpose.msra.mxu0 0
      %1459 = vmatprep.subr.bf16.mxu0 0
      %1460 = vmatpush1.bf16.xpose.msra.mxu0 0
      %1461 = vmatprep.subr.bf16.mxu0 0
      %1462 = vmatpush1.bf16.xpose.msra.mxu0 0
      %1463 = vmatprep.subr.bf16.mxu0 0
      %1464 = vmatpush1.bf16.xpose.msra.mxu0 0
      %1465 = vmatprep.subr.bf16.mxu0 0
      %1466 = vmatpush1.bf16.xpose.msra.mxu0 0
      %1467 = vmatprep.subr.bf16.mxu0 0
      %1468 = vmatpush1.bf16.xpose.msra.mxu0 0
      %1469 = vmatprep.subr.bf16.mxu0 0
      %1470 = vmatpush1.bf16.xpose.msra.mxu0 %v1453
      %1471 = vmatprep.subr.bf16.mxu0 0
      %1472 = vmatpush2.bf16.xpose.msra.mxu0 0
      %1473 = vmatprep.subr.bf16.mxu0 0
      %1474 = vmatpush2.bf16.xpose.msra.mxu0 0
      %1475 = vmatprep.subr.bf16.mxu0 0
      %1476 = vmatpush2.bf16.xpose.msra.mxu0 0
      %1477 = vmatprep.subr.bf16.mxu0 0
      %1478 = vmatpush2.bf16.xpose.msra.mxu0 0
      %1479 = vmatprep.subr.bf16.mxu0 0
      %1480 = vmatpush2.bf16.xpose.msra.mxu0 0
      %1481 = vmatprep.subr.bf16.mxu0 0
      %1482 = vmatpush2.bf16.xpose.msra.mxu0 0
      %1483 = vmatprep.subr.bf16.mxu0 0
      %1484 = vmatpush2.bf16.xpose.msra.mxu0 0
      %1485 = vmatprep.subr.bf16.mxu0 0
      %1486 = vmatpush2.bf16.xpose.msra.mxu0 0
      %1487 = vmatprep.mubr.bf16.mxu0 0
      %1488 = vmatmul.mubr.bf16.gmra.mxu0 %v1450
      %v1489 = vpop.f32.mrf.mxu0
      %v1490 = vadd.f32 0.0, %v1489
      %v1491 = vpop.f32.mrf.mxu0
      %v1492 = vpop.f32.mrf.mxu0
      %v1493 = vadd.f32 0.0, %v1492
      %v1494 = vpop.f32.mrf.mxu0
      %1495 = vdwg.mxu0
      %s1496 = scalar_lea.vmem %s556, 16
      %v1497 = vld [vmem:[%s1496] sm:$0xff]
      %v1498 = vld [vmem:[%s1496 + $0x8] sm:$0xff]
      %v1499 = vpack.c.bf16 %v1498, %v1497
      %s1500 = scalar_lea.vmem %s562, 16
      %v1501 = vld [vmem:[%s1500] sm:$0xff]
      %v1502 = vld [vmem:[%s1500 + $0x8] sm:$0xff]
      %v1503 = vpack.c.bf16 %v1502, %v1501
      %v1505 = vsel %vm1002, %v1499, 0
      %v1508 = vsel %vm1002, %v1503, 0
      %1510 = vmatprep.subr.bf16.mxu0 0
      %1511 = vmatpush1.bf16.xpose.msra.mxu0 0
      %1512 = vmatprep.subr.bf16.mxu0 0
      %1513 = vmatpush1.bf16.xpose.msra.mxu0 0
      %1514 = vmatprep.subr.bf16.mxu0 0
      %1515 = vmatpush1.bf16.xpose.msra.mxu0 0
      %1516 = vmatprep.subr.bf16.mxu0 0
      %1517 = vmatpush1.bf16.xpose.msra.mxu0 0
      %1518 = vmatprep.subr.bf16.mxu0 0
      %1519 = vmatpush1.bf16.xpose.msra.mxu0 0
      %1520 = vmatprep.subr.bf16.mxu0 0
      %1521 = vmatpush1.bf16.xpose.msra.mxu0 0
      %1522 = vmatprep.subr.bf16.mxu0 0
      %1523 = vmatpush1.bf16.xpose.msra.mxu0 0
      %1524 = vmatprep.subr.bf16.mxu0 0
      %1525 = vmatpush1.bf16.xpose.msra.mxu0 %v1508
      %1526 = vmatprep.subr.bf16.mxu0 0
      %1527 = vmatpush2.bf16.xpose.msra.mxu0 0
      %1528 = vmatprep.subr.bf16.mxu0 0
      %1529 = vmatpush2.bf16.xpose.msra.mxu0 0
      %1530 = vmatprep.subr.bf16.mxu0 0
      %1531 = vmatpush2.bf16.xpose.msra.mxu0 0
      %1532 = vmatprep.subr.bf16.mxu0 0
      %1533 = vmatpush2.bf16.xpose.msra.mxu0 0
      %1534 = vmatprep.subr.bf16.mxu0 0
      %1535 = vmatpush2.bf16.xpose.msra.mxu0 0
      %1536 = vmatprep.subr.bf16.mxu0 0
      %1537 = vmatpush2.bf16.xpose.msra.mxu0 0
      %1538 = vmatprep.subr.bf16.mxu0 0
      %1539 = vmatpush2.bf16.xpose.msra.mxu0 0
      %1540 = vmatprep.subr.bf16.mxu0 0
      %1541 = vmatpush2.bf16.xpose.msra.mxu0 0
      %1542 = vmatprep.mubr.bf16.mxu0 0
      %1543 = vmatmul.mubr.bf16.gmra.mxu0 %v1505
      %v1544 = vpop.f32.mrf.mxu0
      %v1545 = vadd.f32 0.0, %v1544
      %v1546 = vpop.f32.mrf.mxu0
      %v1547 = vpop.f32.mrf.mxu0
      %v1548 = vadd.f32 0.0, %v1547
      %v1549 = vpop.f32.mrf.mxu0
      %1550 = vdwg.mxu0
      %v1551 = vmul.f32 %v1490, 0.20412415
      %v1552 = vmul.f32 %v1493, 0.20412415
      %v1553 = vmul.f32 %v1545, 0.13608277
      %v1554 = vmul.f32 %v1548, 0.13608277
      %v1555 = vadd.f32 %v1551, %v1553
      %v1556 = vadd.f32 %v1552, %v1554
      %v1557 = vadd.f32 %v1555, %v862
      %v1558 = vadd.f32 %v1556, %v930
      %v1559 = vsel %vm660, %v1557, -inf
      %1560 = vmax.xlane.f32.xlu0 %v1559
      %v1561 = vpop.xlane.xlu0 %1560
      %v1562 = vsel %vm660, %v1558, -inf
      %1563 = vmax.xlane.f32.xlu0 %v1562
      %v1564 = vpop.xlane.xlu0 %1563
      %v1565 = vsub.f32 %v1557, %v1561
      %v1566 = vsub.f32 %v1558, %v1564
      %v1567 = vmul.f32 %v1565, 1.442695
      %v1568 = vpow.pop %v1567
      %v1569 = vmul.f32 %v1566, 1.442695
      %v1570 = vpow.pop %v1569
      %v1571 = vsel %vm660, %v1568, 0.0
      %1572 = vadd.xlane.f32.xlu0 %v1571
      %v1573 = vpop.xlane.xlu0 %1572
      %v1574 = vsel %vm660, %v1570, 0.0
      %1575 = vadd.xlane.f32.xlu0 %v1574
      %v1576 = vpop.xlane.xlu0 %1575
      %v1577 = vrcp.pop %v1573
      %v1578 = vmul.f32 %v1568, %v1577
      %v1579 = vrcp.pop %v1576
      %v1580 = vmul.f32 %v1570, %v1579
      %s1581 = scalar_lea.vmem [#allocation2], 16
      %1582 = vst.msk [vmem:[%s1581] sm:$0xff] %vm660, %v1578
      %1583 = vst.msk [vmem:[%s1581 + $0x8] sm:$0xff] %vm660, %v1580
      %v1584 = vsel %vm660, %v1545, -inf
      %1585 = vmax.xlane.f32.xlu0 %v1584
      %v1586 = vpop.xlane.xlu0 %1585
      %v1587 = vsel %vm660, %v1548, -inf
      %1588 = vmax.xlane.f32.xlu0 %v1587
      %v1589 = vpop.xlane.xlu0 %1588
      %v1590 = vsub.f32 %v1545, %v1586
      %v1591 = vsub.f32 %v1548, %v1589
      %v1592 = vmul.f32 %v1590, 1.442695
      %v1593 = vpow.pop %v1592
      %v1594 = vmul.f32 %v1591, 1.442695
      %v1595 = vpow.pop %v1594
      %v1596 = vsel %vm660, %v1593, 0.0
      %1597 = vadd.xlane.f32.xlu0 %v1596
      %v1598 = vpop.xlane.xlu0 %1597
      %v1599 = vsel %vm660, %v1595, 0.0
      %1600 = vadd.xlane.f32.xlu0 %v1599
      %v1601 = vpop.xlane.xlu0 %1600
      %v1602 = vrcp.pop %v1598
      %v1603 = vmul.f32 %v1593, %v1602
      %v1604 = vrcp.pop %v1601
      %v1605 = vmul.f32 %v1595, %v1604
      %s1606 = scalar_lea.vmem [#allocation2], 80
      %1607 = vst.msk [vmem:[%s1606] sm:$0xff] %vm660, %v1603
      %1608 = vst.msk [vmem:[%s1606 + $0x8] sm:$0xff] %vm660, %v1605
      %v1609 = vsel %vm660, %v1490, -inf
      %1610 = vmax.xlane.f32.xlu0 %v1609
      %v1611 = vpop.xlane.xlu0 %1610
      %v1612 = vsel %vm660, %v1493, -inf
      %1613 = vmax.xlane.f32.xlu0 %v1612
      %v1614 = vpop.xlane.xlu0 %1613
      %v1615 = vsub.f32 %v1490, %v1611
      %v1616 = vsub.f32 %v1493, %v1614
      %v1617 = vmul.f32 %v1615, 1.442695
      %v1618 = vpow.pop %v1617
      %v1619 = vmul.f32 %v1616, 1.442695
      %v1620 = vpow.pop %v1619
      %v1621 = vsel %vm660, %v1618, 0.0
      %1622 = vadd.xlane.f32.xlu0 %v1621
      %v1623 = vpop.xlane.xlu0 %1622
      %v1624 = vsel %vm660, %v1620, 0.0
      %1625 = vadd.xlane.f32.xlu0 %v1624
      %v1626 = vpop.xlane.xlu0 %1625
      %v1627 = vrcp.pop %v1623
      %v1628 = vmul.f32 %v1618, %v1627
      %v1629 = vrcp.pop %v1626
      %v1630 = vmul.f32 %v1620, %v1629
      %s1631 = scalar_lea.vmem [#allocation2], 144
      %1632 = vst.msk [vmem:[%s1631] sm:$0xff] %vm660, %v1628
      %1633 = vst.msk [vmem:[%s1631 + $0x8] sm:$0xff] %vm660, %v1630
      %v1634 = vpack.c.bf16 %v1580, %v1578
      %v1636 = vcombine.high %v1634, %v1634
      %v1638 = vunpack.c.l.s4 1966171168
      %v1639 = vunpack.c.0.s8 %v1638
      %v1640 = vlaneseq
      %v1641 = vshrl.u32 %v1640, 7
      %v1642 = vsub.s32 %v1639, %v1641
      %v1643 = vrot.slane %v1634, %v1642
      %v1645 = vunpack.c.l.s4 1966171168
      %v1646 = vunpack.c.0.s8 %v1645
      %v1647 = vlaneseq
      %v1648 = vshrl.u32 %v1647, 7
      %v1649 = vsub.s32 %v1646, %v1648
      %v1650 = vrot.slane %v1636, %v1649
      %v1651 = vcombine.high %v1643, %v1643
      %v1652 = vcombine.high %v1650, %v1650
      %v1654 = vunpack.c.l.s4 1966171168
      %v1655 = vunpack.c.0.s8 %v1654
      %v1656 = vlaneseq
      %v1657 = vshrl.u32 %v1656, 7
      %v1658 = vsub.s32 %v1655, %v1657
      %v1659 = vrot.slane %v1643, %v1658
      %v1661 = vunpack.c.l.s4 1966171168
      %v1662 = vunpack.c.0.s8 %v1661
      %v1663 = vlaneseq
      %v1664 = vshrl.u32 %v1663, 7
      %v1665 = vsub.s32 %v1662, %v1664
      %v1666 = vrot.slane %v1650, %v1665
      %v1668 = vunpack.c.l.s4 1966171168
      %v1669 = vunpack.c.0.s8 %v1668
      %v1670 = vlaneseq
      %v1671 = vshrl.u32 %v1670, 7
      %v1672 = vsub.s32 %v1669, %v1671
      %v1673 = vrot.slane %v1651, %v1672
      %v1675 = vunpack.c.l.s4 1966171168
      %v1676 = vunpack.c.0.s8 %v1675
      %v1677 = vlaneseq
      %v1678 = vshrl.u32 %v1677, 7
      %v1679 = vsub.s32 %v1676, %v1678
      %v1680 = vrot.slane %v1652, %v1679
      %v1681 = vcombine.high %v1659, %v1659
      %v1682 = vcombine.high %v1666, %v1666
      %v1683 = vcombine.high %v1673, %v1673
      %v1684 = vcombine.high %v1680, %v1680
      %v1685 = vunpack.i.l.s16 %v1659
      %v1686 = vunpack.i.h.s16 %v1659
      %v1687 = vunpack.i.l.s16 %v1673
      %v1688 = vunpack.i.h.s16 %v1673
      %v1689 = vunpack.i.l.s16 %v1681
      %v1690 = vunpack.i.h.s16 %v1681
      %v1691 = vunpack.i.l.s16 %v1683
      %v1692 = vunpack.i.h.s16 %v1683
      %v1693 = vunpack.i.l.s16 %v1666
      %v1694 = vunpack.i.h.s16 %v1666
      %v1695 = vunpack.i.l.s16 %v1680
      %v1696 = vunpack.i.h.s16 %v1680
      %v1697 = vunpack.i.l.s16 %v1682
      %v1698 = vunpack.i.h.s16 %v1682
      %v1699 = vunpack.i.l.s16 %v1684
      %v1700 = vunpack.i.h.s16 %v1684
      %v1701 = vpack.i.b16 %v1685, %v1685
      %v1702 = vpack.i.b16 %v1686, %v1686
      %v1703 = vpack.i.b16 %v1687, %v1687
      %v1704 = vpack.i.b16 %v1688, %v1688
      %v1705 = vpack.i.b16 %v1689, %v1689
      %v1706 = vpack.i.b16 %v1690, %v1690
      %v1707 = vpack.i.b16 %v1691, %v1691
      %v1708 = vpack.i.b16 %v1692, %v1692
      %v1709 = vpack.i.b16 %v1693, %v1693
      %v1710 = vpack.i.b16 %v1694, %v1694
      %v1711 = vpack.i.b16 %v1695, %v1695
      %v1712 = vpack.i.b16 %v1696, %v1696
      %v1713 = vpack.i.b16 %v1697, %v1697
      %v1714 = vpack.i.b16 %v1698, %v1698
      %v1715 = vpack.i.b16 %v1699, %v1699
      %v1716 = vpack.i.b16 %v1700, %v1700
      %v1718 = vunpack.c.l.s4 857870592
      %v1719 = vunpack.c.0.s8 %v1718
      %v1720 = vlaneseq
      %v1721 = vshrl.u32 %v1720, 7
      %v1722 = vsub.s32 %v1719, %v1721
      %v1723 = vrot.slane %v1701, %v1722
      %v1725 = vunpack.c.l.s4 857870592
      %v1726 = vunpack.c.0.s8 %v1725
      %v1727 = vlaneseq
      %v1728 = vshrl.u32 %v1727, 7
      %v1729 = vsub.s32 %v1726, %v1728
      %v1730 = vrot.slane %v1702, %v1729
      %v1732 = vunpack.c.l.s4 857870592
      %v1733 = vunpack.c.0.s8 %v1732
      %v1734 = vlaneseq
      %v1735 = vshrl.u32 %v1734, 7
      %v1736 = vsub.s32 %v1733, %v1735
      %v1737 = vrot.slane %v1703, %v1736
      %v1739 = vunpack.c.l.s4 857870592
      %v1740 = vunpack.c.0.s8 %v1739
      %v1741 = vlaneseq
      %v1742 = vshrl.u32 %v1741, 7
      %v1743 = vsub.s32 %v1740, %v1742
      %v1744 = vrot.slane %v1704, %v1743
      %v1746 = vunpack.c.l.s4 857870592
      %v1747 = vunpack.c.0.s8 %v1746
      %v1748 = vlaneseq
      %v1749 = vshrl.u32 %v1748, 7
      %v1750 = vsub.s32 %v1747, %v1749
      %v1751 = vrot.slane %v1705, %v1750
      %v1753 = vunpack.c.l.s4 857870592
      %v1754 = vunpack.c.0.s8 %v1753
      %v1755 = vlaneseq
      %v1756 = vshrl.u32 %v1755, 7
      %v1757 = vsub.s32 %v1754, %v1756
      %v1758 = vrot.slane %v1706, %v1757
      %v1760 = vunpack.c.l.s4 857870592
      %v1761 = vunpack.c.0.s8 %v1760
      %v1762 = vlaneseq
      %v1763 = vshrl.u32 %v1762, 7
      %v1764 = vsub.s32 %v1761, %v1763
      %v1765 = vrot.slane %v1707, %v1764
      %v1767 = vunpack.c.l.s4 857870592
      %v1768 = vunpack.c.0.s8 %v1767
      %v1769 = vlaneseq
      %v1770 = vshrl.u32 %v1769, 7
      %v1771 = vsub.s32 %v1768, %v1770
      %v1772 = vrot.slane %v1708, %v1771
      %v1774 = vunpack.c.l.s4 857870592
      %v1775 = vunpack.c.0.s8 %v1774
      %v1776 = vlaneseq
      %v1777 = vshrl.u32 %v1776, 7
      %v1778 = vsub.s32 %v1775, %v1777
      %v1779 = vrot.slane %v1709, %v1778
      %v1781 = vunpack.c.l.s4 857870592
      %v1782 = vunpack.c.0.s8 %v1781
      %v1783 = vlaneseq
      %v1784 = vshrl.u32 %v1783, 7
      %v1785 = vsub.s32 %v1782, %v1784
      %v1786 = vrot.slane %v1710, %v1785
      %v1788 = vunpack.c.l.s4 857870592
      %v1789 = vunpack.c.0.s8 %v1788
      %v1790 = vlaneseq
      %v1791 = vshrl.u32 %v1790, 7
      %v1792 = vsub.s32 %v1789, %v1791
      %v1793 = vrot.slane %v1711, %v1792
      %v1795 = vunpack.c.l.s4 857870592
      %v1796 = vunpack.c.0.s8 %v1795
      %v1797 = vlaneseq
      %v1798 = vshrl.u32 %v1797, 7
      %v1799 = vsub.s32 %v1796, %v1798
      %v1800 = vrot.slane %v1712, %v1799
      %v1802 = vunpack.c.l.s4 857870592
      %v1803 = vunpack.c.0.s8 %v1802
      %v1804 = vlaneseq
      %v1805 = vshrl.u32 %v1804, 7
      %v1806 = vsub.s32 %v1803, %v1805
      %v1807 = vrot.slane %v1713, %v1806
      %v1809 = vunpack.c.l.s4 857870592
      %v1810 = vunpack.c.0.s8 %v1809
      %v1811 = vlaneseq
      %v1812 = vshrl.u32 %v1811, 7
      %v1813 = vsub.s32 %v1810, %v1812
      %v1814 = vrot.slane %v1714, %v1813
      %v1816 = vunpack.c.l.s4 857870592
      %v1817 = vunpack.c.0.s8 %v1816
      %v1818 = vlaneseq
      %v1819 = vshrl.u32 %v1818, 7
      %v1820 = vsub.s32 %v1817, %v1819
      %v1821 = vrot.slane %v1715, %v1820
      %v1823 = vunpack.c.l.s4 857870592
      %v1824 = vunpack.c.0.s8 %v1823
      %v1825 = vlaneseq
      %v1826 = vshrl.u32 %v1825, 7
      %v1827 = vsub.s32 %v1824, %v1826
      %v1828 = vrot.slane %v1716, %v1827
      %vm1845 = vsmask.f32 7938
      %vm1846 = vmand %vm1343, %vm1845
      %v1847 = vld [vmem:[#allocation3] sm:$0x1]
      %v1848 = vsel %vm1846, %v1723, %v1847
      %1849 = vst [vmem:[#allocation3] sm:$0x1] %v1848
      %v1850 = vld [vmem:[#allocation3 + $0x2] sm:$0x1]
      %v1851 = vsel %vm1846, %v1730, %v1850
      %1852 = vst [vmem:[#allocation3 + $0x2] sm:$0x1] %v1851
      %v1853 = vld [vmem:[#allocation3 + $0x4] sm:$0x1]
      %v1854 = vsel %vm1846, %v1737, %v1853
      %1855 = vst [vmem:[#allocation3 + $0x4] sm:$0x1] %v1854
      %v1856 = vld [vmem:[#allocation3 + $0x6] sm:$0x1]
      %v1857 = vsel %vm1846, %v1744, %v1856
      %1858 = vst [vmem:[#allocation3 + $0x6] sm:$0x1] %v1857
      %v1859 = vld [vmem:[#allocation3 + $0x8] sm:$0x1]
      %v1860 = vsel %vm1846, %v1751, %v1859
      %1861 = vst [vmem:[#allocation3 + $0x8] sm:$0x1] %v1860
      %v1862 = vld [vmem:[#allocation3 + $0xa] sm:$0x1]
      %v1863 = vsel %vm1846, %v1758, %v1862
      %1864 = vst [vmem:[#allocation3 + $0xa] sm:$0x1] %v1863
      %v1865 = vld [vmem:[#allocation3 + $0xc] sm:$0x1]
      %v1866 = vsel %vm1846, %v1765, %v1865
      %1867 = vst [vmem:[#allocation3 + $0xc] sm:$0x1] %v1866
      %v1868 = vld [vmem:[#allocation3 + $0xe] sm:$0x1]
      %v1869 = vsel %vm1846, %v1772, %v1868
      %1870 = vst [vmem:[#allocation3 + $0xe] sm:$0x1] %v1869
      %v1871 = vld [vmem:[#allocation3 + $0x10] sm:$0x1]
      %v1872 = vsel %vm1846, %v1779, %v1871
      %1873 = vst [vmem:[#allocation3 + $0x10] sm:$0x1] %v1872
      %v1874 = vld [vmem:[#allocation3 + $0x12] sm:$0x1]
      %v1875 = vsel %vm1846, %v1786, %v1874
      %1876 = vst [vmem:[#allocation3 + $0x12] sm:$0x1] %v1875
      %v1877 = vld [vmem:[#allocation3 + $0x14] sm:$0x1]
      %v1878 = vsel %vm1846, %v1793, %v1877
      %1879 = vst [vmem:[#allocation3 + $0x14] sm:$0x1] %v1878
      %v1880 = vld [vmem:[#allocation3 + $0x16] sm:$0x1]
      %v1881 = vsel %vm1846, %v1800, %v1880
      %1882 = vst [vmem:[#allocation3 + $0x16] sm:$0x1] %v1881
      %v1883 = vld [vmem:[#allocation3 + $0x18] sm:$0x1]
      %v1884 = vsel %vm1846, %v1807, %v1883
      %1885 = vst [vmem:[#allocation3 + $0x18] sm:$0x1] %v1884
      %v1886 = vld [vmem:[#allocation3 + $0x1a] sm:$0x1]
      %v1887 = vsel %vm1846, %v1814, %v1886
      %1888 = vst [vmem:[#allocation3 + $0x1a] sm:$0x1] %v1887
      %v1889 = vld [vmem:[#allocation3 + $0x1c] sm:$0x1]
      %v1890 = vsel %vm1846, %v1821, %v1889
      %1891 = vst [vmem:[#allocation3 + $0x1c] sm:$0x1] %v1890
      %v1892 = vld [vmem:[#allocation3 + $0x1e] sm:$0x1]
      %v1893 = vsel %vm1846, %v1828, %v1892
      %1894 = vst [vmem:[#allocation3 + $0x1e] sm:$0x1] %v1893
      %s1895 = scalar_lea.vmem %s567, 16
      %v1896 = vld [vmem:[%s1895] sm:$0xff]
      %v1897 = vld [vmem:[%s1895 + $0x8] sm:$0xff]
      %v1898 = vpack.c.bf16 %v1897, %v1896
      %v1900 = vsel %vm660, %v1634, 0
      %1902 = vmatprep.subr.bf16.mxu0 0
      %1903 = vmatpush1.bf16.msra.mxu0 0
      %1904 = vmatprep.subr.bf16.mxu0 0
      %1905 = vmatpush1.bf16.msra.mxu0 0
      %1906 = vmatprep.subr.bf16.mxu0 0
      %1907 = vmatpush1.bf16.msra.mxu0 0
      %1908 = vmatprep.subr.bf16.mxu0 0
      %1909 = vmatpush1.bf16.msra.mxu0 0
      %1910 = vmatprep.subr.bf16.mxu0 0
      %1911 = vmatpush1.bf16.msra.mxu0 0
      %1912 = vmatprep.subr.bf16.mxu0 0
      %1913 = vmatpush1.bf16.msra.mxu0 0
      %1914 = vmatprep.subr.bf16.mxu0 0
      %1915 = vmatpush1.bf16.msra.mxu0 0
      %1916 = vmatprep.subr.bf16.mxu0 0
      %1917 = vmatpush1.bf16.msra.mxu0 %v1898
      %1918 = vmatprep.subr.bf16.mxu0 0
      %1919 = vmatpush2.bf16.msra.mxu0 0
      %1920 = vmatprep.subr.bf16.mxu0 0
      %1921 = vmatpush2.bf16.msra.mxu0 0
      %1922 = vmatprep.subr.bf16.mxu0 0
      %1923 = vmatpush2.bf16.msra.mxu0 0
      %1924 = vmatprep.subr.bf16.mxu0 0
      %1925 = vmatpush2.bf16.msra.mxu0 0
      %1926 = vmatprep.subr.bf16.mxu0 0
      %1927 = vmatpush2.bf16.msra.mxu0 0
      %1928 = vmatprep.subr.bf16.mxu0 0
      %1929 = vmatpush2.bf16.msra.mxu0 0
      %1930 = vmatprep.subr.bf16.mxu0 0
      %1931 = vmatpush2.bf16.msra.mxu0 0
      %1932 = vmatprep.subr.bf16.mxu0 0
      %1933 = vmatpush2.bf16.msra.mxu0 0
      %1934 = vmatprep.mubr.bf16.mxu0 0
      %1935 = vmatmul.mubr.bf16.gmra.mxu0 %v1900
      %v1936 = vpop.f32.mrf.mxu0
      %v1937 = vadd.f32 0.0, %v1936
      %v1938 = vpop.f32.mrf.mxu0
      %v1939 = vpop.f32.mrf.mxu0
      %v1940 = vadd.f32 0.0, %v1939
      %v1941 = vpop.f32.mrf.mxu0
      %1942 = vdwg.mxu0
      %s1943 = scalar_lea.vmem %s541, 32
      %v1944 = vld [vmem:[%s1943] sm:$0xff]
      %v1945 = vld [vmem:[%s1943 + $0x8] sm:$0xff]
      %v1946 = vpack.c.bf16 %v1945, %v1944
      %s1947 = scalar_lea.vmem %s547, 32
      %v1948 = vld [vmem:[%s1947] sm:$0xff]
      %v1949 = vld [vmem:[%s1947 + $0x8] sm:$0xff]
      %v1950 = vpack.c.bf16 %v1949, %v1948
      %v1952 = vsel %vm948, %v1946, 0
      %v1955 = vsel %vm948, %v1950, 0
      %1957 = vmatprep.subr.bf16.mxu0 0
      %1958 = vmatpush1.bf16.xpose.msra.mxu0 0
      %1959 = vmatprep.subr.bf16.mxu0 0
      %1960 = vmatpush1.bf16.xpose.msra.mxu0 0
      %1961 = vmatprep.subr.bf16.mxu0 0
      %1962 = vmatpush1.bf16.xpose.msra.mxu0 0
      %1963 = vmatprep.subr.bf16.mxu0 0
      %1964 = vmatpush1.bf16.xpose.msra.mxu0 0
      %1965 = vmatprep.subr.bf16.mxu0 0
      %1966 = vmatpush1.bf16.xpose.msra.mxu0 0
      %1967 = vmatprep.subr.bf16.mxu0 0
      %1968 = vmatpush1.bf16.xpose.msra.mxu0 0
      %1969 = vmatprep.subr.bf16.mxu0 0
      %1970 = vmatpush1.bf16.xpose.msra.mxu0 0
      %1971 = vmatprep.subr.bf16.mxu0 0
      %1972 = vmatpush1.bf16.xpose.msra.mxu0 %v1955
      %1973 = vmatprep.subr.bf16.mxu0 0
      %1974 = vmatpush2.bf16.xpose.msra.mxu0 0
      %1975 = vmatprep.subr.bf16.mxu0 0
      %1976 = vmatpush2.bf16.xpose.msra.mxu0 0
      %1977 = vmatprep.subr.bf16.mxu0 0
      %1978 = vmatpush2.bf16.xpose.msra.mxu0 0
      %1979 = vmatprep.subr.bf16.mxu0 0
      %1980 = vmatpush2.bf16.xpose.msra.mxu0 0
      %1981 = vmatprep.subr.bf16.mxu0 0
      %1982 = vmatpush2.bf16.xpose.msra.mxu0 0
      %1983 = vmatprep.subr.bf16.mxu0 0
      %1984 = vmatpush2.bf16.xpose.msra.mxu0 0
      %1985 = vmatprep.subr.bf16.mxu0 0
      %1986 = vmatpush2.bf16.xpose.msra.mxu0 0
      %1987 = vmatprep.subr.bf16.mxu0 0
      %1988 = vmatpush2.bf16.xpose.msra.mxu0 0
      %1989 = vmatprep.mubr.bf16.mxu0 0
      %1990 = vmatmul.mubr.bf16.gmra.mxu0 %v1952
      %v1991 = vpop.f32.mrf.mxu0
      %v1992 = vadd.f32 0.0, %v1991
      %v1993 = vpop.f32.mrf.mxu0
      %v1994 = vpop.f32.mrf.mxu0
      %v1995 = vadd.f32 0.0, %v1994
      %v1996 = vpop.f32.mrf.mxu0
      %1997 = vdwg.mxu0
      %s1998 = scalar_lea.vmem %s556, 32
      %v1999 = vld [vmem:[%s1998] sm:$0xff]
      %v2000 = vld [vmem:[%s1998 + $0x8] sm:$0xff]
      %v2001 = vpack.c.bf16 %v2000, %v1999
      %s2002 = scalar_lea.vmem %s562, 32
      %v2003 = vld [vmem:[%s2002] sm:$0xff]
      %v2004 = vld [vmem:[%s2002 + $0x8] sm:$0xff]
      %v2005 = vpack.c.bf16 %v2004, %v2003
      %v2007 = vsel %vm1002, %v2001, 0
      %v2010 = vsel %vm1002, %v2005, 0
      %2012 = vmatprep.subr.bf16.mxu0 0
      %2013 = vmatpush1.bf16.xpose.msra.mxu0 0
      %2014 = vmatprep.subr.bf16.mxu0 0
      %2015 = vmatpush1.bf16.xpose.msra.mxu0 0
      %2016 = vmatprep.subr.bf16.mxu0 0
      %2017 = vmatpush1.bf16.xpose.msra.mxu0 0
      %2018 = vmatprep.subr.bf16.mxu0 0
      %2019 = vmatpush1.bf16.xpose.msra.mxu0 0
      %2020 = vmatprep.subr.bf16.mxu0 0
      %2021 = vmatpush1.bf16.xpose.msra.mxu0 0
      %2022 = vmatprep.subr.bf16.mxu0 0
      %2023 = vmatpush1.bf16.xpose.msra.mxu0 0
      %2024 = vmatprep.subr.bf16.mxu0 0
      %2025 = vmatpush1.bf16.xpose.msra.mxu0 0
      %2026 = vmatprep.subr.bf16.mxu0 0
      %2027 = vmatpush1.bf16.xpose.msra.mxu0 %v2010
      %2028 = vmatprep.subr.bf16.mxu0 0
      %2029 = vmatpush2.bf16.xpose.msra.mxu0 0
      %2030 = vmatprep.subr.bf16.mxu0 0
      %2031 = vmatpush2.bf16.xpose.msra.mxu0 0
      %2032 = vmatprep.subr.bf16.mxu0 0
      %2033 = vmatpush2.bf16.xpose.msra.mxu0 0
      %2034 = vmatprep.subr.bf16.mxu0 0
      %2035 = vmatpush2.bf16.xpose.msra.mxu0 0
      %2036 = vmatprep.subr.bf16.mxu0 0
      %2037 = vmatpush2.bf16.xpose.msra.mxu0 0
      %2038 = vmatprep.subr.bf16.mxu0 0
      %2039 = vmatpush2.bf16.xpose.msra.mxu0 0
      %2040 = vmatprep.subr.bf16.mxu0 0
      %2041 = vmatpush2.bf16.xpose.msra.mxu0 0
      %2042 = vmatprep.subr.bf16.mxu0 0
      %2043 = vmatpush2.bf16.xpose.msra.mxu0 0
      %2044 = vmatprep.mubr.bf16.mxu0 0
      %2045 = vmatmul.mubr.bf16.gmra.mxu0 %v2007
      %v2046 = vpop.f32.mrf.mxu0
      %v2047 = vadd.f32 0.0, %v2046
      %v2048 = vpop.f32.mrf.mxu0
      %v2049 = vpop.f32.mrf.mxu0
      %v2050 = vadd.f32 0.0, %v2049
      %v2051 = vpop.f32.mrf.mxu0
      %2052 = vdwg.mxu0
      %v2053 = vmul.f32 %v1992, 0.20412415
      %v2054 = vmul.f32 %v1995, 0.20412415
      %v2055 = vmul.f32 %v2047, 0.13608277
      %v2056 = vmul.f32 %v2050, 0.13608277
      %v2057 = vadd.f32 %v2053, %v2055
      %v2058 = vadd.f32 %v2054, %v2056
      %v2059 = vadd.f32 %v2057, %v863
      %v2060 = vadd.f32 %v2058, %v931
      %v2061 = vsel %vm660, %v2059, -inf
      %2062 = vmax.xlane.f32.xlu0 %v2061
      %v2063 = vpop.xlane.xlu0 %2062
      %v2064 = vsel %vm660, %v2060, -inf
      %2065 = vmax.xlane.f32.xlu0 %v2064
      %v2066 = vpop.xlane.xlu0 %2065
      %v2067 = vsub.f32 %v2059, %v2063
      %v2068 = vsub.f32 %v2060, %v2066
      %v2069 = vmul.f32 %v2067, 1.442695
      %v2070 = vpow.pop %v2069
      %v2071 = vmul.f32 %v2068, 1.442695
      %v2072 = vpow.pop %v2071
      %v2073 = vsel %vm660, %v2070, 0.0
      %2074 = vadd.xlane.f32.xlu0 %v2073
      %v2075 = vpop.xlane.xlu0 %2074
      %v2076 = vsel %vm660, %v2072, 0.0
      %2077 = vadd.xlane.f32.xlu0 %v2076
      %v2078 = vpop.xlane.xlu0 %2077
      %v2079 = vrcp.pop %v2075
      %v2080 = vmul.f32 %v2070, %v2079
      %v2081 = vrcp.pop %v2078
      %v2082 = vmul.f32 %v2072, %v2081
      %s2083 = scalar_lea.vmem [#allocation2], 32
      %2084 = vst.msk [vmem:[%s2083] sm:$0xff] %vm660, %v2080
      %2085 = vst.msk [vmem:[%s2083 + $0x8] sm:$0xff] %vm660, %v2082
      %v2086 = vsel %vm660, %v2047, -inf
      %2087 = vmax.xlane.f32.xlu0 %v2086
      %v2088 = vpop.xlane.xlu0 %2087
      %v2089 = vsel %vm660, %v2050, -inf
      %2090 = vmax.xlane.f32.xlu0 %v2089
      %v2091 = vpop.xlane.xlu0 %2090
      %v2092 = vsub.f32 %v2047, %v2088
      %v2093 = vsub.f32 %v2050, %v2091
      %v2094 = vmul.f32 %v2092, 1.442695
      %v2095 = vpow.pop %v2094
      %v2096 = vmul.f32 %v2093, 1.442695
      %v2097 = vpow.pop %v2096
      %v2098 = vsel %vm660, %v2095, 0.0
      %2099 = vadd.xlane.f32.xlu0 %v2098
      %v2100 = vpop.xlane.xlu0 %2099
      %v2101 = vsel %vm660, %v2097, 0.0
      %2102 = vadd.xlane.f32.xlu0 %v2101
      %v2103 = vpop.xlane.xlu0 %2102
      %v2104 = vrcp.pop %v2100
      %v2105 = vmul.f32 %v2095, %v2104
      %v2106 = vrcp.pop %v2103
      %v2107 = vmul.f32 %v2097, %v2106
      %s2108 = scalar_lea.vmem [#allocation2], 96
      %2109 = vst.msk [vmem:[%s2108] sm:$0xff] %vm660, %v2105
      %2110 = vst.msk [vmem:[%s2108 + $0x8] sm:$0xff] %vm660, %v2107
      %v2111 = vsel %vm660, %v1992, -inf
      %2112 = vmax.xlane.f32.xlu0 %v2111
      %v2113 = vpop.xlane.xlu0 %2112
      %v2114 = vsel %vm660, %v1995, -inf
      %2115 = vmax.xlane.f32.xlu0 %v2114
      %v2116 = vpop.xlane.xlu0 %2115
      %v2117 = vsub.f32 %v1992, %v2113
      %v2118 = vsub.f32 %v1995, %v2116
      %v2119 = vmul.f32 %v2117, 1.442695
      %v2120 = vpow.pop %v2119
      %v2121 = vmul.f32 %v2118, 1.442695
      %v2122 = vpow.pop %v2121
      %v2123 = vsel %vm660, %v2120, 0.0
      %2124 = vadd.xlane.f32.xlu0 %v2123
      %v2125 = vpop.xlane.xlu0 %2124
      %v2126 = vsel %vm660, %v2122, 0.0
      %2127 = vadd.xlane.f32.xlu0 %v2126
      %v2128 = vpop.xlane.xlu0 %2127
      %v2129 = vrcp.pop %v2125
      %v2130 = vmul.f32 %v2120, %v2129
      %v2131 = vrcp.pop %v2128
      %v2132 = vmul.f32 %v2122, %v2131
      %s2133 = scalar_lea.vmem [#allocation2], 160
      %2134 = vst.msk [vmem:[%s2133] sm:$0xff] %vm660, %v2130
      %2135 = vst.msk [vmem:[%s2133 + $0x8] sm:$0xff] %vm660, %v2132
      %v2136 = vpack.c.bf16 %v2082, %v2080
      %v2138 = vcombine.high %v2136, %v2136
      %v2140 = vunpack.c.l.s4 1966171168
      %v2141 = vunpack.c.0.s8 %v2140
      %v2142 = vlaneseq
      %v2143 = vshrl.u32 %v2142, 7
      %v2144 = vsub.s32 %v2141, %v2143
      %v2145 = vrot.slane %v2136, %v2144
      %v2147 = vunpack.c.l.s4 1966171168
      %v2148 = vunpack.c.0.s8 %v2147
      %v2149 = vlaneseq
      %v2150 = vshrl.u32 %v2149, 7
      %v2151 = vsub.s32 %v2148, %v2150
      %v2152 = vrot.slane %v2138, %v2151
      %v2153 = vcombine.high %v2145, %v2145
      %v2154 = vcombine.high %v2152, %v2152
      %v2156 = vunpack.c.l.s4 1966171168
      %v2157 = vunpack.c.0.s8 %v2156
      %v2158 = vlaneseq
      %v2159 = vshrl.u32 %v2158, 7
      %v2160 = vsub.s32 %v2157, %v2159
      %v2161 = vrot.slane %v2145, %v2160
      %v2163 = vunpack.c.l.s4 1966171168
      %v2164 = vunpack.c.0.s8 %v2163
      %v2165 = vlaneseq
      %v2166 = vshrl.u32 %v2165, 7
      %v2167 = vsub.s32 %v2164, %v2166
      %v2168 = vrot.slane %v2152, %v2167
      %v2170 = vunpack.c.l.s4 1966171168
      %v2171 = vunpack.c.0.s8 %v2170
      %v2172 = vlaneseq
      %v2173 = vshrl.u32 %v2172, 7
      %v2174 = vsub.s32 %v2171, %v2173
      %v2175 = vrot.slane %v2153, %v2174
      %v2177 = vunpack.c.l.s4 1966171168
      %v2178 = vunpack.c.0.s8 %v2177
      %v2179 = vlaneseq
      %v2180 = vshrl.u32 %v2179, 7
      %v2181 = vsub.s32 %v2178, %v2180
      %v2182 = vrot.slane %v2154, %v2181
      %v2183 = vcombine.high %v2161, %v2161
      %v2184 = vcombine.high %v2168, %v2168
      %v2185 = vcombine.high %v2175, %v2175
      %v2186 = vcombine.high %v2182, %v2182
      %v2187 = vunpack.i.l.s16 %v2161
      %v2188 = vunpack.i.h.s16 %v2161
      %v2189 = vunpack.i.l.s16 %v2175
      %v2190 = vunpack.i.h.s16 %v2175
      %v2191 = vunpack.i.l.s16 %v2183
      %v2192 = vunpack.i.h.s16 %v2183
      %v2193 = vunpack.i.l.s16 %v2185
      %v2194 = vunpack.i.h.s16 %v2185
      %v2195 = vunpack.i.l.s16 %v2168
      %v2196 = vunpack.i.h.s16 %v2168
      %v2197 = vunpack.i.l.s16 %v2182
      %v2198 = vunpack.i.h.s16 %v2182
      %v2199 = vunpack.i.l.s16 %v2184
      %v2200 = vunpack.i.h.s16 %v2184
      %v2201 = vunpack.i.l.s16 %v2186
      %v2202 = vunpack.i.h.s16 %v2186
      %v2203 = vpack.i.b16 %v2187, %v2187
      %v2204 = vpack.i.b16 %v2188, %v2188
      %v2205 = vpack.i.b16 %v2189, %v2189
      %v2206 = vpack.i.b16 %v2190, %v2190
      %v2207 = vpack.i.b16 %v2191, %v2191
      %v2208 = vpack.i.b16 %v2192, %v2192
      %v2209 = vpack.i.b16 %v2193, %v2193
      %v2210 = vpack.i.b16 %v2194, %v2194
      %v2211 = vpack.i.b16 %v2195, %v2195
      %v2212 = vpack.i.b16 %v2196, %v2196
      %v2213 = vpack.i.b16 %v2197, %v2197
      %v2214 = vpack.i.b16 %v2198, %v2198
      %v2215 = vpack.i.b16 %v2199, %v2199
      %v2216 = vpack.i.b16 %v2200, %v2200
      %v2217 = vpack.i.b16 %v2201, %v2201
      %v2218 = vpack.i.b16 %v2202, %v2202
      %v2220 = vunpack.c.l.s4 857870592
      %v2221 = vunpack.c.0.s8 %v2220
      %v2222 = vlaneseq
      %v2223 = vshrl.u32 %v2222, 7
      %v2224 = vsub.s32 %v2221, %v2223
      %v2225 = vrot.slane %v2203, %v2224
      %v2227 = vunpack.c.l.s4 857870592
      %v2228 = vunpack.c.0.s8 %v2227
      %v2229 = vlaneseq
      %v2230 = vshrl.u32 %v2229, 7
      %v2231 = vsub.s32 %v2228, %v2230
      %v2232 = vrot.slane %v2204, %v2231
      %v2234 = vunpack.c.l.s4 857870592
      %v2235 = vunpack.c.0.s8 %v2234
      %v2236 = vlaneseq
      %v2237 = vshrl.u32 %v2236, 7
      %v2238 = vsub.s32 %v2235, %v2237
      %v2239 = vrot.slane %v2205, %v2238
      %v2241 = vunpack.c.l.s4 857870592
      %v2242 = vunpack.c.0.s8 %v2241
      %v2243 = vlaneseq
      %v2244 = vshrl.u32 %v2243, 7
      %v2245 = vsub.s32 %v2242, %v2244
      %v2246 = vrot.slane %v2206, %v2245
      %v2248 = vunpack.c.l.s4 857870592
      %v2249 = vunpack.c.0.s8 %v2248
      %v2250 = vlaneseq
      %v2251 = vshrl.u32 %v2250, 7
      %v2252 = vsub.s32 %v2249, %v2251
      %v2253 = vrot.slane %v2207, %v2252
      %v2255 = vunpack.c.l.s4 857870592
      %v2256 = vunpack.c.0.s8 %v2255
      %v2257 = vlaneseq
      %v2258 = vshrl.u32 %v2257, 7
      %v2259 = vsub.s32 %v2256, %v2258
      %v2260 = vrot.slane %v2208, %v2259
      %v2262 = vunpack.c.l.s4 857870592
      %v2263 = vunpack.c.0.s8 %v2262
      %v2264 = vlaneseq
      %v2265 = vshrl.u32 %v2264, 7
      %v2266 = vsub.s32 %v2263, %v2265
      %v2267 = vrot.slane %v2209, %v2266
      %v2269 = vunpack.c.l.s4 857870592
      %v2270 = vunpack.c.0.s8 %v2269
      %v2271 = vlaneseq
      %v2272 = vshrl.u32 %v2271, 7
      %v2273 = vsub.s32 %v2270, %v2272
      %v2274 = vrot.slane %v2210, %v2273
      %v2276 = vunpack.c.l.s4 857870592
      %v2277 = vunpack.c.0.s8 %v2276
      %v2278 = vlaneseq
      %v2279 = vshrl.u32 %v2278, 7
      %v2280 = vsub.s32 %v2277, %v2279
      %v2281 = vrot.slane %v2211, %v2280
      %v2283 = vunpack.c.l.s4 857870592
      %v2284 = vunpack.c.0.s8 %v2283
      %v2285 = vlaneseq
      %v2286 = vshrl.u32 %v2285, 7
      %v2287 = vsub.s32 %v2284, %v2286
      %v2288 = vrot.slane %v2212, %v2287
      %v2290 = vunpack.c.l.s4 857870592
      %v2291 = vunpack.c.0.s8 %v2290
      %v2292 = vlaneseq
      %v2293 = vshrl.u32 %v2292, 7
      %v2294 = vsub.s32 %v2291, %v2293
      %v2295 = vrot.slane %v2213, %v2294
      %v2297 = vunpack.c.l.s4 857870592
      %v2298 = vunpack.c.0.s8 %v2297
      %v2299 = vlaneseq
      %v2300 = vshrl.u32 %v2299, 7
      %v2301 = vsub.s32 %v2298, %v2300
      %v2302 = vrot.slane %v2214, %v2301
      %v2304 = vunpack.c.l.s4 857870592
      %v2305 = vunpack.c.0.s8 %v2304
      %v2306 = vlaneseq
      %v2307 = vshrl.u32 %v2306, 7
      %v2308 = vsub.s32 %v2305, %v2307
      %v2309 = vrot.slane %v2215, %v2308
      %v2311 = vunpack.c.l.s4 857870592
      %v2312 = vunpack.c.0.s8 %v2311
      %v2313 = vlaneseq
      %v2314 = vshrl.u32 %v2313, 7
      %v2315 = vsub.s32 %v2312, %v2314
      %v2316 = vrot.slane %v2216, %v2315
      %v2318 = vunpack.c.l.s4 857870592
      %v2319 = vunpack.c.0.s8 %v2318
      %v2320 = vlaneseq
      %v2321 = vshrl.u32 %v2320, 7
      %v2322 = vsub.s32 %v2319, %v2321
      %v2323 = vrot.slane %v2217, %v2322
      %v2325 = vunpack.c.l.s4 857870592
      %v2326 = vunpack.c.0.s8 %v2325
      %v2327 = vlaneseq
      %v2328 = vshrl.u32 %v2327, 7
      %v2329 = vsub.s32 %v2326, %v2328
      %v2330 = vrot.slane %v2218, %v2329
      %vm2347 = vcmask 123905
      %vm2348 = vsmask.f32 1280
      %vm2349 = vmand %vm2347, %vm2348
      %v2350 = vld [vmem:[#allocation3] sm:$0x2]
      %v2351 = vsel %vm2349, %v2225, %v2350
      %2352 = vst [vmem:[#allocation3] sm:$0x2] %v2351
      %v2353 = vld [vmem:[#allocation3 + $0x2] sm:$0x2]
      %v2354 = vsel %vm2349, %v2232, %v2353
      %2355 = vst [vmem:[#allocation3 + $0x2] sm:$0x2] %v2354
      %v2356 = vld [vmem:[#allocation3 + $0x4] sm:$0x2]
      %v2357 = vsel %vm2349, %v2239, %v2356
      %2358 = vst [vmem:[#allocation3 + $0x4] sm:$0x2] %v2357
      %v2359 = vld [vmem:[#allocation3 + $0x6] sm:$0x2]
      %v2360 = vsel %vm2349, %v2246, %v2359
      %2361 = vst [vmem:[#allocation3 + $0x6] sm:$0x2] %v2360
      %v2362 = vld [vmem:[#allocation3 + $0x8] sm:$0x2]
      %v2363 = vsel %vm2349, %v2253, %v2362
      %2364 = vst [vmem:[#allocation3 + $0x8] sm:$0x2] %v2363
      %v2365 = vld [vmem:[#allocation3 + $0xa] sm:$0x2]
      %v2366 = vsel %vm2349, %v2260, %v2365
      %2367 = vst [vmem:[#allocation3 + $0xa] sm:$0x2] %v2366
      %v2368 = vld [vmem:[#allocation3 + $0xc] sm:$0x2]
      %v2369 = vsel %vm2349, %v2267, %v2368
      %2370 = vst [vmem:[#allocation3 + $0xc] sm:$0x2] %v2369
      %v2371 = vld [vmem:[#allocation3 + $0xe] sm:$0x2]
      %v2372 = vsel %vm2349, %v2274, %v2371
      %2373 = vst [vmem:[#allocation3 + $0xe] sm:$0x2] %v2372
      %v2374 = vld [vmem:[#allocation3 + $0x10] sm:$0x2]
      %v2375 = vsel %vm2349, %v2281, %v2374
      %2376 = vst [vmem:[#allocation3 + $0x10] sm:$0x2] %v2375
      %v2377 = vld [vmem:[#allocation3 + $0x12] sm:$0x2]
      %v2378 = vsel %vm2349, %v2288, %v2377
      %2379 = vst [vmem:[#allocation3 + $0x12] sm:$0x2] %v2378
      %v2380 = vld [vmem:[#allocation3 + $0x14] sm:$0x2]
      %v2381 = vsel %vm2349, %v2295, %v2380
      %2382 = vst [vmem:[#allocation3 + $0x14] sm:$0x2] %v2381
      %v2383 = vld [vmem:[#allocation3 + $0x16] sm:$0x2]
      %v2384 = vsel %vm2349, %v2302, %v2383
      %2385 = vst [vmem:[#allocation3 + $0x16] sm:$0x2] %v2384
      %v2386 = vld [vmem:[#allocation3 + $0x18] sm:$0x2]
      %v2387 = vsel %vm2349, %v2309, %v2386
      %2388 = vst [vmem:[#allocation3 + $0x18] sm:$0x2] %v2387
      %v2389 = vld [vmem:[#allocation3 + $0x1a] sm:$0x2]
      %v2390 = vsel %vm2349, %v2316, %v2389
      %2391 = vst [vmem:[#allocation3 + $0x1a] sm:$0x2] %v2390
      %v2392 = vld [vmem:[#allocation3 + $0x1c] sm:$0x2]
      %v2393 = vsel %vm2349, %v2323, %v2392
      %2394 = vst [vmem:[#allocation3 + $0x1c] sm:$0x2] %v2393
      %v2395 = vld [vmem:[#allocation3 + $0x1e] sm:$0x2]
      %v2396 = vsel %vm2349, %v2330, %v2395
      %2397 = vst [vmem:[#allocation3 + $0x1e] sm:$0x2] %v2396
      %s2398 = scalar_lea.vmem %s567, 32
      %v2399 = vld [vmem:[%s2398] sm:$0xff]
      %v2400 = vld [vmem:[%s2398 + $0x8] sm:$0xff]
      %v2401 = vpack.c.bf16 %v2400, %v2399
      %v2403 = vsel %vm660, %v2136, 0
      %2405 = vmatprep.subr.bf16.mxu0 0
      %2406 = vmatpush1.bf16.msra.mxu0 0
      %2407 = vmatprep.subr.bf16.mxu0 0
      %2408 = vmatpush1.bf16.msra.mxu0 0
      %2409 = vmatprep.subr.bf16.mxu0 0
      %2410 = vmatpush1.bf16.msra.mxu0 0
      %2411 = vmatprep.subr.bf16.mxu0 0
      %2412 = vmatpush1.bf16.msra.mxu0 0
      %2413 = vmatprep.subr.bf16.mxu0 0
      %2414 = vmatpush1.bf16.msra.mxu0 0
      %2415 = vmatprep.subr.bf16.mxu0 0
      %2416 = vmatpush1.bf16.msra.mxu0 0
      %2417 = vmatprep.subr.bf16.mxu0 0
      %2418 = vmatpush1.bf16.msra.mxu0 0
      %2419 = vmatprep.subr.bf16.mxu0 0
      %2420 = vmatpush1.bf16.msra.mxu0 %v2401
      %2421 = vmatprep.subr.bf16.mxu0 0
      %2422 = vmatpush2.bf16.msra.mxu0 0
      %2423 = vmatprep.subr.bf16.mxu0 0
      %2424 = vmatpush2.bf16.msra.mxu0 0
      %2425 = vmatprep.subr.bf16.mxu0 0
      %2426 = vmatpush2.bf16.msra.mxu0 0
      %2427 = vmatprep.subr.bf16.mxu0 0
      %2428 = vmatpush2.bf16.msra.mxu0 0
      %2429 = vmatprep.subr.bf16.mxu0 0
      %2430 = vmatpush2.bf16.msra.mxu0 0
      %2431 = vmatprep.subr.bf16.mxu0 0
      %2432 = vmatpush2.bf16.msra.mxu0 0
      %2433 = vmatprep.subr.bf16.mxu0 0
      %2434 = vmatpush2.bf16.msra.mxu0 0
      %2435 = vmatprep.subr.bf16.mxu0 0
      %2436 = vmatpush2.bf16.msra.mxu0 0
      %2437 = vmatprep.mubr.bf16.mxu0 0
      %2438 = vmatmul.mubr.bf16.gmra.mxu0 %v2403
      %v2439 = vpop.f32.mrf.mxu0
      %v2440 = vadd.f32 0.0, %v2439
      %v2441 = vpop.f32.mrf.mxu0
      %v2442 = vpop.f32.mrf.mxu0
      %v2443 = vadd.f32 0.0, %v2442
      %v2444 = vpop.f32.mrf.mxu0
      %2445 = vdwg.mxu0
      %s2446 = scalar_lea.vmem %s541, 48
      %v2447 = vld [vmem:[%s2446] sm:$0xff]
      %v2448 = vld [vmem:[%s2446 + $0x8] sm:$0xff]
      %v2449 = vpack.c.bf16 %v2448, %v2447
      %s2450 = scalar_lea.vmem %s547, 48
      %v2451 = vld [vmem:[%s2450] sm:$0xff]
      %v2452 = vld [vmem:[%s2450 + $0x8] sm:$0xff]
      %v2453 = vpack.c.bf16 %v2452, %v2451
      %v2455 = vsel %vm948, %v2449, 0
      %v2458 = vsel %vm948, %v2453, 0
      %2460 = vmatprep.subr.bf16.mxu0 0
      %2461 = vmatpush1.bf16.xpose.msra.mxu0 0
      %2462 = vmatprep.subr.bf16.mxu0 0
      %2463 = vmatpush1.bf16.xpose.msra.mxu0 0
      %2464 = vmatprep.subr.bf16.mxu0 0
      %2465 = vmatpush1.bf16.xpose.msra.mxu0 0
      %2466 = vmatprep.subr.bf16.mxu0 0
      %2467 = vmatpush1.bf16.xpose.msra.mxu0 0
      %2468 = vmatprep.subr.bf16.mxu0 0
      %2469 = vmatpush1.bf16.xpose.msra.mxu0 0
      %2470 = vmatprep.subr.bf16.mxu0 0
      %2471 = vmatpush1.bf16.xpose.msra.mxu0 0
      %2472 = vmatprep.subr.bf16.mxu0 0
      %2473 = vmatpush1.bf16.xpose.msra.mxu0 0
      %2474 = vmatprep.subr.bf16.mxu0 0
      %2475 = vmatpush1.bf16.xpose.msra.mxu0 %v2458
      %2476 = vmatprep.subr.bf16.mxu0 0
      %2477 = vmatpush2.bf16.xpose.msra.mxu0 0
      %2478 = vmatprep.subr.bf16.mxu0 0
      %2479 = vmatpush2.bf16.xpose.msra.mxu0 0
      %2480 = vmatprep.subr.bf16.mxu0 0
      %2481 = vmatpush2.bf16.xpose.msra.mxu0 0
      %2482 = vmatprep.subr.bf16.mxu0 0
      %2483 = vmatpush2.bf16.xpose.msra.mxu0 0
      %2484 = vmatprep.subr.bf16.mxu0 0
      %2485 = vmatpush2.bf16.xpose.msra.mxu0 0
      %2486 = vmatprep.subr.bf16.mxu0 0
      %2487 = vmatpush2.bf16.xpose.msra.mxu0 0
      %2488 = vmatprep.subr.bf16.mxu0 0
      %2489 = vmatpush2.bf16.xpose.msra.mxu0 0
      %2490 = vmatprep.subr.bf16.mxu0 0
      %2491 = vmatpush2.bf16.xpose.msra.mxu0 0
      %2492 = vmatprep.mubr.bf16.mxu0 0
      %2493 = vmatmul.mubr.bf16.gmra.mxu0 %v2455
      %v2494 = vpop.f32.mrf.mxu0
      %v2495 = vadd.f32 0.0, %v2494
      %v2496 = vpop.f32.mrf.mxu0
      %v2497 = vpop.f32.mrf.mxu0
      %v2498 = vadd.f32 0.0, %v2497
      %v2499 = vpop.f32.mrf.mxu0
      %2500 = vdwg.mxu0
      %s2501 = scalar_lea.vmem %s556, 48
      %v2502 = vld [vmem:[%s2501] sm:$0xff]
      %v2503 = vld [vmem:[%s2501 + $0x8] sm:$0xff]
      %v2504 = vpack.c.bf16 %v2503, %v2502
      %s2505 = scalar_lea.vmem %s562, 48
      %v2506 = vld [vmem:[%s2505] sm:$0xff]
      %v2507 = vld [vmem:[%s2505 + $0x8] sm:$0xff]
      %v2508 = vpack.c.bf16 %v2507, %v2506
      %v2510 = vsel %vm1002, %v2504, 0
      %v2513 = vsel %vm1002, %v2508, 0
      %2515 = vmatprep.subr.bf16.mxu0 0
      %2516 = vmatpush1.bf16.xpose.msra.mxu0 0
      %2517 = vmatprep.subr.bf16.mxu0 0
      %2518 = vmatpush1.bf16.xpose.msra.mxu0 0
      %2519 = vmatprep.subr.bf16.mxu0 0
      %2520 = vmatpush1.bf16.xpose.msra.mxu0 0
      %2521 = vmatprep.subr.bf16.mxu0 0
      %2522 = vmatpush1.bf16.xpose.msra.mxu0 0
      %2523 = vmatprep.subr.bf16.mxu0 0
      %2524 = vmatpush1.bf16.xpose.msra.mxu0 0
      %2525 = vmatprep.subr.bf16.mxu0 0
      %2526 = vmatpush1.bf16.xpose.msra.mxu0 0
      %2527 = vmatprep.subr.bf16.mxu0 0
      %2528 = vmatpush1.bf16.xpose.msra.mxu0 0
      %2529 = vmatprep.subr.bf16.mxu0 0
      %2530 = vmatpush1.bf16.xpose.msra.mxu0 %v2513
      %2531 = vmatprep.subr.bf16.mxu0 0
      %2532 = vmatpush2.bf16.xpose.msra.mxu0 0
      %2533 = vmatprep.subr.bf16.mxu0 0
      %2534 = vmatpush2.bf16.xpose.msra.mxu0 0
      %2535 = vmatprep.subr.bf16.mxu0 0
      %2536 = vmatpush2.bf16.xpose.msra.mxu0 0
      %2537 = vmatprep.subr.bf16.mxu0 0
      %2538 = vmatpush2.bf16.xpose.msra.mxu0 0
      %2539 = vmatprep.subr.bf16.mxu0 0
      %2540 = vmatpush2.bf16.xpose.msra.mxu0 0
      %2541 = vmatprep.subr.bf16.mxu0 0
      %2542 = vmatpush2.bf16.xpose.msra.mxu0 0
      %2543 = vmatprep.subr.bf16.mxu0 0
      %2544 = vmatpush2.bf16.xpose.msra.mxu0 0
      %2545 = vmatprep.subr.bf16.mxu0 0
      %2546 = vmatpush2.bf16.xpose.msra.mxu0 0
      %2547 = vmatprep.mubr.bf16.mxu0 0
      %2548 = vmatmul.mubr.bf16.gmra.mxu0 %v2510
      %v2549 = vpop.f32.mrf.mxu0
      %v2550 = vadd.f32 0.0, %v2549
      %v2551 = vpop.f32.mrf.mxu0
      %v2552 = vpop.f32.mrf.mxu0
      %v2553 = vadd.f32 0.0, %v2552
      %v2554 = vpop.f32.mrf.mxu0
      %2555 = vdwg.mxu0
      %v2556 = vmul.f32 %v2495, 0.20412415
      %v2557 = vmul.f32 %v2498, 0.20412415
      %v2558 = vmul.f32 %v2550, 0.13608277
      %v2559 = vmul.f32 %v2553, 0.13608277
      %v2560 = vadd.f32 %v2556, %v2558
      %v2561 = vadd.f32 %v2557, %v2559
      %v2562 = vadd.f32 %v2560, %v864
      %v2563 = vadd.f32 %v2561, %v932
      %v2564 = vsel %vm660, %v2562, -inf
      %2565 = vmax.xlane.f32.xlu0 %v2564
      %v2566 = vpop.xlane.xlu0 %2565
      %v2567 = vsel %vm660, %v2563, -inf
      %2568 = vmax.xlane.f32.xlu0 %v2567
      %v2569 = vpop.xlane.xlu0 %2568
      %v2570 = vsub.f32 %v2562, %v2566
      %v2571 = vsub.f32 %v2563, %v2569
      %v2572 = vmul.f32 %v2570, 1.442695
      %v2573 = vpow.pop %v2572
      %v2574 = vmul.f32 %v2571, 1.442695
      %v2575 = vpow.pop %v2574
      %v2576 = vsel %vm660, %v2573, 0.0
      %2577 = vadd.xlane.f32.xlu0 %v2576
      %v2578 = vpop.xlane.xlu0 %2577
      %v2579 = vsel %vm660, %v2575, 0.0
      %2580 = vadd.xlane.f32.xlu0 %v2579
      %v2581 = vpop.xlane.xlu0 %2580
      %v2582 = vrcp.pop %v2578
      %v2583 = vmul.f32 %v2573, %v2582
      %v2584 = vrcp.pop %v2581
      %v2585 = vmul.f32 %v2575, %v2584
      %s2586 = scalar_lea.vmem [#allocation2], 48
      %2587 = vst.msk [vmem:[%s2586] sm:$0xff] %vm660, %v2583
      %2588 = vst.msk [vmem:[%s2586 + $0x8] sm:$0xff] %vm660, %v2585
      %v2589 = vsel %vm660, %v2550, -inf
      %2590 = vmax.xlane.f32.xlu0 %v2589
      %v2591 = vpop.xlane.xlu0 %2590
      %v2592 = vsel %vm660, %v2553, -inf
      %2593 = vmax.xlane.f32.xlu0 %v2592
      %v2594 = vpop.xlane.xlu0 %2593
      %v2595 = vsub.f32 %v2550, %v2591
      %v2596 = vsub.f32 %v2553, %v2594
      %v2597 = vmul.f32 %v2595, 1.442695
      %v2598 = vpow.pop %v2597
      %v2599 = vmul.f32 %v2596, 1.442695
      %v2600 = vpow.pop %v2599
      %v2601 = vsel %vm660, %v2598, 0.0
      %2602 = vadd.xlane.f32.xlu0 %v2601
      %v2603 = vpop.xlane.xlu0 %2602
      %v2604 = vsel %vm660, %v2600, 0.0
      %2605 = vadd.xlane.f32.xlu0 %v2604
      %v2606 = vpop.xlane.xlu0 %2605
      %v2607 = vrcp.pop %v2603
      %v2608 = vmul.f32 %v2598, %v2607
      %v2609 = vrcp.pop %v2606
      %v2610 = vmul.f32 %v2600, %v2609
      %s2611 = scalar_lea.vmem [#allocation2], 112
      %2612 = vst.msk [vmem:[%s2611] sm:$0xff] %vm660, %v2608
      %2613 = vst.msk [vmem:[%s2611 + $0x8] sm:$0xff] %vm660, %v2610
      %v2614 = vsel %vm660, %v2495, -inf
      %2615 = vmax.xlane.f32.xlu0 %v2614
      %v2616 = vpop.xlane.xlu0 %2615
      %v2617 = vsel %vm660, %v2498, -inf
      %2618 = vmax.xlane.f32.xlu0 %v2617
      %v2619 = vpop.xlane.xlu0 %2618
      %v2620 = vsub.f32 %v2495, %v2616
      %v2621 = vsub.f32 %v2498, %v2619
      %v2622 = vmul.f32 %v2620, 1.442695
      %v2623 = vpow.pop %v2622
      %v2624 = vmul.f32 %v2621, 1.442695
      %v2625 = vpow.pop %v2624
      %v2626 = vsel %vm660, %v2623, 0.0
      %2627 = vadd.xlane.f32.xlu0 %v2626
      %v2628 = vpop.xlane.xlu0 %2627
      %v2629 = vsel %vm660, %v2625, 0.0
      %2630 = vadd.xlane.f32.xlu0 %v2629
      %v2631 = vpop.xlane.xlu0 %2630
      %v2632 = vrcp.pop %v2628
      %v2633 = vmul.f32 %v2623, %v2632
      %v2634 = vrcp.pop %v2631
      %v2635 = vmul.f32 %v2625, %v2634
      %s2636 = scalar_lea.vmem [#allocation2], 176
      %2637 = vst.msk [vmem:[%s2636] sm:$0xff] %vm660, %v2633
      %2638 = vst.msk [vmem:[%s2636 + $0x8] sm:$0xff] %vm660, %v2635
      %v2639 = vpack.c.bf16 %v2585, %v2583
      %v2641 = vcombine.high %v2639, %v2639
      %v2643 = vunpack.c.l.s4 1966171168
      %v2644 = vunpack.c.0.s8 %v2643
      %v2645 = vlaneseq
      %v2646 = vshrl.u32 %v2645, 7
      %v2647 = vsub.s32 %v2644, %v2646
      %v2648 = vrot.slane %v2639, %v2647
      %v2650 = vunpack.c.l.s4 1966171168
      %v2651 = vunpack.c.0.s8 %v2650
      %v2652 = vlaneseq
      %v2653 = vshrl.u32 %v2652, 7
      %v2654 = vsub.s32 %v2651, %v2653
      %v2655 = vrot.slane %v2641, %v2654
      %v2656 = vcombine.high %v2648, %v2648
      %v2657 = vcombine.high %v2655, %v2655
      %v2659 = vunpack.c.l.s4 1966171168
      %v2660 = vunpack.c.0.s8 %v2659
      %v2661 = vlaneseq
      %v2662 = vshrl.u32 %v2661, 7
      %v2663 = vsub.s32 %v2660, %v2662
      %v2664 = vrot.slane %v2648, %v2663
      %v2666 = vunpack.c.l.s4 1966171168
      %v2667 = vunpack.c.0.s8 %v2666
      %v2668 = vlaneseq
      %v2669 = vshrl.u32 %v2668, 7
      %v2670 = vsub.s32 %v2667, %v2669
      %v2671 = vrot.slane %v2655, %v2670
      %v2673 = vunpack.c.l.s4 1966171168
      %v2674 = vunpack.c.0.s8 %v2673
      %v2675 = vlaneseq
      %v2676 = vshrl.u32 %v2675, 7
      %v2677 = vsub.s32 %v2674, %v2676
      %v2678 = vrot.slane %v2656, %v2677
      %v2680 = vunpack.c.l.s4 1966171168
      %v2681 = vunpack.c.0.s8 %v2680
      %v2682 = vlaneseq
      %v2683 = vshrl.u32 %v2682, 7
      %v2684 = vsub.s32 %v2681, %v2683
      %v2685 = vrot.slane %v2657, %v2684
      %v2686 = vcombine.high %v2664, %v2664
      %v2687 = vcombine.high %v2671, %v2671
      %v2688 = vcombine.high %v2678, %v2678
      %v2689 = vcombine.high %v2685, %v2685
      %v2690 = vunpack.i.l.s16 %v2664
      %v2691 = vunpack.i.h.s16 %v2664
      %v2692 = vunpack.i.l.s16 %v2678
      %v2693 = vunpack.i.h.s16 %v2678
      %v2694 = vunpack.i.l.s16 %v2686
      %v2695 = vunpack.i.h.s16 %v2686
      %v2696 = vunpack.i.l.s16 %v2688
      %v2697 = vunpack.i.h.s16 %v2688
      %v2698 = vunpack.i.l.s16 %v2671
      %v2699 = vunpack.i.h.s16 %v2671
      %v2700 = vunpack.i.l.s16 %v2685
      %v2701 = vunpack.i.h.s16 %v2685
      %v2702 = vunpack.i.l.s16 %v2687
      %v2703 = vunpack.i.h.s16 %v2687
      %v2704 = vunpack.i.l.s16 %v2689
      %v2705 = vunpack.i.h.s16 %v2689
      %v2706 = vpack.i.b16 %v2690, %v2690
      %v2707 = vpack.i.b16 %v2691, %v2691
      %v2708 = vpack.i.b16 %v2692, %v2692
      %v2709 = vpack.i.b16 %v2693, %v2693
      %v2710 = vpack.i.b16 %v2694, %v2694
      %v2711 = vpack.i.b16 %v2695, %v2695
      %v2712 = vpack.i.b16 %v2696, %v2696
      %v2713 = vpack.i.b16 %v2697, %v2697
      %v2714 = vpack.i.b16 %v2698, %v2698
      %v2715 = vpack.i.b16 %v2699, %v2699
      %v2716 = vpack.i.b16 %v2700, %v2700
      %v2717 = vpack.i.b16 %v2701, %v2701
      %v2718 = vpack.i.b16 %v2702, %v2702
      %v2719 = vpack.i.b16 %v2703, %v2703
      %v2720 = vpack.i.b16 %v2704, %v2704
      %v2721 = vpack.i.b16 %v2705, %v2705
      %v2723 = vunpack.c.l.s4 857870592
      %v2724 = vunpack.c.0.s8 %v2723
      %v2725 = vlaneseq
      %v2726 = vshrl.u32 %v2725, 7
      %v2727 = vsub.s32 %v2724, %v2726
      %v2728 = vrot.slane %v2706, %v2727
      %v2730 = vunpack.c.l.s4 857870592
      %v2731 = vunpack.c.0.s8 %v2730
      %v2732 = vlaneseq
      %v2733 = vshrl.u32 %v2732, 7
      %v2734 = vsub.s32 %v2731, %v2733
      %v2735 = vrot.slane %v2707, %v2734
      %v2737 = vunpack.c.l.s4 857870592
      %v2738 = vunpack.c.0.s8 %v2737
      %v2739 = vlaneseq
      %v2740 = vshrl.u32 %v2739, 7
      %v2741 = vsub.s32 %v2738, %v2740
      %v2742 = vrot.slane %v2708, %v2741
      %v2744 = vunpack.c.l.s4 857870592
      %v2745 = vunpack.c.0.s8 %v2744
      %v2746 = vlaneseq
      %v2747 = vshrl.u32 %v2746, 7
      %v2748 = vsub.s32 %v2745, %v2747
      %v2749 = vrot.slane %v2709, %v2748
      %v2751 = vunpack.c.l.s4 857870592
      %v2752 = vunpack.c.0.s8 %v2751
      %v2753 = vlaneseq
      %v2754 = vshrl.u32 %v2753, 7
      %v2755 = vsub.s32 %v2752, %v2754
      %v2756 = vrot.slane %v2710, %v2755
      %v2758 = vunpack.c.l.s4 857870592
      %v2759 = vunpack.c.0.s8 %v2758
      %v2760 = vlaneseq
      %v2761 = vshrl.u32 %v2760, 7
      %v2762 = vsub.s32 %v2759, %v2761
      %v2763 = vrot.slane %v2711, %v2762
      %v2765 = vunpack.c.l.s4 857870592
      %v2766 = vunpack.c.0.s8 %v2765
      %v2767 = vlaneseq
      %v2768 = vshrl.u32 %v2767, 7
      %v2769 = vsub.s32 %v2766, %v2768
      %v2770 = vrot.slane %v2712, %v2769
      %v2772 = vunpack.c.l.s4 857870592
      %v2773 = vunpack.c.0.s8 %v2772
      %v2774 = vlaneseq
      %v2775 = vshrl.u32 %v2774, 7
      %v2776 = vsub.s32 %v2773, %v2775
      %v2777 = vrot.slane %v2713, %v2776
      %v2779 = vunpack.c.l.s4 857870592
      %v2780 = vunpack.c.0.s8 %v2779
      %v2781 = vlaneseq
      %v2782 = vshrl.u32 %v2781, 7
      %v2783 = vsub.s32 %v2780, %v2782
      %v2784 = vrot.slane %v2714, %v2783
      %v2786 = vunpack.c.l.s4 857870592
      %v2787 = vunpack.c.0.s8 %v2786
      %v2788 = vlaneseq
      %v2789 = vshrl.u32 %v2788, 7
      %v2790 = vsub.s32 %v2787, %v2789
      %v2791 = vrot.slane %v2715, %v2790
      %v2793 = vunpack.c.l.s4 857870592
      %v2794 = vunpack.c.0.s8 %v2793
      %v2795 = vlaneseq
      %v2796 = vshrl.u32 %v2795, 7
      %v2797 = vsub.s32 %v2794, %v2796
      %v2798 = vrot.slane %v2716, %v2797
      %v2800 = vunpack.c.l.s4 857870592
      %v2801 = vunpack.c.0.s8 %v2800
      %v2802 = vlaneseq
      %v2803 = vshrl.u32 %v2802, 7
      %v2804 = vsub.s32 %v2801, %v2803
      %v2805 = vrot.slane %v2717, %v2804
      %v2807 = vunpack.c.l.s4 857870592
      %v2808 = vunpack.c.0.s8 %v2807
      %v2809 = vlaneseq
      %v2810 = vshrl.u32 %v2809, 7
      %v2811 = vsub.s32 %v2808, %v2810
      %v2812 = vrot.slane %v2718, %v2811
      %v2814 = vunpack.c.l.s4 857870592
      %v2815 = vunpack.c.0.s8 %v2814
      %v2816 = vlaneseq
      %v2817 = vshrl.u32 %v2816, 7
      %v2818 = vsub.s32 %v2815, %v2817
      %v2819 = vrot.slane %v2719, %v2818
      %v2821 = vunpack.c.l.s4 857870592
      %v2822 = vunpack.c.0.s8 %v2821
      %v2823 = vlaneseq
      %v2824 = vshrl.u32 %v2823, 7
      %v2825 = vsub.s32 %v2822, %v2824
      %v2826 = vrot.slane %v2720, %v2825
      %v2828 = vunpack.c.l.s4 857870592
      %v2829 = vunpack.c.0.s8 %v2828
      %v2830 = vlaneseq
      %v2831 = vshrl.u32 %v2830, 7
      %v2832 = vsub.s32 %v2829, %v2831
      %v2833 = vrot.slane %v2721, %v2832
      %vm2850 = vsmask.f32 7942
      %vm2851 = vmand %vm2347, %vm2850
      %v2852 = vld [vmem:[#allocation3] sm:$0x2]
      %v2853 = vsel %vm2851, %v2728, %v2852
      %2854 = vst [vmem:[#allocation3] sm:$0x2] %v2853
      %v2855 = vld [vmem:[#allocation3 + $0x2] sm:$0x2]
      %v2856 = vsel %vm2851, %v2735, %v2855
      %2857 = vst [vmem:[#allocation3 + $0x2] sm:$0x2] %v2856
      %v2858 = vld [vmem:[#allocation3 + $0x4] sm:$0x2]
      %v2859 = vsel %vm2851, %v2742, %v2858
      %2860 = vst [vmem:[#allocation3 + $0x4] sm:$0x2] %v2859
      %v2861 = vld [vmem:[#allocation3 + $0x6] sm:$0x2]
      %v2862 = vsel %vm2851, %v2749, %v2861
      %2863 = vst [vmem:[#allocation3 + $0x6] sm:$0x2] %v2862
      %v2864 = vld [vmem:[#allocation3 + $0x8] sm:$0x2]
      %v2865 = vsel %vm2851, %v2756, %v2864
      %2866 = vst [vmem:[#allocation3 + $0x8] sm:$0x2] %v2865
      %v2867 = vld [vmem:[#allocation3 + $0xa] sm:$0x2]
      %v2868 = vsel %vm2851, %v2763, %v2867
      %2869 = vst [vmem:[#allocation3 + $0xa] sm:$0x2] %v2868
      %v2870 = vld [vmem:[#allocation3 + $0xc] sm:$0x2]
      %v2871 = vsel %vm2851, %v2770, %v2870
      %2872 = vst [vmem:[#allocation3 + $0xc] sm:$0x2] %v2871
      %v2873 = vld [vmem:[#allocation3 + $0xe] sm:$0x2]
      %v2874 = vsel %vm2851, %v2777, %v2873
      %2875 = vst [vmem:[#allocation3 + $0xe] sm:$0x2] %v2874
      %v2876 = vld [vmem:[#allocation3 + $0x10] sm:$0x2]
      %v2877 = vsel %vm2851, %v2784, %v2876
      %2878 = vst [vmem:[#allocation3 + $0x10] sm:$0x2] %v2877
      %v2879 = vld [vmem:[#allocation3 + $0x12] sm:$0x2]
      %v2880 = vsel %vm2851, %v2791, %v2879
      %2881 = vst [vmem:[#allocation3 + $0x12] sm:$0x2] %v2880
      %v2882 = vld [vmem:[#allocation3 + $0x14] sm:$0x2]
      %v2883 = vsel %vm2851, %v2798, %v2882
      %2884 = vst [vmem:[#allocation3 + $0x14] sm:$0x2] %v2883
      %v2885 = vld [vmem:[#allocation3 + $0x16] sm:$0x2]
      %v2886 = vsel %vm2851, %v2805, %v2885
      %2887 = vst [vmem:[#allocation3 + $0x16] sm:$0x2] %v2886
      %v2888 = vld [vmem:[#allocation3 + $0x18] sm:$0x2]
      %v2889 = vsel %vm2851, %v2812, %v2888
      %2890 = vst [vmem:[#allocation3 + $0x18] sm:$0x2] %v2889
      %v2891 = vld [vmem:[#allocation3 + $0x1a] sm:$0x2]
      %v2892 = vsel %vm2851, %v2819, %v2891
      %2893 = vst [vmem:[#allocation3 + $0x1a] sm:$0x2] %v2892
      %v2894 = vld [vmem:[#allocation3 + $0x1c] sm:$0x2]
      %v2895 = vsel %vm2851, %v2826, %v2894
      %2896 = vst [vmem:[#allocation3 + $0x1c] sm:$0x2] %v2895
      %v2897 = vld [vmem:[#allocation3 + $0x1e] sm:$0x2]
      %v2898 = vsel %vm2851, %v2833, %v2897
      %2899 = vst [vmem:[#allocation3 + $0x1e] sm:$0x2] %v2898
      %s2900 = scalar_lea.vmem %s567, 48
      %v2901 = vld [vmem:[%s2900] sm:$0xff]
      %v2902 = vld [vmem:[%s2900 + $0x8] sm:$0xff]
      %v2903 = vpack.c.bf16 %v2902, %v2901
      %v2905 = vsel %vm660, %v2639, 0
      %2907 = vmatprep.subr.bf16.mxu0 0
      %2908 = vmatpush1.bf16.msra.mxu0 0
      %2909 = vmatprep.subr.bf16.mxu0 0
      %2910 = vmatpush1.bf16.msra.mxu0 0
      %2911 = vmatprep.subr.bf16.mxu0 0
      %2912 = vmatpush1.bf16.msra.mxu0 0
      %2913 = vmatprep.subr.bf16.mxu0 0
      %2914 = vmatpush1.bf16.msra.mxu0 0
      %2915 = vmatprep.subr.bf16.mxu0 0
      %2916 = vmatpush1.bf16.msra.mxu0 0
      %2917 = vmatprep.subr.bf16.mxu0 0
      %2918 = vmatpush1.bf16.msra.mxu0 0
      %2919 = vmatprep.subr.bf16.mxu0 0
      %2920 = vmatpush1.bf16.msra.mxu0 0
      %2921 = vmatprep.subr.bf16.mxu0 0
      %2922 = vmatpush1.bf16.msra.mxu0 %v2903
      %2923 = vmatprep.subr.bf16.mxu0 0
      %2924 = vmatpush2.bf16.msra.mxu0 0
      %2925 = vmatprep.subr.bf16.mxu0 0
      %2926 = vmatpush2.bf16.msra.mxu0 0
      %2927 = vmatprep.subr.bf16.mxu0 0
      %2928 = vmatpush2.bf16.msra.mxu0 0
      %2929 = vmatprep.subr.bf16.mxu0 0
      %2930 = vmatpush2.bf16.msra.mxu0 0
      %2931 = vmatprep.subr.bf16.mxu0 0
      %2932 = vmatpush2.bf16.msra.mxu0 0
      %2933 = vmatprep.subr.bf16.mxu0 0
      %2934 = vmatpush2.bf16.msra.mxu0 0
      %2935 = vmatprep.subr.bf16.mxu0 0
      %2936 = vmatpush2.bf16.msra.mxu0 0
      %2937 = vmatprep.subr.bf16.mxu0 0
      %2938 = vmatpush2.bf16.msra.mxu0 0
      %2939 = vmatprep.mubr.bf16.mxu0 0
      %2940 = vmatmul.mubr.bf16.gmra.mxu0 %v2905
      %v2941 = vpop.f32.mrf.mxu0
      %v2942 = vadd.f32 0.0, %v2941
      %v2943 = vpop.f32.mrf.mxu0
      %v2944 = vpop.f32.mrf.mxu0
      %v2945 = vadd.f32 0.0, %v2944
      %v2946 = vpop.f32.mrf.mxu0
      %2947 = vdwg.mxu0
      %2950 = vrot.lane.b32.xlu0 %v1937, 20
      %v2951 = vpop.permute.xlu0 %2950
      %2952 = vrot.lane.b32.xlu0 %v1940, 20
      %v2953 = vpop.permute.xlu0 %2952
      %2958 = vrot.lane.b32.xlu0 %v2440, 40
      %v2959 = vpop.permute.xlu0 %2958
      %2960 = vrot.lane.b32.xlu0 %v2443, 40
      %v2961 = vpop.permute.xlu0 %2960
      %2966 = vrot.lane.b32.xlu0 %v2942, 60
      %v2967 = vpop.permute.xlu0 %2966
      %2968 = vrot.lane.b32.xlu0 %v2945, 60
      %v2969 = vpop.permute.xlu0 %2968
      %vm2972 = vcmask 162816
      %v2973 = vsel %vm2972, %v1435, %v2951
      %v2974 = vsel %vm2972, %v1438, %v2953
      %vm2975 = vcmask 326656
      %v2976 = vsel %vm2975, %v2973, %v2959
      %v2977 = vsel %vm2975, %v2974, %v2961
      %vm2978 = vcmask 490496
      %v2979 = vsel %vm2978, %v2976, %v2967
      %v2980 = vsel %vm2978, %v2977, %v2969
      %vm2981 = vcmask 654336
      %2982 = vst.msk [vmem:[%s587] sm:$0xff] %vm2981, %v2979
      %2983 = vst.msk [vmem:[%s587 + $0x8] sm:$0xff] %vm2981, %v2980
      %v2984 = vld [vmem:[#allocation3] sm:$0x3]
      %v2985 = vld [vmem:[#allocation3 + $0x2] sm:$0x3]
      %v2986 = vld [vmem:[#allocation3 + $0x4] sm:$0x3]
      %v2987 = vld [vmem:[#allocation3 + $0x6] sm:$0x3]
      %v2988 = vld [vmem:[#allocation3 + $0x8] sm:$0x3]
      %v2989 = vld [vmem:[#allocation3 + $0xa] sm:$0x3]
      %v2990 = vld [vmem:[#allocation3 + $0xc] sm:$0x3]
      %v2991 = vld [vmem:[#allocation3 + $0xe] sm:$0x3]
      %v2992 = vld [vmem:[#allocation3 + $0x10] sm:$0x3]
      %v2993 = vld [vmem:[#allocation3 + $0x12] sm:$0x3]
      %v2994 = vld [vmem:[#allocation3 + $0x14] sm:$0x3]
      %v2995 = vld [vmem:[#allocation3 + $0x16] sm:$0x3]
      %v2996 = vld [vmem:[#allocation3 + $0x18] sm:$0x3]
      %v2997 = vld [vmem:[#allocation3 + $0x1a] sm:$0x3]
      %v2998 = vld [vmem:[#allocation3 + $0x1c] sm:$0x3]
      %v2999 = vld [vmem:[#allocation3 + $0x1e] sm:$0x3]
      %v3001 = vsel %vm660, %v2984, 0
      %3003 = vmatprep.subr.bf16.mxu0 0
      %3004 = vmatpush1.bf16.msra.mxu0 0
      %3005 = vmatprep.subr.bf16.mxu0 0
      %3006 = vmatpush1.bf16.msra.mxu0 0
      %3007 = vmatprep.subr.bf16.mxu0 0
      %3008 = vmatpush1.bf16.msra.mxu0 0
      %3009 = vmatprep.subr.bf16.mxu0 0
      %3010 = vmatpush1.bf16.msra.mxu0 0
      %3011 = vmatprep.subr.bf16.mxu0 0
      %3012 = vmatpush1.bf16.msra.mxu0 0
      %3013 = vmatprep.subr.bf16.mxu0 0
      %3014 = vmatpush1.bf16.msra.mxu0 0
      %3015 = vmatprep.subr.bf16.mxu0 0
      %3016 = vmatpush1.bf16.msra.mxu0 0
      %3017 = vmatprep.subr.bf16.mxu0 0
      %3018 = vmatpush1.bf16.msra.mxu0 %v643
      %3019 = vmatprep.subr.bf16.mxu0 0
      %3020 = vmatpush2.bf16.msra.mxu0 0
      %3021 = vmatprep.subr.bf16.mxu0 0
      %3022 = vmatpush2.bf16.msra.mxu0 0
      %3023 = vmatprep.subr.bf16.mxu0 0
      %3024 = vmatpush2.bf16.msra.mxu0 0
      %3025 = vmatprep.subr.bf16.mxu0 0
      %3026 = vmatpush2.bf16.msra.mxu0 0
      %3027 = vmatprep.subr.bf16.mxu0 0
      %3028 = vmatpush2.bf16.msra.mxu0 0
      %3029 = vmatprep.subr.bf16.mxu0 0
      %3030 = vmatpush2.bf16.msra.mxu0 0
      %3031 = vmatprep.subr.bf16.mxu0 0
      %3032 = vmatpush2.bf16.msra.mxu0 0
      %3033 = vmatprep.subr.bf16.mxu0 0
      %3034 = vmatpush2.bf16.msra.mxu0 0
      %3035 = vmatprep.mubr.bf16.mxu0 0
      %3036 = vmatmul.mubr.bf16.gmra.mxu0 %v3001
      %v3037 = vpop.f32.mrf.mxu0
      %v3038 = vadd.f32 0.0, %v3037
      %v3039 = vpop.f32.mrf.mxu0
      %v3040 = vpop.f32.mrf.mxu0
      %v3041 = vpop.f32.mrf.mxu0
      %3042 = vdwg.mxu0
      %v3044 = vsel %vm660, %v2985, 0
      %3046 = vmatprep.subr.bf16.mxu0 0
      %3047 = vmatpush1.bf16.msra.mxu0 0
      %3048 = vmatprep.subr.bf16.mxu0 0
      %3049 = vmatpush1.bf16.msra.mxu0 0
      %3050 = vmatprep.subr.bf16.mxu0 0
      %3051 = vmatpush1.bf16.msra.mxu0 0
      %3052 = vmatprep.subr.bf16.mxu0 0
      %3053 = vmatpush1.bf16.msra.mxu0 0
      %3054 = vmatprep.subr.bf16.mxu0 0
      %3055 = vmatpush1.bf16.msra.mxu0 0
      %3056 = vmatprep.subr.bf16.mxu0 0
      %3057 = vmatpush1.bf16.msra.mxu0 0
      %3058 = vmatprep.subr.bf16.mxu0 0
      %3059 = vmatpush1.bf16.msra.mxu0 0
      %3060 = vmatprep.subr.bf16.mxu0 0
      %3061 = vmatpush1.bf16.msra.mxu0 %v644
      %3062 = vmatprep.subr.bf16.mxu0 0
      %3063 = vmatpush2.bf16.msra.mxu0 0
      %3064 = vmatprep.subr.bf16.mxu0 0
      %3065 = vmatpush2.bf16.msra.mxu0 0
      %3066 = vmatprep.subr.bf16.mxu0 0
      %3067 = vmatpush2.bf16.msra.mxu0 0
      %3068 = vmatprep.subr.bf16.mxu0 0
      %3069 = vmatpush2.bf16.msra.mxu0 0
      %3070 = vmatprep.subr.bf16.mxu0 0
      %3071 = vmatpush2.bf16.msra.mxu0 0
      %3072 = vmatprep.subr.bf16.mxu0 0
      %3073 = vmatpush2.bf16.msra.mxu0 0
      %3074 = vmatprep.subr.bf16.mxu0 0
      %3075 = vmatpush2.bf16.msra.mxu0 0
      %3076 = vmatprep.subr.bf16.mxu0 0
      %3077 = vmatpush2.bf16.msra.mxu0 0
      %3078 = vmatprep.mubr.bf16.mxu0 0
      %3079 = vmatmul.mubr.bf16.gmra.mxu0 %v3044
      %v3080 = vpop.f32.mrf.mxu0
      %v3081 = vadd.f32 0.0, %v3080
      %v3082 = vpop.f32.mrf.mxu0
      %v3083 = vpop.f32.mrf.mxu0
      %v3084 = vpop.f32.mrf.mxu0
      %3085 = vdwg.mxu0
      %v3087 = vsel %vm660, %v2986, 0
      %3089 = vmatprep.subr.bf16.mxu0 0
      %3090 = vmatpush1.bf16.msra.mxu0 0
      %3091 = vmatprep.subr.bf16.mxu0 0
      %3092 = vmatpush1.bf16.msra.mxu0 0
      %3093 = vmatprep.subr.bf16.mxu0 0
      %3094 = vmatpush1.bf16.msra.mxu0 0
      %3095 = vmatprep.subr.bf16.mxu0 0
      %3096 = vmatpush1.bf16.msra.mxu0 0
      %3097 = vmatprep.subr.bf16.mxu0 0
      %3098 = vmatpush1.bf16.msra.mxu0 0
      %3099 = vmatprep.subr.bf16.mxu0 0
      %3100 = vmatpush1.bf16.msra.mxu0 0
      %3101 = vmatprep.subr.bf16.mxu0 0
      %3102 = vmatpush1.bf16.msra.mxu0 0
      %3103 = vmatprep.subr.bf16.mxu0 0
      %3104 = vmatpush1.bf16.msra.mxu0 %v645
      %3105 = vmatprep.subr.bf16.mxu0 0
      %3106 = vmatpush2.bf16.msra.mxu0 0
      %3107 = vmatprep.subr.bf16.mxu0 0
      %3108 = vmatpush2.bf16.msra.mxu0 0
      %3109 = vmatprep.subr.bf16.mxu0 0
      %3110 = vmatpush2.bf16.msra.mxu0 0
      %3111 = vmatprep.subr.bf16.mxu0 0
      %3112 = vmatpush2.bf16.msra.mxu0 0
      %3113 = vmatprep.subr.bf16.mxu0 0
      %3114 = vmatpush2.bf16.msra.mxu0 0
      %3115 = vmatprep.subr.bf16.mxu0 0
      %3116 = vmatpush2.bf16.msra.mxu0 0
      %3117 = vmatprep.subr.bf16.mxu0 0
      %3118 = vmatpush2.bf16.msra.mxu0 0
      %3119 = vmatprep.subr.bf16.mxu0 0
      %3120 = vmatpush2.bf16.msra.mxu0 0
      %3121 = vmatprep.mubr.bf16.mxu0 0
      %3122 = vmatmul.mubr.bf16.gmra.mxu0 %v3087
      %v3123 = vpop.f32.mrf.mxu0
      %v3124 = vadd.f32 0.0, %v3123
      %v3125 = vpop.f32.mrf.mxu0
      %v3126 = vpop.f32.mrf.mxu0
      %v3127 = vpop.f32.mrf.mxu0
      %3128 = vdwg.mxu0
      %v3130 = vsel %vm660, %v2987, 0
      %3132 = vmatprep.subr.bf16.mxu0 0
      %3133 = vmatpush1.bf16.msra.mxu0 0
      %3134 = vmatprep.subr.bf16.mxu0 0
      %3135 = vmatpush1.bf16.msra.mxu0 0
      %3136 = vmatprep.subr.bf16.mxu0 0
      %3137 = vmatpush1.bf16.msra.mxu0 0
      %3138 = vmatprep.subr.bf16.mxu0 0
      %3139 = vmatpush1.bf16.msra.mxu0 0
      %3140 = vmatprep.subr.bf16.mxu0 0
      %3141 = vmatpush1.bf16.msra.mxu0 0
      %3142 = vmatprep.subr.bf16.mxu0 0
      %3143 = vmatpush1.bf16.msra.mxu0 0
      %3144 = vmatprep.subr.bf16.mxu0 0
      %3145 = vmatpush1.bf16.msra.mxu0 0
      %3146 = vmatprep.subr.bf16.mxu0 0
      %3147 = vmatpush1.bf16.msra.mxu0 %v646
      %3148 = vmatprep.subr.bf16.mxu0 0
      %3149 = vmatpush2.bf16.msra.mxu0 0
      %3150 = vmatprep.subr.bf16.mxu0 0
      %3151 = vmatpush2.bf16.msra.mxu0 0
      %3152 = vmatprep.subr.bf16.mxu0 0
      %3153 = vmatpush2.bf16.msra.mxu0 0
      %3154 = vmatprep.subr.bf16.mxu0 0
      %3155 = vmatpush2.bf16.msra.mxu0 0
      %3156 = vmatprep.subr.bf16.mxu0 0
      %3157 = vmatpush2.bf16.msra.mxu0 0
      %3158 = vmatprep.subr.bf16.mxu0 0
      %3159 = vmatpush2.bf16.msra.mxu0 0
      %3160 = vmatprep.subr.bf16.mxu0 0
      %3161 = vmatpush2.bf16.msra.mxu0 0
      %3162 = vmatprep.subr.bf16.mxu0 0
      %3163 = vmatpush2.bf16.msra.mxu0 0
      %3164 = vmatprep.mubr.bf16.mxu0 0
      %3165 = vmatmul.mubr.bf16.gmra.mxu0 %v3130
      %v3166 = vpop.f32.mrf.mxu0
      %v3167 = vadd.f32 0.0, %v3166
      %v3168 = vpop.f32.mrf.mxu0
      %v3169 = vpop.f32.mrf.mxu0
      %v3170 = vpop.f32.mrf.mxu0
      %3171 = vdwg.mxu0
      %v3173 = vsel %vm660, %v2988, 0
      %3175 = vmatprep.subr.bf16.mxu0 0
      %3176 = vmatpush1.bf16.msra.mxu0 0
      %3177 = vmatprep.subr.bf16.mxu0 0
      %3178 = vmatpush1.bf16.msra.mxu0 0
      %3179 = vmatprep.subr.bf16.mxu0 0
      %3180 = vmatpush1.bf16.msra.mxu0 0
      %3181 = vmatprep.subr.bf16.mxu0 0
      %3182 = vmatpush1.bf16.msra.mxu0 0
      %3183 = vmatprep.subr.bf16.mxu0 0
      %3184 = vmatpush1.bf16.msra.mxu0 0
      %3185 = vmatprep.subr.bf16.mxu0 0
      %3186 = vmatpush1.bf16.msra.mxu0 0
      %3187 = vmatprep.subr.bf16.mxu0 0
      %3188 = vmatpush1.bf16.msra.mxu0 0
      %3189 = vmatprep.subr.bf16.mxu0 0
      %3190 = vmatpush1.bf16.msra.mxu0 %v647
      %3191 = vmatprep.subr.bf16.mxu0 0
      %3192 = vmatpush2.bf16.msra.mxu0 0
      %3193 = vmatprep.subr.bf16.mxu0 0
      %3194 = vmatpush2.bf16.msra.mxu0 0
      %3195 = vmatprep.subr.bf16.mxu0 0
      %3196 = vmatpush2.bf16.msra.mxu0 0
      %3197 = vmatprep.subr.bf16.mxu0 0
      %3198 = vmatpush2.bf16.msra.mxu0 0
      %3199 = vmatprep.subr.bf16.mxu0 0
      %3200 = vmatpush2.bf16.msra.mxu0 0
      %3201 = vmatprep.subr.bf16.mxu0 0
      %3202 = vmatpush2.bf16.msra.mxu0 0
      %3203 = vmatprep.subr.bf16.mxu0 0
      %3204 = vmatpush2.bf16.msra.mxu0 0
      %3205 = vmatprep.subr.bf16.mxu0 0
      %3206 = vmatpush2.bf16.msra.mxu0 0
      %3207 = vmatprep.mubr.bf16.mxu0 0
      %3208 = vmatmul.mubr.bf16.gmra.mxu0 %v3173
      %v3209 = vpop.f32.mrf.mxu0
      %v3210 = vadd.f32 0.0, %v3209
      %v3211 = vpop.f32.mrf.mxu0
      %v3212 = vpop.f32.mrf.mxu0
      %v3213 = vpop.f32.mrf.mxu0
      %3214 = vdwg.mxu0
      %v3216 = vsel %vm660, %v2989, 0
      %3218 = vmatprep.subr.bf16.mxu0 0
      %3219 = vmatpush1.bf16.msra.mxu0 0
      %3220 = vmatprep.subr.bf16.mxu0 0
      %3221 = vmatpush1.bf16.msra.mxu0 0
      %3222 = vmatprep.subr.bf16.mxu0 0
      %3223 = vmatpush1.bf16.msra.mxu0 0
      %3224 = vmatprep.subr.bf16.mxu0 0
      %3225 = vmatpush1.bf16.msra.mxu0 0
      %3226 = vmatprep.subr.bf16.mxu0 0
      %3227 = vmatpush1.bf16.msra.mxu0 0
      %3228 = vmatprep.subr.bf16.mxu0 0
      %3229 = vmatpush1.bf16.msra.mxu0 0
      %3230 = vmatprep.subr.bf16.mxu0 0
      %3231 = vmatpush1.bf16.msra.mxu0 0
      %3232 = vmatprep.subr.bf16.mxu0 0
      %3233 = vmatpush1.bf16.msra.mxu0 %v648
      %3234 = vmatprep.subr.bf16.mxu0 0
      %3235 = vmatpush2.bf16.msra.mxu0 0
      %3236 = vmatprep.subr.bf16.mxu0 0
      %3237 = vmatpush2.bf16.msra.mxu0 0
      %3238 = vmatprep.subr.bf16.mxu0 0
      %3239 = vmatpush2.bf16.msra.mxu0 0
      %3240 = vmatprep.subr.bf16.mxu0 0
      %3241 = vmatpush2.bf16.msra.mxu0 0
      %3242 = vmatprep.subr.bf16.mxu0 0
      %3243 = vmatpush2.bf16.msra.mxu0 0
      %3244 = vmatprep.subr.bf16.mxu0 0
      %3245 = vmatpush2.bf16.msra.mxu0 0
      %3246 = vmatprep.subr.bf16.mxu0 0
      %3247 = vmatpush2.bf16.msra.mxu0 0
      %3248 = vmatprep.subr.bf16.mxu0 0
      %3249 = vmatpush2.bf16.msra.mxu0 0
      %3250 = vmatprep.mubr.bf16.mxu0 0
      %3251 = vmatmul.mubr.bf16.gmra.mxu0 %v3216
      %v3252 = vpop.f32.mrf.mxu0
      %v3253 = vadd.f32 0.0, %v3252
      %v3254 = vpop.f32.mrf.mxu0
      %v3255 = vpop.f32.mrf.mxu0
      %v3256 = vpop.f32.mrf.mxu0
      %3257 = vdwg.mxu0
      %v3259 = vsel %vm660, %v2990, 0
      %3261 = vmatprep.subr.bf16.mxu0 0
      %3262 = vmatpush1.bf16.msra.mxu0 0
      %3263 = vmatprep.subr.bf16.mxu0 0
      %3264 = vmatpush1.bf16.msra.mxu0 0
      %3265 = vmatprep.subr.bf16.mxu0 0
      %3266 = vmatpush1.bf16.msra.mxu0 0
      %3267 = vmatprep.subr.bf16.mxu0 0
      %3268 = vmatpush1.bf16.msra.mxu0 0
      %3269 = vmatprep.subr.bf16.mxu0 0
      %3270 = vmatpush1.bf16.msra.mxu0 0
      %3271 = vmatprep.subr.bf16.mxu0 0
      %3272 = vmatpush1.bf16.msra.mxu0 0
      %3273 = vmatprep.subr.bf16.mxu0 0
      %3274 = vmatpush1.bf16.msra.mxu0 0
      %3275 = vmatprep.subr.bf16.mxu0 0
      %3276 = vmatpush1.bf16.msra.mxu0 %v649
      %3277 = vmatprep.subr.bf16.mxu0 0
      %3278 = vmatpush2.bf16.msra.mxu0 0
      %3279 = vmatprep.subr.bf16.mxu0 0
      %3280 = vmatpush2.bf16.msra.mxu0 0
      %3281 = vmatprep.subr.bf16.mxu0 0
      %3282 = vmatpush2.bf16.msra.mxu0 0
      %3283 = vmatprep.subr.bf16.mxu0 0
      %3284 = vmatpush2.bf16.msra.mxu0 0
      %3285 = vmatprep.subr.bf16.mxu0 0
      %3286 = vmatpush2.bf16.msra.mxu0 0
      %3287 = vmatprep.subr.bf16.mxu0 0
      %3288 = vmatpush2.bf16.msra.mxu0 0
      %3289 = vmatprep.subr.bf16.mxu0 0
      %3290 = vmatpush2.bf16.msra.mxu0 0
      %3291 = vmatprep.subr.bf16.mxu0 0
      %3292 = vmatpush2.bf16.msra.mxu0 0
      %3293 = vmatprep.mubr.bf16.mxu0 0
      %3294 = vmatmul.mubr.bf16.gmra.mxu0 %v3259
      %v3295 = vpop.f32.mrf.mxu0
      %v3296 = vadd.f32 0.0, %v3295
      %v3297 = vpop.f32.mrf.mxu0
      %v3298 = vpop.f32.mrf.mxu0
      %v3299 = vpop.f32.mrf.mxu0
      %3300 = vdwg.mxu0
      %v3302 = vsel %vm660, %v2991, 0
      %3304 = vmatprep.subr.bf16.mxu0 0
      %3305 = vmatpush1.bf16.msra.mxu0 0
      %3306 = vmatprep.subr.bf16.mxu0 0
      %3307 = vmatpush1.bf16.msra.mxu0 0
      %3308 = vmatprep.subr.bf16.mxu0 0
      %3309 = vmatpush1.bf16.msra.mxu0 0
      %3310 = vmatprep.subr.bf16.mxu0 0
      %3311 = vmatpush1.bf16.msra.mxu0 0
      %3312 = vmatprep.subr.bf16.mxu0 0
      %3313 = vmatpush1.bf16.msra.mxu0 0
      %3314 = vmatprep.subr.bf16.mxu0 0
      %3315 = vmatpush1.bf16.msra.mxu0 0
      %3316 = vmatprep.subr.bf16.mxu0 0
      %3317 = vmatpush1.bf16.msra.mxu0 0
      %3318 = vmatprep.subr.bf16.mxu0 0
      %3319 = vmatpush1.bf16.msra.mxu0 %v650
      %3320 = vmatprep.subr.bf16.mxu0 0
      %3321 = vmatpush2.bf16.msra.mxu0 0
      %3322 = vmatprep.subr.bf16.mxu0 0
      %3323 = vmatpush2.bf16.msra.mxu0 0
      %3324 = vmatprep.subr.bf16.mxu0 0
      %3325 = vmatpush2.bf16.msra.mxu0 0
      %3326 = vmatprep.subr.bf16.mxu0 0
      %3327 = vmatpush2.bf16.msra.mxu0 0
      %3328 = vmatprep.subr.bf16.mxu0 0
      %3329 = vmatpush2.bf16.msra.mxu0 0
      %3330 = vmatprep.subr.bf16.mxu0 0
      %3331 = vmatpush2.bf16.msra.mxu0 0
      %3332 = vmatprep.subr.bf16.mxu0 0
      %3333 = vmatpush2.bf16.msra.mxu0 0
      %3334 = vmatprep.subr.bf16.mxu0 0
      %3335 = vmatpush2.bf16.msra.mxu0 0
      %3336 = vmatprep.mubr.bf16.mxu0 0
      %3337 = vmatmul.mubr.bf16.gmra.mxu0 %v3302
      %v3338 = vpop.f32.mrf.mxu0
      %v3339 = vadd.f32 0.0, %v3338
      %v3340 = vpop.f32.mrf.mxu0
      %v3341 = vpop.f32.mrf.mxu0
      %v3342 = vpop.f32.mrf.mxu0
      %3343 = vdwg.mxu0
      %v3345 = vsel %vm660, %v2992, 0
      %3347 = vmatprep.subr.bf16.mxu0 0
      %3348 = vmatpush1.bf16.msra.mxu0 0
      %3349 = vmatprep.subr.bf16.mxu0 0
      %3350 = vmatpush1.bf16.msra.mxu0 0
      %3351 = vmatprep.subr.bf16.mxu0 0
      %3352 = vmatpush1.bf16.msra.mxu0 0
      %3353 = vmatprep.subr.bf16.mxu0 0
      %3354 = vmatpush1.bf16.msra.mxu0 0
      %3355 = vmatprep.subr.bf16.mxu0 0
      %3356 = vmatpush1.bf16.msra.mxu0 0
      %3357 = vmatprep.subr.bf16.mxu0 0
      %3358 = vmatpush1.bf16.msra.mxu0 0
      %3359 = vmatprep.subr.bf16.mxu0 0
      %3360 = vmatpush1.bf16.msra.mxu0 0
      %3361 = vmatprep.subr.bf16.mxu0 0
      %3362 = vmatpush1.bf16.msra.mxu0 %v651
      %3363 = vmatprep.subr.bf16.mxu0 0
      %3364 = vmatpush2.bf16.msra.mxu0 0
      %3365 = vmatprep.subr.bf16.mxu0 0
      %3366 = vmatpush2.bf16.msra.mxu0 0
      %3367 = vmatprep.subr.bf16.mxu0 0
      %3368 = vmatpush2.bf16.msra.mxu0 0
      %3369 = vmatprep.subr.bf16.mxu0 0
      %3370 = vmatpush2.bf16.msra.mxu0 0
      %3371 = vmatprep.subr.bf16.mxu0 0
      %3372 = vmatpush2.bf16.msra.mxu0 0
      %3373 = vmatprep.subr.bf16.mxu0 0
      %3374 = vmatpush2.bf16.msra.mxu0 0
      %3375 = vmatprep.subr.bf16.mxu0 0
      %3376 = vmatpush2.bf16.msra.mxu0 0
      %3377 = vmatprep.subr.bf16.mxu0 0
      %3378 = vmatpush2.bf16.msra.mxu0 0
      %3379 = vmatprep.mubr.bf16.mxu0 0
      %3380 = vmatmul.mubr.bf16.gmra.mxu0 %v3345
      %v3381 = vpop.f32.mrf.mxu0
      %v3382 = vadd.f32 0.0, %v3381
      %v3383 = vpop.f32.mrf.mxu0
      %v3384 = vpop.f32.mrf.mxu0
      %v3385 = vpop.f32.mrf.mxu0
      %3386 = vdwg.mxu0
      %v3388 = vsel %vm660, %v2993, 0
      %3390 = vmatprep.subr.bf16.mxu0 0
      %3391 = vmatpush1.bf16.msra.mxu0 0
      %3392 = vmatprep.subr.bf16.mxu0 0
      %3393 = vmatpush1.bf16.msra.mxu0 0
      %3394 = vmatprep.subr.bf16.mxu0 0
      %3395 = vmatpush1.bf16.msra.mxu0 0
      %3396 = vmatprep.subr.bf16.mxu0 0
      %3397 = vmatpush1.bf16.msra.mxu0 0
      %3398 = vmatprep.subr.bf16.mxu0 0
      %3399 = vmatpush1.bf16.msra.mxu0 0
      %3400 = vmatprep.subr.bf16.mxu0 0
      %3401 = vmatpush1.bf16.msra.mxu0 0
      %3402 = vmatprep.subr.bf16.mxu0 0
      %3403 = vmatpush1.bf16.msra.mxu0 0
      %3404 = vmatprep.subr.bf16.mxu0 0
      %3405 = vmatpush1.bf16.msra.mxu0 %v652
      %3406 = vmatprep.subr.bf16.mxu0 0
      %3407 = vmatpush2.bf16.msra.mxu0 0
      %3408 = vmatprep.subr.bf16.mxu0 0
      %3409 = vmatpush2.bf16.msra.mxu0 0
      %3410 = vmatprep.subr.bf16.mxu0 0
      %3411 = vmatpush2.bf16.msra.mxu0 0
      %3412 = vmatprep.subr.bf16.mxu0 0
      %3413 = vmatpush2.bf16.msra.mxu0 0
      %3414 = vmatprep.subr.bf16.mxu0 0
      %3415 = vmatpush2.bf16.msra.mxu0 0
      %3416 = vmatprep.subr.bf16.mxu0 0
      %3417 = vmatpush2.bf16.msra.mxu0 0
      %3418 = vmatprep.subr.bf16.mxu0 0
      %3419 = vmatpush2.bf16.msra.mxu0 0
      %3420 = vmatprep.subr.bf16.mxu0 0
      %3421 = vmatpush2.bf16.msra.mxu0 0
      %3422 = vmatprep.mubr.bf16.mxu0 0
      %3423 = vmatmul.mubr.bf16.gmra.mxu0 %v3388
      %v3424 = vpop.f32.mrf.mxu0
      %v3425 = vadd.f32 0.0, %v3424
      %v3426 = vpop.f32.mrf.mxu0
      %v3427 = vpop.f32.mrf.mxu0
      %v3428 = vpop.f32.mrf.mxu0
      %3429 = vdwg.mxu0
      %v3431 = vsel %vm660, %v2994, 0
      %3433 = vmatprep.subr.bf16.mxu0 0
      %3434 = vmatpush1.bf16.msra.mxu0 0
      %3435 = vmatprep.subr.bf16.mxu0 0
      %3436 = vmatpush1.bf16.msra.mxu0 0
      %3437 = vmatprep.subr.bf16.mxu0 0
      %3438 = vmatpush1.bf16.msra.mxu0 0
      %3439 = vmatprep.subr.bf16.mxu0 0
      %3440 = vmatpush1.bf16.msra.mxu0 0
      %3441 = vmatprep.subr.bf16.mxu0 0
      %3442 = vmatpush1.bf16.msra.mxu0 0
      %3443 = vmatprep.subr.bf16.mxu0 0
      %3444 = vmatpush1.bf16.msra.mxu0 0
      %3445 = vmatprep.subr.bf16.mxu0 0
      %3446 = vmatpush1.bf16.msra.mxu0 0
      %3447 = vmatprep.subr.bf16.mxu0 0
      %3448 = vmatpush1.bf16.msra.mxu0 %v653
      %3449 = vmatprep.subr.bf16.mxu0 0
      %3450 = vmatpush2.bf16.msra.mxu0 0
      %3451 = vmatprep.subr.bf16.mxu0 0
      %3452 = vmatpush2.bf16.msra.mxu0 0
      %3453 = vmatprep.subr.bf16.mxu0 0
      %3454 = vmatpush2.bf16.msra.mxu0 0
      %3455 = vmatprep.subr.bf16.mxu0 0
      %3456 = vmatpush2.bf16.msra.mxu0 0
      %3457 = vmatprep.subr.bf16.mxu0 0
      %3458 = vmatpush2.bf16.msra.mxu0 0
      %3459 = vmatprep.subr.bf16.mxu0 0
      %3460 = vmatpush2.bf16.msra.mxu0 0
      %3461 = vmatprep.subr.bf16.mxu0 0
      %3462 = vmatpush2.bf16.msra.mxu0 0
      %3463 = vmatprep.subr.bf16.mxu0 0
      %3464 = vmatpush2.bf16.msra.mxu0 0
      %3465 = vmatprep.mubr.bf16.mxu0 0
      %3466 = vmatmul.mubr.bf16.gmra.mxu0 %v3431
      %v3467 = vpop.f32.mrf.mxu0
      %v3468 = vadd.f32 0.0, %v3467
      %v3469 = vpop.f32.mrf.mxu0
      %v3470 = vpop.f32.mrf.mxu0
      %v3471 = vpop.f32.mrf.mxu0
      %3472 = vdwg.mxu0
      %v3474 = vsel %vm660, %v2995, 0
      %3476 = vmatprep.subr.bf16.mxu0 0
      %3477 = vmatpush1.bf16.msra.mxu0 0
      %3478 = vmatprep.subr.bf16.mxu0 0
      %3479 = vmatpush1.bf16.msra.mxu0 0
      %3480 = vmatprep.subr.bf16.mxu0 0
      %3481 = vmatpush1.bf16.msra.mxu0 0
      %3482 = vmatprep.subr.bf16.mxu0 0
      %3483 = vmatpush1.bf16.msra.mxu0 0
      %3484 = vmatprep.subr.bf16.mxu0 0
      %3485 = vmatpush1.bf16.msra.mxu0 0
      %3486 = vmatprep.subr.bf16.mxu0 0
      %3487 = vmatpush1.bf16.msra.mxu0 0
      %3488 = vmatprep.subr.bf16.mxu0 0
      %3489 = vmatpush1.bf16.msra.mxu0 0
      %3490 = vmatprep.subr.bf16.mxu0 0
      %3491 = vmatpush1.bf16.msra.mxu0 %v654
      %3492 = vmatprep.subr.bf16.mxu0 0
      %3493 = vmatpush2.bf16.msra.mxu0 0
      %3494 = vmatprep.subr.bf16.mxu0 0
      %3495 = vmatpush2.bf16.msra.mxu0 0
      %3496 = vmatprep.subr.bf16.mxu0 0
      %3497 = vmatpush2.bf16.msra.mxu0 0
      %3498 = vmatprep.subr.bf16.mxu0 0
      %3499 = vmatpush2.bf16.msra.mxu0 0
      %3500 = vmatprep.subr.bf16.mxu0 0
      %3501 = vmatpush2.bf16.msra.mxu0 0
      %3502 = vmatprep.subr.bf16.mxu0 0
      %3503 = vmatpush2.bf16.msra.mxu0 0
      %3504 = vmatprep.subr.bf16.mxu0 0
      %3505 = vmatpush2.bf16.msra.mxu0 0
      %3506 = vmatprep.subr.bf16.mxu0 0
      %3507 = vmatpush2.bf16.msra.mxu0 0
      %3508 = vmatprep.mubr.bf16.mxu0 0
      %3509 = vmatmul.mubr.bf16.gmra.mxu0 %v3474
      %v3510 = vpop.f32.mrf.mxu0
      %v3511 = vadd.f32 0.0, %v3510
      %v3512 = vpop.f32.mrf.mxu0
      %v3513 = vpop.f32.mrf.mxu0
      %v3514 = vpop.f32.mrf.mxu0
      %3515 = vdwg.mxu0
      %v3517 = vsel %vm660, %v2996, 0
      %3519 = vmatprep.subr.bf16.mxu0 0
      %3520 = vmatpush1.bf16.msra.mxu0 0
      %3521 = vmatprep.subr.bf16.mxu0 0
      %3522 = vmatpush1.bf16.msra.mxu0 0
      %3523 = vmatprep.subr.bf16.mxu0 0
      %3524 = vmatpush1.bf16.msra.mxu0 0
      %3525 = vmatprep.subr.bf16.mxu0 0
      %3526 = vmatpush1.bf16.msra.mxu0 0
      %3527 = vmatprep.subr.bf16.mxu0 0
      %3528 = vmatpush1.bf16.msra.mxu0 0
      %3529 = vmatprep.subr.bf16.mxu0 0
      %3530 = vmatpush1.bf16.msra.mxu0 0
      %3531 = vmatprep.subr.bf16.mxu0 0
      %3532 = vmatpush1.bf16.msra.mxu0 0
      %3533 = vmatprep.subr.bf16.mxu0 0
      %3534 = vmatpush1.bf16.msra.mxu0 %v655
      %3535 = vmatprep.subr.bf16.mxu0 0
      %3536 = vmatpush2.bf16.msra.mxu0 0
      %3537 = vmatprep.subr.bf16.mxu0 0
      %3538 = vmatpush2.bf16.msra.mxu0 0
      %3539 = vmatprep.subr.bf16.mxu0 0
      %3540 = vmatpush2.bf16.msra.mxu0 0
      %3541 = vmatprep.subr.bf16.mxu0 0
      %3542 = vmatpush2.bf16.msra.mxu0 0
      %3543 = vmatprep.subr.bf16.mxu0 0
      %3544 = vmatpush2.bf16.msra.mxu0 0
      %3545 = vmatprep.subr.bf16.mxu0 0
      %3546 = vmatpush2.bf16.msra.mxu0 0
      %3547 = vmatprep.subr.bf16.mxu0 0
      %3548 = vmatpush2.bf16.msra.mxu0 0
      %3549 = vmatprep.subr.bf16.mxu0 0
      %3550 = vmatpush2.bf16.msra.mxu0 0
      %3551 = vmatprep.mubr.bf16.mxu0 0
      %3552 = vmatmul.mubr.bf16.gmra.mxu0 %v3517
      %v3553 = vpop.f32.mrf.mxu0
      %v3554 = vadd.f32 0.0, %v3553
      %v3555 = vpop.f32.mrf.mxu0
      %v3556 = vpop.f32.mrf.mxu0
      %v3557 = vpop.f32.mrf.mxu0
      %3558 = vdwg.mxu0
      %v3560 = vsel %vm660, %v2997, 0
      %3562 = vmatprep.subr.bf16.mxu0 0
      %3563 = vmatpush1.bf16.msra.mxu0 0
      %3564 = vmatprep.subr.bf16.mxu0 0
      %3565 = vmatpush1.bf16.msra.mxu0 0
      %3566 = vmatprep.subr.bf16.mxu0 0
      %3567 = vmatpush1.bf16.msra.mxu0 0
      %3568 = vmatprep.subr.bf16.mxu0 0
      %3569 = vmatpush1.bf16.msra.mxu0 0
      %3570 = vmatprep.subr.bf16.mxu0 0
      %3571 = vmatpush1.bf16.msra.mxu0 0
      %3572 = vmatprep.subr.bf16.mxu0 0
      %3573 = vmatpush1.bf16.msra.mxu0 0
      %3574 = vmatprep.subr.bf16.mxu0 0
      %3575 = vmatpush1.bf16.msra.mxu0 0
      %3576 = vmatprep.subr.bf16.mxu0 0
      %3577 = vmatpush1.bf16.msra.mxu0 %v656
      %3578 = vmatprep.subr.bf16.mxu0 0
      %3579 = vmatpush2.bf16.msra.mxu0 0
      %3580 = vmatprep.subr.bf16.mxu0 0
      %3581 = vmatpush2.bf16.msra.mxu0 0
      %3582 = vmatprep.subr.bf16.mxu0 0
      %3583 = vmatpush2.bf16.msra.mxu0 0
      %3584 = vmatprep.subr.bf16.mxu0 0
      %3585 = vmatpush2.bf16.msra.mxu0 0
      %3586 = vmatprep.subr.bf16.mxu0 0
      %3587 = vmatpush2.bf16.msra.mxu0 0
      %3588 = vmatprep.subr.bf16.mxu0 0
      %3589 = vmatpush2.bf16.msra.mxu0 0
      %3590 = vmatprep.subr.bf16.mxu0 0
      %3591 = vmatpush2.bf16.msra.mxu0 0
      %3592 = vmatprep.subr.bf16.mxu0 0
      %3593 = vmatpush2.bf16.msra.mxu0 0
      %3594 = vmatprep.mubr.bf16.mxu0 0
      %3595 = vmatmul.mubr.bf16.gmra.mxu0 %v3560
      %v3596 = vpop.f32.mrf.mxu0
      %v3597 = vadd.f32 0.0, %v3596
      %v3598 = vpop.f32.mrf.mxu0
      %v3599 = vpop.f32.mrf.mxu0
      %v3600 = vpop.f32.mrf.mxu0
      %3601 = vdwg.mxu0
      %v3603 = vsel %vm660, %v2998, 0
      %3605 = vmatprep.subr.bf16.mxu0 0
      %3606 = vmatpush1.bf16.msra.mxu0 0
      %3607 = vmatprep.subr.bf16.mxu0 0
      %3608 = vmatpush1.bf16.msra.mxu0 0
      %3609 = vmatprep.subr.bf16.mxu0 0
      %3610 = vmatpush1.bf16.msra.mxu0 0
      %3611 = vmatprep.subr.bf16.mxu0 0
      %3612 = vmatpush1.bf16.msra.mxu0 0
      %3613 = vmatprep.subr.bf16.mxu0 0
      %3614 = vmatpush1.bf16.msra.mxu0 0
      %3615 = vmatprep.subr.bf16.mxu0 0
      %3616 = vmatpush1.bf16.msra.mxu0 0
      %3617 = vmatprep.subr.bf16.mxu0 0
      %3618 = vmatpush1.bf16.msra.mxu0 0
      %3619 = vmatprep.subr.bf16.mxu0 0
      %3620 = vmatpush1.bf16.msra.mxu0 %v657
      %3621 = vmatprep.subr.bf16.mxu0 0
      %3622 = vmatpush2.bf16.msra.mxu0 0
      %3623 = vmatprep.subr.bf16.mxu0 0
      %3624 = vmatpush2.bf16.msra.mxu0 0
      %3625 = vmatprep.subr.bf16.mxu0 0
      %3626 = vmatpush2.bf16.msra.mxu0 0
      %3627 = vmatprep.subr.bf16.mxu0 0
      %3628 = vmatpush2.bf16.msra.mxu0 0
      %3629 = vmatprep.subr.bf16.mxu0 0
      %3630 = vmatpush2.bf16.msra.mxu0 0
      %3631 = vmatprep.subr.bf16.mxu0 0
      %3632 = vmatpush2.bf16.msra.mxu0 0
      %3633 = vmatprep.subr.bf16.mxu0 0
      %3634 = vmatpush2.bf16.msra.mxu0 0
      %3635 = vmatprep.subr.bf16.mxu0 0
      %3636 = vmatpush2.bf16.msra.mxu0 0
      %3637 = vmatprep.mubr.bf16.mxu0 0
      %3638 = vmatmul.mubr.bf16.gmra.mxu0 %v3603
      %v3639 = vpop.f32.mrf.mxu0
      %v3640 = vadd.f32 0.0, %v3639
      %v3641 = vpop.f32.mrf.mxu0
      %v3642 = vpop.f32.mrf.mxu0
      %v3643 = vpop.f32.mrf.mxu0
      %3644 = vdwg.mxu0
      %v3646 = vsel %vm660, %v2999, 0
      %3648 = vmatprep.subr.bf16.mxu0 0
      %3649 = vmatpush1.bf16.msra.mxu0 0
      %3650 = vmatprep.subr.bf16.mxu0 0
      %3651 = vmatpush1.bf16.msra.mxu0 0
      %3652 = vmatprep.subr.bf16.mxu0 0
      %3653 = vmatpush1.bf16.msra.mxu0 0
      %3654 = vmatprep.subr.bf16.mxu0 0
      %3655 = vmatpush1.bf16.msra.mxu0 0
      %3656 = vmatprep.subr.bf16.mxu0 0
      %3657 = vmatpush1.bf16.msra.mxu0 0
      %3658 = vmatprep.subr.bf16.mxu0 0
      %3659 = vmatpush1.bf16.msra.mxu0 0
      %3660 = vmatprep.subr.bf16.mxu0 0
      %3661 = vmatpush1.bf16.msra.mxu0 0
      %3662 = vmatprep.subr.bf16.mxu0 0
      %3663 = vmatpush1.bf16.msra.mxu0 %v658
      %3664 = vmatprep.subr.bf16.mxu0 0
      %3665 = vmatpush2.bf16.msra.mxu0 0
      %3666 = vmatprep.subr.bf16.mxu0 0
      %3667 = vmatpush2.bf16.msra.mxu0 0
      %3668 = vmatprep.subr.bf16.mxu0 0
      %3669 = vmatpush2.bf16.msra.mxu0 0
      %3670 = vmatprep.subr.bf16.mxu0 0
      %3671 = vmatpush2.bf16.msra.mxu0 0
      %3672 = vmatprep.subr.bf16.mxu0 0
      %3673 = vmatpush2.bf16.msra.mxu0 0
      %3674 = vmatprep.subr.bf16.mxu0 0
      %3675 = vmatpush2.bf16.msra.mxu0 0
      %3676 = vmatprep.subr.bf16.mxu0 0
      %3677 = vmatpush2.bf16.msra.mxu0 0
      %3678 = vmatprep.subr.bf16.mxu0 0
      %3679 = vmatpush2.bf16.msra.mxu0 0
      %3680 = vmatprep.mubr.bf16.mxu0 0
      %3681 = vmatmul.mubr.bf16.gmra.mxu0 %v3646
      %v3682 = vpop.f32.mrf.mxu0
      %v3683 = vadd.f32 0.0, %v3682
      %v3684 = vpop.f32.mrf.mxu0
      %v3685 = vpop.f32.mrf.mxu0
      %v3686 = vpop.f32.mrf.mxu0
      %3687 = vdwg.mxu0
      %v3688 = vcombine.low %v3038, %v3124
      %v3690 = vunpack.c.l.s4 1983009808
      %v3691 = vunpack.c.0.s8 %v3690
      %v3692 = vlaneseq
      %v3693 = vshrl.u32 %v3692, 7
      %v3694 = vsub.s32 %v3691, %v3693
      %v3695 = vrot.slane %v3688, %v3694
      %v3696 = vcombine.low %v3081, %v3167
      %v3698 = vunpack.c.l.s4 1983009808
      %v3699 = vunpack.c.0.s8 %v3698
      %v3700 = vlaneseq
      %v3701 = vshrl.u32 %v3700, 7
      %v3702 = vsub.s32 %v3699, %v3701
      %v3703 = vrot.slane %v3696, %v3702
      %v3704 = vcombine.low %v3210, %v3296
      %v3706 = vunpack.c.l.s4 1983009808
      %v3707 = vunpack.c.0.s8 %v3706
      %v3708 = vlaneseq
      %v3709 = vshrl.u32 %v3708, 7
      %v3710 = vsub.s32 %v3707, %v3709
      %v3711 = vrot.slane %v3704, %v3710
      %v3712 = vcombine.low %v3253, %v3339
      %v3714 = vunpack.c.l.s4 1983009808
      %v3715 = vunpack.c.0.s8 %v3714
      %v3716 = vlaneseq
      %v3717 = vshrl.u32 %v3716, 7
      %v3718 = vsub.s32 %v3715, %v3717
      %v3719 = vrot.slane %v3712, %v3718
      %v3720 = vcombine.low %v3695, %v3703
      %v3721 = vcombine.high %v3695, %v3703
      %v3723 = vunpack.c.l.s4 1934713408
      %v3724 = vunpack.c.0.s8 %v3723
      %v3725 = vlaneseq
      %v3726 = vshrl.u32 %v3725, 7
      %v3727 = vsub.s32 %v3724, %v3726
      %v3728 = vrot.slane %v3720, %v3727
      %v3730 = vunpack.c.l.s4 1934713408
      %v3731 = vunpack.c.0.s8 %v3730
      %v3732 = vlaneseq
      %v3733 = vshrl.u32 %v3732, 7
      %v3734 = vsub.s32 %v3731, %v3733
      %v3735 = vrot.slane %v3721, %v3734
      %v3736 = vcombine.low %v3711, %v3719
      %v3737 = vcombine.high %v3711, %v3719
      %v3739 = vunpack.c.l.s4 1934713408
      %v3740 = vunpack.c.0.s8 %v3739
      %v3741 = vlaneseq
      %v3742 = vshrl.u32 %v3741, 7
      %v3743 = vsub.s32 %v3740, %v3742
      %v3744 = vrot.slane %v3736, %v3743
      %v3746 = vunpack.c.l.s4 1934713408
      %v3747 = vunpack.c.0.s8 %v3746
      %v3748 = vlaneseq
      %v3749 = vshrl.u32 %v3748, 7
      %v3750 = vsub.s32 %v3747, %v3749
      %v3751 = vrot.slane %v3737, %v3750
      %v3752 = vcombine.low %v3728, %v3744
      %v3753 = vcombine.high %v3728, %v3744
      %v3754 = vcombine.low %v3735, %v3751
      %v3755 = vcombine.high %v3735, %v3751
      %v3756 = vcombine.low %v3382, %v3468
      %v3758 = vunpack.c.l.s4 1983009808
      %v3759 = vunpack.c.0.s8 %v3758
      %v3760 = vlaneseq
      %v3761 = vshrl.u32 %v3760, 7
      %v3762 = vsub.s32 %v3759, %v3761
      %v3763 = vrot.slane %v3756, %v3762
      %v3764 = vcombine.low %v3425, %v3511
      %v3766 = vunpack.c.l.s4 1983009808
      %v3767 = vunpack.c.0.s8 %v3766
      %v3768 = vlaneseq
      %v3769 = vshrl.u32 %v3768, 7
      %v3770 = vsub.s32 %v3767, %v3769
      %v3771 = vrot.slane %v3764, %v3770
      %v3772 = vcombine.low %v3554, %v3640
      %v3774 = vunpack.c.l.s4 1983009808
      %v3775 = vunpack.c.0.s8 %v3774
      %v3776 = vlaneseq
      %v3777 = vshrl.u32 %v3776, 7
      %v3778 = vsub.s32 %v3775, %v3777
      %v3779 = vrot.slane %v3772, %v3778
      %v3780 = vcombine.low %v3597, %v3683
      %v3782 = vunpack.c.l.s4 1983009808
      %v3783 = vunpack.c.0.s8 %v3782
      %v3784 = vlaneseq
      %v3785 = vshrl.u32 %v3784, 7
      %v3786 = vsub.s32 %v3783, %v3785
      %v3787 = vrot.slane %v3780, %v3786
      %v3788 = vcombine.low %v3763, %v3771
      %v3789 = vcombine.high %v3763, %v3771
      %v3791 = vunpack.c.l.s4 1934713408
      %v3792 = vunpack.c.0.s8 %v3791
      %v3793 = vlaneseq
      %v3794 = vshrl.u32 %v3793, 7
      %v3795 = vsub.s32 %v3792, %v3794
      %v3796 = vrot.slane %v3788, %v3795
      %v3798 = vunpack.c.l.s4 1934713408
      %v3799 = vunpack.c.0.s8 %v3798
      %v3800 = vlaneseq
      %v3801 = vshrl.u32 %v3800, 7
      %v3802 = vsub.s32 %v3799, %v3801
      %v3803 = vrot.slane %v3789, %v3802
      %v3804 = vcombine.low %v3779, %v3787
      %v3805 = vcombine.high %v3779, %v3787
      %v3807 = vunpack.c.l.s4 1934713408
      %v3808 = vunpack.c.0.s8 %v3807
      %v3809 = vlaneseq
      %v3810 = vshrl.u32 %v3809, 7
      %v3811 = vsub.s32 %v3808, %v3810
      %v3812 = vrot.slane %v3804, %v3811
      %v3814 = vunpack.c.l.s4 1934713408
      %v3815 = vunpack.c.0.s8 %v3814
      %v3816 = vlaneseq
      %v3817 = vshrl.u32 %v3816, 7
      %v3818 = vsub.s32 %v3815, %v3817
      %v3819 = vrot.slane %v3805, %v3818
      %v3820 = vcombine.low %v3796, %v3812
      %v3821 = vcombine.high %v3796, %v3812
      %v3822 = vcombine.low %v3803, %v3819
      %v3823 = vcombine.high %v3803, %v3819
      %3826 = vrot.lane.b32.xlu0 %v3753, 16
      %v3827 = vpop.permute.xlu0 %3826
      %3828 = vrot.lane.b32.xlu0 %v3821, 16
      %v3829 = vpop.permute.xlu0 %3828
      %3834 = vrot.lane.b32.xlu0 %v3754, 32
      %v3835 = vpop.permute.xlu0 %3834
      %3836 = vrot.lane.b32.xlu0 %v3822, 32
      %v3837 = vpop.permute.xlu0 %3836
      %3842 = vrot.lane.b32.xlu0 %v3755, 48
      %v3843 = vpop.permute.xlu0 %3842
      %3844 = vrot.lane.b32.xlu0 %v3823, 48
      %v3845 = vpop.permute.xlu0 %3844
      %v3848 = vsel %vm660, %v3752, %v3827
      %v3849 = vsel %vm660, %v3820, %v3829
      %vm3850 = vcmask 261120
      %v3851 = vsel %vm3850, %v3848, %v3835
      %v3852 = vsel %vm3850, %v3849, %v3837
      %vm3853 = vcmask 392192
      %v3854 = vsel %vm3853, %v3851, %v3843
      %v3855 = vsel %vm3853, %v3852, %v3845
      %vm3856 = vcmask 523264
      %3857 = vst.msk [vmem:[%s597] sm:$0xff] %vm3856, %v3854
      %3858 = vst.msk [vmem:[%s597 + $0x8] sm:$0xff] %vm3856, %v3855
      %v3859 = vld [vmem:[#allocation2] sm:$0xff]
      %v3860 = vld [vmem:[#allocation2 + $0x8] sm:$0xff]
      %v3861 = vld [vmem:[#allocation2 + $0x10] sm:$0xff]
      %v3862 = vld [vmem:[#allocation2 + $0x18] sm:$0xff]
      %v3863 = vld [vmem:[#allocation2 + $0x20] sm:$0xff]
      %v3864 = vld [vmem:[#allocation2 + $0x28] sm:$0xff]
      %v3865 = vld [vmem:[#allocation2 + $0x30] sm:$0xff]
      %v3866 = vld [vmem:[#allocation2 + $0x38] sm:$0xff]
      %v3867 = vld [vmem:[#allocation2 + $0x40] sm:$0xff]
      %v3868 = vld [vmem:[#allocation2 + $0x48] sm:$0xff]
      %v3869 = vld [vmem:[#allocation2 + $0x50] sm:$0xff]
      %v3870 = vld [vmem:[#allocation2 + $0x58] sm:$0xff]
      %v3871 = vld [vmem:[#allocation2 + $0x60] sm:$0xff]
      %v3872 = vld [vmem:[#allocation2 + $0x68] sm:$0xff]
      %v3873 = vld [vmem:[#allocation2 + $0x70] sm:$0xff]
      %v3874 = vld [vmem:[#allocation2 + $0x78] sm:$0xff]
      %v3875 = vld [vmem:[#allocation2 + $0x80] sm:$0xff]
      %v3876 = vld [vmem:[#allocation2 + $0x88] sm:$0xff]
      %v3877 = vld [vmem:[#allocation2 + $0x90] sm:$0xff]
      %v3878 = vld [vmem:[#allocation2 + $0x98] sm:$0xff]
      %v3879 = vld [vmem:[#allocation2 + $0xa0] sm:$0xff]
      %v3880 = vld [vmem:[#allocation2 + $0xa8] sm:$0xff]
      %v3881 = vld [vmem:[#allocation2 + $0xb0] sm:$0xff]
      %v3882 = vld [vmem:[#allocation2 + $0xb8] sm:$0xff]
      %v3883 = vld [vmem:[#allocation2 + $0xc0] sm:$0xff]
      %v3884 = vld [vmem:[#allocation2 + $0xc8] sm:$0xff]
      %v3885 = vld [vmem:[#allocation2 + $0xd0] sm:$0xff]
      %v3886 = vld [vmem:[#allocation2 + $0xd8] sm:$0xff]
      %v3887 = vld [vmem:[#allocation2 + $0xe0] sm:$0xff]
      %v3888 = vld [vmem:[#allocation2 + $0xe8] sm:$0xff]
      %v3889 = vld [vmem:[#allocation2 + $0xf0] sm:$0xff]
      %v3890 = vld [vmem:[#allocation2 + $0xf8] sm:$0xff]
      %v3891 = vcombine.low %v3859, %v3863
      %v3892 = vcombine.high %v3859, %v3863
      %v3894 = vunpack.c.l.s4 1983009808
      %v3895 = vunpack.c.0.s8 %v3894
      %v3896 = vlaneseq
      %v3897 = vshrl.u32 %v3896, 7
      %v3898 = vsub.s32 %v3895, %v3897
      %v3899 = vrot.slane %v3891, %v3898
      %v3901 = vunpack.c.l.s4 1983009808
      %v3902 = vunpack.c.0.s8 %v3901
      %v3903 = vlaneseq
      %v3904 = vshrl.u32 %v3903, 7
      %v3905 = vsub.s32 %v3902, %v3904
      %v3906 = vrot.slane %v3892, %v3905
      %v3907 = vcombine.low %v3861, %v3865
      %v3908 = vcombine.high %v3861, %v3865
      %v3910 = vunpack.c.l.s4 1983009808
      %v3911 = vunpack.c.0.s8 %v3910
      %v3912 = vlaneseq
      %v3913 = vshrl.u32 %v3912, 7
      %v3914 = vsub.s32 %v3911, %v3913
      %v3915 = vrot.slane %v3907, %v3914
      %v3917 = vunpack.c.l.s4 1983009808
      %v3918 = vunpack.c.0.s8 %v3917
      %v3919 = vlaneseq
      %v3920 = vshrl.u32 %v3919, 7
      %v3921 = vsub.s32 %v3918, %v3920
      %v3922 = vrot.slane %v3908, %v3921
      %v3923 = vcombine.low %v3867, %v3871
      %v3924 = vcombine.high %v3867, %v3871
      %v3926 = vunpack.c.l.s4 1983009808
      %v3927 = vunpack.c.0.s8 %v3926
      %v3928 = vlaneseq
      %v3929 = vshrl.u32 %v3928, 7
      %v3930 = vsub.s32 %v3927, %v3929
      %v3931 = vrot.slane %v3923, %v3930
      %v3933 = vunpack.c.l.s4 1983009808
      %v3934 = vunpack.c.0.s8 %v3933
      %v3935 = vlaneseq
      %v3936 = vshrl.u32 %v3935, 7
      %v3937 = vsub.s32 %v3934, %v3936
      %v3938 = vrot.slane %v3924, %v3937
      %v3939 = vcombine.low %v3869, %v3873
      %v3940 = vcombine.high %v3869, %v3873
      %v3942 = vunpack.c.l.s4 1983009808
      %v3943 = vunpack.c.0.s8 %v3942
      %v3944 = vlaneseq
      %v3945 = vshrl.u32 %v3944, 7
      %v3946 = vsub.s32 %v3943, %v3945
      %v3947 = vrot.slane %v3939, %v3946
      %v3949 = vunpack.c.l.s4 1983009808
      %v3950 = vunpack.c.0.s8 %v3949
      %v3951 = vlaneseq
      %v3952 = vshrl.u32 %v3951, 7
      %v3953 = vsub.s32 %v3950, %v3952
      %v3954 = vrot.slane %v3940, %v3953
      %v3955 = vcombine.low %v3899, %v3915
      %v3956 = vcombine.high %v3899, %v3915
      %v3958 = vunpack.c.l.s4 1934713408
      %v3959 = vunpack.c.0.s8 %v3958
      %v3960 = vlaneseq
      %v3961 = vshrl.u32 %v3960, 7
      %v3962 = vsub.s32 %v3959, %v3961
      %v3963 = vrot.slane %v3955, %v3962
      %v3965 = vunpack.c.l.s4 1934713408
      %v3966 = vunpack.c.0.s8 %v3965
      %v3967 = vlaneseq
      %v3968 = vshrl.u32 %v3967, 7
      %v3969 = vsub.s32 %v3966, %v3968
      %v3970 = vrot.slane %v3956, %v3969
      %v3971 = vcombine.low %v3906, %v3922
      %v3972 = vcombine.high %v3906, %v3922
      %v3974 = vunpack.c.l.s4 1934713408
      %v3975 = vunpack.c.0.s8 %v3974
      %v3976 = vlaneseq
      %v3977 = vshrl.u32 %v3976, 7
      %v3978 = vsub.s32 %v3975, %v3977
      %v3979 = vrot.slane %v3971, %v3978
      %v3981 = vunpack.c.l.s4 1934713408
      %v3982 = vunpack.c.0.s8 %v3981
      %v3983 = vlaneseq
      %v3984 = vshrl.u32 %v3983, 7
      %v3985 = vsub.s32 %v3982, %v3984
      %v3986 = vrot.slane %v3972, %v3985
      %v3987 = vcombine.low %v3931, %v3947
      %v3988 = vcombine.high %v3931, %v3947
      %v3990 = vunpack.c.l.s4 1934713408
      %v3991 = vunpack.c.0.s8 %v3990
      %v3992 = vlaneseq
      %v3993 = vshrl.u32 %v3992, 7
      %v3994 = vsub.s32 %v3991, %v3993
      %v3995 = vrot.slane %v3987, %v3994
      %v3997 = vunpack.c.l.s4 1934713408
      %v3998 = vunpack.c.0.s8 %v3997
      %v3999 = vlaneseq
      %v4000 = vshrl.u32 %v3999, 7
      %v4001 = vsub.s32 %v3998, %v4000
      %v4002 = vrot.slane %v3988, %v4001
      %v4003 = vcombine.low %v3938, %v3954
      %v4004 = vcombine.high %v3938, %v3954
      %v4006 = vunpack.c.l.s4 1934713408
      %v4007 = vunpack.c.0.s8 %v4006
      %v4008 = vlaneseq
      %v4009 = vshrl.u32 %v4008, 7
      %v4010 = vsub.s32 %v4007, %v4009
      %v4011 = vrot.slane %v4003, %v4010
      %v4013 = vunpack.c.l.s4 1934713408
      %v4014 = vunpack.c.0.s8 %v4013
      %v4015 = vlaneseq
      %v4016 = vshrl.u32 %v4015, 7
      %v4017 = vsub.s32 %v4014, %v4016
      %v4018 = vrot.slane %v4004, %v4017
      %v4019 = vcombine.low %v3963, %v3995
      %v4020 = vcombine.high %v3963, %v3995
      %v4021 = vcombine.low %v3970, %v4002
      %v4022 = vcombine.high %v3970, %v4002
      %v4023 = vcombine.low %v3979, %v4011
      %v4024 = vcombine.high %v3979, %v4011
      %v4025 = vcombine.low %v3986, %v4018
      %v4026 = vcombine.high %v3986, %v4018
      %v4027 = vcombine.low %v3875, %v3879
      %v4028 = vcombine.high %v3875, %v3879
      %v4030 = vunpack.c.l.s4 1983009808
      %v4031 = vunpack.c.0.s8 %v4030
      %v4032 = vlaneseq
      %v4033 = vshrl.u32 %v4032, 7
      %v4034 = vsub.s32 %v4031, %v4033
      %v4035 = vrot.slane %v4027, %v4034
      %v4037 = vunpack.c.l.s4 1983009808
      %v4038 = vunpack.c.0.s8 %v4037
      %v4039 = vlaneseq
      %v4040 = vshrl.u32 %v4039, 7
      %v4041 = vsub.s32 %v4038, %v4040
      %v4042 = vrot.slane %v4028, %v4041
      %v4043 = vcombine.low %v3877, %v3881
      %v4044 = vcombine.high %v3877, %v3881
      %v4046 = vunpack.c.l.s4 1983009808
      %v4047 = vunpack.c.0.s8 %v4046
      %v4048 = vlaneseq
      %v4049 = vshrl.u32 %v4048, 7
      %v4050 = vsub.s32 %v4047, %v4049
      %v4051 = vrot.slane %v4043, %v4050
      %v4053 = vunpack.c.l.s4 1983009808
      %v4054 = vunpack.c.0.s8 %v4053
      %v4055 = vlaneseq
      %v4056 = vshrl.u32 %v4055, 7
      %v4057 = vsub.s32 %v4054, %v4056
      %v4058 = vrot.slane %v4044, %v4057
      %v4059 = vcombine.low %v3883, %v3887
      %v4060 = vcombine.high %v3883, %v3887
      %v4062 = vunpack.c.l.s4 1983009808
      %v4063 = vunpack.c.0.s8 %v4062
      %v4064 = vlaneseq
      %v4065 = vshrl.u32 %v4064, 7
      %v4066 = vsub.s32 %v4063, %v4065
      %v4067 = vrot.slane %v4059, %v4066
      %v4069 = vunpack.c.l.s4 1983009808
      %v4070 = vunpack.c.0.s8 %v4069
      %v4071 = vlaneseq
      %v4072 = vshrl.u32 %v4071, 7
      %v4073 = vsub.s32 %v4070, %v4072
      %v4074 = vrot.slane %v4060, %v4073
      %v4075 = vcombine.low %v3885, %v3889
      %v4076 = vcombine.high %v3885, %v3889
      %v4078 = vunpack.c.l.s4 1983009808
      %v4079 = vunpack.c.0.s8 %v4078
      %v4080 = vlaneseq
      %v4081 = vshrl.u32 %v4080, 7
      %v4082 = vsub.s32 %v4079, %v4081
      %v4083 = vrot.slane %v4075, %v4082
      %v4085 = vunpack.c.l.s4 1983009808
      %v4086 = vunpack.c.0.s8 %v4085
      %v4087 = vlaneseq
      %v4088 = vshrl.u32 %v4087, 7
      %v4089 = vsub.s32 %v4086, %v4088
      %v4090 = vrot.slane %v4076, %v4089
      %v4091 = vcombine.low %v4035, %v4051
      %v4092 = vcombine.high %v4035, %v4051
      %v4094 = vunpack.c.l.s4 1934713408
      %v4095 = vunpack.c.0.s8 %v4094
      %v4096 = vlaneseq
      %v4097 = vshrl.u32 %v4096, 7
      %v4098 = vsub.s32 %v4095, %v4097
      %v4099 = vrot.slane %v4091, %v4098
      %v4101 = vunpack.c.l.s4 1934713408
      %v4102 = vunpack.c.0.s8 %v4101
      %v4103 = vlaneseq
      %v4104 = vshrl.u32 %v4103, 7
      %v4105 = vsub.s32 %v4102, %v4104
      %v4106 = vrot.slane %v4092, %v4105
      %v4107 = vcombine.low %v4042, %v4058
      %v4108 = vcombine.high %v4042, %v4058
      %v4110 = vunpack.c.l.s4 1934713408
      %v4111 = vunpack.c.0.s8 %v4110
      %v4112 = vlaneseq
      %v4113 = vshrl.u32 %v4112, 7
      %v4114 = vsub.s32 %v4111, %v4113
      %v4115 = vrot.slane %v4107, %v4114
      %v4117 = vunpack.c.l.s4 1934713408
      %v4118 = vunpack.c.0.s8 %v4117
      %v4119 = vlaneseq
      %v4120 = vshrl.u32 %v4119, 7
      %v4121 = vsub.s32 %v4118, %v4120
      %v4122 = vrot.slane %v4108, %v4121
      %v4123 = vcombine.low %v4067, %v4083
      %v4124 = vcombine.high %v4067, %v4083
      %v4126 = vunpack.c.l.s4 1934713408
      %v4127 = vunpack.c.0.s8 %v4126
      %v4128 = vlaneseq
      %v4129 = vshrl.u32 %v4128, 7
      %v4130 = vsub.s32 %v4127, %v4129
      %v4131 = vrot.slane %v4123, %v4130
      %v4133 = vunpack.c.l.s4 1934713408
      %v4134 = vunpack.c.0.s8 %v4133
      %v4135 = vlaneseq
      %v4136 = vshrl.u32 %v4135, 7
      %v4137 = vsub.s32 %v4134, %v4136
      %v4138 = vrot.slane %v4124, %v4137
      %v4139 = vcombine.low %v4074, %v4090
      %v4140 = vcombine.high %v4074, %v4090
      %v4142 = vunpack.c.l.s4 1934713408
      %v4143 = vunpack.c.0.s8 %v4142
      %v4144 = vlaneseq
      %v4145 = vshrl.u32 %v4144, 7
      %v4146 = vsub.s32 %v4143, %v4145
      %v4147 = vrot.slane %v4139, %v4146
      %v4149 = vunpack.c.l.s4 1934713408
      %v4150 = vunpack.c.0.s8 %v4149
      %v4151 = vlaneseq
      %v4152 = vshrl.u32 %v4151, 7
      %v4153 = vsub.s32 %v4150, %v4152
      %v4154 = vrot.slane %v4140, %v4153
      %v4155 = vcombine.low %v4099, %v4131
      %v4156 = vcombine.high %v4099, %v4131
      %v4157 = vcombine.low %v4106, %v4138
      %v4158 = vcombine.high %v4106, %v4138
      %v4159 = vcombine.low %v4115, %v4147
      %v4160 = vcombine.high %v4115, %v4147
      %v4161 = vcombine.low %v4122, %v4154
      %v4162 = vcombine.high %v4122, %v4154
      %v4163 = vcombine.low %v3860, %v3864
      %v4164 = vcombine.high %v3860, %v3864
      %v4166 = vunpack.c.l.s4 1983009808
      %v4167 = vunpack.c.0.s8 %v4166
      %v4168 = vlaneseq
      %v4169 = vshrl.u32 %v4168, 7
      %v4170 = vsub.s32 %v4167, %v4169
      %v4171 = vrot.slane %v4163, %v4170
      %v4173 = vunpack.c.l.s4 1983009808
      %v4174 = vunpack.c.0.s8 %v4173
      %v4175 = vlaneseq
      %v4176 = vshrl.u32 %v4175, 7
      %v4177 = vsub.s32 %v4174, %v4176
      %v4178 = vrot.slane %v4164, %v4177
      %v4179 = vcombine.low %v3862, %v3866
      %v4180 = vcombine.high %v3862, %v3866
      %v4182 = vunpack.c.l.s4 1983009808
      %v4183 = vunpack.c.0.s8 %v4182
      %v4184 = vlaneseq
      %v4185 = vshrl.u32 %v4184, 7
      %v4186 = vsub.s32 %v4183, %v4185
      %v4187 = vrot.slane %v4179, %v4186
      %v4189 = vunpack.c.l.s4 1983009808
      %v4190 = vunpack.c.0.s8 %v4189
      %v4191 = vlaneseq
      %v4192 = vshrl.u32 %v4191, 7
      %v4193 = vsub.s32 %v4190, %v4192
      %v4194 = vrot.slane %v4180, %v4193
      %v4195 = vcombine.low %v3868, %v3872
      %v4196 = vcombine.high %v3868, %v3872
      %v4198 = vunpack.c.l.s4 1983009808
      %v4199 = vunpack.c.0.s8 %v4198
      %v4200 = vlaneseq
      %v4201 = vshrl.u32 %v4200, 7
      %v4202 = vsub.s32 %v4199, %v4201
      %v4203 = vrot.slane %v4195, %v4202
      %v4205 = vunpack.c.l.s4 1983009808
      %v4206 = vunpack.c.0.s8 %v4205
      %v4207 = vlaneseq
      %v4208 = vshrl.u32 %v4207, 7
      %v4209 = vsub.s32 %v4206, %v4208
      %v4210 = vrot.slane %v4196, %v4209
      %v4211 = vcombine.low %v3870, %v3874
      %v4212 = vcombine.high %v3870, %v3874
      %v4214 = vunpack.c.l.s4 1983009808
      %v4215 = vunpack.c.0.s8 %v4214
      %v4216 = vlaneseq
      %v4217 = vshrl.u32 %v4216, 7
      %v4218 = vsub.s32 %v4215, %v4217
      %v4219 = vrot.slane %v4211, %v4218
      %v4221 = vunpack.c.l.s4 1983009808
      %v4222 = vunpack.c.0.s8 %v4221
      %v4223 = vlaneseq
      %v4224 = vshrl.u32 %v4223, 7
      %v4225 = vsub.s32 %v4222, %v4224
      %v4226 = vrot.slane %v4212, %v4225
      %v4227 = vcombine.low %v4171, %v4187
      %v4228 = vcombine.high %v4171, %v4187
      %v4230 = vunpack.c.l.s4 1934713408
      %v4231 = vunpack.c.0.s8 %v4230
      %v4232 = vlaneseq
      %v4233 = vshrl.u32 %v4232, 7
      %v4234 = vsub.s32 %v4231, %v4233
      %v4235 = vrot.slane %v4227, %v4234
      %v4237 = vunpack.c.l.s4 1934713408
      %v4238 = vunpack.c.0.s8 %v4237
      %v4239 = vlaneseq
      %v4240 = vshrl.u32 %v4239, 7
      %v4241 = vsub.s32 %v4238, %v4240
      %v4242 = vrot.slane %v4228, %v4241
      %v4243 = vcombine.low %v4178, %v4194
      %v4244 = vcombine.high %v4178, %v4194
      %v4246 = vunpack.c.l.s4 1934713408
      %v4247 = vunpack.c.0.s8 %v4246
      %v4248 = vlaneseq
      %v4249 = vshrl.u32 %v4248, 7
      %v4250 = vsub.s32 %v4247, %v4249
      %v4251 = vrot.slane %v4243, %v4250
      %v4253 = vunpack.c.l.s4 1934713408
      %v4254 = vunpack.c.0.s8 %v4253
      %v4255 = vlaneseq
      %v4256 = vshrl.u32 %v4255, 7
      %v4257 = vsub.s32 %v4254, %v4256
      %v4258 = vrot.slane %v4244, %v4257
      %v4259 = vcombine.low %v4203, %v4219
      %v4260 = vcombine.high %v4203, %v4219
      %v4262 = vunpack.c.l.s4 1934713408
      %v4263 = vunpack.c.0.s8 %v4262
      %v4264 = vlaneseq
      %v4265 = vshrl.u32 %v4264, 7
      %v4266 = vsub.s32 %v4263, %v4265
      %v4267 = vrot.slane %v4259, %v4266
      %v4269 = vunpack.c.l.s4 1934713408
      %v4270 = vunpack.c.0.s8 %v4269
      %v4271 = vlaneseq
      %v4272 = vshrl.u32 %v4271, 7
      %v4273 = vsub.s32 %v4270, %v4272
      %v4274 = vrot.slane %v4260, %v4273
      %v4275 = vcombine.low %v4210, %v4226
      %v4276 = vcombine.high %v4210, %v4226
      %v4278 = vunpack.c.l.s4 1934713408
      %v4279 = vunpack.c.0.s8 %v4278
      %v4280 = vlaneseq
      %v4281 = vshrl.u32 %v4280, 7
      %v4282 = vsub.s32 %v4279, %v4281
      %v4283 = vrot.slane %v4275, %v4282
      %v4285 = vunpack.c.l.s4 1934713408
      %v4286 = vunpack.c.0.s8 %v4285
      %v4287 = vlaneseq
      %v4288 = vshrl.u32 %v4287, 7
      %v4289 = vsub.s32 %v4286, %v4288
      %v4290 = vrot.slane %v4276, %v4289
      %v4291 = vcombine.low %v4235, %v4267
      %v4292 = vcombine.high %v4235, %v4267
      %v4293 = vcombine.low %v4242, %v4274
      %v4294 = vcombine.high %v4242, %v4274
      %v4295 = vcombine.low %v4251, %v4283
      %v4296 = vcombine.high %v4251, %v4283
      %v4297 = vcombine.low %v4258, %v4290
      %v4298 = vcombine.high %v4258, %v4290
      %v4299 = vcombine.low %v3876, %v3880
      %v4300 = vcombine.high %v3876, %v3880
      %v4302 = vunpack.c.l.s4 1983009808
      %v4303 = vunpack.c.0.s8 %v4302
      %v4304 = vlaneseq
      %v4305 = vshrl.u32 %v4304, 7
      %v4306 = vsub.s32 %v4303, %v4305
      %v4307 = vrot.slane %v4299, %v4306
      %v4309 = vunpack.c.l.s4 1983009808
      %v4310 = vunpack.c.0.s8 %v4309
      %v4311 = vlaneseq
      %v4312 = vshrl.u32 %v4311, 7
      %v4313 = vsub.s32 %v4310, %v4312
      %v4314 = vrot.slane %v4300, %v4313
      %v4315 = vcombine.low %v3878, %v3882
      %v4316 = vcombine.high %v3878, %v3882
      %v4318 = vunpack.c.l.s4 1983009808
      %v4319 = vunpack.c.0.s8 %v4318
      %v4320 = vlaneseq
      %v4321 = vshrl.u32 %v4320, 7
      %v4322 = vsub.s32 %v4319, %v4321
      %v4323 = vrot.slane %v4315, %v4322
      %v4325 = vunpack.c.l.s4 1983009808
      %v4326 = vunpack.c.0.s8 %v4325
      %v4327 = vlaneseq
      %v4328 = vshrl.u32 %v4327, 7
      %v4329 = vsub.s32 %v4326, %v4328
      %v4330 = vrot.slane %v4316, %v4329
      %v4331 = vcombine.low %v3884, %v3888
      %v4332 = vcombine.high %v3884, %v3888
      %v4334 = vunpack.c.l.s4 1983009808
      %v4335 = vunpack.c.0.s8 %v4334
      %v4336 = vlaneseq
      %v4337 = vshrl.u32 %v4336, 7
      %v4338 = vsub.s32 %v4335, %v4337
      %v4339 = vrot.slane %v4331, %v4338
      %v4341 = vunpack.c.l.s4 1983009808
      %v4342 = vunpack.c.0.s8 %v4341
      %v4343 = vlaneseq
      %v4344 = vshrl.u32 %v4343, 7
      %v4345 = vsub.s32 %v4342, %v4344
      %v4346 = vrot.slane %v4332, %v4345
      %v4347 = vcombine.low %v3886, %v3890
      %v4348 = vcombine.high %v3886, %v3890
      %v4350 = vunpack.c.l.s4 1983009808
      %v4351 = vunpack.c.0.s8 %v4350
      %v4352 = vlaneseq
      %v4353 = vshrl.u32 %v4352, 7
      %v4354 = vsub.s32 %v4351, %v4353
      %v4355 = vrot.slane %v4347, %v4354
      %v4357 = vunpack.c.l.s4 1983009808
      %v4358 = vunpack.c.0.s8 %v4357
      %v4359 = vlaneseq
      %v4360 = vshrl.u32 %v4359, 7
      %v4361 = vsub.s32 %v4358, %v4360
      %v4362 = vrot.slane %v4348, %v4361
      %v4363 = vcombine.low %v4307, %v4323
      %v4364 = vcombine.high %v4307, %v4323
      %v4366 = vunpack.c.l.s4 1934713408
      %v4367 = vunpack.c.0.s8 %v4366
      %v4368 = vlaneseq
      %v4369 = vshrl.u32 %v4368, 7
      %v4370 = vsub.s32 %v4367, %v4369
      %v4371 = vrot.slane %v4363, %v4370
      %v4373 = vunpack.c.l.s4 1934713408
      %v4374 = vunpack.c.0.s8 %v4373
      %v4375 = vlaneseq
      %v4376 = vshrl.u32 %v4375, 7
      %v4377 = vsub.s32 %v4374, %v4376
      %v4378 = vrot.slane %v4364, %v4377
      %v4379 = vcombine.low %v4314, %v4330
      %v4380 = vcombine.high %v4314, %v4330
      %v4382 = vunpack.c.l.s4 1934713408
      %v4383 = vunpack.c.0.s8 %v4382
      %v4384 = vlaneseq
      %v4385 = vshrl.u32 %v4384, 7
      %v4386 = vsub.s32 %v4383, %v4385
      %v4387 = vrot.slane %v4379, %v4386
      %v4389 = vunpack.c.l.s4 1934713408
      %v4390 = vunpack.c.0.s8 %v4389
      %v4391 = vlaneseq
      %v4392 = vshrl.u32 %v4391, 7
      %v4393 = vsub.s32 %v4390, %v4392
      %v4394 = vrot.slane %v4380, %v4393
      %v4395 = vcombine.low %v4339, %v4355
      %v4396 = vcombine.high %v4339, %v4355
      %v4398 = vunpack.c.l.s4 1934713408
      %v4399 = vunpack.c.0.s8 %v4398
      %v4400 = vlaneseq
      %v4401 = vshrl.u32 %v4400, 7
      %v4402 = vsub.s32 %v4399, %v4401
      %v4403 = vrot.slane %v4395, %v4402
      %v4405 = vunpack.c.l.s4 1934713408
      %v4406 = vunpack.c.0.s8 %v4405
      %v4407 = vlaneseq
      %v4408 = vshrl.u32 %v4407, 7
      %v4409 = vsub.s32 %v4406, %v4408
      %v4410 = vrot.slane %v4396, %v4409
      %v4411 = vcombine.low %v4346, %v4362
      %v4412 = vcombine.high %v4346, %v4362
      %v4414 = vunpack.c.l.s4 1934713408
      %v4415 = vunpack.c.0.s8 %v4414
      %v4416 = vlaneseq
      %v4417 = vshrl.u32 %v4416, 7
      %v4418 = vsub.s32 %v4415, %v4417
      %v4419 = vrot.slane %v4411, %v4418
      %v4421 = vunpack.c.l.s4 1934713408
      %v4422 = vunpack.c.0.s8 %v4421
      %v4423 = vlaneseq
      %v4424 = vshrl.u32 %v4423, 7
      %v4425 = vsub.s32 %v4422, %v4424
      %v4426 = vrot.slane %v4412, %v4425
      %v4427 = vcombine.low %v4371, %v4403
      %v4428 = vcombine.high %v4371, %v4403
      %v4429 = vcombine.low %v4378, %v4410
      %v4430 = vcombine.high %v4378, %v4410
      %v4431 = vcombine.low %v4387, %v4419
      %v4432 = vcombine.high %v4387, %v4419
      %v4433 = vcombine.low %v4394, %v4426
      %v4434 = vcombine.high %v4394, %v4426
      %4437 = vrot.lane.b32.xlu0 %v4020, 16
      %v4438 = vpop.permute.xlu0 %4437
      %4439 = vrot.lane.b32.xlu0 %v4156, 16
      %v4440 = vpop.permute.xlu0 %4439
      %4445 = vrot.lane.b32.xlu0 %v4021, 32
      %v4446 = vpop.permute.xlu0 %4445
      %4447 = vrot.lane.b32.xlu0 %v4157, 32
      %v4448 = vpop.permute.xlu0 %4447
      %4453 = vrot.lane.b32.xlu0 %v4022, 48
      %v4454 = vpop.permute.xlu0 %4453
      %4455 = vrot.lane.b32.xlu0 %v4158, 48
      %v4456 = vpop.permute.xlu0 %4455
      %4461 = vrot.lane.b32.xlu0 %v4023, 64
      %v4462 = vpop.permute.xlu0 %4461
      %4463 = vrot.lane.b32.xlu0 %v4159, 64
      %v4464 = vpop.permute.xlu0 %4463
      %4469 = vrot.lane.b32.xlu0 %v4024, 80
      %v4470 = vpop.permute.xlu0 %4469
      %4471 = vrot.lane.b32.xlu0 %v4160, 80
      %v4472 = vpop.permute.xlu0 %4471
      %4477 = vrot.lane.b32.xlu0 %v4025, 96
      %v4478 = vpop.permute.xlu0 %4477
      %4479 = vrot.lane.b32.xlu0 %v4161, 96
      %v4480 = vpop.permute.xlu0 %4479
      %4485 = vrot.lane.b32.xlu0 %v4026, 112
      %v4486 = vpop.permute.xlu0 %4485
      %4487 = vrot.lane.b32.xlu0 %v4162, 112
      %v4488 = vpop.permute.xlu0 %4487
      %4493 = vrot.lane.b32.xlu0 %v4292, 16
      %v4494 = vpop.permute.xlu0 %4493
      %4495 = vrot.lane.b32.xlu0 %v4428, 16
      %v4496 = vpop.permute.xlu0 %4495
      %4501 = vrot.lane.b32.xlu0 %v4293, 32
      %v4502 = vpop.permute.xlu0 %4501
      %4503 = vrot.lane.b32.xlu0 %v4429, 32
      %v4504 = vpop.permute.xlu0 %4503
      %4509 = vrot.lane.b32.xlu0 %v4294, 48
      %v4510 = vpop.permute.xlu0 %4509
      %4511 = vrot.lane.b32.xlu0 %v4430, 48
      %v4512 = vpop.permute.xlu0 %4511
      %4517 = vrot.lane.b32.xlu0 %v4295, 64
      %v4518 = vpop.permute.xlu0 %4517
      %4519 = vrot.lane.b32.xlu0 %v4431, 64
      %v4520 = vpop.permute.xlu0 %4519
      %4525 = vrot.lane.b32.xlu0 %v4296, 80
      %v4526 = vpop.permute.xlu0 %4525
      %4527 = vrot.lane.b32.xlu0 %v4432, 80
      %v4528 = vpop.permute.xlu0 %4527
      %4533 = vrot.lane.b32.xlu0 %v4297, 96
      %v4534 = vpop.permute.xlu0 %4533
      %4535 = vrot.lane.b32.xlu0 %v4433, 96
      %v4536 = vpop.permute.xlu0 %4535
      %4541 = vrot.lane.b32.xlu0 %v4298, 112
      %v4542 = vpop.permute.xlu0 %4541
      %4543 = vrot.lane.b32.xlu0 %v4434, 112
      %v4544 = vpop.permute.xlu0 %4543
      %v4547 = vsel %vm660, %v4019, %v4438
      %v4548 = vsel %vm660, %v4155, %v4440
      %v4549 = vsel %vm3850, %v4547, %v4446
      %v4550 = vsel %vm3850, %v4548, %v4448
      %v4551 = vsel %vm3853, %v4549, %v4454
      %v4552 = vsel %vm3853, %v4550, %v4456
      %v4553 = vsel %vm3856, %v4551, %v4462
      %v4554 = vsel %vm3856, %v4552, %v4464
      %v4555 = vsel %vm2981, %v4553, %v4470
      %v4556 = vsel %vm2981, %v4554, %v4472
      %vm4557 = vcmask 785408
      %v4558 = vsel %vm4557, %v4555, %v4478
      %v4559 = vsel %vm4557, %v4556, %v4480
      %vm4560 = vcmask 916480
      %v4561 = vsel %vm4560, %v4558, %v4486
      %v4562 = vsel %vm4560, %v4559, %v4488
      %v4563 = vsel %vm660, %v4291, %v4494
      %v4564 = vsel %vm660, %v4427, %v4496
      %v4565 = vsel %vm3850, %v4563, %v4502
      %v4566 = vsel %vm3850, %v4564, %v4504
      %v4567 = vsel %vm3853, %v4565, %v4510
      %v4568 = vsel %vm3853, %v4566, %v4512
      %v4569 = vsel %vm3856, %v4567, %v4518
      %v4570 = vsel %vm3856, %v4568, %v4520
      %v4571 = vsel %vm2981, %v4569, %v4526
      %v4572 = vsel %vm2981, %v4570, %v4528
      %v4573 = vsel %vm4557, %v4571, %v4534
      %v4574 = vsel %vm4557, %v4572, %v4536
      %v4575 = vsel %vm4560, %v4573, %v4542
      %v4576 = vsel %vm4560, %v4574, %v4544
      %4577 = vxpose.xlu0.b32.start [1/16] %v4561, 128
      %4578 = vxpose.xlu0.b32.cont [2/16] %v4562, 128
      %4579 = vxpose.xlu0.b32.cont [3/16] 0.0, 128
      %4580 = vxpose.xlu0.b32.cont [4/16] 0.0, 128
      %4581 = vxpose.xlu0.b32.cont [5/16] 0.0, 128
      %4582 = vxpose.xlu0.b32.cont [6/16] 0.0, 128
      %4583 = vxpose.xlu0.b32.cont [7/16] 0.0, 128
      %4584 = vxpose.xlu0.b32.cont [8/16] 0.0, 128
      %4585 = vxpose.xlu0.b32.cont [9/16] 0.0, 128
      %4586 = vxpose.xlu0.b32.cont [10/16] 0.0, 128
      %4587 = vxpose.xlu0.b32.cont [11/16] 0.0, 128
      %4588 = vxpose.xlu0.b32.cont [12/16] 0.0, 128
      %4589 = vxpose.xlu0.b32.cont [13/16] 0.0, 128
      %4590 = vxpose.xlu0.b32.cont [14/16] 0.0, 128
      %4591 = vxpose.xlu0.b32.cont [15/16] 0.0, 128
      %4592 = vxpose.xlu0.b32.end [16/16] 0.0, 128
      %v4593 = vpop.trf.xlu0
      %v4594 = vpop.trf.xlu0
      %v4595 = vpop.trf.xlu0
      %v4596 = vpop.trf.xlu0
      %v4597 = vpop.trf.xlu0
      %v4598 = vpop.trf.xlu0
      %v4599 = vpop.trf.xlu0
      %v4600 = vpop.trf.xlu0
      %v4601 = vpop.trf.xlu0
      %v4602 = vpop.trf.xlu0
      %v4603 = vpop.trf.xlu0
      %v4604 = vpop.trf.xlu0
      %v4605 = vpop.trf.xlu0
      %v4606 = vpop.trf.xlu0
      %v4607 = vpop.trf.xlu0
      %v4608 = vpop.trf.xlu0
      %4609 = vxpose.xlu0.b32.start [1/16] %v4575, 128
      %4610 = vxpose.xlu0.b32.cont [2/16] %v4576, 128
      %4611 = vxpose.xlu0.b32.cont [3/16] 0.0, 128
      %4612 = vxpose.xlu0.b32.cont [4/16] 0.0, 128
      %4613 = vxpose.xlu0.b32.cont [5/16] 0.0, 128
      %4614 = vxpose.xlu0.b32.cont [6/16] 0.0, 128
      %4615 = vxpose.xlu0.b32.cont [7/16] 0.0, 128
      %4616 = vxpose.xlu0.b32.cont [8/16] 0.0, 128
      %4617 = vxpose.xlu0.b32.cont [9/16] 0.0, 128
      %4618 = vxpose.xlu0.b32.cont [10/16] 0.0, 128
      %4619 = vxpose.xlu0.b32.cont [11/16] 0.0, 128
      %4620 = vxpose.xlu0.b32.cont [12/16] 0.0, 128
      %4621 = vxpose.xlu0.b32.cont [13/16] 0.0, 128
      %4622 = vxpose.xlu0.b32.cont [14/16] 0.0, 128
      %4623 = vxpose.xlu0.b32.cont [15/16] 0.0, 128
      %4624 = vxpose.xlu0.b32.end [16/16] 0.0, 128
      %v4625 = vpop.trf.xlu0
      %v4626 = vpop.trf.xlu0
      %v4627 = vpop.trf.xlu0
      %v4628 = vpop.trf.xlu0
      %v4629 = vpop.trf.xlu0
      %v4630 = vpop.trf.xlu0
      %v4631 = vpop.trf.xlu0
      %v4632 = vpop.trf.xlu0
      %v4633 = vpop.trf.xlu0
      %v4634 = vpop.trf.xlu0
      %v4635 = vpop.trf.xlu0
      %v4636 = vpop.trf.xlu0
      %v4637 = vpop.trf.xlu0
      %v4638 = vpop.trf.xlu0
      %v4639 = vpop.trf.xlu0
      %v4640 = vpop.trf.xlu0
      %v4641 = vpack.c.bf16 %v4594, %v4593
      %v4642 = vpack.c.bf16 %v4596, %v4595
      %v4643 = vpack.c.bf16 %v4598, %v4597
      %v4644 = vpack.c.bf16 %v4600, %v4599
      %v4645 = vpack.c.bf16 %v4602, %v4601
      %v4646 = vpack.c.bf16 %v4604, %v4603
      %v4647 = vpack.c.bf16 %v4606, %v4605
      %v4648 = vpack.c.bf16 %v4608, %v4607
      %v4649 = vpack.c.bf16 %v4626, %v4625
      %v4650 = vpack.c.bf16 %v4628, %v4627
      %v4651 = vpack.c.bf16 %v4630, %v4629
      %v4652 = vpack.c.bf16 %v4632, %v4631
      %v4653 = vpack.c.bf16 %v4634, %v4633
      %v4654 = vpack.c.bf16 %v4636, %v4635
      %v4655 = vpack.c.bf16 %v4638, %v4637
      %v4656 = vpack.c.bf16 %v4640, %v4639
      %v4657 = vld [vmem:[%s7] sm:$0xf]
      %v4658 = vld [vmem:[%s7 + $0x4] sm:$0xf]
      %v4661 = vunpack.c.l.b16 %v4657
      %v4662 = vunpack.c.l.b16 %v4658
      %v4663 = vpack.c.b16 %v4662, %v4661
      %v4666 = vsel %vm660, %v4641, 0
      %v4669 = vsel %vm660, %v4642, 0
      %v4672 = vsel %vm660, %v4643, 0
      %v4675 = vsel %vm660, %v4644, 0
      %v4678 = vsel %vm660, %v4645, 0
      %v4681 = vsel %vm660, %v4646, 0
      %v4684 = vsel %vm660, %v4647, 0
      %v4687 = vsel %vm660, %v4648, 0
      %v4690 = vsel %vm660, %v4649, 0
      %v4693 = vsel %vm660, %v4650, 0
      %v4696 = vsel %vm660, %v4651, 0
      %v4699 = vsel %vm660, %v4652, 0
      %v4702 = vsel %vm660, %v4653, 0
      %v4705 = vsel %vm660, %v4654, 0
      %v4708 = vsel %vm660, %v4655, 0
      %v4711 = vsel %vm660, %v4656, 0
      %4713 = vmatprep.subr.bf16.mxu0 0
      %4714 = vmatpush1.bf16.msra.mxu0 0
      %4715 = vmatprep.subr.bf16.mxu0 0
      %4716 = vmatpush1.bf16.msra.mxu0 0
      %4717 = vmatprep.subr.bf16.mxu0 0
      %4718 = vmatpush1.bf16.msra.mxu0 0
      %4719 = vmatprep.subr.bf16.mxu0 0
      %4720 = vmatpush1.bf16.msra.mxu0 0
      %4721 = vmatprep.subr.bf16.mxu0 0
      %4722 = vmatpush1.bf16.msra.mxu0 0
      %4723 = vmatprep.subr.bf16.mxu0 0
      %4724 = vmatpush1.bf16.msra.mxu0 0
      %4725 = vmatprep.subr.bf16.mxu0 0
      %4726 = vmatpush1.bf16.msra.mxu0 0
      %4727 = vmatprep.subr.bf16.mxu0 0
      %4728 = vmatpush1.bf16.msra.mxu0 %v4663
      %4729 = vmatprep.subr.bf16.mxu0 0
      %4730 = vmatpush2.bf16.msra.mxu0 0
      %4731 = vmatprep.subr.bf16.mxu0 0
      %4732 = vmatpush2.bf16.msra.mxu0 0
      %4733 = vmatprep.subr.bf16.mxu0 0
      %4734 = vmatpush2.bf16.msra.mxu0 0
      %4735 = vmatprep.subr.bf16.mxu0 0
      %4736 = vmatpush2.bf16.msra.mxu0 0
      %4737 = vmatprep.subr.bf16.mxu0 0
      %4738 = vmatpush2.bf16.msra.mxu0 0
      %4739 = vmatprep.subr.bf16.mxu0 0
      %4740 = vmatpush2.bf16.msra.mxu0 0
      %4741 = vmatprep.subr.bf16.mxu0 0
      %4742 = vmatpush2.bf16.msra.mxu0 0
      %4743 = vmatprep.subr.bf16.mxu0 0
      %4744 = vmatpush2.bf16.msra.mxu0 0
      %4745 = vmatprep.mubr.bf16.mxu0 0
      %4746 = vmatmul.mubr.bf16.gmra.mxu0 %v4666
      %v4747 = vpop.f32.mrf.mxu0
      %v4748 = vadd.f32 0.0, %v4747
      %v4749 = vpop.f32.mrf.mxu0
      %v4750 = vpop.f32.mrf.mxu0
      %v4751 = vadd.f32 0.0, %v4750
      %v4752 = vpop.f32.mrf.mxu0
      %4753 = vmatprep.mubr.bf16.mxu0 0
      %4754 = vmatmul.mubr.bf16.gmra.mxu0 %v4669
      %v4755 = vpop.f32.mrf.mxu0
      %v4756 = vadd.f32 0.0, %v4755
      %v4757 = vpop.f32.mrf.mxu0
      %v4758 = vpop.f32.mrf.mxu0
      %v4759 = vadd.f32 0.0, %v4758
      %v4760 = vpop.f32.mrf.mxu0
      %4761 = vmatprep.mubr.bf16.mxu0 0
      %4762 = vmatmul.mubr.bf16.gmra.mxu0 %v4672
      %v4763 = vpop.f32.mrf.mxu0
      %v4764 = vadd.f32 0.0, %v4763
      %v4765 = vpop.f32.mrf.mxu0
      %v4766 = vpop.f32.mrf.mxu0
      %v4767 = vadd.f32 0.0, %v4766
      %v4768 = vpop.f32.mrf.mxu0
      %4769 = vmatprep.mubr.bf16.mxu0 0
      %4770 = vmatmul.mubr.bf16.gmra.mxu0 %v4675
      %v4771 = vpop.f32.mrf.mxu0
      %v4772 = vadd.f32 0.0, %v4771
      %v4773 = vpop.f32.mrf.mxu0
      %v4774 = vpop.f32.mrf.mxu0
      %v4775 = vadd.f32 0.0, %v4774
      %v4776 = vpop.f32.mrf.mxu0
      %4777 = vmatprep.mubr.bf16.mxu0 0
      %4778 = vmatmul.mubr.bf16.gmra.mxu0 %v4678
      %v4779 = vpop.f32.mrf.mxu0
      %v4780 = vadd.f32 0.0, %v4779
      %v4781 = vpop.f32.mrf.mxu0
      %v4782 = vpop.f32.mrf.mxu0
      %v4783 = vadd.f32 0.0, %v4782
      %v4784 = vpop.f32.mrf.mxu0
      %4785 = vmatprep.mubr.bf16.mxu0 0
      %4786 = vmatmul.mubr.bf16.gmra.mxu0 %v4681
      %v4787 = vpop.f32.mrf.mxu0
      %v4788 = vadd.f32 0.0, %v4787
      %v4789 = vpop.f32.mrf.mxu0
      %v4790 = vpop.f32.mrf.mxu0
      %v4791 = vadd.f32 0.0, %v4790
      %v4792 = vpop.f32.mrf.mxu0
      %4793 = vmatprep.mubr.bf16.mxu0 0
      %4794 = vmatmul.mubr.bf16.gmra.mxu0 %v4684
      %v4795 = vpop.f32.mrf.mxu0
      %v4796 = vadd.f32 0.0, %v4795
      %v4797 = vpop.f32.mrf.mxu0
      %v4798 = vpop.f32.mrf.mxu0
      %v4799 = vadd.f32 0.0, %v4798
      %v4800 = vpop.f32.mrf.mxu0
      %4801 = vmatprep.mubr.bf16.mxu0 0
      %4802 = vmatmul.mubr.bf16.gmra.mxu0 %v4687
      %v4803 = vpop.f32.mrf.mxu0
      %v4804 = vadd.f32 0.0, %v4803
      %v4805 = vpop.f32.mrf.mxu0
      %v4806 = vpop.f32.mrf.mxu0
      %v4807 = vadd.f32 0.0, %v4806
      %v4808 = vpop.f32.mrf.mxu0
      %4809 = vmatprep.mubr.bf16.mxu0 0
      %4810 = vmatmul.mubr.bf16.gmra.mxu0 %v4690
      %v4811 = vpop.f32.mrf.mxu0
      %v4812 = vadd.f32 0.0, %v4811
      %v4813 = vpop.f32.mrf.mxu0
      %v4814 = vpop.f32.mrf.mxu0
      %v4815 = vadd.f32 0.0, %v4814
      %v4816 = vpop.f32.mrf.mxu0
      %4817 = vmatprep.mubr.bf16.mxu0 0
      %4818 = vmatmul.mubr.bf16.gmra.mxu0 %v4693
      %v4819 = vpop.f32.mrf.mxu0
      %v4820 = vadd.f32 0.0, %v4819
      %v4821 = vpop.f32.mrf.mxu0
      %v4822 = vpop.f32.mrf.mxu0
      %v4823 = vadd.f32 0.0, %v4822
      %v4824 = vpop.f32.mrf.mxu0
      %4825 = vmatprep.mubr.bf16.mxu0 0
      %4826 = vmatmul.mubr.bf16.gmra.mxu0 %v4696
      %v4827 = vpop.f32.mrf.mxu0
      %v4828 = vadd.f32 0.0, %v4827
      %v4829 = vpop.f32.mrf.mxu0
      %v4830 = vpop.f32.mrf.mxu0
      %v4831 = vadd.f32 0.0, %v4830
      %v4832 = vpop.f32.mrf.mxu0
      %4833 = vmatprep.mubr.bf16.mxu0 0
      %4834 = vmatmul.mubr.bf16.gmra.mxu0 %v4699
      %v4835 = vpop.f32.mrf.mxu0
      %v4836 = vadd.f32 0.0, %v4835
      %v4837 = vpop.f32.mrf.mxu0
      %v4838 = vpop.f32.mrf.mxu0
      %v4839 = vadd.f32 0.0, %v4838
      %v4840 = vpop.f32.mrf.mxu0
      %4841 = vmatprep.mubr.bf16.mxu0 0
      %4842 = vmatmul.mubr.bf16.gmra.mxu0 %v4702
      %v4843 = vpop.f32.mrf.mxu0
      %v4844 = vadd.f32 0.0, %v4843
      %v4845 = vpop.f32.mrf.mxu0
      %v4846 = vpop.f32.mrf.mxu0
      %v4847 = vadd.f32 0.0, %v4846
      %v4848 = vpop.f32.mrf.mxu0
      %4849 = vmatprep.mubr.bf16.mxu0 0
      %4850 = vmatmul.mubr.bf16.gmra.mxu0 %v4705
      %v4851 = vpop.f32.mrf.mxu0
      %v4852 = vadd.f32 0.0, %v4851
      %v4853 = vpop.f32.mrf.mxu0
      %v4854 = vpop.f32.mrf.mxu0
      %v4855 = vadd.f32 0.0, %v4854
      %v4856 = vpop.f32.mrf.mxu0
      %4857 = vmatprep.mubr.bf16.mxu0 0
      %4858 = vmatmul.mubr.bf16.gmra.mxu0 %v4708
      %v4859 = vpop.f32.mrf.mxu0
      %v4860 = vadd.f32 0.0, %v4859
      %v4861 = vpop.f32.mrf.mxu0
      %v4862 = vpop.f32.mrf.mxu0
      %v4863 = vadd.f32 0.0, %v4862
      %v4864 = vpop.f32.mrf.mxu0
      %4865 = vmatprep.mubr.bf16.mxu0 0
      %4866 = vmatmul.mubr.bf16.gmra.mxu0 %v4711
      %v4867 = vpop.f32.mrf.mxu0
      %v4868 = vadd.f32 0.0, %v4867
      %v4869 = vpop.f32.mrf.mxu0
      %v4870 = vpop.f32.mrf.mxu0
      %v4871 = vadd.f32 0.0, %v4870
      %v4872 = vpop.f32.mrf.mxu0
      %4873 = vdwg.mxu0
      %v4874 = vld [vmem:[%s8] sm:$0x1]
      %v4876 = vlaneseq
      %v4877 = vshrl.u32 %v4876, 7
      %v4878 = vsub.s32 0, %v4877
      %v4879 = vrot.slane %v4874, %v4878
      %v4881 = vadd.f32 %v4748, %v4879
      %v4882 = vadd.f32 %v4751, %v4879
      %v4883 = vadd.f32 %v4756, %v4879
      %v4884 = vadd.f32 %v4759, %v4879
      %v4885 = vadd.f32 %v4764, %v4879
      %v4886 = vadd.f32 %v4767, %v4879
      %v4887 = vadd.f32 %v4772, %v4879
      %v4888 = vadd.f32 %v4775, %v4879
      %v4889 = vadd.f32 %v4780, %v4879
      %v4890 = vadd.f32 %v4783, %v4879
      %v4891 = vadd.f32 %v4788, %v4879
      %v4892 = vadd.f32 %v4791, %v4879
      %v4893 = vadd.f32 %v4796, %v4879
      %v4894 = vadd.f32 %v4799, %v4879
      %v4895 = vadd.f32 %v4804, %v4879
      %v4896 = vadd.f32 %v4807, %v4879
      %v4897 = vadd.f32 %v4812, %v4879
      %v4898 = vadd.f32 %v4815, %v4879
      %v4899 = vadd.f32 %v4820, %v4879
      %v4900 = vadd.f32 %v4823, %v4879
      %v4901 = vadd.f32 %v4828, %v4879
      %v4902 = vadd.f32 %v4831, %v4879
      %v4903 = vadd.f32 %v4836, %v4879
      %v4904 = vadd.f32 %v4839, %v4879
      %v4905 = vadd.f32 %v4844, %v4879
      %v4906 = vadd.f32 %v4847, %v4879
      %v4907 = vadd.f32 %v4852, %v4879
      %v4908 = vadd.f32 %v4855, %v4879
      %v4909 = vadd.f32 %v4860, %v4879
      %v4910 = vadd.f32 %v4863, %v4879
      %v4911 = vadd.f32 %v4868, %v4879
      %v4912 = vadd.f32 %v4871, %v4879
      %4913 = vst.msk [vmem:[%s608] sm:$0xff] %vm660, %v4881
      %4914 = vst.msk [vmem:[%s608 + $0x8] sm:$0xff] %vm660, %v4882
      %4915 = vst.msk [vmem:[%s608 + $0x10] sm:$0xff] %vm660, %v4883
      %4916 = vst.msk [vmem:[%s608 + $0x18] sm:$0xff] %vm660, %v4884
      %4917 = vst.msk [vmem:[%s608 + $0x20] sm:$0xff] %vm660, %v4885
      %4918 = vst.msk [vmem:[%s608 + $0x28] sm:$0xff] %vm660, %v4886
      %4919 = vst.msk [vmem:[%s608 + $0x30] sm:$0xff] %vm660, %v4887
      %4920 = vst.msk [vmem:[%s608 + $0x38] sm:$0xff] %vm660, %v4888
      %4921 = vst.msk [vmem:[%s608 + $0x40] sm:$0xff] %vm660, %v4889
      %4922 = vst.msk [vmem:[%s608 + $0x48] sm:$0xff] %vm660, %v4890
      %4923 = vst.msk [vmem:[%s608 + $0x50] sm:$0xff] %vm660, %v4891
      %4924 = vst.msk [vmem:[%s608 + $0x58] sm:$0xff] %vm660, %v4892
      %4925 = vst.msk [vmem:[%s608 + $0x60] sm:$0xff] %vm660, %v4893
      %4926 = vst.msk [vmem:[%s608 + $0x68] sm:$0xff] %vm660, %v4894
      %4927 = vst.msk [vmem:[%s608 + $0x70] sm:$0xff] %vm660, %v4895
      %4928 = vst.msk [vmem:[%s608 + $0x78] sm:$0xff] %vm660, %v4896
      %4929 = vst.msk [vmem:[%s608 + $0x80] sm:$0xff] %vm660, %v4897
      %4930 = vst.msk [vmem:[%s608 + $0x88] sm:$0xff] %vm660, %v4898
      %4931 = vst.msk [vmem:[%s608 + $0x90] sm:$0xff] %vm660, %v4899
      %4932 = vst.msk [vmem:[%s608 + $0x98] sm:$0xff] %vm660, %v4900
      %4933 = vst.msk [vmem:[%s608 + $0xa0] sm:$0xff] %vm660, %v4901
      %4934 = vst.msk [vmem:[%s608 + $0xa8] sm:$0xff] %vm660, %v4902
      %4935 = vst.msk [vmem:[%s608 + $0xb0] sm:$0xff] %vm660, %v4903
      %4936 = vst.msk [vmem:[%s608 + $0xb8] sm:$0xff] %vm660, %v4904
      %4937 = vst.msk [vmem:[%s608 + $0xc0] sm:$0xff] %vm660, %v4905
      %4938 = vst.msk [vmem:[%s608 + $0xc8] sm:$0xff] %vm660, %v4906
      %4939 = vst.msk [vmem:[%s608 + $0xd0] sm:$0xff] %vm660, %v4907
      %4940 = vst.msk [vmem:[%s608 + $0xd8] sm:$0xff] %vm660, %v4908
      %4941 = vst.msk [vmem:[%s608 + $0xe0] sm:$0xff] %vm660, %v4909
      %4942 = vst.msk [vmem:[%s608 + $0xe8] sm:$0xff] %vm660, %v4910
      %4943 = vst.msk [vmem:[%s608 + $0xf0] sm:$0xff] %vm660, %v4911
      %4944 = vst.msk [vmem:[%s608 + $0xf8] sm:$0xff] %vm660, %v4912
      %s4945 = smul.u32 2, %s28
      %p4946 = scmp.lt.s32.totalorder %s27, 1
      %s4947 = scalar_select %p4946, %s27, 1
      %p4948 = scmp.lt.s32.totalorder %s4945, 1
      %s4949 = scalar_select %p4948, %s4945, 1
      %s4950 = smul.addr %s4947, 2
      %s4951 = sadd.s32 %s4949, %s4950
      %s4952 = smul.addr %s4951, 8
      %s4953 = scalar_lea.vmem %s9, %s4952
      %s4954 = smul.u32 2, %s28
      %p4955 = scmp.lt.s32.totalorder %s27, 1
      %s4956 = scalar_select %p4955, %s27, 1
      %p4957 = scmp.lt.s32.totalorder %s4954, 1
      %s4958 = scalar_select %p4957, %s4954, 1
      %s4959 = smul.addr %s4956, 2
      %s4960 = sadd.s32 %s4958, %s4959
      %s4961 = smul.addr %s4960, 8
      %s4962 = scalar_lea.vmem %s10, %s4961
      %s4963 = smul.u32 16, %s28
      %p4964 = scmp.lt.s32.totalorder %s27, 1
      %s4965 = scalar_select %p4964, %s27, 1
      %p4966 = scmp.lt.s32.totalorder %s4963, 15
      %s4967 = scalar_select %p4966, %s4963, 15
      %s4968 = smul.addr %s4967, 2
      %s4969 = smul.addr %s4965, 32
      %s4970 = sadd.s32 %s4968, %s4969
      %s4971 = smul.addr %s4970, 8
      %s4972 = scalar_lea.vmem %s11, %s4971
      // Predicated region
      $region57: #{block_forward.7} parent=55 // pred_check
        %p4973 = pneg %p280
      $region58: #{block_forward.7} parent=55 // pred_check_branch
        %4975 = sbr.rel (%p4973) target = $region60
      $region59: #{block_forward.7} parent=55 // pred_region
        %s4976 = smul.u32 2, %s28
      $region60: #{block_forward.7} parent=55 // pred_fallthru
        _
      // Predicated region
      $region61: #{block_forward.7} parent=55 // pred_check
        %p4977 = pneg %p308
      $region62: #{block_forward.7} parent=55 // pred_check_branch
        %4979 = sbr.rel (%p4977) target = $region64
      $region63: #{block_forward.7} parent=55 // pred_region
        %s4980 = smul.u32 2, %s28
      $region64: #{block_forward.7} parent=55 // pred_fallthru
        _
      // Predicated region
      $region65: #{block_forward.7} parent=55 // pred_check
        %p4981 = pneg %p336
      $region66: #{block_forward.7} parent=55 // pred_check_branch
        %4983 = sbr.rel (%p4981) target = $region68
      $region67: #{block_forward.7} parent=55 // pred_region
        %s4984 = smul.u32 16, %s28
      $region68: #{block_forward.7} parent=55 // pred_fallthru
        _
    $region56: #{block_forward.7} parent=5 // pred_fallthru
      _
    %p4985 = scmp.le.s32.totalorder 2, %s18
    // Predicated region
    $region69: #{block_forward.7} parent=5 // pred_check
      %p4986 = pneg %p4985
    $region70: #{block_forward.7} parent=5 // pred_check_branch
      %4988 = sbr.rel (%p4986) target = $region72
    $region71: #{block_forward.7} parent=5 // pred_region
      %s4989 = ssub.s32 %s18, 2
      // Predicated region
      $region73: #{block_forward.7} parent=71 // pred_check
        %p4990 = pneg %p286
      $region74: #{block_forward.7} parent=71 // pred_check_branch
        %4992 = sbr.rel (%p4990) target = $region76
      $region75: #{block_forward.7} parent=71 // pred_region
        %s4993 = smul.u32 2, %s30
        %p4994 = scmp.lt.s32.totalorder %s29, 1
        %s4995 = scalar_select %p4994, %s29, 1
        %p4996 = scmp.lt.s32.totalorder %s4993, 1
        %s4997 = scalar_select %p4996, %s4993, 1
        %s4998 = smul.addr %s4995, 2
        %s4999 = sadd.s32 %s4997, %s4998
        %s5000 = smul.addr %s4999, 8
        %s5001 = scalar_lea.vmem %s9, %s5000
      $region76: #{block_forward.7} parent=71 // pred_fallthru
        _
      // Predicated region
      $region77: #{block_forward.7} parent=71 // pred_check
        %p5002 = pneg %p314
      $region78: #{block_forward.7} parent=71 // pred_check_branch
        %5004 = sbr.rel (%p5002) target = $region80
      $region79: #{block_forward.7} parent=71 // pred_region
        %s5005 = smul.u32 2, %s30
        %p5006 = scmp.lt.s32.totalorder %s29, 1
        %s5007 = scalar_select %p5006, %s29, 1
        %p5008 = scmp.lt.s32.totalorder %s5005, 1
        %s5009 = scalar_select %p5008, %s5005, 1
        %s5010 = smul.addr %s5007, 2
        %s5011 = sadd.s32 %s5009, %s5010
        %s5012 = smul.addr %s5011, 8
        %s5013 = scalar_lea.vmem %s10, %s5012
      $region80: #{block_forward.7} parent=71 // pred_fallthru
        _
      // Predicated region
      $region81: #{block_forward.7} parent=71 // pred_check
        %p5014 = pneg %p342
      $region82: #{block_forward.7} parent=71 // pred_check_branch
        %5016 = sbr.rel (%p5014) target = $region84
      $region83: #{block_forward.7} parent=71 // pred_region
        %s5017 = smul.u32 16, %s30
        %p5018 = scmp.lt.s32.totalorder %s29, 1
        %s5019 = scalar_select %p5018, %s29, 1
        %p5020 = scmp.lt.s32.totalorder %s5017, 15
        %s5021 = scalar_select %p5020, %s5017, 15
        %s5022 = smul.addr %s5021, 2
        %s5023 = smul.addr %s5019, 32
        %s5024 = sadd.s32 %s5022, %s5023
        %s5025 = smul.addr %s5024, 8
        %s5026 = scalar_lea.vmem %s11, %s5025
      $region84: #{block_forward.7} parent=71 // pred_fallthru
        _
    $region72: #{block_forward.7} parent=5 // pred_fallthru
      _
  $region6: #{block_forward.7} parent=0 // loop_footer
    %s22 = sadd.s32 1, %s18
  $region7: #{block_forward.7} parent=0 // loop_footer_branch
    %17 = sbr.rel target = $region3
  $region8: #{block_forward.7} parent=0 // loop_exit
    _

</llo_original>
